<compile_context>
chip_gen: v7x
topology: tpu7x:2x2x1
jax: 0.10.0
libtpu: 0.0.40
codegen_flags: <defaults>
</compile_context>

<pallas_src>
import jax
import jax.numpy as jnp
from jax import lax
from jax.experimental import pallas as pl
from jax.experimental.pallas import tpu as pltpu

KP = 128    # conv1 patch dim 25  -> 128 (lane-dense contraction)
C1P = 128   # conv1 channels 10   -> 128
C2P = 128   # conv2 channels 20   -> 128
NFC = 128   # fc outputs 10       -> 128


# ----------------------------------------------------------------------------
# Fused kernel: conv1 + pool1 + relu + conv2 + pool2 + relu + fc  (one image)
# ----------------------------------------------------------------------------

def _fused_net_kernel(p1_ref, w1_ref, b1_ref, w2_ref, b2_ref, wfc_ref, bfc_ref,
                      out_ref, a1_s):
    f32 = jnp.float32

    # ---- conv1 as MXU matmuls over host-built patches; the four 2x2 pooling
    #      phases are contiguous 144-row blocks, so maxpool = elementwise max.
    w1 = w1_ref[...]                                      # (128, 128)
    m = None
    for q in range(4):
        yq = jnp.dot(p1_ref[0, 144 * q:144 * (q + 1), :], w1,
                     preferred_element_type=f32)          # (144, 128)
        m = yq if m is None else jnp.maximum(m, yq)
    a1 = jnp.maximum(m + b1_ref[...], 0.0)                # (144,128) rows = h*12+w

    # Stage a1 as a (12, 12, 128) spatial tile in VMEM scratch (row chunks keep
    # the 128-lane channel dim intact -> no awkward relayouts).
    for h in range(12):
        a1_s[h] = a1[h * 12:(h + 1) * 12, :]

    # ---- conv2: in-kernel im2col via 25 shifted VMEM window reads, each a
    #      (64,128)x(128,128) MXU matmul accumulated in f32.
    acc = jnp.broadcast_to(b2_ref[...], (64, C2P))        # bias-initialized
    for ki in range(5):
        for kj in range(5):
            win = a1_s[ki:ki + 8, kj:kj + 8, :].reshape(64, C1P)
            acc = acc + jnp.dot(win, w2_ref[ki * 5 + kj],
                                preferred_element_type=f32)
    # acc rows = oi*8 + oj (8x8 spatial), lanes = conv2 channels (padded)

    # ---- maxpool 2x2 + relu on the 8x8 map (8-aligned row slices only) ----
    hp = [jnp.maximum(acc[16 * i:16 * i + 8, :], acc[16 * i + 8:16 * i + 16, :])
          for i in range(4)]                              # each (8,128), rows = oj
    hpc = jnp.concatenate(hp, axis=1)                     # (8, 512) lanes = i*128+c
    rows = [jnp.maximum(hpc[2 * j:2 * j + 1, :], hpc[2 * j + 1:2 * j + 2, :])
            for j in range(4)]                            # each (1, 512)
    a2 = jnp.maximum(jnp.concatenate(rows, axis=1), 0.0)  # (1, 2048): j*512+i*128+c

    # ---- fc: single lane-dense matmul with pre-permuted padded weights ----
    a2b = jnp.broadcast_to(a2, (8, 16 * C2P))             # sublane-broadcast (M=8)
    logits = jnp.dot(a2b, wfc_ref[...], preferred_element_type=f32) + bfc_ref[...]
    out_ref[0] = logits.astype(out_ref.dtype)             # (8, 128), rows identical


# ----------------------------------------------------------------------------
# Host wrapper: patch/weight prep (tiny, fused by XLA) + fused pallas_call
# ----------------------------------------------------------------------------

@jax.jit
def net_forward(x_nchw, params):
    B = x_nchw.shape[0]
    x = x_nchw[:, 0, :, :].astype(jnp.float32)            # (B, 28, 28)

    # conv1 im2col with pool-phase-grouped row ordering:
    # row = q*144 + i*12 + j  where q = pi*2+pj, output pixel = (2i+pi, 2j+pj)
    cols = [x[:, ki:ki + 24, kj:kj + 24] for ki in range(5) for kj in range(5)]
    pat = jnp.stack(cols, axis=-1)                        # (B,24,24,25)
    pat = pat.reshape(B, 12, 2, 12, 2, 25)
    pat = jnp.transpose(pat, (0, 2, 4, 1, 3, 5))          # (B,pi,pj,i,j,25)
    pat = pat.reshape(B, 576, 25)
    p1 = jnp.pad(pat, ((0, 0), (0, 0), (0, KP - 25)))     # (B, 576, 128)

    # weights, zero-padded to lane-dense MXU-friendly shapes
    w1p = jnp.pad(params["w1"].reshape(10, 25).T,
                  ((0, KP - 25), (0, C1P - 10)))                      # (128,128)
    b1p = jnp.pad(params["b1"], (0, C1P - 10)).reshape(1, C1P)

    w2p = jnp.pad(jnp.transpose(params["w2"], (2, 3, 1, 0)).reshape(25, 10, 20),
                  ((0, 0), (0, C1P - 10), (0, C2P - 20)))             # (25,128,128)
    b2p = jnp.pad(params["b2"], (0, C2P - 20)).reshape(1, C2P)

    wfc = jnp.transpose(params["wfc"].reshape(10, 20, 4, 4), (3, 2, 1, 0))
    wfcp = jnp.pad(wfc, ((0, 0), (0, 0), (0, C2P - 20), (0, NFC - 10)))
    wfcp = wfcp.reshape(16 * C2P, NFC)                    # row = j*512 + i*128 + c
    bfcp = jnp.pad(params["bfc"], (0, NFC - 10)).reshape(1, NFC)

    flops = B * 2 * (576 * KP * C1P + 25 * 64 * C1P * C2P + 8 * 16 * C2P * NFC)
    bytes_accessed = 4 * (B * 576 * KP + KP * C1P + 25 * C1P * C2P
                          + 16 * C2P * NFC + B * 8 * NFC)

    out = pl.pallas_call(
        _fused_net_kernel,
        out_shape=jax.ShapeDtypeStruct((B, 8, NFC), jnp.float32),
        grid=(B,),
        in_specs=[
            pl.BlockSpec((1, 576, KP), lambda b: (b, 0, 0)),      # patches
            pl.BlockSpec((KP, C1P), lambda b: (0, 0)),            # w1 (resident)
            pl.BlockSpec((1, C1P), lambda b: (0, 0)),             # b1
            pl.BlockSpec((25, C1P, C2P), lambda b: (0, 0, 0)),    # w2 (resident)
            pl.BlockSpec((1, C2P), lambda b: (0, 0)),             # b2
            pl.BlockSpec((16 * C2P, NFC), lambda b: (0, 0)),      # wfc (resident)
            pl.BlockSpec((1, NFC), lambda b: (0, 0)),             # bfc
        ],
        out_specs=pl.BlockSpec((1, 8, NFC), lambda b: (b, 0, 0)),
        scratch_shapes=[pltpu.VMEM((12, 12, C1P), jnp.float32)],
        compiler_params=pltpu.CompilerParams(
            dimension_semantics=("parallel",),
            vmem_limit_bytes=32 * 1024 * 1024),
        cost_estimate=pl.CostEstimate(flops=flops, transcendentals=0,
                                      bytes_accessed=bytes_accessed),
    )(p1, w1p, b1p, w2p, b2p, wfcp, bfcp)

    return out[:, 0, :10]


# ----------------------------------------------------------------------------
# Pure-JAX reference (correctness check)
# ----------------------------------------------------------------------------

def ref_forward(x_nchw, params):
    def conv(x, w, b):
        y = lax.conv_general_dilated(
            x, w, window_strides=(1, 1), padding="VALID",
            dimension_numbers=("NCHW", "OIHW", "NCHW"))
        return y + b[None, :, None, None]

    def pool_relu(y):
        B, C, H, W = y.shape
        y = y.reshape(B, C, H // 2, 2, W // 2, 2).max(axis=(3, 5))
        return jnp.maximum(y, 0.0)

    B = x_nchw.shape[0]
    y = pool_relu(conv(x_nchw, params["w1"], params["b1"]))
    y = pool_relu(conv(y, params["w2"], params["b2"]))
    y = y.reshape(B, -1)
    return y @ params["wfc"].T + params["bfc"]


def init_params(key):
    k1, k2, k3, k4, k5, k6 = jax.random.split(key, 6)
    return {
        "w1": 0.1 * jax.random.normal(k1, (10, 1, 5, 5), jnp.float32),
        "b1": 0.1 * jax.random.normal(k2, (10,), jnp.float32),
        "w2": 0.1 * jax.random.normal(k3, (20, 10, 5, 5), jnp.float32),
        "b2": 0.1 * jax.random.normal(k4, (20,), jnp.float32),
        "wfc": 0.1 * jax.random.normal(k5, (10, 320), jnp.float32),
        "bfc": 0.1 * jax.random.normal(k6, (10,), jnp.float32),
    }


if __name__ == "__main__":
    key = jax.random.PRNGKey(0)
    pkey, xkey = jax.random.split(key)
    params = init_params(pkey)

    # MNIST geometry is forced by fc(320): 1x28x28 input.
    B = 2
    x = jax.random.normal(xkey, (B, 1, 28, 28), jnp.float32)

    logits = jax.block_until_ready(net_forward(x, params))
    assert logits.shape == (B, 10)

    ref = jax.block_until_ready(ref_forward(x, params))
    assert jnp.allclose(logits, ref, rtol=5e-3, atol=5e-3), (
        "Pallas output mismatch vs JAX reference")

    print("KERNEL_OK")
</pallas_src>

<mosaic_0001>
module attributes {stable_mosaic.version = 11 : i64} {
  func.func @_fused_net_kernel(%arg0: i32, %arg1: memref<1x576x128xf32, #tpu.memory_space<vmem>>, %arg2: memref<128x128xf32, #tpu.memory_space<vmem>>, %arg3: memref<1x128xf32, #tpu.memory_space<vmem>>, %arg4: memref<25x128x128xf32, #tpu.memory_space<vmem>>, %arg5: memref<1x128xf32, #tpu.memory_space<vmem>>, %arg6: memref<2048x128xf32, #tpu.memory_space<vmem>>, %arg7: memref<1x128xf32, #tpu.memory_space<vmem>>, %arg8: memref<1x8x128xf32, #tpu.memory_space<vmem>>, %arg9: memref<12x12x128xf32, #tpu.memory_space<vmem>>) attributes {dimension_semantics = [#tpu.dimension_semantics<parallel>], iteration_bounds = array<i64: 2>, scalar_prefetch = 0 : i64, scratch_operands = 1 : i64, tpu.core_type = #tpu.core_type<tc>, window_params = [{transform_indices = @transform_0, window_bounds = array<i64: 1, 576, 128>}, {pipeline_mode = #tpu.pipeline_mode<synchronous>, transform_indices = @transform_1, window_bounds = array<i64: 128, 128>}, {pipeline_mode = #tpu.pipeline_mode<synchronous>, transform_indices = @transform_2, window_bounds = array<i64: 1, 128>}, {pipeline_mode = #tpu.pipeline_mode<synchronous>, transform_indices = @transform_3, window_bounds = array<i64: 25, 128, 128>}, {pipeline_mode = #tpu.pipeline_mode<synchronous>, transform_indices = @transform_4, window_bounds = array<i64: 1, 128>}, {pipeline_mode = #tpu.pipeline_mode<synchronous>, transform_indices = @transform_5, window_bounds = array<i64: 2048, 128>}, {pipeline_mode = #tpu.pipeline_mode<synchronous>, transform_indices = @transform_6, window_bounds = array<i64: 1, 128>}, {transform_indices = @transform_7, window_bounds = array<i64: 1, 8, 128>}]} {
    %c0 = arith.constant 0 : index
    %c0_0 = arith.constant 0 : index
    %0 = vector.load %arg2[%c0, %c0_0] : memref<128x128xf32, #tpu.memory_space<vmem>>, vector<128x128xf32>
    %c0_1 = arith.constant 0 : index
    %c0_2 = arith.constant 0 : index
    %c0_3 = arith.constant 0 : index
    %1 = vector.load %arg1[%c0_1, %c0_2, %c0_3] : memref<1x576x128xf32, #tpu.memory_space<vmem>>, vector<1x144x128xf32>
    %2 = vector.shape_cast %1 : vector<1x144x128xf32> to vector<144x128xf32>
    %cst = arith.constant dense<0.000000e+00> : vector<144x128xf32>
    %3 = tpu.matmul %2, %0, %cst {dimension_numbers = #tpu.dot_dimension_numbers<[1], [0], [0], [1], [0, 0, 1, 1], [], []>} : vector<144x128xf32>, vector<128x128xf32>, vector<144x128xf32> -> vector<144x128xf32>
    %c0_4 = arith.constant 0 : index
    %c144 = arith.constant 144 : index
    %c0_5 = arith.constant 0 : index
    %4 = vector.load %arg1[%c0_4, %c144, %c0_5] : memref<1x576x128xf32, #tpu.memory_space<vmem>>, vector<1x144x128xf32>
    %5 = vector.shape_cast %4 : vector<1x144x128xf32> to vector<144x128xf32>
    %cst_6 = arith.constant dense<0.000000e+00> : vector<144x128xf32>
    %6 = tpu.matmul %5, %0, %cst_6 {dimension_numbers = #tpu.dot_dimension_numbers<[1], [0], [0], [1], [0, 0, 1, 1], [], []>} : vector<144x128xf32>, vector<128x128xf32>, vector<144x128xf32> -> vector<144x128xf32>
    %7 = arith.maximumf %3, %6 : vector<144x128xf32>
    %c0_7 = arith.constant 0 : index
    %c288 = arith.constant 288 : index
    %c0_8 = arith.constant 0 : index
    %8 = vector.load %arg1[%c0_7, %c288, %c0_8] : memref<1x576x128xf32, #tpu.memory_space<vmem>>, vector<1x144x128xf32>
    %9 = vector.shape_cast %8 : vector<1x144x128xf32> to vector<144x128xf32>
    %cst_9 = arith.constant dense<0.000000e+00> : vector<144x128xf32>
    %10 = tpu.matmul %9, %0, %cst_9 {dimension_numbers = #tpu.dot_dimension_numbers<[1], [0], [0], [1], [0, 0, 1, 1], [], []>} : vector<144x128xf32>, vector<128x128xf32>, vector<144x128xf32> -> vector<144x128xf32>
    %11 = arith.maximumf %7, %10 : vector<144x128xf32>
    %c0_10 = arith.constant 0 : index
    %c432 = arith.constant 432 : index
    %c0_11 = arith.constant 0 : index
    %12 = vector.load %arg1[%c0_10, %c432, %c0_11] : memref<1x576x128xf32, #tpu.memory_space<vmem>>, vector<1x144x128xf32>
    %13 = vector.shape_cast %12 : vector<1x144x128xf32> to vector<144x128xf32>
    %cst_12 = arith.constant dense<0.000000e+00> : vector<144x128xf32>
    %14 = tpu.matmul %13, %0, %cst_12 {dimension_numbers = #tpu.dot_dimension_numbers<[1], [0], [0], [1], [0, 0, 1, 1], [], []>} : vector<144x128xf32>, vector<128x128xf32>, vector<144x128xf32> -> vector<144x128xf32>
    %15 = arith.maximumf %11, %14 : vector<144x128xf32>
    %c0_13 = arith.constant 0 : index
    %c0_14 = arith.constant 0 : index
    %16 = vector.load %arg3[%c0_13, %c0_14] : memref<1x128xf32, #tpu.memory_space<vmem>>, vector<1x128xf32>
    %17 = vector.broadcast %16 : vector<1x128xf32> to vector<144x128xf32>
    %18 = arith.addf %15, %17 : vector<144x128xf32>
    %cst_15 = arith.constant 0.000000e+00 : f32
    %19 = vector.broadcast %cst_15 : f32 to vector<144x128xf32>
    %20 = arith.maximumf %18, %19 : vector<144x128xf32>
    %21 = vector.extract_strided_slice %20 {offsets = [0, 0], sizes = [12, 128], strides = [1, 1]} : vector<144x128xf32> to vector<12x128xf32>
    %c0_16 = arith.constant 0 : index
    %c0_17 = arith.constant 0 : index
    %c0_18 = arith.constant 0 : index
    %22 = vector.load %arg9[%c0_16, %c0_17, %c0_18] : memref<12x12x128xf32, #tpu.memory_space<vmem>>, vector<1x12x128xf32>
    %23 = vector.shape_cast %22 : vector<1x12x128xf32> to vector<12x128xf32>
    %24 = vector.shape_cast %21 : vector<12x128xf32> to vector<1x12x128xf32>
    tpu.vector_store %arg9[%c0_16, %c0_17, %c0_18], %24 {strides = array<i32>} : memref<12x12x128xf32, #tpu.memory_space<vmem>>, vector<1x12x128xf32>,
    %25 = vector.extract_strided_slice %20 {offsets = [12, 0], sizes = [12, 128], strides = [1, 1]} : vector<144x128xf32> to vector<12x128xf32>
    %c1 = arith.constant 1 : index
    %c0_19 = arith.constant 0 : index
    %c0_20 = arith.constant 0 : index
    %26 = vector.load %arg9[%c1, %c0_19, %c0_20] : memref<12x12x128xf32, #tpu.memory_space<vmem>>, vector<1x12x128xf32>
    %27 = vector.shape_cast %26 : vector<1x12x128xf32> to vector<12x128xf32>
    %28 = vector.shape_cast %25 : vector<12x128xf32> to vector<1x12x128xf32>
    tpu.vector_store %arg9[%c1, %c0_19, %c0_20], %28 {strides = array<i32>} : memref<12x12x128xf32, #tpu.memory_space<vmem>>, vector<1x12x128xf32>,
    %29 = vector.extract_strided_slice %20 {offsets = [24, 0], sizes = [12, 128], strides = [1, 1]} : vector<144x128xf32> to vector<12x128xf32>
    %c2 = arith.constant 2 : index
    %c0_21 = arith.constant 0 : index
    %c0_22 = arith.constant 0 : index
    %30 = vector.load %arg9[%c2, %c0_21, %c0_22] : memref<12x12x128xf32, #tpu.memory_space<vmem>>, vector<1x12x128xf32>
    %31 = vector.shape_cast %30 : vector<1x12x128xf32> to vector<12x128xf32>
    %32 = vector.shape_cast %29 : vector<12x128xf32> to vector<1x12x128xf32>
    tpu.vector_store %arg9[%c2, %c0_21, %c0_22], %32 {strides = array<i32>} : memref<12x12x128xf32, #tpu.memory_space<vmem>>, vector<1x12x128xf32>,
    %33 = vector.extract_strided_slice %20 {offsets = [36, 0], sizes = [12, 128], strides = [1, 1]} : vector<144x128xf32> to vector<12x128xf32>
    %c3 = arith.constant 3 : index
    %c0_23 = arith.constant 0 : index
    %c0_24 = arith.constant 0 : index
    %34 = vector.load %arg9[%c3, %c0_23, %c0_24] : memref<12x12x128xf32, #tpu.memory_space<vmem>>, vector<1x12x128xf32>
    %35 = vector.shape_cast %34 : vector<1x12x128xf32> to vector<12x128xf32>
    %36 = vector.shape_cast %33 : vector<12x128xf32> to vector<1x12x128xf32>
    tpu.vector_store %arg9[%c3, %c0_23, %c0_24], %36 {strides = array<i32>} : memref<12x12x128xf32, #tpu.memory_space<vmem>>, vector<1x12x128xf32>,
    %37 = vector.extract_strided_slice %20 {offsets = [48, 0], sizes = [12, 128], strides = [1, 1]} : vector<144x128xf32> to vector<12x128xf32>
    %c4 = arith.constant 4 : index
    %c0_25 = arith.constant 0 : index
    %c0_26 = arith.constant 0 : index
    %38 = vector.load %arg9[%c4, %c0_25, %c0_26] : memref<12x12x128xf32, #tpu.memory_space<vmem>>, vector<1x12x128xf32>
    %39 = vector.shape_cast %38 : vector<1x12x128xf32> to vector<12x128xf32>
    %40 = vector.shape_cast %37 : vector<12x128xf32> to vector<1x12x128xf32>
    tpu.vector_store %arg9[%c4, %c0_25, %c0_26], %40 {strides = array<i32>} : memref<12x12x128xf32, #tpu.memory_space<vmem>>, vector<1x12x128xf32>,
    %41 = vector.extract_strided_slice %20 {offsets = [60, 0], sizes = [12, 128], strides = [1, 1]} : vector<144x128xf32> to vector<12x128xf32>
    %c5 = arith.constant 5 : index
    %c0_27 = arith.constant 0 : index
    %c0_28 = arith.constant 0 : index
    %42 = vector.load %arg9[%c5, %c0_27, %c0_28] : memref<12x12x128xf32, #tpu.memory_space<vmem>>, vector<1x12x128xf32>
    %43 = vector.shape_cast %42 : vector<1x12x128xf32> to vector<12x128xf32>
    %44 = vector.shape_cast %41 : vector<12x128xf32> to vector<1x12x128xf32>
    tpu.vector_store %arg9[%c5, %c0_27, %c0_28], %44 {strides = array<i32>} : memref<12x12x128xf32, #tpu.memory_space<vmem>>, vector<1x12x128xf32>,
    %45 = vector.extract_strided_slice %20 {offsets = [72, 0], sizes = [12, 128], strides = [1, 1]} : vector<144x128xf32> to vector<12x128xf32>
    %c6 = arith.constant 6 : index
    %c0_29 = arith.constant 0 : index
    %c0_30 = arith.constant 0 : index
    %46 = vector.load %arg9[%c6, %c0_29, %c0_30] : memref<12x12x128xf32, #tpu.memory_space<vmem>>, vector<1x12x128xf32>
    %47 = vector.shape_cast %46 : vector<1x12x128xf32> to vector<12x128xf32>
    %48 = vector.shape_cast %45 : vector<12x128xf32> to vector<1x12x128xf32>
    tpu.vector_store %arg9[%c6, %c0_29, %c0_30], %48 {strides = array<i32>} : memref<12x12x128xf32, #tpu.memory_space<vmem>>, vector<1x12x128xf32>,
    %49 = vector.extract_strided_slice %20 {offsets = [84, 0], sizes = [12, 128], strides = [1, 1]} : vector<144x128xf32> to vector<12x128xf32>
    %c7 = arith.constant 7 : index
    %c0_31 = arith.constant 0 : index
    %c0_32 = arith.constant 0 : index
    %50 = vector.load %arg9[%c7, %c0_31, %c0_32] : memref<12x12x128xf32, #tpu.memory_space<vmem>>, vector<1x12x128xf32>
    %51 = vector.shape_cast %50 : vector<1x12x128xf32> to vector<12x128xf32>
    %52 = vector.shape_cast %49 : vector<12x128xf32> to vector<1x12x128xf32>
    tpu.vector_store %arg9[%c7, %c0_31, %c0_32], %52 {strides = array<i32>} : memref<12x12x128xf32, #tpu.memory_space<vmem>>, vector<1x12x128xf32>,
    %53 = vector.extract_strided_slice %20 {offsets = [96, 0], sizes = [12, 128], strides = [1, 1]} : vector<144x128xf32> to vector<12x128xf32>
    %c8 = arith.constant 8 : index
    %c0_33 = arith.constant 0 : index
    %c0_34 = arith.constant 0 : index
    %54 = vector.load %arg9[%c8, %c0_33, %c0_34] : memref<12x12x128xf32, #tpu.memory_space<vmem>>, vector<1x12x128xf32>
    %55 = vector.shape_cast %54 : vector<1x12x128xf32> to vector<12x128xf32>
    %56 = vector.shape_cast %53 : vector<12x128xf32> to vector<1x12x128xf32>
    tpu.vector_store %arg9[%c8, %c0_33, %c0_34], %56 {strides = array<i32>} : memref<12x12x128xf32, #tpu.memory_space<vmem>>, vector<1x12x128xf32>,
    %57 = vector.extract_strided_slice %20 {offsets = [108, 0], sizes = [12, 128], strides = [1, 1]} : vector<144x128xf32> to vector<12x128xf32>
    %c9 = arith.constant 9 : index
    %c0_35 = arith.constant 0 : index
    %c0_36 = arith.constant 0 : index
    %58 = vector.load %arg9[%c9, %c0_35, %c0_36] : memref<12x12x128xf32, #tpu.memory_space<vmem>>, vector<1x12x128xf32>
    %59 = vector.shape_cast %58 : vector<1x12x128xf32> to vector<12x128xf32>
    %60 = vector.shape_cast %57 : vector<12x128xf32> to vector<1x12x128xf32>
    tpu.vector_store %arg9[%c9, %c0_35, %c0_36], %60 {strides = array<i32>} : memref<12x12x128xf32, #tpu.memory_space<vmem>>, vector<1x12x128xf32>,
    %61 = vector.extract_strided_slice %20 {offsets = [120, 0], sizes = [12, 128], strides = [1, 1]} : vector<144x128xf32> to vector<12x128xf32>
    %c10 = arith.constant 10 : index
    %c0_37 = arith.constant 0 : index
    %c0_38 = arith.constant 0 : index
    %62 = vector.load %arg9[%c10, %c0_37, %c0_38] : memref<12x12x128xf32, #tpu.memory_space<vmem>>, vector<1x12x128xf32>
    %63 = vector.shape_cast %62 : vector<1x12x128xf32> to vector<12x128xf32>
    %64 = vector.shape_cast %61 : vector<12x128xf32> to vector<1x12x128xf32>
    tpu.vector_store %arg9[%c10, %c0_37, %c0_38], %64 {strides = array<i32>} : memref<12x12x128xf32, #tpu.memory_space<vmem>>, vector<1x12x128xf32>,
    %65 = vector.extract_strided_slice %20 {offsets = [132, 0], sizes = [12, 128], strides = [1, 1]} : vector<144x128xf32> to vector<12x128xf32>
    %c11 = arith.constant 11 : index
    %c0_39 = arith.constant 0 : index
    %c0_40 = arith.constant 0 : index
    %66 = vector.load %arg9[%c11, %c0_39, %c0_40] : memref<12x12x128xf32, #tpu.memory_space<vmem>>, vector<1x12x128xf32>
    %67 = vector.shape_cast %66 : vector<1x12x128xf32> to vector<12x128xf32>
    %68 = vector.shape_cast %65 : vector<12x128xf32> to vector<1x12x128xf32>
    tpu.vector_store %arg9[%c11, %c0_39, %c0_40], %68 {strides = array<i32>} : memref<12x12x128xf32, #tpu.memory_space<vmem>>, vector<1x12x128xf32>,
    %c0_41 = arith.constant 0 : index
    %c0_42 = arith.constant 0 : index
    %69 = vector.load %arg5[%c0_41, %c0_42] : memref<1x128xf32, #tpu.memory_space<vmem>>, vector<1x128xf32>
    %70 = vector.shape_cast %69 : vector<1x128xf32> to vector<1x128xf32>
    %71 = vector.broadcast %70 : vector<1x128xf32> to vector<64x128xf32>
    %c0_43 = arith.constant 0 : index
    %c0_44 = arith.constant 0 : index
    %c0_45 = arith.constant 0 : index
    %72 = vector.load %arg9[%c0_43, %c0_44, %c0_45] : memref<12x12x128xf32, #tpu.memory_space<vmem>>, vector<8x8x128xf32>
    %73 = vector.shape_cast %72 : vector<8x8x128xf32> to vector<64x128xf32>
    %c0_46 = arith.constant 0 : index
    %c0_47 = arith.constant 0 : index
    %c0_48 = arith.constant 0 : index
    %74 = vector.load %arg4[%c0_46, %c0_47, %c0_48] : memref<25x128x128xf32, #tpu.memory_space<vmem>>, vector<1x128x128xf32>
    %75 = vector.shape_cast %74 : vector<1x128x128xf32> to vector<128x128xf32>
    %cst_49 = arith.constant dense<0.000000e+00> : vector<64x128xf32>
    %76 = tpu.matmul %73, %75, %cst_49 {dimension_numbers = #tpu.dot_dimension_numbers<[1], [0], [0], [1], [0, 0, 1, 1], [], []>} : vector<64x128xf32>, vector<128x128xf32>, vector<64x128xf32> -> vector<64x128xf32>
    %77 = arith.addf %71, %76 : vector<64x128xf32>
    %c0_50 = arith.constant 0 : index
    %c1_51 = arith.constant 1 : index
    %c0_52 = arith.constant 0 : index
    %78 = vector.load %arg9[%c0_50, %c1_51, %c0_52] : memref<12x12x128xf32, #tpu.memory_space<vmem>>, vector<8x8x128xf32>
    %79 = vector.shape_cast %78 : vector<8x8x128xf32> to vector<64x128xf32>
    %c1_53 = arith.constant 1 : index
    %c0_54 = arith.constant 0 : index
    %c0_55 = arith.constant 0 : index
    %80 = vector.load %arg4[%c1_53, %c0_54, %c0_55] : memref<25x128x128xf32, #tpu.memory_space<vmem>>, vector<1x128x128xf32>
    %81 = vector.shape_cast %80 : vector<1x128x128xf32> to vector<128x128xf32>
    %cst_56 = arith.constant dense<0.000000e+00> : vector<64x128xf32>
    %82 = tpu.matmul %79, %81, %cst_56 {dimension_numbers = #tpu.dot_dimension_numbers<[1], [0], [0], [1], [0, 0, 1, 1], [], []>} : vector<64x128xf32>, vector<128x128xf32>, vector<64x128xf32> -> vector<64x128xf32>
    %83 = arith.addf %77, %82 : vector<64x128xf32>
    %c0_57 = arith.constant 0 : index
    %c2_58 = arith.constant 2 : index
    %c0_59 = arith.constant 0 : index
    %84 = vector.load %arg9[%c0_57, %c2_58, %c0_59] : memref<12x12x128xf32, #tpu.memory_space<vmem>>, vector<8x8x128xf32>
    %85 = vector.shape_cast %84 : vector<8x8x128xf32> to vector<64x128xf32>
    %c2_60 = arith.constant 2 : index
    %c0_61 = arith.constant 0 : index
    %c0_62 = arith.constant 0 : index
    %86 = vector.load %arg4[%c2_60, %c0_61, %c0_62] : memref<25x128x128xf32, #tpu.memory_space<vmem>>, vector<1x128x128xf32>
    %87 = vector.shape_cast %86 : vector<1x128x128xf32> to vector<128x128xf32>
    %cst_63 = arith.constant dense<0.000000e+00> : vector<64x128xf32>
    %88 = tpu.matmul %85, %87, %cst_63 {dimension_numbers = #tpu.dot_dimension_numbers<[1], [0], [0], [1], [0, 0, 1, 1], [], []>} : vector<64x128xf32>, vector<128x128xf32>, vector<64x128xf32> -> vector<64x128xf32>
    %89 = arith.addf %83, %88 : vector<64x128xf32>
    %c0_64 = arith.constant 0 : index
    %c3_65 = arith.constant 3 : index
    %c0_66 = arith.constant 0 : index
    %90 = vector.load %arg9[%c0_64, %c3_65, %c0_66] : memref<12x12x128xf32, #tpu.memory_space<vmem>>, vector<8x8x128xf32>
    %91 = vector.shape_cast %90 : vector<8x8x128xf32> to vector<64x128xf32>
    %c3_67 = arith.constant 3 : index
    %c0_68 = arith.constant 0 : index
    %c0_69 = arith.constant 0 : index
    %92 = vector.load %arg4[%c3_67, %c0_68, %c0_69] : memref<25x128x128xf32, #tpu.memory_space<vmem>>, vector<1x128x128xf32>
    %93 = vector.shape_cast %92 : vector<1x128x128xf32> to vector<128x128xf32>
    %cst_70 = arith.constant dense<0.000000e+00> : vector<64x128xf32>
    %94 = tpu.matmul %91, %93, %cst_70 {dimension_numbers = #tpu.dot_dimension_numbers<[1], [0], [0], [1], [0, 0, 1, 1], [], []>} : vector<64x128xf32>, vector<128x128xf32>, vector<64x128xf32> -> vector<64x128xf32>
    %95 = arith.addf %89, %94 : vector<64x128xf32>
    %c0_71 = arith.constant 0 : index
    %c4_72 = arith.constant 4 : index
    %c0_73 = arith.constant 0 : index
    %96 = vector.load %arg9[%c0_71, %c4_72, %c0_73] : memref<12x12x128xf32, #tpu.memory_space<vmem>>, vector<8x8x128xf32>
    %97 = vector.shape_cast %96 : vector<8x8x128xf32> to vector<64x128xf32>
    %c4_74 = arith.constant 4 : index
    %c0_75 = arith.constant 0 : index
    %c0_76 = arith.constant 0 : index
    %98 = vector.load %arg4[%c4_74, %c0_75, %c0_76] : memref<25x128x128xf32, #tpu.memory_space<vmem>>, vector<1x128x128xf32>
    %99 = vector.shape_cast %98 : vector<1x128x128xf32> to vector<128x128xf32>
    %cst_77 = arith.constant dense<0.000000e+00> : vector<64x128xf32>
    %100 = tpu.matmul %97, %99, %cst_77 {dimension_numbers = #tpu.dot_dimension_numbers<[1], [0], [0], [1], [0, 0, 1, 1], [], []>} : vector<64x128xf32>, vector<128x128xf32>, vector<64x128xf32> -> vector<64x128xf32>
    %101 = arith.addf %95, %100 : vector<64x128xf32>
    %c1_78 = arith.constant 1 : index
    %c0_79 = arith.constant 0 : index
    %c0_80 = arith.constant 0 : index
    %102 = vector.load %arg9[%c1_78, %c0_79, %c0_80] : memref<12x12x128xf32, #tpu.memory_space<vmem>>, vector<8x8x128xf32>
    %103 = vector.shape_cast %102 : vector<8x8x128xf32> to vector<64x128xf32>
    %c5_81 = arith.constant 5 : index
    %c0_82 = arith.constant 0 : index
    %c0_83 = arith.constant 0 : index
    %104 = vector.load %arg4[%c5_81, %c0_82, %c0_83] : memref<25x128x128xf32, #tpu.memory_space<vmem>>, vector<1x128x128xf32>
    %105 = vector.shape_cast %104 : vector<1x128x128xf32> to vector<128x128xf32>
    %cst_84 = arith.constant dense<0.000000e+00> : vector<64x128xf32>
    %106 = tpu.matmul %103, %105, %cst_84 {dimension_numbers = #tpu.dot_dimension_numbers<[1], [0], [0], [1], [0, 0, 1, 1], [], []>} : vector<64x128xf32>, vector<128x128xf32>, vector<64x128xf32> -> vector<64x128xf32>
    %107 = arith.addf %101, %106 : vector<64x128xf32>
    %c1_85 = arith.constant 1 : index
    %c1_86 = arith.constant 1 : index
    %c0_87 = arith.constant 0 : index
    %108 = vector.load %arg9[%c1_85, %c1_86, %c0_87] : memref<12x12x128xf32, #tpu.memory_space<vmem>>, vector<8x8x128xf32>
    %109 = vector.shape_cast %108 : vector<8x8x128xf32> to vector<64x128xf32>
    %c6_88 = arith.constant 6 : index
    %c0_89 = arith.constant 0 : index
    %c0_90 = arith.constant 0 : index
    %110 = vector.load %arg4[%c6_88, %c0_89, %c0_90] : memref<25x128x128xf32, #tpu.memory_space<vmem>>, vector<1x128x128xf32>
    %111 = vector.shape_cast %110 : vector<1x128x128xf32> to vector<128x128xf32>
    %cst_91 = arith.constant dense<0.000000e+00> : vector<64x128xf32>
    %112 = tpu.matmul %109, %111, %cst_91 {dimension_numbers = #tpu.dot_dimension_numbers<[1], [0], [0], [1], [0, 0, 1, 1], [], []>} : vector<64x128xf32>, vector<128x128xf32>, vector<64x128xf32> -> vector<64x128xf32>
    %113 = arith.addf %107, %112 : vector<64x128xf32>
    %c1_92 = arith.constant 1 : index
    %c2_93 = arith.constant 2 : index
    %c0_94 = arith.constant 0 : index
    %114 = vector.load %arg9[%c1_92, %c2_93, %c0_94] : memref<12x12x128xf32, #tpu.memory_space<vmem>>, vector<8x8x128xf32>
    %115 = vector.shape_cast %114 : vector<8x8x128xf32> to vector<64x128xf32>
    %c7_95 = arith.constant 7 : index
    %c0_96 = arith.constant 0 : index
    %c0_97 = arith.constant 0 : index
    %116 = vector.load %arg4[%c7_95, %c0_96, %c0_97] : memref<25x128x128xf32, #tpu.memory_space<vmem>>, vector<1x128x128xf32>
    %117 = vector.shape_cast %116 : vector<1x128x128xf32> to vector<128x128xf32>
    %cst_98 = arith.constant dense<0.000000e+00> : vector<64x128xf32>
    %118 = tpu.matmul %115, %117, %cst_98 {dimension_numbers = #tpu.dot_dimension_numbers<[1], [0], [0], [1], [0, 0, 1, 1], [], []>} : vector<64x128xf32>, vector<128x128xf32>, vector<64x128xf32> -> vector<64x128xf32>
    %119 = arith.addf %113, %118 : vector<64x128xf32>
    %c1_99 = arith.constant 1 : index
    %c3_100 = arith.constant 3 : index
    %c0_101 = arith.constant 0 : index
    %120 = vector.load %arg9[%c1_99, %c3_100, %c0_101] : memref<12x12x128xf32, #tpu.memory_space<vmem>>, vector<8x8x128xf32>
    %121 = vector.shape_cast %120 : vector<8x8x128xf32> to vector<64x128xf32>
    %c8_102 = arith.constant 8 : index
    %c0_103 = arith.constant 0 : index
    %c0_104 = arith.constant 0 : index
    %122 = vector.load %arg4[%c8_102, %c0_103, %c0_104] : memref<25x128x128xf32, #tpu.memory_space<vmem>>, vector<1x128x128xf32>
    %123 = vector.shape_cast %122 : vector<1x128x128xf32> to vector<128x128xf32>
    %cst_105 = arith.constant dense<0.000000e+00> : vector<64x128xf32>
    %124 = tpu.matmul %121, %123, %cst_105 {dimension_numbers = #tpu.dot_dimension_numbers<[1], [0], [0], [1], [0, 0, 1, 1], [], []>} : vector<64x128xf32>, vector<128x128xf32>, vector<64x128xf32> -> vector<64x128xf32>
    %125 = arith.addf %119, %124 : vector<64x128xf32>
    %c1_106 = arith.constant 1 : index
    %c4_107 = arith.constant 4 : index
    %c0_108 = arith.constant 0 : index
    %126 = vector.load %arg9[%c1_106, %c4_107, %c0_108] : memref<12x12x128xf32, #tpu.memory_space<vmem>>, vector<8x8x128xf32>
    %127 = vector.shape_cast %126 : vector<8x8x128xf32> to vector<64x128xf32>
    %c9_109 = arith.constant 9 : index
    %c0_110 = arith.constant 0 : index
    %c0_111 = arith.constant 0 : index
    %128 = vector.load %arg4[%c9_109, %c0_110, %c0_111] : memref<25x128x128xf32, #tpu.memory_space<vmem>>, vector<1x128x128xf32>
    %129 = vector.shape_cast %128 : vector<1x128x128xf32> to vector<128x128xf32>
    %cst_112 = arith.constant dense<0.000000e+00> : vector<64x128xf32>
    %130 = tpu.matmul %127, %129, %cst_112 {dimension_numbers = #tpu.dot_dimension_numbers<[1], [0], [0], [1], [0, 0, 1, 1], [], []>} : vector<64x128xf32>, vector<128x128xf32>, vector<64x128xf32> -> vector<64x128xf32>
    %131 = arith.addf %125, %130 : vector<64x128xf32>
    %c2_113 = arith.constant 2 : index
    %c0_114 = arith.constant 0 : index
    %c0_115 = arith.constant 0 : index
    %132 = vector.load %arg9[%c2_113, %c0_114, %c0_115] : memref<12x12x128xf32, #tpu.memory_space<vmem>>, vector<8x8x128xf32>
    %133 = vector.shape_cast %132 : vector<8x8x128xf32> to vector<64x128xf32>
    %c10_116 = arith.constant 10 : index
    %c0_117 = arith.constant 0 : index
    %c0_118 = arith.constant 0 : index
    %134 = vector.load %arg4[%c10_116, %c0_117, %c0_118] : memref<25x128x128xf32, #tpu.memory_space<vmem>>, vector<1x128x128xf32>
    %135 = vector.shape_cast %134 : vector<1x128x128xf32> to vector<128x128xf32>
    %cst_119 = arith.constant dense<0.000000e+00> : vector<64x128xf32>
    %136 = tpu.matmul %133, %135, %cst_119 {dimension_numbers = #tpu.dot_dimension_numbers<[1], [0], [0], [1], [0, 0, 1, 1], [], []>} : vector<64x128xf32>, vector<128x128xf32>, vector<64x128xf32> -> vector<64x128xf32>
    %137 = arith.addf %131, %136 : vector<64x128xf32>
    %c2_120 = arith.constant 2 : index
    %c1_121 = arith.constant 1 : index
    %c0_122 = arith.constant 0 : index
    %138 = vector.load %arg9[%c2_120, %c1_121, %c0_122] : memref<12x12x128xf32, #tpu.memory_space<vmem>>, vector<8x8x128xf32>
    %139 = vector.shape_cast %138 : vector<8x8x128xf32> to vector<64x128xf32>
    %c11_123 = arith.constant 11 : index
    %c0_124 = arith.constant 0 : index
    %c0_125 = arith.constant 0 : index
    %140 = vector.load %arg4[%c11_123, %c0_124, %c0_125] : memref<25x128x128xf32, #tpu.memory_space<vmem>>, vector<1x128x128xf32>
    %141 = vector.shape_cast %140 : vector<1x128x128xf32> to vector<128x128xf32>
    %cst_126 = arith.constant dense<0.000000e+00> : vector<64x128xf32>
    %142 = tpu.matmul %139, %141, %cst_126 {dimension_numbers = #tpu.dot_dimension_numbers<[1], [0], [0], [1], [0, 0, 1, 1], [], []>} : vector<64x128xf32>, vector<128x128xf32>, vector<64x128xf32> -> vector<64x128xf32>
    %143 = arith.addf %137, %142 : vector<64x128xf32>
    %c2_127 = arith.constant 2 : index
    %c2_128 = arith.constant 2 : index
    %c0_129 = arith.constant 0 : index
    %144 = vector.load %arg9[%c2_127, %c2_128, %c0_129] : memref<12x12x128xf32, #tpu.memory_space<vmem>>, vector<8x8x128xf32>
    %145 = vector.shape_cast %144 : vector<8x8x128xf32> to vector<64x128xf32>
    %c12 = arith.constant 12 : index
    %c0_130 = arith.constant 0 : index
    %c0_131 = arith.constant 0 : index
    %146 = vector.load %arg4[%c12, %c0_130, %c0_131] : memref<25x128x128xf32, #tpu.memory_space<vmem>>, vector<1x128x128xf32>
    %147 = vector.shape_cast %146 : vector<1x128x128xf32> to vector<128x128xf32>
    %cst_132 = arith.constant dense<0.000000e+00> : vector<64x128xf32>
    %148 = tpu.matmul %145, %147, %cst_132 {dimension_numbers = #tpu.dot_dimension_numbers<[1], [0], [0], [1], [0, 0, 1, 1], [], []>} : vector<64x128xf32>, vector<128x128xf32>, vector<64x128xf32> -> vector<64x128xf32>
    %149 = arith.addf %143, %148 : vector<64x128xf32>
    %c2_133 = arith.constant 2 : index
    %c3_134 = arith.constant 3 : index
    %c0_135 = arith.constant 0 : index
    %150 = vector.load %arg9[%c2_133, %c3_134, %c0_135] : memref<12x12x128xf32, #tpu.memory_space<vmem>>, vector<8x8x128xf32>
    %151 = vector.shape_cast %150 : vector<8x8x128xf32> to vector<64x128xf32>
    %c13 = arith.constant 13 : index
    %c0_136 = arith.constant 0 : index
    %c0_137 = arith.constant 0 : index
    %152 = vector.load %arg4[%c13, %c0_136, %c0_137] : memref<25x128x128xf32, #tpu.memory_space<vmem>>, vector<1x128x128xf32>
    %153 = vector.shape_cast %152 : vector<1x128x128xf32> to vector<128x128xf32>
    %cst_138 = arith.constant dense<0.000000e+00> : vector<64x128xf32>
    %154 = tpu.matmul %151, %153, %cst_138 {dimension_numbers = #tpu.dot_dimension_numbers<[1], [0], [0], [1], [0, 0, 1, 1], [], []>} : vector<64x128xf32>, vector<128x128xf32>, vector<64x128xf32> -> vector<64x128xf32>
    %155 = arith.addf %149, %154 : vector<64x128xf32>
    %c2_139 = arith.constant 2 : index
    %c4_140 = arith.constant 4 : index
    %c0_141 = arith.constant 0 : index
    %156 = vector.load %arg9[%c2_139, %c4_140, %c0_141] : memref<12x12x128xf32, #tpu.memory_space<vmem>>, vector<8x8x128xf32>
    %157 = vector.shape_cast %156 : vector<8x8x128xf32> to vector<64x128xf32>
    %c14 = arith.constant 14 : index
    %c0_142 = arith.constant 0 : index
    %c0_143 = arith.constant 0 : index
    %158 = vector.load %arg4[%c14, %c0_142, %c0_143] : memref<25x128x128xf32, #tpu.memory_space<vmem>>, vector<1x128x128xf32>
    %159 = vector.shape_cast %158 : vector<1x128x128xf32> to vector<128x128xf32>
    %cst_144 = arith.constant dense<0.000000e+00> : vector<64x128xf32>
    %160 = tpu.matmul %157, %159, %cst_144 {dimension_numbers = #tpu.dot_dimension_numbers<[1], [0], [0], [1], [0, 0, 1, 1], [], []>} : vector<64x128xf32>, vector<128x128xf32>, vector<64x128xf32> -> vector<64x128xf32>
    %161 = arith.addf %155, %160 : vector<64x128xf32>
    %c3_145 = arith.constant 3 : index
    %c0_146 = arith.constant 0 : index
    %c0_147 = arith.constant 0 : index
    %162 = vector.load %arg9[%c3_145, %c0_146, %c0_147] : memref<12x12x128xf32, #tpu.memory_space<vmem>>, vector<8x8x128xf32>
    %163 = vector.shape_cast %162 : vector<8x8x128xf32> to vector<64x128xf32>
    %c15 = arith.constant 15 : index
    %c0_148 = arith.constant 0 : index
    %c0_149 = arith.constant 0 : index
    %164 = vector.load %arg4[%c15, %c0_148, %c0_149] : memref<25x128x128xf32, #tpu.memory_space<vmem>>, vector<1x128x128xf32>
    %165 = vector.shape_cast %164 : vector<1x128x128xf32> to vector<128x128xf32>
    %cst_150 = arith.constant dense<0.000000e+00> : vector<64x128xf32>
    %166 = tpu.matmul %163, %165, %cst_150 {dimension_numbers = #tpu.dot_dimension_numbers<[1], [0], [0], [1], [0, 0, 1, 1], [], []>} : vector<64x128xf32>, vector<128x128xf32>, vector<64x128xf32> -> vector<64x128xf32>
    %167 = arith.addf %161, %166 : vector<64x128xf32>
    %c3_151 = arith.constant 3 : index
    %c1_152 = arith.constant 1 : index
    %c0_153 = arith.constant 0 : index
    %168 = vector.load %arg9[%c3_151, %c1_152, %c0_153] : memref<12x12x128xf32, #tpu.memory_space<vmem>>, vector<8x8x128xf32>
    %169 = vector.shape_cast %168 : vector<8x8x128xf32> to vector<64x128xf32>
    %c16 = arith.constant 16 : index
    %c0_154 = arith.constant 0 : index
    %c0_155 = arith.constant 0 : index
    %170 = vector.load %arg4[%c16, %c0_154, %c0_155] : memref<25x128x128xf32, #tpu.memory_space<vmem>>, vector<1x128x128xf32>
    %171 = vector.shape_cast %170 : vector<1x128x128xf32> to vector<128x128xf32>
    %cst_156 = arith.constant dense<0.000000e+00> : vector<64x128xf32>
    %172 = tpu.matmul %169, %171, %cst_156 {dimension_numbers = #tpu.dot_dimension_numbers<[1], [0], [0], [1], [0, 0, 1, 1], [], []>} : vector<64x128xf32>, vector<128x128xf32>, vector<64x128xf32> -> vector<64x128xf32>
    %173 = arith.addf %167, %172 : vector<64x128xf32>
    %c3_157 = arith.constant 3 : index
    %c2_158 = arith.constant 2 : index
    %c0_159 = arith.constant 0 : index
    %174 = vector.load %arg9[%c3_157, %c2_158, %c0_159] : memref<12x12x128xf32, #tpu.memory_space<vmem>>, vector<8x8x128xf32>
    %175 = vector.shape_cast %174 : vector<8x8x128xf32> to vector<64x128xf32>
    %c17 = arith.constant 17 : index
    %c0_160 = arith.constant 0 : index
    %c0_161 = arith.constant 0 : index
    %176 = vector.load %arg4[%c17, %c0_160, %c0_161] : memref<25x128x128xf32, #tpu.memory_space<vmem>>, vector<1x128x128xf32>
    %177 = vector.shape_cast %176 : vector<1x128x128xf32> to vector<128x128xf32>
    %cst_162 = arith.constant dense<0.000000e+00> : vector<64x128xf32>
    %178 = tpu.matmul %175, %177, %cst_162 {dimension_numbers = #tpu.dot_dimension_numbers<[1], [0], [0], [1], [0, 0, 1, 1], [], []>} : vector<64x128xf32>, vector<128x128xf32>, vector<64x128xf32> -> vector<64x128xf32>
    %179 = arith.addf %173, %178 : vector<64x128xf32>
    %c3_163 = arith.constant 3 : index
    %c3_164 = arith.constant 3 : index
    %c0_165 = arith.constant 0 : index
    %180 = vector.load %arg9[%c3_163, %c3_164, %c0_165] : memref<12x12x128xf32, #tpu.memory_space<vmem>>, vector<8x8x128xf32>
    %181 = vector.shape_cast %180 : vector<8x8x128xf32> to vector<64x128xf32>
    %c18 = arith.constant 18 : index
    %c0_166 = arith.constant 0 : index
    %c0_167 = arith.constant 0 : index
    %182 = vector.load %arg4[%c18, %c0_166, %c0_167] : memref<25x128x128xf32, #tpu.memory_space<vmem>>, vector<1x128x128xf32>
    %183 = vector.shape_cast %182 : vector<1x128x128xf32> to vector<128x128xf32>
    %cst_168 = arith.constant dense<0.000000e+00> : vector<64x128xf32>
    %184 = tpu.matmul %181, %183, %cst_168 {dimension_numbers = #tpu.dot_dimension_numbers<[1], [0], [0], [1], [0, 0, 1, 1], [], []>} : vector<64x128xf32>, vector<128x128xf32>, vector<64x128xf32> -> vector<64x128xf32>
    %185 = arith.addf %179, %184 : vector<64x128xf32>
    %c3_169 = arith.constant 3 : index
    %c4_170 = arith.constant 4 : index
    %c0_171 = arith.constant 0 : index
    %186 = vector.load %arg9[%c3_169, %c4_170, %c0_171] : memref<12x12x128xf32, #tpu.memory_space<vmem>>, vector<8x8x128xf32>
    %187 = vector.shape_cast %186 : vector<8x8x128xf32> to vector<64x128xf32>
    %c19 = arith.constant 19 : index
    %c0_172 = arith.constant 0 : index
    %c0_173 = arith.constant 0 : index
    %188 = vector.load %arg4[%c19, %c0_172, %c0_173] : memref<25x128x128xf32, #tpu.memory_space<vmem>>, vector<1x128x128xf32>
    %189 = vector.shape_cast %188 : vector<1x128x128xf32> to vector<128x128xf32>
    %cst_174 = arith.constant dense<0.000000e+00> : vector<64x128xf32>
    %190 = tpu.matmul %187, %189, %cst_174 {dimension_numbers = #tpu.dot_dimension_numbers<[1], [0], [0], [1], [0, 0, 1, 1], [], []>} : vector<64x128xf32>, vector<128x128xf32>, vector<64x128xf32> -> vector<64x128xf32>
    %191 = arith.addf %185, %190 : vector<64x128xf32>
    %c4_175 = arith.constant 4 : index
    %c0_176 = arith.constant 0 : index
    %c0_177 = arith.constant 0 : index
    %192 = vector.load %arg9[%c4_175, %c0_176, %c0_177] : memref<12x12x128xf32, #tpu.memory_space<vmem>>, vector<8x8x128xf32>
    %193 = vector.shape_cast %192 : vector<8x8x128xf32> to vector<64x128xf32>
    %c20 = arith.constant 20 : index
    %c0_178 = arith.constant 0 : index
    %c0_179 = arith.constant 0 : index
    %194 = vector.load %arg4[%c20, %c0_178, %c0_179] : memref<25x128x128xf32, #tpu.memory_space<vmem>>, vector<1x128x128xf32>
    %195 = vector.shape_cast %194 : vector<1x128x128xf32> to vector<128x128xf32>
    %cst_180 = arith.constant dense<0.000000e+00> : vector<64x128xf32>
    %196 = tpu.matmul %193, %195, %cst_180 {dimension_numbers = #tpu.dot_dimension_numbers<[1], [0], [0], [1], [0, 0, 1, 1], [], []>} : vector<64x128xf32>, vector<128x128xf32>, vector<64x128xf32> -> vector<64x128xf32>
    %197 = arith.addf %191, %196 : vector<64x128xf32>
    %c4_181 = arith.constant 4 : index
    %c1_182 = arith.constant 1 : index
    %c0_183 = arith.constant 0 : index
    %198 = vector.load %arg9[%c4_181, %c1_182, %c0_183] : memref<12x12x128xf32, #tpu.memory_space<vmem>>, vector<8x8x128xf32>
    %199 = vector.shape_cast %198 : vector<8x8x128xf32> to vector<64x128xf32>
    %c21 = arith.constant 21 : index
    %c0_184 = arith.constant 0 : index
    %c0_185 = arith.constant 0 : index
    %200 = vector.load %arg4[%c21, %c0_184, %c0_185] : memref<25x128x128xf32, #tpu.memory_space<vmem>>, vector<1x128x128xf32>
    %201 = vector.shape_cast %200 : vector<1x128x128xf32> to vector<128x128xf32>
    %cst_186 = arith.constant dense<0.000000e+00> : vector<64x128xf32>
    %202 = tpu.matmul %199, %201, %cst_186 {dimension_numbers = #tpu.dot_dimension_numbers<[1], [0], [0], [1], [0, 0, 1, 1], [], []>} : vector<64x128xf32>, vector<128x128xf32>, vector<64x128xf32> -> vector<64x128xf32>
    %203 = arith.addf %197, %202 : vector<64x128xf32>
    %c4_187 = arith.constant 4 : index
    %c2_188 = arith.constant 2 : index
    %c0_189 = arith.constant 0 : index
    %204 = vector.load %arg9[%c4_187, %c2_188, %c0_189] : memref<12x12x128xf32, #tpu.memory_space<vmem>>, vector<8x8x128xf32>
    %205 = vector.shape_cast %204 : vector<8x8x128xf32> to vector<64x128xf32>
    %c22 = arith.constant 22 : index
    %c0_190 = arith.constant 0 : index
    %c0_191 = arith.constant 0 : index
    %206 = vector.load %arg4[%c22, %c0_190, %c0_191] : memref<25x128x128xf32, #tpu.memory_space<vmem>>, vector<1x128x128xf32>
    %207 = vector.shape_cast %206 : vector<1x128x128xf32> to vector<128x128xf32>
    %cst_192 = arith.constant dense<0.000000e+00> : vector<64x128xf32>
    %208 = tpu.matmul %205, %207, %cst_192 {dimension_numbers = #tpu.dot_dimension_numbers<[1], [0], [0], [1], [0, 0, 1, 1], [], []>} : vector<64x128xf32>, vector<128x128xf32>, vector<64x128xf32> -> vector<64x128xf32>
    %209 = arith.addf %203, %208 : vector<64x128xf32>
    %c4_193 = arith.constant 4 : index
    %c3_194 = arith.constant 3 : index
    %c0_195 = arith.constant 0 : index
    %210 = vector.load %arg9[%c4_193, %c3_194, %c0_195] : memref<12x12x128xf32, #tpu.memory_space<vmem>>, vector<8x8x128xf32>
    %211 = vector.shape_cast %210 : vector<8x8x128xf32> to vector<64x128xf32>
    %c23 = arith.constant 23 : index
    %c0_196 = arith.constant 0 : index
    %c0_197 = arith.constant 0 : index
    %212 = vector.load %arg4[%c23, %c0_196, %c0_197] : memref<25x128x128xf32, #tpu.memory_space<vmem>>, vector<1x128x128xf32>
    %213 = vector.shape_cast %212 : vector<1x128x128xf32> to vector<128x128xf32>
    %cst_198 = arith.constant dense<0.000000e+00> : vector<64x128xf32>
    %214 = tpu.matmul %211, %213, %cst_198 {dimension_numbers = #tpu.dot_dimension_numbers<[1], [0], [0], [1], [0, 0, 1, 1], [], []>} : vector<64x128xf32>, vector<128x128xf32>, vector<64x128xf32> -> vector<64x128xf32>
    %215 = arith.addf %209, %214 : vector<64x128xf32>
    %c4_199 = arith.constant 4 : index
    %c4_200 = arith.constant 4 : index
    %c0_201 = arith.constant 0 : index
    %216 = vector.load %arg9[%c4_199, %c4_200, %c0_201] : memref<12x12x128xf32, #tpu.memory_space<vmem>>, vector<8x8x128xf32>
    %217 = vector.shape_cast %216 : vector<8x8x128xf32> to vector<64x128xf32>
    %c24 = arith.constant 24 : index
    %c0_202 = arith.constant 0 : index
    %c0_203 = arith.constant 0 : index
    %218 = vector.load %arg4[%c24, %c0_202, %c0_203] : memref<25x128x128xf32, #tpu.memory_space<vmem>>, vector<1x128x128xf32>
    %219 = vector.shape_cast %218 : vector<1x128x128xf32> to vector<128x128xf32>
    %cst_204 = arith.constant dense<0.000000e+00> : vector<64x128xf32>
    %220 = tpu.matmul %217, %219, %cst_204 {dimension_numbers = #tpu.dot_dimension_numbers<[1], [0], [0], [1], [0, 0, 1, 1], [], []>} : vector<64x128xf32>, vector<128x128xf32>, vector<64x128xf32> -> vector<64x128xf32>
    %221 = arith.addf %215, %220 : vector<64x128xf32>
    %222 = vector.extract_strided_slice %221 {offsets = [0, 0], sizes = [8, 128], strides = [1, 1]} : vector<64x128xf32> to vector<8x128xf32>
    %223 = vector.extract_strided_slice %221 {offsets = [8, 0], sizes = [8, 128], strides = [1, 1]} : vector<64x128xf32> to vector<8x128xf32>
    %224 = arith.maximumf %222, %223 : vector<8x128xf32>
    %225 = vector.extract_strided_slice %221 {offsets = [16, 0], sizes = [8, 128], strides = [1, 1]} : vector<64x128xf32> to vector<8x128xf32>
    %226 = vector.extract_strided_slice %221 {offsets = [24, 0], sizes = [8, 128], strides = [1, 1]} : vector<64x128xf32> to vector<8x128xf32>
    %227 = arith.maximumf %225, %226 : vector<8x128xf32>
    %228 = vector.extract_strided_slice %221 {offsets = [32, 0], sizes = [8, 128], strides = [1, 1]} : vector<64x128xf32> to vector<8x128xf32>
    %229 = vector.extract_strided_slice %221 {offsets = [40, 0], sizes = [8, 128], strides = [1, 1]} : vector<64x128xf32> to vector<8x128xf32>
    %230 = arith.maximumf %228, %229 : vector<8x128xf32>
    %231 = vector.extract_strided_slice %221 {offsets = [48, 0], sizes = [8, 128], strides = [1, 1]} : vector<64x128xf32> to vector<8x128xf32>
    %232 = vector.extract_strided_slice %221 {offsets = [56, 0], sizes = [8, 128], strides = [1, 1]} : vector<64x128xf32> to vector<8x128xf32>
    %233 = arith.maximumf %231, %232 : vector<8x128xf32>
    %234 = tpu.concatenate %224, %227, %230, %233 in 1 : vector<8x128xf32>, vector<8x128xf32>, vector<8x128xf32>, vector<8x128xf32> -> vector<8x512xf32>
    %235 = vector.extract_strided_slice %234 {offsets = [0, 0], sizes = [1, 512], strides = [1, 1]} : vector<8x512xf32> to vector<1x512xf32>
    %236 = vector.extract_strided_slice %234 {offsets = [1, 0], sizes = [1, 512], strides = [1, 1]} : vector<8x512xf32> to vector<1x512xf32>
    %237 = arith.maximumf %235, %236 : vector<1x512xf32>
    %238 = vector.extract_strided_slice %234 {offsets = [2, 0], sizes = [1, 512], strides = [1, 1]} : vector<8x512xf32> to vector<1x512xf32>
    %239 = vector.extract_strided_slice %234 {offsets = [3, 0], sizes = [1, 512], strides = [1, 1]} : vector<8x512xf32> to vector<1x512xf32>
    %240 = arith.maximumf %238, %239 : vector<1x512xf32>
    %241 = vector.extract_strided_slice %234 {offsets = [4, 0], sizes = [1, 512], strides = [1, 1]} : vector<8x512xf32> to vector<1x512xf32>
    %242 = vector.extract_strided_slice %234 {offsets = [5, 0], sizes = [1, 512], strides = [1, 1]} : vector<8x512xf32> to vector<1x512xf32>
    %243 = arith.maximumf %241, %242 : vector<1x512xf32>
    %244 = vector.extract_strided_slice %234 {offsets = [6, 0], sizes = [1, 512], strides = [1, 1]} : vector<8x512xf32> to vector<1x512xf32>
    %245 = vector.extract_strided_slice %234 {offsets = [7, 0], sizes = [1, 512], strides = [1, 1]} : vector<8x512xf32> to vector<1x512xf32>
    %246 = arith.maximumf %244, %245 : vector<1x512xf32>
    %247 = tpu.concatenate %237, %240, %243, %246 in 1 : vector<1x512xf32>, vector<1x512xf32>, vector<1x512xf32>, vector<1x512xf32> -> vector<1x2048xf32>
    %cst_205 = arith.constant 0.000000e+00 : f32
    %248 = vector.broadcast %cst_205 : f32 to vector<1x2048xf32>
    %249 = arith.maximumf %247, %248 : vector<1x2048xf32>
    %250 = vector.shape_cast %249 : vector<1x2048xf32> to vector<1x2048xf32>
    %251 = vector.broadcast %250 : vector<1x2048xf32> to vector<8x2048xf32>
    %c0_206 = arith.constant 0 : index
    %c0_207 = arith.constant 0 : index
    %252 = vector.load %arg6[%c0_206, %c0_207] : memref<2048x128xf32, #tpu.memory_space<vmem>>, vector<2048x128xf32>
    %cst_208 = arith.constant dense<0.000000e+00> : vector<8x128xf32>
    %253 = tpu.matmul %251, %252, %cst_208 {dimension_numbers = #tpu.dot_dimension_numbers<[1], [0], [0], [1], [0, 0, 1, 1], [], []>} : vector<8x2048xf32>, vector<2048x128xf32>, vector<8x128xf32> -> vector<8x128xf32>
    %c0_209 = arith.constant 0 : index
    %c0_210 = arith.constant 0 : index
    %254 = vector.load %arg7[%c0_209, %c0_210] : memref<1x128xf32, #tpu.memory_space<vmem>>, vector<1x128xf32>
    %255 = vector.broadcast %254 : vector<1x128xf32> to vector<8x128xf32>
    %256 = arith.addf %253, %255 : vector<8x128xf32>
    %c0_211 = arith.constant 0 : index
    %c0_212 = arith.constant 0 : index
    %c0_213 = arith.constant 0 : index
    %257 = vector.load %arg8[%c0_211, %c0_212, %c0_213] : memref<1x8x128xf32, #tpu.memory_space<vmem>>, vector<1x8x128xf32>
    %258 = vector.shape_cast %257 : vector<1x8x128xf32> to vector<8x128xf32>
    %259 = vector.shape_cast %256 : vector<8x128xf32> to vector<1x8x128xf32>
    tpu.vector_store %arg8[%c0_211, %c0_212, %c0_213], %259 {strides = array<i32>} : memref<1x8x128xf32, #tpu.memory_space<vmem>>, vector<1x8x128xf32>,
    return
  }
  func.func @transform_0(%arg0: i32) -> (i32, i32, i32) {
    %c0_i32 = arith.constant 0 : i32
    %c0_i32_0 = arith.constant 0 : i32
    %c0_i32_1 = arith.constant 0 : i32
    return %arg0, %c0_i32, %c0_i32_0 : i32, i32, i32
  }
  func.func @transform_1(%arg0: i32) -> (i32, i32) {
    %c0_i32 = arith.constant 0 : i32
    %c0_i32_0 = arith.constant 0 : i32
    %c0_i32_1 = arith.constant 0 : i32
    return %c0_i32, %c0_i32_0 : i32, i32
  }
  func.func @transform_2(%arg0: i32) -> (i32, i32) {
    %c0_i32 = arith.constant 0 : i32
    %c0_i32_0 = arith.constant 0 : i32
    %c0_i32_1 = arith.constant 0 : i32
    return %c0_i32, %c0_i32_0 : i32, i32
  }
  func.func @transform_3(%arg0: i32) -> (i32, i32, i32) {
    %c0_i32 = arith.constant 0 : i32
    %c0_i32_0 = arith.constant 0 : i32
    %c0_i32_1 = arith.constant 0 : i32
    %c0_i32_2 = arith.constant 0 : i32
    return %c0_i32, %c0_i32_0, %c0_i32_1 : i32, i32, i32
  }
  func.func @transform_4(%arg0: i32) -> (i32, i32) {
    %c0_i32 = arith.constant 0 : i32
    %c0_i32_0 = arith.constant 0 : i32
    %c0_i32_1 = arith.constant 0 : i32
    return %c0_i32, %c0_i32_0 : i32, i32
  }
  func.func @transform_5(%arg0: i32) -> (i32, i32) {
    %c0_i32 = arith.constant 0 : i32
    %c0_i32_0 = arith.constant 0 : i32
    %c0_i32_1 = arith.constant 0 : i32
    return %c0_i32, %c0_i32_0 : i32, i32
  }
  func.func @transform_6(%arg0: i32) -> (i32, i32) {
    %c0_i32 = arith.constant 0 : i32
    %c0_i32_0 = arith.constant 0 : i32
    %c0_i32_1 = arith.constant 0 : i32
    return %c0_i32, %c0_i32_0 : i32, i32
  }
  func.func @transform_7(%arg0: i32) -> (i32, i32, i32) {
    %c0_i32 = arith.constant 0 : i32
    %c0_i32_0 = arith.constant 0 : i32
    %c0_i32_1 = arith.constant 0 : i32
    return %arg0, %c0_i32, %c0_i32_0 : i32, i32, i32
  }
}

</mosaic_0001>

<llo_original>
// kernel: net_forward.1
$region0: #{net_forward.1}
  #allocation0 [shape = 'u32[]', space=smem, size = 0x4, offset = 0x4, fixed_abs, tag = 'smem constant byte address 0x4 - core index']
  #allocation1 [shape = 'u32[144,128]{1,0:T(1,128)}', space=vmem, size = 0x12000, scoped, tag = 'internal scratch']
  #allocation2 [shape = 'f32[12,12,128]{2,1,0:T(8,128)}', space=vmem, size = 0x18000, scoped, tag = 'scratch operand']
  %s0 = inlined_call_operand.vmem [shape: f32[2,576,128], index: 0, kind: input, shape index: {}]
  %s1 = inlined_call_operand.vmem [shape: f32[128,128], index: 1, kind: input, shape index: {}]
  %s2 = inlined_call_operand.vmem [shape: f32[1,128], index: 2, kind: input, shape index: {}]
  %s3 = inlined_call_operand.vmem [shape: f32[25,128,128], index: 3, kind: input, shape index: {}]
  %s4 = inlined_call_operand.vmem [shape: f32[1,128], index: 4, kind: input, shape index: {}]
  %s5 = inlined_call_operand.vmem [shape: f32[2048,128], index: 5, kind: input, shape index: {}]
  %s6 = inlined_call_operand.vmem [shape: f32[1,128], index: 6, kind: input, shape index: {}]
  %s7 = inlined_call_operand.vmem [shape: f32[2,8,128], index: 7, kind: output, shape index: {}]
  %s8 = sld [smem:[#allocation0]]
  $region61: #{net_forward.1} parent=0
    _
  %s10 = ssub.s32 1, %s8
  %s11 = scalar_select 0, %s10, %s8
  loop: start=0, step=1, limit=4
  $region2: #{net_forward.1} parent=0 // loop_pre_header
    _
  $region3: #{net_forward.1} parent=0 // loop_header
    %s13 = sphi 0, %s17
    %p14 = scmp.ge.s32.totalorder %s13, 4
    %s23 = sphi 0, %s25
    %s26 = sphi 0, %s23
    %s27 = sphi 0, %s26
    %s43 = sphi 0, %s27
    %s47 = sphi 0, %s47
    %s49 = sphi 0, %s47
    %s50 = sphi 0, %s49
    %s64 = sphi 0, %s50
    %s68 = sphi 0, %s68
    %s70 = sphi 0, %s68
    %s71 = sphi 0, %s70
    %s85 = sphi 0, %s71
    %s89 = sphi 0, %s89
    %s91 = sphi 0, %s89
    %s92 = sphi 0, %s91
    %s106 = sphi 0, %s92
    %s110 = sphi 0, %s110
    %s112 = sphi 0, %s110
    %s113 = sphi 0, %s112
    %s127 = sphi 0, %s113
    %s131 = sphi 0, %s131
    %s133 = sphi 0, %s131
    %s134 = sphi 0, %s133
    %s148 = sphi 0, %s134
    %s152 = sphi 0, %s152
    %s154 = sphi 0, %s152
    %s155 = sphi 0, %s154
    %s169 = sphi 0, %s155
    %s175 = sphi 0, %s177
    %s178 = sphi 0, %s175
    %s179 = sphi 0, %s178
    %s195 = sphi 0, %s179
  $region4: #{net_forward.1} parent=0 // loop_header_branch
    %16 = sbr.rel (%p14) target = $region8
  $region5: #{net_forward.1} parent=0 // loop_body
    %s18 = ssub.s32 %s13, 1
    %s19 = ssub.s32 %s13, 2
    %s20 = sadd.s32 %s13, 1
    %s21 = ssub.s32 %s13, %s20
    %p22 = scmp.eq.s32.totalorder %s21, 0
    %s24 = sadd.s32 %s23, 1
    %s25 = scalar_select %p22, %s23, %s24
    %p28 = pneg %p22
    %p29 = scmp.eq.s32.totalorder %s13, 1
    %p30 = por %p28, %p29
    %p31 = scmp.ne.s32.totalorder %s23, %s26
    %p32 = scmp.eq.s32.totalorder %s13, 0
    %p33 = por %p31, %p32
    %p34 = scmp.ne.s32.totalorder %s23, %s26
    %p35 = scmp.eq.s32.totalorder %s18, 1
    %p36 = por %p34, %p35
    %p37 = scmp.ne.s32.totalorder %s26, %s27
    %p38 = scmp.eq.s32.totalorder %s18, 0
    %p39 = por %p37, %p38
    %p40 = scmp.ne.s32.totalorder %s26, %s27
    %p41 = scmp.eq.s32.totalorder %s19, 1
    %p42 = por %p40, %p41
    %p44 = scmp.ne.s32.totalorder %s27, %s43
    %p45 = scmp.eq.s32.totalorder %s19, 0
    %p46 = por %p44, %p45
    %s48 = sadd.s32 %s47, 1
    %p51 = scmp.eq.s32.totalorder %s13, 1
    %p52 = scmp.ne.s32.totalorder %s47, %s49
    %p53 = scmp.eq.s32.totalorder %s13, 0
    %p54 = por %p52, %p53
    %p55 = scmp.ne.s32.totalorder %s47, %s49
    %p56 = scmp.eq.s32.totalorder %s18, 1
    %p57 = por %p55, %p56
    %p58 = scmp.ne.s32.totalorder %s49, %s50
    %p59 = scmp.eq.s32.totalorder %s18, 0
    %p60 = por %p58, %p59
    %p61 = scmp.ne.s32.totalorder %s49, %s50
    %p62 = scmp.eq.s32.totalorder %s19, 1
    %p63 = por %p61, %p62
    %p65 = scmp.ne.s32.totalorder %s50, %s64
    %p66 = scmp.eq.s32.totalorder %s19, 0
    %p67 = por %p65, %p66
    %s69 = sadd.s32 %s68, 1
    %p72 = scmp.eq.s32.totalorder %s13, 1
    %p73 = scmp.ne.s32.totalorder %s68, %s70
    %p74 = scmp.eq.s32.totalorder %s13, 0
    %p75 = por %p73, %p74
    %p76 = scmp.ne.s32.totalorder %s68, %s70
    %p77 = scmp.eq.s32.totalorder %s18, 1
    %p78 = por %p76, %p77
    %p79 = scmp.ne.s32.totalorder %s70, %s71
    %p80 = scmp.eq.s32.totalorder %s18, 0
    %p81 = por %p79, %p80
    %p82 = scmp.ne.s32.totalorder %s70, %s71
    %p83 = scmp.eq.s32.totalorder %s19, 1
    %p84 = por %p82, %p83
    %p86 = scmp.ne.s32.totalorder %s71, %s85
    %p87 = scmp.eq.s32.totalorder %s19, 0
    %p88 = por %p86, %p87
    %s90 = sadd.s32 %s89, 1
    %p93 = scmp.eq.s32.totalorder %s13, 1
    %p94 = scmp.ne.s32.totalorder %s89, %s91
    %p95 = scmp.eq.s32.totalorder %s13, 0
    %p96 = por %p94, %p95
    %p97 = scmp.ne.s32.totalorder %s89, %s91
    %p98 = scmp.eq.s32.totalorder %s18, 1
    %p99 = por %p97, %p98
    %p100 = scmp.ne.s32.totalorder %s91, %s92
    %p101 = scmp.eq.s32.totalorder %s18, 0
    %p102 = por %p100, %p101
    %p103 = scmp.ne.s32.totalorder %s91, %s92
    %p104 = scmp.eq.s32.totalorder %s19, 1
    %p105 = por %p103, %p104
    %p107 = scmp.ne.s32.totalorder %s92, %s106
    %p108 = scmp.eq.s32.totalorder %s19, 0
    %p109 = por %p107, %p108
    %s111 = sadd.s32 %s110, 1
    %p114 = scmp.eq.s32.totalorder %s13, 1
    %p115 = scmp.ne.s32.totalorder %s110, %s112
    %p116 = scmp.eq.s32.totalorder %s13, 0
    %p117 = por %p115, %p116
    %p118 = scmp.ne.s32.totalorder %s110, %s112
    %p119 = scmp.eq.s32.totalorder %s18, 1
    %p120 = por %p118, %p119
    %p121 = scmp.ne.s32.totalorder %s112, %s113
    %p122 = scmp.eq.s32.totalorder %s18, 0
    %p123 = por %p121, %p122
    %p124 = scmp.ne.s32.totalorder %s112, %s113
    %p125 = scmp.eq.s32.totalorder %s19, 1
    %p126 = por %p124, %p125
    %p128 = scmp.ne.s32.totalorder %s113, %s127
    %p129 = scmp.eq.s32.totalorder %s19, 0
    %p130 = por %p128, %p129
    %s132 = sadd.s32 %s131, 1
    %p135 = scmp.eq.s32.totalorder %s13, 1
    %p136 = scmp.ne.s32.totalorder %s131, %s133
    %p137 = scmp.eq.s32.totalorder %s13, 0
    %p138 = por %p136, %p137
    %p139 = scmp.ne.s32.totalorder %s131, %s133
    %p140 = scmp.eq.s32.totalorder %s18, 1
    %p141 = por %p139, %p140
    %p142 = scmp.ne.s32.totalorder %s133, %s134
    %p143 = scmp.eq.s32.totalorder %s18, 0
    %p144 = por %p142, %p143
    %p145 = scmp.ne.s32.totalorder %s133, %s134
    %p146 = scmp.eq.s32.totalorder %s19, 1
    %p147 = por %p145, %p146
    %p149 = scmp.ne.s32.totalorder %s134, %s148
    %p150 = scmp.eq.s32.totalorder %s19, 0
    %p151 = por %p149, %p150
    %s153 = sadd.s32 %s152, 1
    %p156 = scmp.eq.s32.totalorder %s13, 1
    %p157 = scmp.ne.s32.totalorder %s152, %s154
    %p158 = scmp.eq.s32.totalorder %s13, 0
    %p159 = por %p157, %p158
    %p160 = scmp.ne.s32.totalorder %s152, %s154
    %p161 = scmp.eq.s32.totalorder %s18, 1
    %p162 = por %p160, %p161
    %p163 = scmp.ne.s32.totalorder %s154, %s155
    %p164 = scmp.eq.s32.totalorder %s18, 0
    %p165 = por %p163, %p164
    %p166 = scmp.ne.s32.totalorder %s154, %s155
    %p167 = scmp.eq.s32.totalorder %s19, 1
    %p168 = por %p166, %p167
    %p170 = scmp.ne.s32.totalorder %s155, %s169
    %p171 = scmp.eq.s32.totalorder %s19, 0
    %p172 = por %p170, %p171
    %s173 = ssub.s32 %s13, %s20
    %p174 = scmp.eq.s32.totalorder %s173, 0
    %s176 = sadd.s32 %s175, 1
    %s177 = scalar_select %p174, %s175, %s176
    %p180 = pneg %p174
    %p181 = scmp.eq.s32.totalorder %s13, 1
    %p182 = por %p180, %p181
    %p183 = scmp.ne.s32.totalorder %s175, %s178
    %p184 = scmp.eq.s32.totalorder %s13, 0
    %p185 = por %p183, %p184
    %p186 = scmp.ne.s32.totalorder %s175, %s178
    %p187 = scmp.eq.s32.totalorder %s18, 1
    %p188 = por %p186, %p187
    %p189 = scmp.ne.s32.totalorder %s178, %s179
    %p190 = scmp.eq.s32.totalorder %s18, 0
    %p191 = por %p189, %p190
    %p192 = scmp.ne.s32.totalorder %s178, %s179
    %p193 = scmp.eq.s32.totalorder %s19, 1
    %p194 = por %p192, %p193
    %p196 = scmp.ne.s32.totalorder %s179, %s195
    %p197 = scmp.eq.s32.totalorder %s19, 0
    %p198 = por %p196, %p197
    %p199 = scmp.le.s32.totalorder 1, %s13
    %p200 = scmp.lt.s32.totalorder %s13, 3
    %p201 = pnand %p199, %p200
    %p202 = pneg %p201
    // Predicated region
    $region9: #{net_forward.1} parent=5 // pred_check
      _
    $region10: #{net_forward.1} parent=5 // pred_check_branch
      %204 = sbr.rel (%p201) target = $region12
    $region11: #{net_forward.1} parent=5 // pred_region
      %s205 = ssub.s32 %s13, 1
      // Predicated region
      $region13: #{net_forward.1} parent=11 // pred_check
        %p206 = pneg %p60
      $region14: #{net_forward.1} parent=11 // pred_check_branch
        %208 = sbr.rel (%p206) target = $region16
      $region15: #{net_forward.1} parent=11 // pred_region
        _
      $region16: #{net_forward.1} parent=11 // pred_fallthru
        _
      // Predicated region
      $region17: #{net_forward.1} parent=11 // pred_check
        %p209 = pneg %p81
      $region18: #{net_forward.1} parent=11 // pred_check_branch
        %211 = sbr.rel (%p209) target = $region20
      $region19: #{net_forward.1} parent=11 // pred_region
        _
      $region20: #{net_forward.1} parent=11 // pred_fallthru
        _
      // Predicated region
      $region21: #{net_forward.1} parent=11 // pred_check
        %p212 = pneg %p102
      $region22: #{net_forward.1} parent=11 // pred_check_branch
        %214 = sbr.rel (%p212) target = $region24
      $region23: #{net_forward.1} parent=11 // pred_region
        _
      $region24: #{net_forward.1} parent=11 // pred_fallthru
        _
      // Predicated region
      $region25: #{net_forward.1} parent=11 // pred_check
        %p215 = pneg %p123
      $region26: #{net_forward.1} parent=11 // pred_check_branch
        %217 = sbr.rel (%p215) target = $region28
      $region27: #{net_forward.1} parent=11 // pred_region
        _
      $region28: #{net_forward.1} parent=11 // pred_fallthru
        _
      // Predicated region
      $region29: #{net_forward.1} parent=11 // pred_check
        %p218 = pneg %p144
      $region30: #{net_forward.1} parent=11 // pred_check_branch
        %220 = sbr.rel (%p218) target = $region32
      $region31: #{net_forward.1} parent=11 // pred_region
        _
      $region32: #{net_forward.1} parent=11 // pred_fallthru
        _
      // Predicated region
      $region33: #{net_forward.1} parent=11 // pred_check
        %p221 = pneg %p165
      $region34: #{net_forward.1} parent=11 // pred_check_branch
        %223 = sbr.rel (%p221) target = $region36
      $region35: #{net_forward.1} parent=11 // pred_region
        _
      $region36: #{net_forward.1} parent=11 // pred_fallthru
        _
    $region12: #{net_forward.1} parent=5 // pred_fallthru
      _
    %p224 = scmp.lt.s32.totalorder %s13, 2
    // Predicated region
    $region37: #{net_forward.1} parent=5 // pred_check
      %p225 = pneg %p224
    $region38: #{net_forward.1} parent=5 // pred_check_branch
      %227 = sbr.rel (%p225) target = $region40
    $region39: #{net_forward.1} parent=5 // pred_region
      // Predicated region
      $region41: #{net_forward.1} parent=39 // pred_check
        %p228 = pneg %p33
      $region42: #{net_forward.1} parent=39 // pred_check_branch
        %230 = sbr.rel (%p228) target = $region44
      $region43: #{net_forward.1} parent=39 // pred_region
        %p231 = scmp.lt.s32.totalorder %s13, 1
        %s232 = scalar_select %p231, %s13, 1
        %s233 = smul.addr %s232, 72
        %s234 = smul.addr %s233, 8
        %s235 = scalar_lea.vmem %s0, %s234
      $region44: #{net_forward.1} parent=39 // pred_fallthru
        _
    $region40: #{net_forward.1} parent=5 // pred_fallthru
      _
    %p236 = scmp.le.s32.totalorder 1, %s13
    %p237 = scmp.lt.s32.totalorder %s13, 3
    %p238 = pnand %p236, %p237
    %p239 = pneg %p238
    // Predicated region
    $region45: #{net_forward.1} parent=5 // pred_check
      _
    $region46: #{net_forward.1} parent=5 // pred_check_branch
      %241 = sbr.rel (%p238) target = $region48
    $region47: #{net_forward.1} parent=5 // pred_region
      %s242 = ssub.s32 %s13, 1
      %p243 = scmp.lt.s32.totalorder %s18, 1
      %s244 = scalar_select %p243, %s18, 1
      %s245 = smul.addr %s244, 72
      %s246 = smul.addr %s245, 8
      %s247 = scalar_lea.vmem %s0, %s246
      %p248 = pneg %p39
      %p249 = pneg %p36
      %p250 = pneg %p60
      %p251 = pneg %p57
      %p252 = pneg %p81
      %p253 = pneg %p78
      %p254 = pneg %p102
      %p255 = pneg %p99
      %p256 = pneg %p123
      %p257 = pneg %p120
      %p258 = pneg %p144
      %p259 = pneg %p141
      %p260 = pneg %p165
      %p261 = pneg %p162
      %p262 = pneg %p191
      %p263 = pneg %p188
      %p264 = scmp.lt.s32.totalorder %s18, 1
      %s265 = scalar_select %p264, %s18, 1
      %s266 = smul.addr %s265, 8
      %s267 = scalar_lea.vmem %s7, %s266
      %p268 = scmp.lt.s32.totalorder %s18, 1
      %s269 = scalar_select %p268, %s18, 1
      %s270 = smul.addr %s269, 72
      %s271 = smul.addr %s270, 8
      %s272 = scalar_lea.vmem %s0, %s271
      %p273 = scmp.lt.s32.totalorder %s18, 1
      %s274 = scalar_select %p273, %s18, 1
      %s275 = smul.addr %s274, 8
      %s276 = scalar_lea.vmem %s7, %s275
      %v277 = vld [vmem:[%s1] sm:$0xff]
      %v278 = vld [vmem:[%s1 + $0x8] sm:$0xff]
      %v279 = vld [vmem:[%s1 + $0x10] sm:$0xff]
      %v280 = vld [vmem:[%s1 + $0x18] sm:$0xff]
      %v281 = vld [vmem:[%s1 + $0x20] sm:$0xff]
      %v282 = vld [vmem:[%s1 + $0x28] sm:$0xff]
      %v283 = vld [vmem:[%s1 + $0x30] sm:$0xff]
      %v284 = vld [vmem:[%s1 + $0x38] sm:$0xff]
      %v285 = vld [vmem:[%s1 + $0x40] sm:$0xff]
      %v286 = vld [vmem:[%s1 + $0x48] sm:$0xff]
      %v287 = vld [vmem:[%s1 + $0x50] sm:$0xff]
      %v288 = vld [vmem:[%s1 + $0x58] sm:$0xff]
      %v289 = vld [vmem:[%s1 + $0x60] sm:$0xff]
      %v290 = vld [vmem:[%s1 + $0x68] sm:$0xff]
      %v291 = vld [vmem:[%s1 + $0x70] sm:$0xff]
      %v292 = vld [vmem:[%s1 + $0x78] sm:$0xff]
      %v293 = vld [vmem:[%s272] sm:$0xff]
      %v294 = vld [vmem:[%s272 + $0x8] sm:$0xff]
      %v295 = vld [vmem:[%s272 + $0x10] sm:$0xff]
      %v296 = vld [vmem:[%s272 + $0x18] sm:$0xff]
      %v297 = vld [vmem:[%s272 + $0x20] sm:$0xff]
      %v298 = vld [vmem:[%s272 + $0x28] sm:$0xff]
      %v299 = vld [vmem:[%s272 + $0x30] sm:$0xff]
      %v300 = vld [vmem:[%s272 + $0x38] sm:$0xff]
      %v301 = vld [vmem:[%s272 + $0x40] sm:$0xff]
      %v302 = vld [vmem:[%s272 + $0x48] sm:$0xff]
      %v303 = vld [vmem:[%s272 + $0x50] sm:$0xff]
      %v304 = vld [vmem:[%s272 + $0x58] sm:$0xff]
      %v305 = vld [vmem:[%s272 + $0x60] sm:$0xff]
      %v306 = vld [vmem:[%s272 + $0x68] sm:$0xff]
      %v307 = vld [vmem:[%s272 + $0x70] sm:$0xff]
      %v308 = vld [vmem:[%s272 + $0x78] sm:$0xff]
      %v309 = vld [vmem:[%s272 + $0x80] sm:$0xff]
      %v310 = vld [vmem:[%s272 + $0x88] sm:$0xff]
      %311 = vmatprep.subr.mxu0 0.0
      %312 = vmatpush1.msra.mxu0 %v277
      %313 = vmatprep.subr.mxu0 0.0
      %314 = vmatpush1.msra.mxu0 %v278
      %315 = vmatprep.subr.mxu0 0.0
      %316 = vmatpush1.msra.mxu0 %v279
      %317 = vmatprep.subr.mxu0 0.0
      %318 = vmatpush1.msra.mxu0 %v280
      %319 = vmatprep.subr.mxu0 0.0
      %320 = vmatpush1.msra.mxu0 %v281
      %321 = vmatprep.subr.mxu0 0.0
      %322 = vmatpush1.msra.mxu0 %v282
      %323 = vmatprep.subr.mxu0 0.0
      %324 = vmatpush1.msra.mxu0 %v283
      %325 = vmatprep.subr.mxu0 0.0
      %326 = vmatpush1.msra.mxu0 %v284
      %327 = vmatprep.subr.mxu0 0.0
      %328 = vmatpush1.msra.mxu0 %v285
      %329 = vmatprep.subr.mxu0 0.0
      %330 = vmatpush1.msra.mxu0 %v286
      %331 = vmatprep.subr.mxu0 0.0
      %332 = vmatpush1.msra.mxu0 %v287
      %333 = vmatprep.subr.mxu0 0.0
      %334 = vmatpush1.msra.mxu0 %v288
      %335 = vmatprep.subr.mxu0 0.0
      %336 = vmatpush1.msra.mxu0 %v289
      %337 = vmatprep.subr.mxu0 0.0
      %338 = vmatpush1.msra.mxu0 %v290
      %339 = vmatprep.subr.mxu0 0.0
      %340 = vmatpush1.msra.mxu0 %v291
      %341 = vmatprep.subr.mxu0 0.0
      %342 = vmatpush1.msra.mxu0 %v292
      %343 = vmatprep.subr.mxu0 0.0
      %344 = vmatpush1.msra.mxu0 0.0
      %345 = vmatprep.subr.mxu0 0.0
      %346 = vmatpush1.msra.mxu0 0.0
      %347 = vmatprep.subr.mxu0 0.0
      %348 = vmatpush1.msra.mxu0 0.0
      %349 = vmatprep.subr.mxu0 0.0
      %350 = vmatpush1.msra.mxu0 0.0
      %351 = vmatprep.subr.mxu0 0.0
      %352 = vmatpush1.msra.mxu0 0.0
      %353 = vmatprep.subr.mxu0 0.0
      %354 = vmatpush1.msra.mxu0 0.0
      %355 = vmatprep.subr.mxu0 0.0
      %356 = vmatpush1.msra.mxu0 0.0
      %357 = vmatprep.subr.mxu0 0.0
      %358 = vmatpush1.msra.mxu0 0.0
      %359 = vmatprep.subr.mxu0 0.0
      %360 = vmatpush1.msra.mxu0 0.0
      %361 = vmatprep.subr.mxu0 0.0
      %362 = vmatpush1.msra.mxu0 0.0
      %363 = vmatprep.subr.mxu0 0.0
      %364 = vmatpush1.msra.mxu0 0.0
      %365 = vmatprep.subr.mxu0 0.0
      %366 = vmatpush1.msra.mxu0 0.0
      %367 = vmatprep.subr.mxu0 0.0
      %368 = vmatpush1.msra.mxu0 0.0
      %369 = vmatprep.subr.mxu0 0.0
      %370 = vmatpush1.msra.mxu0 0.0
      %371 = vmatprep.subr.mxu0 0.0
      %372 = vmatpush1.msra.mxu0 0.0
      %373 = vmatprep.subr.mxu0 0.0
      %374 = vmatpush1.msra.mxu0 0.0
      %375 = vmatprep.mubr.f32.mxu0 0.0
      %376 = vmatmul.mubr.f32.gmra.mrb[0].mxu0 %v293
      %v377 = vpop.f32.mrb[0].mxu0
      %v378 = vadd.f32 0.0, %v377
      %v379 = vpop.f32.mrb[0].mxu0
      %380 = vmatprep.mubr.f32.mxu0 0.0
      %381 = vmatmul.mubr.f32.gmra.mrb[0].mxu0 %v294
      %v382 = vpop.f32.mrb[0].mxu0
      %v383 = vadd.f32 0.0, %v382
      %v384 = vpop.f32.mrb[0].mxu0
      %385 = vmatprep.mubr.f32.mxu0 0.0
      %386 = vmatmul.mubr.f32.gmra.mrb[0].mxu0 %v295
      %v387 = vpop.f32.mrb[0].mxu0
      %v388 = vadd.f32 0.0, %v387
      %v389 = vpop.f32.mrb[0].mxu0
      %390 = vmatprep.mubr.f32.mxu0 0.0
      %391 = vmatmul.mubr.f32.gmra.mrb[0].mxu0 %v296
      %v392 = vpop.f32.mrb[0].mxu0
      %v393 = vadd.f32 0.0, %v392
      %v394 = vpop.f32.mrb[0].mxu0
      %395 = vmatprep.mubr.f32.mxu0 0.0
      %396 = vmatmul.mubr.f32.gmra.mrb[0].mxu0 %v297
      %v397 = vpop.f32.mrb[0].mxu0
      %v398 = vadd.f32 0.0, %v397
      %v399 = vpop.f32.mrb[0].mxu0
      %400 = vmatprep.mubr.f32.mxu0 0.0
      %401 = vmatmul.mubr.f32.gmra.mrb[0].mxu0 %v298
      %v402 = vpop.f32.mrb[0].mxu0
      %v403 = vadd.f32 0.0, %v402
      %v404 = vpop.f32.mrb[0].mxu0
      %405 = vmatprep.mubr.f32.mxu0 0.0
      %406 = vmatmul.mubr.f32.gmra.mrb[0].mxu0 %v299
      %v407 = vpop.f32.mrb[0].mxu0
      %v408 = vadd.f32 0.0, %v407
      %v409 = vpop.f32.mrb[0].mxu0
      %410 = vmatprep.mubr.f32.mxu0 0.0
      %411 = vmatmul.mubr.f32.gmra.mrb[0].mxu0 %v300
      %v412 = vpop.f32.mrb[0].mxu0
      %v413 = vadd.f32 0.0, %v412
      %v414 = vpop.f32.mrb[0].mxu0
      %415 = vmatprep.mubr.f32.mxu0 0.0
      %416 = vmatmul.mubr.f32.gmra.mrb[0].mxu0 %v301
      %v417 = vpop.f32.mrb[0].mxu0
      %v418 = vadd.f32 0.0, %v417
      %v419 = vpop.f32.mrb[0].mxu0
      %420 = vmatprep.mubr.f32.mxu0 0.0
      %421 = vmatmul.mubr.f32.gmra.mrb[0].mxu0 %v302
      %v422 = vpop.f32.mrb[0].mxu0
      %v423 = vadd.f32 0.0, %v422
      %v424 = vpop.f32.mrb[0].mxu0
      %425 = vmatprep.mubr.f32.mxu0 0.0
      %426 = vmatmul.mubr.f32.gmra.mrb[0].mxu0 %v303
      %v427 = vpop.f32.mrb[0].mxu0
      %v428 = vadd.f32 0.0, %v427
      %v429 = vpop.f32.mrb[0].mxu0
      %430 = vmatprep.mubr.f32.mxu0 0.0
      %431 = vmatmul.mubr.f32.gmra.mrb[0].mxu0 %v304
      %v432 = vpop.f32.mrb[0].mxu0
      %v433 = vadd.f32 0.0, %v432
      %v434 = vpop.f32.mrb[0].mxu0
      %435 = vmatprep.mubr.f32.mxu0 0.0
      %436 = vmatmul.mubr.f32.gmra.mrb[0].mxu0 %v305
      %v437 = vpop.f32.mrb[0].mxu0
      %v438 = vadd.f32 0.0, %v437
      %v439 = vpop.f32.mrb[0].mxu0
      %440 = vmatprep.mubr.f32.mxu0 0.0
      %441 = vmatmul.mubr.f32.gmra.mrb[0].mxu0 %v306
      %v442 = vpop.f32.mrb[0].mxu0
      %v443 = vadd.f32 0.0, %v442
      %v444 = vpop.f32.mrb[0].mxu0
      %445 = vmatprep.mubr.f32.mxu0 0.0
      %446 = vmatmul.mubr.f32.gmra.mrb[0].mxu0 %v307
      %v447 = vpop.f32.mrb[0].mxu0
      %v448 = vadd.f32 0.0, %v447
      %v449 = vpop.f32.mrb[0].mxu0
      %450 = vmatprep.mubr.f32.mxu0 0.0
      %451 = vmatmul.mubr.f32.gmra.mrb[0].mxu0 %v308
      %v452 = vpop.f32.mrb[0].mxu0
      %v453 = vadd.f32 0.0, %v452
      %v454 = vpop.f32.mrb[0].mxu0
      %455 = vmatprep.mubr.f32.mxu0 0.0
      %456 = vmatmul.mubr.f32.gmra.mrb[0].mxu0 %v309
      %v457 = vpop.f32.mrb[0].mxu0
      %v458 = vadd.f32 0.0, %v457
      %v459 = vpop.f32.mrb[0].mxu0
      %460 = vmatprep.mubr.f32.mxu0 0.0
      %461 = vmatmul.mubr.f32.gmra.mrb[0].mxu0 %v310
      %v462 = vpop.f32.mrb[0].mxu0
      %v463 = vadd.f32 0.0, %v462
      %v464 = vpop.f32.mrb[0].mxu0
      %465 = vdwg.mxu0
      %v466 = vld [vmem:[%s272 + $0x90] sm:$0xff]
      %v467 = vld [vmem:[%s272 + $0x98] sm:$0xff]
      %v468 = vld [vmem:[%s272 + $0xa0] sm:$0xff]
      %v469 = vld [vmem:[%s272 + $0xa8] sm:$0xff]
      %v470 = vld [vmem:[%s272 + $0xb0] sm:$0xff]
      %v471 = vld [vmem:[%s272 + $0xb8] sm:$0xff]
      %v472 = vld [vmem:[%s272 + $0xc0] sm:$0xff]
      %v473 = vld [vmem:[%s272 + $0xc8] sm:$0xff]
      %v474 = vld [vmem:[%s272 + $0xd0] sm:$0xff]
      %v475 = vld [vmem:[%s272 + $0xd8] sm:$0xff]
      %v476 = vld [vmem:[%s272 + $0xe0] sm:$0xff]
      %v477 = vld [vmem:[%s272 + $0xe8] sm:$0xff]
      %v478 = vld [vmem:[%s272 + $0xf0] sm:$0xff]
      %v479 = vld [vmem:[%s272 + $0xf8] sm:$0xff]
      %v480 = vld [vmem:[%s272 + $0x100] sm:$0xff]
      %v481 = vld [vmem:[%s272 + $0x108] sm:$0xff]
      %v482 = vld [vmem:[%s272 + $0x110] sm:$0xff]
      %v483 = vld [vmem:[%s272 + $0x118] sm:$0xff]
      %484 = vmatprep.subr.mxu0 0.0
      %485 = vmatpush1.msra.mxu0 %v277
      %486 = vmatprep.subr.mxu0 0.0
      %487 = vmatpush1.msra.mxu0 %v278
      %488 = vmatprep.subr.mxu0 0.0
      %489 = vmatpush1.msra.mxu0 %v279
      %490 = vmatprep.subr.mxu0 0.0
      %491 = vmatpush1.msra.mxu0 %v280
      %492 = vmatprep.subr.mxu0 0.0
      %493 = vmatpush1.msra.mxu0 %v281
      %494 = vmatprep.subr.mxu0 0.0
      %495 = vmatpush1.msra.mxu0 %v282
      %496 = vmatprep.subr.mxu0 0.0
      %497 = vmatpush1.msra.mxu0 %v283
      %498 = vmatprep.subr.mxu0 0.0
      %499 = vmatpush1.msra.mxu0 %v284
      %500 = vmatprep.subr.mxu0 0.0
      %501 = vmatpush1.msra.mxu0 %v285
      %502 = vmatprep.subr.mxu0 0.0
      %503 = vmatpush1.msra.mxu0 %v286
      %504 = vmatprep.subr.mxu0 0.0
      %505 = vmatpush1.msra.mxu0 %v287
      %506 = vmatprep.subr.mxu0 0.0
      %507 = vmatpush1.msra.mxu0 %v288
      %508 = vmatprep.subr.mxu0 0.0
      %509 = vmatpush1.msra.mxu0 %v289
      %510 = vmatprep.subr.mxu0 0.0
      %511 = vmatpush1.msra.mxu0 %v290
      %512 = vmatprep.subr.mxu0 0.0
      %513 = vmatpush1.msra.mxu0 %v291
      %514 = vmatprep.subr.mxu0 0.0
      %515 = vmatpush1.msra.mxu0 %v292
      %516 = vmatprep.subr.mxu0 0.0
      %517 = vmatpush1.msra.mxu0 0.0
      %518 = vmatprep.subr.mxu0 0.0
      %519 = vmatpush1.msra.mxu0 0.0
      %520 = vmatprep.subr.mxu0 0.0
      %521 = vmatpush1.msra.mxu0 0.0
      %522 = vmatprep.subr.mxu0 0.0
      %523 = vmatpush1.msra.mxu0 0.0
      %524 = vmatprep.subr.mxu0 0.0
      %525 = vmatpush1.msra.mxu0 0.0
      %526 = vmatprep.subr.mxu0 0.0
      %527 = vmatpush1.msra.mxu0 0.0
      %528 = vmatprep.subr.mxu0 0.0
      %529 = vmatpush1.msra.mxu0 0.0
      %530 = vmatprep.subr.mxu0 0.0
      %531 = vmatpush1.msra.mxu0 0.0
      %532 = vmatprep.subr.mxu0 0.0
      %533 = vmatpush1.msra.mxu0 0.0
      %534 = vmatprep.subr.mxu0 0.0
      %535 = vmatpush1.msra.mxu0 0.0
      %536 = vmatprep.subr.mxu0 0.0
      %537 = vmatpush1.msra.mxu0 0.0
      %538 = vmatprep.subr.mxu0 0.0
      %539 = vmatpush1.msra.mxu0 0.0
      %540 = vmatprep.subr.mxu0 0.0
      %541 = vmatpush1.msra.mxu0 0.0
      %542 = vmatprep.subr.mxu0 0.0
      %543 = vmatpush1.msra.mxu0 0.0
      %544 = vmatprep.subr.mxu0 0.0
      %545 = vmatpush1.msra.mxu0 0.0
      %546 = vmatprep.subr.mxu0 0.0
      %547 = vmatpush1.msra.mxu0 0.0
      %548 = vmatprep.mubr.f32.mxu0 0.0
      %549 = vmatmul.mubr.f32.gmra.mrb[0].mxu0 %v466
      %v550 = vpop.f32.mrb[0].mxu0
      %v551 = vadd.f32 0.0, %v550
      %v552 = vpop.f32.mrb[0].mxu0
      %553 = vmatprep.mubr.f32.mxu0 0.0
      %554 = vmatmul.mubr.f32.gmra.mrb[0].mxu0 %v467
      %v555 = vpop.f32.mrb[0].mxu0
      %v556 = vadd.f32 0.0, %v555
      %v557 = vpop.f32.mrb[0].mxu0
      %558 = vmatprep.mubr.f32.mxu0 0.0
      %559 = vmatmul.mubr.f32.gmra.mrb[0].mxu0 %v468
      %v560 = vpop.f32.mrb[0].mxu0
      %v561 = vadd.f32 0.0, %v560
      %v562 = vpop.f32.mrb[0].mxu0
      %563 = vmatprep.mubr.f32.mxu0 0.0
      %564 = vmatmul.mubr.f32.gmra.mrb[0].mxu0 %v469
      %v565 = vpop.f32.mrb[0].mxu0
      %v566 = vadd.f32 0.0, %v565
      %v567 = vpop.f32.mrb[0].mxu0
      %568 = vmatprep.mubr.f32.mxu0 0.0
      %569 = vmatmul.mubr.f32.gmra.mrb[0].mxu0 %v470
      %v570 = vpop.f32.mrb[0].mxu0
      %v571 = vadd.f32 0.0, %v570
      %v572 = vpop.f32.mrb[0].mxu0
      %573 = vmatprep.mubr.f32.mxu0 0.0
      %574 = vmatmul.mubr.f32.gmra.mrb[0].mxu0 %v471
      %v575 = vpop.f32.mrb[0].mxu0
      %v576 = vadd.f32 0.0, %v575
      %v577 = vpop.f32.mrb[0].mxu0
      %578 = vmatprep.mubr.f32.mxu0 0.0
      %579 = vmatmul.mubr.f32.gmra.mrb[0].mxu0 %v472
      %v580 = vpop.f32.mrb[0].mxu0
      %v581 = vadd.f32 0.0, %v580
      %v582 = vpop.f32.mrb[0].mxu0
      %583 = vmatprep.mubr.f32.mxu0 0.0
      %584 = vmatmul.mubr.f32.gmra.mrb[0].mxu0 %v473
      %v585 = vpop.f32.mrb[0].mxu0
      %v586 = vadd.f32 0.0, %v585
      %v587 = vpop.f32.mrb[0].mxu0
      %588 = vmatprep.mubr.f32.mxu0 0.0
      %589 = vmatmul.mubr.f32.gmra.mrb[0].mxu0 %v474
      %v590 = vpop.f32.mrb[0].mxu0
      %v591 = vadd.f32 0.0, %v590
      %v592 = vpop.f32.mrb[0].mxu0
      %593 = vmatprep.mubr.f32.mxu0 0.0
      %594 = vmatmul.mubr.f32.gmra.mrb[0].mxu0 %v475
      %v595 = vpop.f32.mrb[0].mxu0
      %v596 = vadd.f32 0.0, %v595
      %v597 = vpop.f32.mrb[0].mxu0
      %598 = vmatprep.mubr.f32.mxu0 0.0
      %599 = vmatmul.mubr.f32.gmra.mrb[0].mxu0 %v476
      %v600 = vpop.f32.mrb[0].mxu0
      %v601 = vadd.f32 0.0, %v600
      %v602 = vpop.f32.mrb[0].mxu0
      %603 = vmatprep.mubr.f32.mxu0 0.0
      %604 = vmatmul.mubr.f32.gmra.mrb[0].mxu0 %v477
      %v605 = vpop.f32.mrb[0].mxu0
      %v606 = vadd.f32 0.0, %v605
      %v607 = vpop.f32.mrb[0].mxu0
      %608 = vmatprep.mubr.f32.mxu0 0.0
      %609 = vmatmul.mubr.f32.gmra.mrb[0].mxu0 %v478
      %v610 = vpop.f32.mrb[0].mxu0
      %v611 = vadd.f32 0.0, %v610
      %v612 = vpop.f32.mrb[0].mxu0
      %613 = vmatprep.mubr.f32.mxu0 0.0
      %614 = vmatmul.mubr.f32.gmra.mrb[0].mxu0 %v479
      %v615 = vpop.f32.mrb[0].mxu0
      %v616 = vadd.f32 0.0, %v615
      %v617 = vpop.f32.mrb[0].mxu0
      %618 = vmatprep.mubr.f32.mxu0 0.0
      %619 = vmatmul.mubr.f32.gmra.mrb[0].mxu0 %v480
      %v620 = vpop.f32.mrb[0].mxu0
      %v621 = vadd.f32 0.0, %v620
      %v622 = vpop.f32.mrb[0].mxu0
      %623 = vmatprep.mubr.f32.mxu0 0.0
      %624 = vmatmul.mubr.f32.gmra.mrb[0].mxu0 %v481
      %v625 = vpop.f32.mrb[0].mxu0
      %v626 = vadd.f32 0.0, %v625
      %v627 = vpop.f32.mrb[0].mxu0
      %628 = vmatprep.mubr.f32.mxu0 0.0
      %629 = vmatmul.mubr.f32.gmra.mrb[0].mxu0 %v482
      %v630 = vpop.f32.mrb[0].mxu0
      %v631 = vadd.f32 0.0, %v630
      %v632 = vpop.f32.mrb[0].mxu0
      %633 = vmatprep.mubr.f32.mxu0 0.0
      %634 = vmatmul.mubr.f32.gmra.mrb[0].mxu0 %v483
      %v635 = vpop.f32.mrb[0].mxu0
      %v636 = vadd.f32 0.0, %v635
      %v637 = vpop.f32.mrb[0].mxu0
      %638 = vdwg.mxu0
      %v639 = vmax.f32 %v378, %v551
      %v640 = vmax.f32 %v383, %v556
      %v641 = vmax.f32 %v388, %v561
      %v642 = vmax.f32 %v393, %v566
      %v643 = vmax.f32 %v398, %v571
      %v644 = vmax.f32 %v403, %v576
      %v645 = vmax.f32 %v408, %v581
      %v646 = vmax.f32 %v413, %v586
      %v647 = vmax.f32 %v418, %v591
      %v648 = vmax.f32 %v423, %v596
      %v649 = vmax.f32 %v428, %v601
      %v650 = vmax.f32 %v433, %v606
      %v651 = vmax.f32 %v438, %v611
      %v652 = vmax.f32 %v443, %v616
      %v653 = vmax.f32 %v448, %v621
      %v654 = vmax.f32 %v453, %v626
      %v655 = vmax.f32 %v458, %v631
      %v656 = vmax.f32 %v463, %v636
      %v657 = vld [vmem:[%s272 + $0x120] sm:$0xff]
      %v658 = vld [vmem:[%s272 + $0x128] sm:$0xff]
      %v659 = vld [vmem:[%s272 + $0x130] sm:$0xff]
      %v660 = vld [vmem:[%s272 + $0x138] sm:$0xff]
      %v661 = vld [vmem:[%s272 + $0x140] sm:$0xff]
      %v662 = vld [vmem:[%s272 + $0x148] sm:$0xff]
      %v663 = vld [vmem:[%s272 + $0x150] sm:$0xff]
      %v664 = vld [vmem:[%s272 + $0x158] sm:$0xff]
      %v665 = vld [vmem:[%s272 + $0x160] sm:$0xff]
      %v666 = vld [vmem:[%s272 + $0x168] sm:$0xff]
      %v667 = vld [vmem:[%s272 + $0x170] sm:$0xff]
      %v668 = vld [vmem:[%s272 + $0x178] sm:$0xff]
      %v669 = vld [vmem:[%s272 + $0x180] sm:$0xff]
      %v670 = vld [vmem:[%s272 + $0x188] sm:$0xff]
      %v671 = vld [vmem:[%s272 + $0x190] sm:$0xff]
      %v672 = vld [vmem:[%s272 + $0x198] sm:$0xff]
      %v673 = vld [vmem:[%s272 + $0x1a0] sm:$0xff]
      %v674 = vld [vmem:[%s272 + $0x1a8] sm:$0xff]
      %675 = vmatprep.subr.mxu0 0.0
      %676 = vmatpush1.msra.mxu0 %v277
      %677 = vmatprep.subr.mxu0 0.0
      %678 = vmatpush1.msra.mxu0 %v278
      %679 = vmatprep.subr.mxu0 0.0
      %680 = vmatpush1.msra.mxu0 %v279
      %681 = vmatprep.subr.mxu0 0.0
      %682 = vmatpush1.msra.mxu0 %v280
      %683 = vmatprep.subr.mxu0 0.0
      %684 = vmatpush1.msra.mxu0 %v281
      %685 = vmatprep.subr.mxu0 0.0
      %686 = vmatpush1.msra.mxu0 %v282
      %687 = vmatprep.subr.mxu0 0.0
      %688 = vmatpush1.msra.mxu0 %v283
      %689 = vmatprep.subr.mxu0 0.0
      %690 = vmatpush1.msra.mxu0 %v284
      %691 = vmatprep.subr.mxu0 0.0
      %692 = vmatpush1.msra.mxu0 %v285
      %693 = vmatprep.subr.mxu0 0.0
      %694 = vmatpush1.msra.mxu0 %v286
      %695 = vmatprep.subr.mxu0 0.0
      %696 = vmatpush1.msra.mxu0 %v287
      %697 = vmatprep.subr.mxu0 0.0
      %698 = vmatpush1.msra.mxu0 %v288
      %699 = vmatprep.subr.mxu0 0.0
      %700 = vmatpush1.msra.mxu0 %v289
      %701 = vmatprep.subr.mxu0 0.0
      %702 = vmatpush1.msra.mxu0 %v290
      %703 = vmatprep.subr.mxu0 0.0
      %704 = vmatpush1.msra.mxu0 %v291
      %705 = vmatprep.subr.mxu0 0.0
      %706 = vmatpush1.msra.mxu0 %v292
      %707 = vmatprep.subr.mxu0 0.0
      %708 = vmatpush1.msra.mxu0 0.0
      %709 = vmatprep.subr.mxu0 0.0
      %710 = vmatpush1.msra.mxu0 0.0
      %711 = vmatprep.subr.mxu0 0.0
      %712 = vmatpush1.msra.mxu0 0.0
      %713 = vmatprep.subr.mxu0 0.0
      %714 = vmatpush1.msra.mxu0 0.0
      %715 = vmatprep.subr.mxu0 0.0
      %716 = vmatpush1.msra.mxu0 0.0
      %717 = vmatprep.subr.mxu0 0.0
      %718 = vmatpush1.msra.mxu0 0.0
      %719 = vmatprep.subr.mxu0 0.0
      %720 = vmatpush1.msra.mxu0 0.0
      %721 = vmatprep.subr.mxu0 0.0
      %722 = vmatpush1.msra.mxu0 0.0
      %723 = vmatprep.subr.mxu0 0.0
      %724 = vmatpush1.msra.mxu0 0.0
      %725 = vmatprep.subr.mxu0 0.0
      %726 = vmatpush1.msra.mxu0 0.0
      %727 = vmatprep.subr.mxu0 0.0
      %728 = vmatpush1.msra.mxu0 0.0
      %729 = vmatprep.subr.mxu0 0.0
      %730 = vmatpush1.msra.mxu0 0.0
      %731 = vmatprep.subr.mxu0 0.0
      %732 = vmatpush1.msra.mxu0 0.0
      %733 = vmatprep.subr.mxu0 0.0
      %734 = vmatpush1.msra.mxu0 0.0
      %735 = vmatprep.subr.mxu0 0.0
      %736 = vmatpush1.msra.mxu0 0.0
      %737 = vmatprep.subr.mxu0 0.0
      %738 = vmatpush1.msra.mxu0 0.0
      %739 = vmatprep.mubr.f32.mxu0 0.0
      %740 = vmatmul.mubr.f32.gmra.mrb[0].mxu0 %v657
      %v741 = vpop.f32.mrb[0].mxu0
      %v742 = vadd.f32 0.0, %v741
      %v743 = vpop.f32.mrb[0].mxu0
      %744 = vmatprep.mubr.f32.mxu0 0.0
      %745 = vmatmul.mubr.f32.gmra.mrb[0].mxu0 %v658
      %v746 = vpop.f32.mrb[0].mxu0
      %v747 = vadd.f32 0.0, %v746
      %v748 = vpop.f32.mrb[0].mxu0
      %749 = vmatprep.mubr.f32.mxu0 0.0
      %750 = vmatmul.mubr.f32.gmra.mrb[0].mxu0 %v659
      %v751 = vpop.f32.mrb[0].mxu0
      %v752 = vadd.f32 0.0, %v751
      %v753 = vpop.f32.mrb[0].mxu0
      %754 = vmatprep.mubr.f32.mxu0 0.0
      %755 = vmatmul.mubr.f32.gmra.mrb[0].mxu0 %v660
      %v756 = vpop.f32.mrb[0].mxu0
      %v757 = vadd.f32 0.0, %v756
      %v758 = vpop.f32.mrb[0].mxu0
      %759 = vmatprep.mubr.f32.mxu0 0.0
      %760 = vmatmul.mubr.f32.gmra.mrb[0].mxu0 %v661
      %v761 = vpop.f32.mrb[0].mxu0
      %v762 = vadd.f32 0.0, %v761
      %v763 = vpop.f32.mrb[0].mxu0
      %764 = vmatprep.mubr.f32.mxu0 0.0
      %765 = vmatmul.mubr.f32.gmra.mrb[0].mxu0 %v662
      %v766 = vpop.f32.mrb[0].mxu0
      %v767 = vadd.f32 0.0, %v766
      %v768 = vpop.f32.mrb[0].mxu0
      %769 = vmatprep.mubr.f32.mxu0 0.0
      %770 = vmatmul.mubr.f32.gmra.mrb[0].mxu0 %v663
      %v771 = vpop.f32.mrb[0].mxu0
      %v772 = vadd.f32 0.0, %v771
      %v773 = vpop.f32.mrb[0].mxu0
      %774 = vmatprep.mubr.f32.mxu0 0.0
      %775 = vmatmul.mubr.f32.gmra.mrb[0].mxu0 %v664
      %v776 = vpop.f32.mrb[0].mxu0
      %v777 = vadd.f32 0.0, %v776
      %v778 = vpop.f32.mrb[0].mxu0
      %779 = vmatprep.mubr.f32.mxu0 0.0
      %780 = vmatmul.mubr.f32.gmra.mrb[0].mxu0 %v665
      %v781 = vpop.f32.mrb[0].mxu0
      %v782 = vadd.f32 0.0, %v781
      %v783 = vpop.f32.mrb[0].mxu0
      %784 = vmatprep.mubr.f32.mxu0 0.0
      %785 = vmatmul.mubr.f32.gmra.mrb[0].mxu0 %v666
      %v786 = vpop.f32.mrb[0].mxu0
      %v787 = vadd.f32 0.0, %v786
      %v788 = vpop.f32.mrb[0].mxu0
      %789 = vmatprep.mubr.f32.mxu0 0.0
      %790 = vmatmul.mubr.f32.gmra.mrb[0].mxu0 %v667
      %v791 = vpop.f32.mrb[0].mxu0
      %v792 = vadd.f32 0.0, %v791
      %v793 = vpop.f32.mrb[0].mxu0
      %794 = vmatprep.mubr.f32.mxu0 0.0
      %795 = vmatmul.mubr.f32.gmra.mrb[0].mxu0 %v668
      %v796 = vpop.f32.mrb[0].mxu0
      %v797 = vadd.f32 0.0, %v796
      %v798 = vpop.f32.mrb[0].mxu0
      %799 = vmatprep.mubr.f32.mxu0 0.0
      %800 = vmatmul.mubr.f32.gmra.mrb[0].mxu0 %v669
      %v801 = vpop.f32.mrb[0].mxu0
      %v802 = vadd.f32 0.0, %v801
      %v803 = vpop.f32.mrb[0].mxu0
      %804 = vmatprep.mubr.f32.mxu0 0.0
      %805 = vmatmul.mubr.f32.gmra.mrb[0].mxu0 %v670
      %v806 = vpop.f32.mrb[0].mxu0
      %v807 = vadd.f32 0.0, %v806
      %v808 = vpop.f32.mrb[0].mxu0
      %809 = vmatprep.mubr.f32.mxu0 0.0
      %810 = vmatmul.mubr.f32.gmra.mrb[0].mxu0 %v671
      %v811 = vpop.f32.mrb[0].mxu0
      %v812 = vadd.f32 0.0, %v811
      %v813 = vpop.f32.mrb[0].mxu0
      %814 = vmatprep.mubr.f32.mxu0 0.0
      %815 = vmatmul.mubr.f32.gmra.mrb[0].mxu0 %v672
      %v816 = vpop.f32.mrb[0].mxu0
      %v817 = vadd.f32 0.0, %v816
      %v818 = vpop.f32.mrb[0].mxu0
      %819 = vmatprep.mubr.f32.mxu0 0.0
      %820 = vmatmul.mubr.f32.gmra.mrb[0].mxu0 %v673
      %v821 = vpop.f32.mrb[0].mxu0
      %v822 = vadd.f32 0.0, %v821
      %v823 = vpop.f32.mrb[0].mxu0
      %824 = vmatprep.mubr.f32.mxu0 0.0
      %825 = vmatmul.mubr.f32.gmra.mrb[0].mxu0 %v674
      %v826 = vpop.f32.mrb[0].mxu0
      %v827 = vadd.f32 0.0, %v826
      %v828 = vpop.f32.mrb[0].mxu0
      %829 = vdwg.mxu0
      %v830 = vmax.f32 %v639, %v742
      %v831 = vmax.f32 %v640, %v747
      %v832 = vmax.f32 %v641, %v752
      %v833 = vmax.f32 %v642, %v757
      %v834 = vmax.f32 %v643, %v762
      %v835 = vmax.f32 %v644, %v767
      %v836 = vmax.f32 %v645, %v772
      %v837 = vmax.f32 %v646, %v777
      %v838 = vmax.f32 %v647, %v782
      %v839 = vmax.f32 %v648, %v787
      %v840 = vmax.f32 %v649, %v792
      %v841 = vmax.f32 %v650, %v797
      %v842 = vmax.f32 %v651, %v802
      %v843 = vmax.f32 %v652, %v807
      %v844 = vmax.f32 %v653, %v812
      %v845 = vmax.f32 %v654, %v817
      %v846 = vmax.f32 %v655, %v822
      %v847 = vmax.f32 %v656, %v827
      %v848 = vld [vmem:[%s272 + $0x1b0] sm:$0xff]
      %v849 = vld [vmem:[%s272 + $0x1b8] sm:$0xff]
      %v850 = vld [vmem:[%s272 + $0x1c0] sm:$0xff]
      %v851 = vld [vmem:[%s272 + $0x1c8] sm:$0xff]
      %v852 = vld [vmem:[%s272 + $0x1d0] sm:$0xff]
      %v853 = vld [vmem:[%s272 + $0x1d8] sm:$0xff]
      %v854 = vld [vmem:[%s272 + $0x1e0] sm:$0xff]
      %v855 = vld [vmem:[%s272 + $0x1e8] sm:$0xff]
      %v856 = vld [vmem:[%s272 + $0x1f0] sm:$0xff]
      %v857 = vld [vmem:[%s272 + $0x1f8] sm:$0xff]
      %v858 = vld [vmem:[%s272 + $0x200] sm:$0xff]
      %v859 = vld [vmem:[%s272 + $0x208] sm:$0xff]
      %v860 = vld [vmem:[%s272 + $0x210] sm:$0xff]
      %v861 = vld [vmem:[%s272 + $0x218] sm:$0xff]
      %v862 = vld [vmem:[%s272 + $0x220] sm:$0xff]
      %v863 = vld [vmem:[%s272 + $0x228] sm:$0xff]
      %v864 = vld [vmem:[%s272 + $0x230] sm:$0xff]
      %v865 = vld [vmem:[%s272 + $0x238] sm:$0xff]
      %866 = vmatprep.subr.mxu0 0.0
      %867 = vmatpush1.msra.mxu0 %v277
      %868 = vmatprep.subr.mxu0 0.0
      %869 = vmatpush1.msra.mxu0 %v278
      %870 = vmatprep.subr.mxu0 0.0
      %871 = vmatpush1.msra.mxu0 %v279
      %872 = vmatprep.subr.mxu0 0.0
      %873 = vmatpush1.msra.mxu0 %v280
      %874 = vmatprep.subr.mxu0 0.0
      %875 = vmatpush1.msra.mxu0 %v281
      %876 = vmatprep.subr.mxu0 0.0
      %877 = vmatpush1.msra.mxu0 %v282
      %878 = vmatprep.subr.mxu0 0.0
      %879 = vmatpush1.msra.mxu0 %v283
      %880 = vmatprep.subr.mxu0 0.0
      %881 = vmatpush1.msra.mxu0 %v284
      %882 = vmatprep.subr.mxu0 0.0
      %883 = vmatpush1.msra.mxu0 %v285
      %884 = vmatprep.subr.mxu0 0.0
      %885 = vmatpush1.msra.mxu0 %v286
      %886 = vmatprep.subr.mxu0 0.0
      %887 = vmatpush1.msra.mxu0 %v287
      %888 = vmatprep.subr.mxu0 0.0
      %889 = vmatpush1.msra.mxu0 %v288
      %890 = vmatprep.subr.mxu0 0.0
      %891 = vmatpush1.msra.mxu0 %v289
      %892 = vmatprep.subr.mxu0 0.0
      %893 = vmatpush1.msra.mxu0 %v290
      %894 = vmatprep.subr.mxu0 0.0
      %895 = vmatpush1.msra.mxu0 %v291
      %896 = vmatprep.subr.mxu0 0.0
      %897 = vmatpush1.msra.mxu0 %v292
      %898 = vmatprep.subr.mxu0 0.0
      %899 = vmatpush1.msra.mxu0 0.0
      %900 = vmatprep.subr.mxu0 0.0
      %901 = vmatpush1.msra.mxu0 0.0
      %902 = vmatprep.subr.mxu0 0.0
      %903 = vmatpush1.msra.mxu0 0.0
      %904 = vmatprep.subr.mxu0 0.0
      %905 = vmatpush1.msra.mxu0 0.0
      %906 = vmatprep.subr.mxu0 0.0
      %907 = vmatpush1.msra.mxu0 0.0
      %908 = vmatprep.subr.mxu0 0.0
      %909 = vmatpush1.msra.mxu0 0.0
      %910 = vmatprep.subr.mxu0 0.0
      %911 = vmatpush1.msra.mxu0 0.0
      %912 = vmatprep.subr.mxu0 0.0
      %913 = vmatpush1.msra.mxu0 0.0
      %914 = vmatprep.subr.mxu0 0.0
      %915 = vmatpush1.msra.mxu0 0.0
      %916 = vmatprep.subr.mxu0 0.0
      %917 = vmatpush1.msra.mxu0 0.0
      %918 = vmatprep.subr.mxu0 0.0
      %919 = vmatpush1.msra.mxu0 0.0
      %920 = vmatprep.subr.mxu0 0.0
      %921 = vmatpush1.msra.mxu0 0.0
      %922 = vmatprep.subr.mxu0 0.0
      %923 = vmatpush1.msra.mxu0 0.0
      %924 = vmatprep.subr.mxu0 0.0
      %925 = vmatpush1.msra.mxu0 0.0
      %926 = vmatprep.subr.mxu0 0.0
      %927 = vmatpush1.msra.mxu0 0.0
      %928 = vmatprep.subr.mxu0 0.0
      %929 = vmatpush1.msra.mxu0 0.0
      %930 = vmatprep.mubr.f32.mxu0 0.0
      %931 = vmatmul.mubr.f32.gmra.mrb[0].mxu0 %v848
      %v932 = vpop.f32.mrb[0].mxu0
      %v933 = vadd.f32 0.0, %v932
      %v934 = vpop.f32.mrb[0].mxu0
      %935 = vmatprep.mubr.f32.mxu0 0.0
      %936 = vmatmul.mubr.f32.gmra.mrb[0].mxu0 %v849
      %v937 = vpop.f32.mrb[0].mxu0
      %v938 = vadd.f32 0.0, %v937
      %v939 = vpop.f32.mrb[0].mxu0
      %940 = vmatprep.mubr.f32.mxu0 0.0
      %941 = vmatmul.mubr.f32.gmra.mrb[0].mxu0 %v850
      %v942 = vpop.f32.mrb[0].mxu0
      %v943 = vadd.f32 0.0, %v942
      %v944 = vpop.f32.mrb[0].mxu0
      %945 = vmatprep.mubr.f32.mxu0 0.0
      %946 = vmatmul.mubr.f32.gmra.mrb[0].mxu0 %v851
      %v947 = vpop.f32.mrb[0].mxu0
      %v948 = vadd.f32 0.0, %v947
      %v949 = vpop.f32.mrb[0].mxu0
      %950 = vmatprep.mubr.f32.mxu0 0.0
      %951 = vmatmul.mubr.f32.gmra.mrb[0].mxu0 %v852
      %v952 = vpop.f32.mrb[0].mxu0
      %v953 = vadd.f32 0.0, %v952
      %v954 = vpop.f32.mrb[0].mxu0
      %955 = vmatprep.mubr.f32.mxu0 0.0
      %956 = vmatmul.mubr.f32.gmra.mrb[0].mxu0 %v853
      %v957 = vpop.f32.mrb[0].mxu0
      %v958 = vadd.f32 0.0, %v957
      %v959 = vpop.f32.mrb[0].mxu0
      %960 = vmatprep.mubr.f32.mxu0 0.0
      %961 = vmatmul.mubr.f32.gmra.mrb[0].mxu0 %v854
      %v962 = vpop.f32.mrb[0].mxu0
      %v963 = vadd.f32 0.0, %v962
      %v964 = vpop.f32.mrb[0].mxu0
      %965 = vmatprep.mubr.f32.mxu0 0.0
      %966 = vmatmul.mubr.f32.gmra.mrb[0].mxu0 %v855
      %v967 = vpop.f32.mrb[0].mxu0
      %v968 = vadd.f32 0.0, %v967
      %v969 = vpop.f32.mrb[0].mxu0
      %970 = vmatprep.mubr.f32.mxu0 0.0
      %971 = vmatmul.mubr.f32.gmra.mrb[0].mxu0 %v856
      %v972 = vpop.f32.mrb[0].mxu0
      %v973 = vadd.f32 0.0, %v972
      %v974 = vpop.f32.mrb[0].mxu0
      %975 = vmatprep.mubr.f32.mxu0 0.0
      %976 = vmatmul.mubr.f32.gmra.mrb[0].mxu0 %v857
      %v977 = vpop.f32.mrb[0].mxu0
      %v978 = vadd.f32 0.0, %v977
      %v979 = vpop.f32.mrb[0].mxu0
      %980 = vmatprep.mubr.f32.mxu0 0.0
      %981 = vmatmul.mubr.f32.gmra.mrb[0].mxu0 %v858
      %v982 = vpop.f32.mrb[0].mxu0
      %v983 = vadd.f32 0.0, %v982
      %v984 = vpop.f32.mrb[0].mxu0
      %985 = vmatprep.mubr.f32.mxu0 0.0
      %986 = vmatmul.mubr.f32.gmra.mrb[0].mxu0 %v859
      %v987 = vpop.f32.mrb[0].mxu0
      %v988 = vadd.f32 0.0, %v987
      %v989 = vpop.f32.mrb[0].mxu0
      %990 = vmatprep.mubr.f32.mxu0 0.0
      %991 = vmatmul.mubr.f32.gmra.mrb[0].mxu0 %v860
      %v992 = vpop.f32.mrb[0].mxu0
      %v993 = vadd.f32 0.0, %v992
      %v994 = vpop.f32.mrb[0].mxu0
      %995 = vmatprep.mubr.f32.mxu0 0.0
      %996 = vmatmul.mubr.f32.gmra.mrb[0].mxu0 %v861
      %v997 = vpop.f32.mrb[0].mxu0
      %v998 = vadd.f32 0.0, %v997
      %v999 = vpop.f32.mrb[0].mxu0
      %1000 = vmatprep.mubr.f32.mxu0 0.0
      %1001 = vmatmul.mubr.f32.gmra.mrb[0].mxu0 %v862
      %v1002 = vpop.f32.mrb[0].mxu0
      %v1003 = vadd.f32 0.0, %v1002
      %v1004 = vpop.f32.mrb[0].mxu0
      %1005 = vmatprep.mubr.f32.mxu0 0.0
      %1006 = vmatmul.mubr.f32.gmra.mrb[0].mxu0 %v863
      %v1007 = vpop.f32.mrb[0].mxu0
      %v1008 = vadd.f32 0.0, %v1007
      %v1009 = vpop.f32.mrb[0].mxu0
      %1010 = vmatprep.mubr.f32.mxu0 0.0
      %1011 = vmatmul.mubr.f32.gmra.mrb[0].mxu0 %v864
      %v1012 = vpop.f32.mrb[0].mxu0
      %v1013 = vadd.f32 0.0, %v1012
      %v1014 = vpop.f32.mrb[0].mxu0
      %1015 = vmatprep.mubr.f32.mxu0 0.0
      %1016 = vmatmul.mubr.f32.gmra.mrb[0].mxu0 %v865
      %v1017 = vpop.f32.mrb[0].mxu0
      %v1018 = vadd.f32 0.0, %v1017
      %v1019 = vpop.f32.mrb[0].mxu0
      %1020 = vdwg.mxu0
      %v1021 = vmax.f32 %v830, %v933
      %v1022 = vmax.f32 %v831, %v938
      %v1023 = vmax.f32 %v832, %v943
      %v1024 = vmax.f32 %v833, %v948
      %v1025 = vmax.f32 %v834, %v953
      %v1026 = vmax.f32 %v835, %v958
      %v1027 = vmax.f32 %v836, %v963
      %v1028 = vmax.f32 %v837, %v968
      %v1029 = vmax.f32 %v838, %v973
      %v1030 = vmax.f32 %v839, %v978
      %v1031 = vmax.f32 %v840, %v983
      %v1032 = vmax.f32 %v841, %v988
      %v1033 = vmax.f32 %v842, %v993
      %v1034 = vmax.f32 %v843, %v998
      %v1035 = vmax.f32 %v844, %v1003
      %v1036 = vmax.f32 %v845, %v1008
      %v1037 = vmax.f32 %v846, %v1013
      %v1038 = vmax.f32 %v847, %v1018
      %v1039 = vld [vmem:[%s2] sm:$0x1]
      %v1041 = vlaneseq
      %v1042 = vshrl.u32 %v1041, 7
      %v1043 = vsub.s32 0, %v1042
      %v1044 = vrot.slane %v1039, %v1043
      %v1046 = vadd.f32 %v1021, %v1044
      %v1047 = vadd.f32 %v1022, %v1044
      %v1048 = vadd.f32 %v1023, %v1044
      %v1049 = vadd.f32 %v1024, %v1044
      %v1050 = vadd.f32 %v1025, %v1044
      %v1051 = vadd.f32 %v1026, %v1044
      %v1052 = vadd.f32 %v1027, %v1044
      %v1053 = vadd.f32 %v1028, %v1044
      %v1054 = vadd.f32 %v1029, %v1044
      %v1055 = vadd.f32 %v1030, %v1044
      %v1056 = vadd.f32 %v1031, %v1044
      %v1057 = vadd.f32 %v1032, %v1044
      %v1058 = vadd.f32 %v1033, %v1044
      %v1059 = vadd.f32 %v1034, %v1044
      %v1060 = vadd.f32 %v1035, %v1044
      %v1061 = vadd.f32 %v1036, %v1044
      %v1062 = vadd.f32 %v1037, %v1044
      %v1063 = vadd.f32 %v1038, %v1044
      %v1064 = vmax.f32 %v1046, 0.0
      %v1065 = vmax.f32 %v1047, 0.0
      %v1066 = vmax.f32 %v1048, 0.0
      %v1067 = vmax.f32 %v1049, 0.0
      %v1068 = vmax.f32 %v1050, 0.0
      %v1069 = vmax.f32 %v1051, 0.0
      %v1070 = vmax.f32 %v1052, 0.0
      %v1071 = vmax.f32 %v1053, 0.0
      %v1072 = vmax.f32 %v1054, 0.0
      %v1073 = vmax.f32 %v1055, 0.0
      %v1074 = vmax.f32 %v1056, 0.0
      %v1075 = vmax.f32 %v1057, 0.0
      %v1076 = vmax.f32 %v1058, 0.0
      %v1077 = vmax.f32 %v1059, 0.0
      %v1078 = vmax.f32 %v1060, 0.0
      %v1079 = vmax.f32 %v1061, 0.0
      %v1080 = vmax.f32 %v1062, 0.0
      %v1081 = vmax.f32 %v1063, 0.0
      %1082 = vst [vmem:[#allocation2] sm:$0xff] %v1064
      %1083 = vst [vmem:[#allocation2 + $0x8] sm:$0xf] %v1065
      %s1084 = scalar_lea.vmem [#allocation2], 16
      %1085 = vst [vmem:[%s1084 - $0x4] sm:$0xf0] %v1065
      %1086 = vst [vmem:[%s1084 + $0x4] sm:$0xff] %v1066
      %s1087 = scalar_lea.vmem [#allocation2], 32
      %1088 = vst [vmem:[%s1087] sm:$0xff] %v1067
      %1089 = vst [vmem:[%s1087 + $0x8] sm:$0xf] %v1068
      %s1090 = scalar_lea.vmem [#allocation2], 48
      %1091 = vst [vmem:[%s1090 - $0x4] sm:$0xf0] %v1068
      %1092 = vst [vmem:[%s1090 + $0x4] sm:$0xff] %v1069
      %s1093 = scalar_lea.vmem [#allocation2], 64
      %1094 = vst [vmem:[%s1093] sm:$0xff] %v1070
      %1095 = vst [vmem:[%s1093 + $0x8] sm:$0xf] %v1071
      %s1096 = scalar_lea.vmem [#allocation2], 80
      %1097 = vst [vmem:[%s1096 - $0x4] sm:$0xf0] %v1071
      %1098 = vst [vmem:[%s1096 + $0x4] sm:$0xff] %v1072
      %s1099 = scalar_lea.vmem [#allocation2], 96
      %1100 = vst [vmem:[%s1099] sm:$0xff] %v1073
      %1101 = vst [vmem:[%s1099 + $0x8] sm:$0xf] %v1074
      %s1102 = scalar_lea.vmem [#allocation2], 112
      %1103 = vst [vmem:[%s1102 - $0x4] sm:$0xf0] %v1074
      %1104 = vst [vmem:[%s1102 + $0x4] sm:$0xff] %v1075
      %s1105 = scalar_lea.vmem [#allocation2], 128
      %1106 = vst [vmem:[%s1105] sm:$0xff] %v1076
      %1107 = vst [vmem:[%s1105 + $0x8] sm:$0xf] %v1077
      %s1108 = scalar_lea.vmem [#allocation2], 144
      %1109 = vst [vmem:[%s1108 - $0x4] sm:$0xf0] %v1077
      %1110 = vst [vmem:[%s1108 + $0x4] sm:$0xff] %v1078
      %s1111 = scalar_lea.vmem [#allocation2], 160
      %1112 = vst [vmem:[%s1111] sm:$0xff] %v1079
      %1113 = vst [vmem:[%s1111 + $0x8] sm:$0xf] %v1080
      %s1114 = scalar_lea.vmem [#allocation2], 176
      %1115 = vst [vmem:[%s1114 - $0x4] sm:$0xf0] %v1080
      %1116 = vst [vmem:[%s1114 + $0x4] sm:$0xff] %v1081
      %v1117 = vld [vmem:[%s4] sm:$0x1]
      %v1119 = vlaneseq
      %v1120 = vshrl.u32 %v1119, 7
      %v1121 = vsub.s32 0, %v1120
      %v1122 = vrot.slane %v1117, %v1121
      %v1124 = vld [vmem:[#allocation2] sm:$0xff]
      %v1125 = vld [vmem:[#allocation2 + $0x10] sm:$0xff]
      %v1126 = vld [vmem:[#allocation2 + $0x20] sm:$0xff]
      %v1127 = vld [vmem:[#allocation2 + $0x30] sm:$0xff]
      %v1128 = vld [vmem:[#allocation2 + $0x40] sm:$0xff]
      %v1129 = vld [vmem:[#allocation2 + $0x50] sm:$0xff]
      %v1130 = vld [vmem:[#allocation2 + $0x60] sm:$0xff]
      %v1131 = vld [vmem:[#allocation2 + $0x70] sm:$0xff]
      %v1132 = vld [vmem:[%s3] sm:$0xff]
      %v1133 = vld [vmem:[%s3 + $0x8] sm:$0xff]
      %v1134 = vld [vmem:[%s3 + $0x10] sm:$0xff]
      %v1135 = vld [vmem:[%s3 + $0x18] sm:$0xff]
      %v1136 = vld [vmem:[%s3 + $0x20] sm:$0xff]
      %v1137 = vld [vmem:[%s3 + $0x28] sm:$0xff]
      %v1138 = vld [vmem:[%s3 + $0x30] sm:$0xff]
      %v1139 = vld [vmem:[%s3 + $0x38] sm:$0xff]
      %v1140 = vld [vmem:[%s3 + $0x40] sm:$0xff]
      %v1141 = vld [vmem:[%s3 + $0x48] sm:$0xff]
      %v1142 = vld [vmem:[%s3 + $0x50] sm:$0xff]
      %v1143 = vld [vmem:[%s3 + $0x58] sm:$0xff]
      %v1144 = vld [vmem:[%s3 + $0x60] sm:$0xff]
      %v1145 = vld [vmem:[%s3 + $0x68] sm:$0xff]
      %v1146 = vld [vmem:[%s3 + $0x70] sm:$0xff]
      %v1147 = vld [vmem:[%s3 + $0x78] sm:$0xff]
      %1148 = vmatprep.subr.mxu0 0.0
      %1149 = vmatpush1.msra.mxu0 %v1132
      %1150 = vmatprep.subr.mxu0 0.0
      %1151 = vmatpush1.msra.mxu0 %v1133
      %1152 = vmatprep.subr.mxu0 0.0
      %1153 = vmatpush1.msra.mxu0 %v1134
      %1154 = vmatprep.subr.mxu0 0.0
      %1155 = vmatpush1.msra.mxu0 %v1135
      %1156 = vmatprep.subr.mxu0 0.0
      %1157 = vmatpush1.msra.mxu0 %v1136
      %1158 = vmatprep.subr.mxu0 0.0
      %1159 = vmatpush1.msra.mxu0 %v1137
      %1160 = vmatprep.subr.mxu0 0.0
      %1161 = vmatpush1.msra.mxu0 %v1138
      %1162 = vmatprep.subr.mxu0 0.0
      %1163 = vmatpush1.msra.mxu0 %v1139
      %1164 = vmatprep.subr.mxu0 0.0
      %1165 = vmatpush1.msra.mxu0 %v1140
      %1166 = vmatprep.subr.mxu0 0.0
      %1167 = vmatpush1.msra.mxu0 %v1141
      %1168 = vmatprep.subr.mxu0 0.0
      %1169 = vmatpush1.msra.mxu0 %v1142
      %1170 = vmatprep.subr.mxu0 0.0
      %1171 = vmatpush1.msra.mxu0 %v1143
      %1172 = vmatprep.subr.mxu0 0.0
      %1173 = vmatpush1.msra.mxu0 %v1144
      %1174 = vmatprep.subr.mxu0 0.0
      %1175 = vmatpush1.msra.mxu0 %v1145
      %1176 = vmatprep.subr.mxu0 0.0
      %1177 = vmatpush1.msra.mxu0 %v1146
      %1178 = vmatprep.subr.mxu0 0.0
      %1179 = vmatpush1.msra.mxu0 %v1147
      %1180 = vmatprep.subr.mxu0 0.0
      %1181 = vmatpush1.msra.mxu0 0.0
      %1182 = vmatprep.subr.mxu0 0.0
      %1183 = vmatpush1.msra.mxu0 0.0
      %1184 = vmatprep.subr.mxu0 0.0
      %1185 = vmatpush1.msra.mxu0 0.0
      %1186 = vmatprep.subr.mxu0 0.0
      %1187 = vmatpush1.msra.mxu0 0.0
      %1188 = vmatprep.subr.mxu0 0.0
      %1189 = vmatpush1.msra.mxu0 0.0
      %1190 = vmatprep.subr.mxu0 0.0
      %1191 = vmatpush1.msra.mxu0 0.0
      %1192 = vmatprep.subr.mxu0 0.0
      %1193 = vmatpush1.msra.mxu0 0.0
      %1194 = vmatprep.subr.mxu0 0.0
      %1195 = vmatpush1.msra.mxu0 0.0
      %1196 = vmatprep.subr.mxu0 0.0
      %1197 = vmatpush1.msra.mxu0 0.0
      %1198 = vmatprep.subr.mxu0 0.0
      %1199 = vmatpush1.msra.mxu0 0.0
      %1200 = vmatprep.subr.mxu0 0.0
      %1201 = vmatpush1.msra.mxu0 0.0
      %1202 = vmatprep.subr.mxu0 0.0
      %1203 = vmatpush1.msra.mxu0 0.0
      %1204 = vmatprep.subr.mxu0 0.0
      %1205 = vmatpush1.msra.mxu0 0.0
      %1206 = vmatprep.subr.mxu0 0.0
      %1207 = vmatpush1.msra.mxu0 0.0
      %1208 = vmatprep.subr.mxu0 0.0
      %1209 = vmatpush1.msra.mxu0 0.0
      %1210 = vmatprep.subr.mxu0 0.0
      %1211 = vmatpush1.msra.mxu0 0.0
      %1212 = vmatprep.mubr.f32.mxu0 0.0
      %1213 = vmatmul.mubr.f32.gmra.mrb[0].mxu0 %v1124
      %v1214 = vpop.f32.mrb[0].mxu0
      %v1215 = vadd.f32 0.0, %v1214
      %v1216 = vpop.f32.mrb[0].mxu0
      %1217 = vmatprep.mubr.f32.mxu0 0.0
      %1218 = vmatmul.mubr.f32.gmra.mrb[0].mxu0 %v1125
      %v1219 = vpop.f32.mrb[0].mxu0
      %v1220 = vadd.f32 0.0, %v1219
      %v1221 = vpop.f32.mrb[0].mxu0
      %1222 = vmatprep.mubr.f32.mxu0 0.0
      %1223 = vmatmul.mubr.f32.gmra.mrb[0].mxu0 %v1126
      %v1224 = vpop.f32.mrb[0].mxu0
      %v1225 = vadd.f32 0.0, %v1224
      %v1226 = vpop.f32.mrb[0].mxu0
      %1227 = vmatprep.mubr.f32.mxu0 0.0
      %1228 = vmatmul.mubr.f32.gmra.mrb[0].mxu0 %v1127
      %v1229 = vpop.f32.mrb[0].mxu0
      %v1230 = vadd.f32 0.0, %v1229
      %v1231 = vpop.f32.mrb[0].mxu0
      %1232 = vmatprep.mubr.f32.mxu0 0.0
      %1233 = vmatmul.mubr.f32.gmra.mrb[0].mxu0 %v1128
      %v1234 = vpop.f32.mrb[0].mxu0
      %v1235 = vadd.f32 0.0, %v1234
      %v1236 = vpop.f32.mrb[0].mxu0
      %1237 = vmatprep.mubr.f32.mxu0 0.0
      %1238 = vmatmul.mubr.f32.gmra.mrb[0].mxu0 %v1129
      %v1239 = vpop.f32.mrb[0].mxu0
      %v1240 = vadd.f32 0.0, %v1239
      %v1241 = vpop.f32.mrb[0].mxu0
      %1242 = vmatprep.mubr.f32.mxu0 0.0
      %1243 = vmatmul.mubr.f32.gmra.mrb[0].mxu0 %v1130
      %v1244 = vpop.f32.mrb[0].mxu0
      %v1245 = vadd.f32 0.0, %v1244
      %v1246 = vpop.f32.mrb[0].mxu0
      %1247 = vmatprep.mubr.f32.mxu0 0.0
      %1248 = vmatmul.mubr.f32.gmra.mrb[0].mxu0 %v1131
      %v1249 = vpop.f32.mrb[0].mxu0
      %v1250 = vadd.f32 0.0, %v1249
      %v1251 = vpop.f32.mrb[0].mxu0
      %1252 = vdwg.mxu0
      %v1253 = vadd.f32 %v1122, %v1215
      %v1254 = vadd.f32 %v1122, %v1220
      %v1255 = vadd.f32 %v1122, %v1225
      %v1256 = vadd.f32 %v1122, %v1230
      %v1257 = vadd.f32 %v1122, %v1235
      %v1258 = vadd.f32 %v1122, %v1240
      %v1259 = vadd.f32 %v1122, %v1245
      %v1260 = vadd.f32 %v1122, %v1250
      %v1261 = vld [vmem:[#allocation2 + $0x1] sm:$0xff]
      %v1262 = vld [vmem:[#allocation2 + $0x11] sm:$0xff]
      %v1263 = vld [vmem:[#allocation2 + $0x21] sm:$0xff]
      %v1264 = vld [vmem:[#allocation2 + $0x31] sm:$0xff]
      %v1265 = vld [vmem:[#allocation2 + $0x41] sm:$0xff]
      %v1266 = vld [vmem:[#allocation2 + $0x51] sm:$0xff]
      %v1267 = vld [vmem:[#allocation2 + $0x61] sm:$0xff]
      %v1268 = vld [vmem:[#allocation2 + $0x71] sm:$0xff]
      %s1269 = scalar_lea.vmem %s3, 128
      %v1270 = vld [vmem:[%s1269] sm:$0xff]
      %v1271 = vld [vmem:[%s1269 + $0x8] sm:$0xff]
      %v1272 = vld [vmem:[%s1269 + $0x10] sm:$0xff]
      %v1273 = vld [vmem:[%s1269 + $0x18] sm:$0xff]
      %v1274 = vld [vmem:[%s1269 + $0x20] sm:$0xff]
      %v1275 = vld [vmem:[%s1269 + $0x28] sm:$0xff]
      %v1276 = vld [vmem:[%s1269 + $0x30] sm:$0xff]
      %v1277 = vld [vmem:[%s1269 + $0x38] sm:$0xff]
      %v1278 = vld [vmem:[%s1269 + $0x40] sm:$0xff]
      %v1279 = vld [vmem:[%s1269 + $0x48] sm:$0xff]
      %v1280 = vld [vmem:[%s1269 + $0x50] sm:$0xff]
      %v1281 = vld [vmem:[%s1269 + $0x58] sm:$0xff]
      %v1282 = vld [vmem:[%s1269 + $0x60] sm:$0xff]
      %v1283 = vld [vmem:[%s1269 + $0x68] sm:$0xff]
      %v1284 = vld [vmem:[%s1269 + $0x70] sm:$0xff]
      %v1285 = vld [vmem:[%s1269 + $0x78] sm:$0xff]
      %1286 = vmatprep.subr.mxu0 0.0
      %1287 = vmatpush1.msra.mxu0 %v1270
      %1288 = vmatprep.subr.mxu0 0.0
      %1289 = vmatpush1.msra.mxu0 %v1271
      %1290 = vmatprep.subr.mxu0 0.0
      %1291 = vmatpush1.msra.mxu0 %v1272
      %1292 = vmatprep.subr.mxu0 0.0
      %1293 = vmatpush1.msra.mxu0 %v1273
      %1294 = vmatprep.subr.mxu0 0.0
      %1295 = vmatpush1.msra.mxu0 %v1274
      %1296 = vmatprep.subr.mxu0 0.0
      %1297 = vmatpush1.msra.mxu0 %v1275
      %1298 = vmatprep.subr.mxu0 0.0
      %1299 = vmatpush1.msra.mxu0 %v1276
      %1300 = vmatprep.subr.mxu0 0.0
      %1301 = vmatpush1.msra.mxu0 %v1277
      %1302 = vmatprep.subr.mxu0 0.0
      %1303 = vmatpush1.msra.mxu0 %v1278
      %1304 = vmatprep.subr.mxu0 0.0
      %1305 = vmatpush1.msra.mxu0 %v1279
      %1306 = vmatprep.subr.mxu0 0.0
      %1307 = vmatpush1.msra.mxu0 %v1280
      %1308 = vmatprep.subr.mxu0 0.0
      %1309 = vmatpush1.msra.mxu0 %v1281
      %1310 = vmatprep.subr.mxu0 0.0
      %1311 = vmatpush1.msra.mxu0 %v1282
      %1312 = vmatprep.subr.mxu0 0.0
      %1313 = vmatpush1.msra.mxu0 %v1283
      %1314 = vmatprep.subr.mxu0 0.0
      %1315 = vmatpush1.msra.mxu0 %v1284
      %1316 = vmatprep.subr.mxu0 0.0
      %1317 = vmatpush1.msra.mxu0 %v1285
      %1318 = vmatprep.subr.mxu0 0.0
      %1319 = vmatpush1.msra.mxu0 0.0
      %1320 = vmatprep.subr.mxu0 0.0
      %1321 = vmatpush1.msra.mxu0 0.0
      %1322 = vmatprep.subr.mxu0 0.0
      %1323 = vmatpush1.msra.mxu0 0.0
      %1324 = vmatprep.subr.mxu0 0.0
      %1325 = vmatpush1.msra.mxu0 0.0
      %1326 = vmatprep.subr.mxu0 0.0
      %1327 = vmatpush1.msra.mxu0 0.0
      %1328 = vmatprep.subr.mxu0 0.0
      %1329 = vmatpush1.msra.mxu0 0.0
      %1330 = vmatprep.subr.mxu0 0.0
      %1331 = vmatpush1.msra.mxu0 0.0
      %1332 = vmatprep.subr.mxu0 0.0
      %1333 = vmatpush1.msra.mxu0 0.0
      %1334 = vmatprep.subr.mxu0 0.0
      %1335 = vmatpush1.msra.mxu0 0.0
      %1336 = vmatprep.subr.mxu0 0.0
      %1337 = vmatpush1.msra.mxu0 0.0
      %1338 = vmatprep.subr.mxu0 0.0
      %1339 = vmatpush1.msra.mxu0 0.0
      %1340 = vmatprep.subr.mxu0 0.0
      %1341 = vmatpush1.msra.mxu0 0.0
      %1342 = vmatprep.subr.mxu0 0.0
      %1343 = vmatpush1.msra.mxu0 0.0
      %1344 = vmatprep.subr.mxu0 0.0
      %1345 = vmatpush1.msra.mxu0 0.0
      %1346 = vmatprep.subr.mxu0 0.0
      %1347 = vmatpush1.msra.mxu0 0.0
      %1348 = vmatprep.subr.mxu0 0.0
      %1349 = vmatpush1.msra.mxu0 0.0
      %1350 = vmatprep.mubr.f32.mxu0 0.0
      %1351 = vmatmul.mubr.f32.gmra.mrb[0].mxu0 %v1261
      %v1352 = vpop.f32.mrb[0].mxu0
      %v1353 = vadd.f32 0.0, %v1352
      %v1354 = vpop.f32.mrb[0].mxu0
      %1355 = vmatprep.mubr.f32.mxu0 0.0
      %1356 = vmatmul.mubr.f32.gmra.mrb[0].mxu0 %v1262
      %v1357 = vpop.f32.mrb[0].mxu0
      %v1358 = vadd.f32 0.0, %v1357
      %v1359 = vpop.f32.mrb[0].mxu0
      %1360 = vmatprep.mubr.f32.mxu0 0.0
      %1361 = vmatmul.mubr.f32.gmra.mrb[0].mxu0 %v1263
      %v1362 = vpop.f32.mrb[0].mxu0
      %v1363 = vadd.f32 0.0, %v1362
      %v1364 = vpop.f32.mrb[0].mxu0
      %1365 = vmatprep.mubr.f32.mxu0 0.0
      %1366 = vmatmul.mubr.f32.gmra.mrb[0].mxu0 %v1264
      %v1367 = vpop.f32.mrb[0].mxu0
      %v1368 = vadd.f32 0.0, %v1367
      %v1369 = vpop.f32.mrb[0].mxu0
      %1370 = vmatprep.mubr.f32.mxu0 0.0
      %1371 = vmatmul.mubr.f32.gmra.mrb[0].mxu0 %v1265
      %v1372 = vpop.f32.mrb[0].mxu0
      %v1373 = vadd.f32 0.0, %v1372
      %v1374 = vpop.f32.mrb[0].mxu0
      %1375 = vmatprep.mubr.f32.mxu0 0.0
      %1376 = vmatmul.mubr.f32.gmra.mrb[0].mxu0 %v1266
      %v1377 = vpop.f32.mrb[0].mxu0
      %v1378 = vadd.f32 0.0, %v1377
      %v1379 = vpop.f32.mrb[0].mxu0
      %1380 = vmatprep.mubr.f32.mxu0 0.0
      %1381 = vmatmul.mubr.f32.gmra.mrb[0].mxu0 %v1267
      %v1382 = vpop.f32.mrb[0].mxu0
      %v1383 = vadd.f32 0.0, %v1382
      %v1384 = vpop.f32.mrb[0].mxu0
      %1385 = vmatprep.mubr.f32.mxu0 0.0
      %1386 = vmatmul.mubr.f32.gmra.mrb[0].mxu0 %v1268
      %v1387 = vpop.f32.mrb[0].mxu0
      %v1388 = vadd.f32 0.0, %v1387
      %v1389 = vpop.f32.mrb[0].mxu0
      %1390 = vdwg.mxu0
      %v1391 = vadd.f32 %v1253, %v1353
      %v1392 = vadd.f32 %v1254, %v1358
      %v1393 = vadd.f32 %v1255, %v1363
      %v1394 = vadd.f32 %v1256, %v1368
      %v1395 = vadd.f32 %v1257, %v1373
      %v1396 = vadd.f32 %v1258, %v1378
      %v1397 = vadd.f32 %v1259, %v1383
      %v1398 = vadd.f32 %v1260, %v1388
      %v1399 = vld [vmem:[#allocation2 + $0x2] sm:$0xff]
      %v1400 = vld [vmem:[#allocation2 + $0x12] sm:$0xff]
      %v1401 = vld [vmem:[#allocation2 + $0x22] sm:$0xff]
      %v1402 = vld [vmem:[#allocation2 + $0x32] sm:$0xff]
      %v1403 = vld [vmem:[#allocation2 + $0x42] sm:$0xff]
      %v1404 = vld [vmem:[#allocation2 + $0x52] sm:$0xff]
      %v1405 = vld [vmem:[#allocation2 + $0x62] sm:$0xff]
      %v1406 = vld [vmem:[#allocation2 + $0x72] sm:$0xff]
      %s1407 = scalar_lea.vmem %s3, 256
      %v1408 = vld [vmem:[%s1407] sm:$0xff]
      %v1409 = vld [vmem:[%s1407 + $0x8] sm:$0xff]
      %v1410 = vld [vmem:[%s1407 + $0x10] sm:$0xff]
      %v1411 = vld [vmem:[%s1407 + $0x18] sm:$0xff]
      %v1412 = vld [vmem:[%s1407 + $0x20] sm:$0xff]
      %v1413 = vld [vmem:[%s1407 + $0x28] sm:$0xff]
      %v1414 = vld [vmem:[%s1407 + $0x30] sm:$0xff]
      %v1415 = vld [vmem:[%s1407 + $0x38] sm:$0xff]
      %v1416 = vld [vmem:[%s1407 + $0x40] sm:$0xff]
      %v1417 = vld [vmem:[%s1407 + $0x48] sm:$0xff]
      %v1418 = vld [vmem:[%s1407 + $0x50] sm:$0xff]
      %v1419 = vld [vmem:[%s1407 + $0x58] sm:$0xff]
      %v1420 = vld [vmem:[%s1407 + $0x60] sm:$0xff]
      %v1421 = vld [vmem:[%s1407 + $0x68] sm:$0xff]
      %v1422 = vld [vmem:[%s1407 + $0x70] sm:$0xff]
      %v1423 = vld [vmem:[%s1407 + $0x78] sm:$0xff]
      %1424 = vmatprep.subr.mxu0 0.0
      %1425 = vmatpush1.msra.mxu0 %v1408
      %1426 = vmatprep.subr.mxu0 0.0
      %1427 = vmatpush1.msra.mxu0 %v1409
      %1428 = vmatprep.subr.mxu0 0.0
      %1429 = vmatpush1.msra.mxu0 %v1410
      %1430 = vmatprep.subr.mxu0 0.0
      %1431 = vmatpush1.msra.mxu0 %v1411
      %1432 = vmatprep.subr.mxu0 0.0
      %1433 = vmatpush1.msra.mxu0 %v1412
      %1434 = vmatprep.subr.mxu0 0.0
      %1435 = vmatpush1.msra.mxu0 %v1413
      %1436 = vmatprep.subr.mxu0 0.0
      %1437 = vmatpush1.msra.mxu0 %v1414
      %1438 = vmatprep.subr.mxu0 0.0
      %1439 = vmatpush1.msra.mxu0 %v1415
      %1440 = vmatprep.subr.mxu0 0.0
      %1441 = vmatpush1.msra.mxu0 %v1416
      %1442 = vmatprep.subr.mxu0 0.0
      %1443 = vmatpush1.msra.mxu0 %v1417
      %1444 = vmatprep.subr.mxu0 0.0
      %1445 = vmatpush1.msra.mxu0 %v1418
      %1446 = vmatprep.subr.mxu0 0.0
      %1447 = vmatpush1.msra.mxu0 %v1419
      %1448 = vmatprep.subr.mxu0 0.0
      %1449 = vmatpush1.msra.mxu0 %v1420
      %1450 = vmatprep.subr.mxu0 0.0
      %1451 = vmatpush1.msra.mxu0 %v1421
      %1452 = vmatprep.subr.mxu0 0.0
      %1453 = vmatpush1.msra.mxu0 %v1422
      %1454 = vmatprep.subr.mxu0 0.0
      %1455 = vmatpush1.msra.mxu0 %v1423
      %1456 = vmatprep.subr.mxu0 0.0
      %1457 = vmatpush1.msra.mxu0 0.0
      %1458 = vmatprep.subr.mxu0 0.0
      %1459 = vmatpush1.msra.mxu0 0.0
      %1460 = vmatprep.subr.mxu0 0.0
      %1461 = vmatpush1.msra.mxu0 0.0
      %1462 = vmatprep.subr.mxu0 0.0
      %1463 = vmatpush1.msra.mxu0 0.0
      %1464 = vmatprep.subr.mxu0 0.0
      %1465 = vmatpush1.msra.mxu0 0.0
      %1466 = vmatprep.subr.mxu0 0.0
      %1467 = vmatpush1.msra.mxu0 0.0
      %1468 = vmatprep.subr.mxu0 0.0
      %1469 = vmatpush1.msra.mxu0 0.0
      %1470 = vmatprep.subr.mxu0 0.0
      %1471 = vmatpush1.msra.mxu0 0.0
      %1472 = vmatprep.subr.mxu0 0.0
      %1473 = vmatpush1.msra.mxu0 0.0
      %1474 = vmatprep.subr.mxu0 0.0
      %1475 = vmatpush1.msra.mxu0 0.0
      %1476 = vmatprep.subr.mxu0 0.0
      %1477 = vmatpush1.msra.mxu0 0.0
      %1478 = vmatprep.subr.mxu0 0.0
      %1479 = vmatpush1.msra.mxu0 0.0
      %1480 = vmatprep.subr.mxu0 0.0
      %1481 = vmatpush1.msra.mxu0 0.0
      %1482 = vmatprep.subr.mxu0 0.0
      %1483 = vmatpush1.msra.mxu0 0.0
      %1484 = vmatprep.subr.mxu0 0.0
      %1485 = vmatpush1.msra.mxu0 0.0
      %1486 = vmatprep.subr.mxu0 0.0
      %1487 = vmatpush1.msra.mxu0 0.0
      %1488 = vmatprep.mubr.f32.mxu0 0.0
      %1489 = vmatmul.mubr.f32.gmra.mrb[0].mxu0 %v1399
      %v1490 = vpop.f32.mrb[0].mxu0
      %v1491 = vadd.f32 0.0, %v1490
      %v1492 = vpop.f32.mrb[0].mxu0
      %1493 = vmatprep.mubr.f32.mxu0 0.0
      %1494 = vmatmul.mubr.f32.gmra.mrb[0].mxu0 %v1400
      %v1495 = vpop.f32.mrb[0].mxu0
      %v1496 = vadd.f32 0.0, %v1495
      %v1497 = vpop.f32.mrb[0].mxu0
      %1498 = vmatprep.mubr.f32.mxu0 0.0
      %1499 = vmatmul.mubr.f32.gmra.mrb[0].mxu0 %v1401
      %v1500 = vpop.f32.mrb[0].mxu0
      %v1501 = vadd.f32 0.0, %v1500
      %v1502 = vpop.f32.mrb[0].mxu0
      %1503 = vmatprep.mubr.f32.mxu0 0.0
      %1504 = vmatmul.mubr.f32.gmra.mrb[0].mxu0 %v1402
      %v1505 = vpop.f32.mrb[0].mxu0
      %v1506 = vadd.f32 0.0, %v1505
      %v1507 = vpop.f32.mrb[0].mxu0
      %1508 = vmatprep.mubr.f32.mxu0 0.0
      %1509 = vmatmul.mubr.f32.gmra.mrb[0].mxu0 %v1403
      %v1510 = vpop.f32.mrb[0].mxu0
      %v1511 = vadd.f32 0.0, %v1510
      %v1512 = vpop.f32.mrb[0].mxu0
      %1513 = vmatprep.mubr.f32.mxu0 0.0
      %1514 = vmatmul.mubr.f32.gmra.mrb[0].mxu0 %v1404
      %v1515 = vpop.f32.mrb[0].mxu0
      %v1516 = vadd.f32 0.0, %v1515
      %v1517 = vpop.f32.mrb[0].mxu0
      %1518 = vmatprep.mubr.f32.mxu0 0.0
      %1519 = vmatmul.mubr.f32.gmra.mrb[0].mxu0 %v1405
      %v1520 = vpop.f32.mrb[0].mxu0
      %v1521 = vadd.f32 0.0, %v1520
      %v1522 = vpop.f32.mrb[0].mxu0
      %1523 = vmatprep.mubr.f32.mxu0 0.0
      %1524 = vmatmul.mubr.f32.gmra.mrb[0].mxu0 %v1406
      %v1525 = vpop.f32.mrb[0].mxu0
      %v1526 = vadd.f32 0.0, %v1525
      %v1527 = vpop.f32.mrb[0].mxu0
      %1528 = vdwg.mxu0
      %v1529 = vadd.f32 %v1391, %v1491
      %v1530 = vadd.f32 %v1392, %v1496
      %v1531 = vadd.f32 %v1393, %v1501
      %v1532 = vadd.f32 %v1394, %v1506
      %v1533 = vadd.f32 %v1395, %v1511
      %v1534 = vadd.f32 %v1396, %v1516
      %v1535 = vadd.f32 %v1397, %v1521
      %v1536 = vadd.f32 %v1398, %v1526
      %v1537 = vld [vmem:[#allocation2 + $0x3] sm:$0xff]
      %v1538 = vld [vmem:[#allocation2 + $0x13] sm:$0xff]
      %v1539 = vld [vmem:[#allocation2 + $0x23] sm:$0xff]
      %v1540 = vld [vmem:[#allocation2 + $0x33] sm:$0xff]
      %v1541 = vld [vmem:[#allocation2 + $0x43] sm:$0xff]
      %v1542 = vld [vmem:[#allocation2 + $0x53] sm:$0xff]
      %v1543 = vld [vmem:[#allocation2 + $0x63] sm:$0xff]
      %v1544 = vld [vmem:[#allocation2 + $0x73] sm:$0xff]
      %s1545 = scalar_lea.vmem %s3, 384
      %v1546 = vld [vmem:[%s1545] sm:$0xff]
      %v1547 = vld [vmem:[%s1545 + $0x8] sm:$0xff]
      %v1548 = vld [vmem:[%s1545 + $0x10] sm:$0xff]
      %v1549 = vld [vmem:[%s1545 + $0x18] sm:$0xff]
      %v1550 = vld [vmem:[%s1545 + $0x20] sm:$0xff]
      %v1551 = vld [vmem:[%s1545 + $0x28] sm:$0xff]
      %v1552 = vld [vmem:[%s1545 + $0x30] sm:$0xff]
      %v1553 = vld [vmem:[%s1545 + $0x38] sm:$0xff]
      %v1554 = vld [vmem:[%s1545 + $0x40] sm:$0xff]
      %v1555 = vld [vmem:[%s1545 + $0x48] sm:$0xff]
      %v1556 = vld [vmem:[%s1545 + $0x50] sm:$0xff]
      %v1557 = vld [vmem:[%s1545 + $0x58] sm:$0xff]
      %v1558 = vld [vmem:[%s1545 + $0x60] sm:$0xff]
      %v1559 = vld [vmem:[%s1545 + $0x68] sm:$0xff]
      %v1560 = vld [vmem:[%s1545 + $0x70] sm:$0xff]
      %v1561 = vld [vmem:[%s1545 + $0x78] sm:$0xff]
      %1562 = vmatprep.subr.mxu0 0.0
      %1563 = vmatpush1.msra.mxu0 %v1546
      %1564 = vmatprep.subr.mxu0 0.0
      %1565 = vmatpush1.msra.mxu0 %v1547
      %1566 = vmatprep.subr.mxu0 0.0
      %1567 = vmatpush1.msra.mxu0 %v1548
      %1568 = vmatprep.subr.mxu0 0.0
      %1569 = vmatpush1.msra.mxu0 %v1549
      %1570 = vmatprep.subr.mxu0 0.0
      %1571 = vmatpush1.msra.mxu0 %v1550
      %1572 = vmatprep.subr.mxu0 0.0
      %1573 = vmatpush1.msra.mxu0 %v1551
      %1574 = vmatprep.subr.mxu0 0.0
      %1575 = vmatpush1.msra.mxu0 %v1552
      %1576 = vmatprep.subr.mxu0 0.0
      %1577 = vmatpush1.msra.mxu0 %v1553
      %1578 = vmatprep.subr.mxu0 0.0
      %1579 = vmatpush1.msra.mxu0 %v1554
      %1580 = vmatprep.subr.mxu0 0.0
      %1581 = vmatpush1.msra.mxu0 %v1555
      %1582 = vmatprep.subr.mxu0 0.0
      %1583 = vmatpush1.msra.mxu0 %v1556
      %1584 = vmatprep.subr.mxu0 0.0
      %1585 = vmatpush1.msra.mxu0 %v1557
      %1586 = vmatprep.subr.mxu0 0.0
      %1587 = vmatpush1.msra.mxu0 %v1558
      %1588 = vmatprep.subr.mxu0 0.0
      %1589 = vmatpush1.msra.mxu0 %v1559
      %1590 = vmatprep.subr.mxu0 0.0
      %1591 = vmatpush1.msra.mxu0 %v1560
      %1592 = vmatprep.subr.mxu0 0.0
      %1593 = vmatpush1.msra.mxu0 %v1561
      %1594 = vmatprep.subr.mxu0 0.0
      %1595 = vmatpush1.msra.mxu0 0.0
      %1596 = vmatprep.subr.mxu0 0.0
      %1597 = vmatpush1.msra.mxu0 0.0
      %1598 = vmatprep.subr.mxu0 0.0
      %1599 = vmatpush1.msra.mxu0 0.0
      %1600 = vmatprep.subr.mxu0 0.0
      %1601 = vmatpush1.msra.mxu0 0.0
      %1602 = vmatprep.subr.mxu0 0.0
      %1603 = vmatpush1.msra.mxu0 0.0
      %1604 = vmatprep.subr.mxu0 0.0
      %1605 = vmatpush1.msra.mxu0 0.0
      %1606 = vmatprep.subr.mxu0 0.0
      %1607 = vmatpush1.msra.mxu0 0.0
      %1608 = vmatprep.subr.mxu0 0.0
      %1609 = vmatpush1.msra.mxu0 0.0
      %1610 = vmatprep.subr.mxu0 0.0
      %1611 = vmatpush1.msra.mxu0 0.0
      %1612 = vmatprep.subr.mxu0 0.0
      %1613 = vmatpush1.msra.mxu0 0.0
      %1614 = vmatprep.subr.mxu0 0.0
      %1615 = vmatpush1.msra.mxu0 0.0
      %1616 = vmatprep.subr.mxu0 0.0
      %1617 = vmatpush1.msra.mxu0 0.0
      %1618 = vmatprep.subr.mxu0 0.0
      %1619 = vmatpush1.msra.mxu0 0.0
      %1620 = vmatprep.subr.mxu0 0.0
      %1621 = vmatpush1.msra.mxu0 0.0
      %1622 = vmatprep.subr.mxu0 0.0
      %1623 = vmatpush1.msra.mxu0 0.0
      %1624 = vmatprep.subr.mxu0 0.0
      %1625 = vmatpush1.msra.mxu0 0.0
      %1626 = vmatprep.mubr.f32.mxu0 0.0
      %1627 = vmatmul.mubr.f32.gmra.mrb[0].mxu0 %v1537
      %v1628 = vpop.f32.mrb[0].mxu0
      %v1629 = vadd.f32 0.0, %v1628
      %v1630 = vpop.f32.mrb[0].mxu0
      %1631 = vmatprep.mubr.f32.mxu0 0.0
      %1632 = vmatmul.mubr.f32.gmra.mrb[0].mxu0 %v1538
      %v1633 = vpop.f32.mrb[0].mxu0
      %v1634 = vadd.f32 0.0, %v1633
      %v1635 = vpop.f32.mrb[0].mxu0
      %1636 = vmatprep.mubr.f32.mxu0 0.0
      %1637 = vmatmul.mubr.f32.gmra.mrb[0].mxu0 %v1539
      %v1638 = vpop.f32.mrb[0].mxu0
      %v1639 = vadd.f32 0.0, %v1638
      %v1640 = vpop.f32.mrb[0].mxu0
      %1641 = vmatprep.mubr.f32.mxu0 0.0
      %1642 = vmatmul.mubr.f32.gmra.mrb[0].mxu0 %v1540
      %v1643 = vpop.f32.mrb[0].mxu0
      %v1644 = vadd.f32 0.0, %v1643
      %v1645 = vpop.f32.mrb[0].mxu0
      %1646 = vmatprep.mubr.f32.mxu0 0.0
      %1647 = vmatmul.mubr.f32.gmra.mrb[0].mxu0 %v1541
      %v1648 = vpop.f32.mrb[0].mxu0
      %v1649 = vadd.f32 0.0, %v1648
      %v1650 = vpop.f32.mrb[0].mxu0
      %1651 = vmatprep.mubr.f32.mxu0 0.0
      %1652 = vmatmul.mubr.f32.gmra.mrb[0].mxu0 %v1542
      %v1653 = vpop.f32.mrb[0].mxu0
      %v1654 = vadd.f32 0.0, %v1653
      %v1655 = vpop.f32.mrb[0].mxu0
      %1656 = vmatprep.mubr.f32.mxu0 0.0
      %1657 = vmatmul.mubr.f32.gmra.mrb[0].mxu0 %v1543
      %v1658 = vpop.f32.mrb[0].mxu0
      %v1659 = vadd.f32 0.0, %v1658
      %v1660 = vpop.f32.mrb[0].mxu0
      %1661 = vmatprep.mubr.f32.mxu0 0.0
      %1662 = vmatmul.mubr.f32.gmra.mrb[0].mxu0 %v1544
      %v1663 = vpop.f32.mrb[0].mxu0
      %v1664 = vadd.f32 0.0, %v1663
      %v1665 = vpop.f32.mrb[0].mxu0
      %1666 = vdwg.mxu0
      %v1667 = vadd.f32 %v1529, %v1629
      %v1668 = vadd.f32 %v1530, %v1634
      %v1669 = vadd.f32 %v1531, %v1639
      %v1670 = vadd.f32 %v1532, %v1644
      %v1671 = vadd.f32 %v1533, %v1649
      %v1672 = vadd.f32 %v1534, %v1654
      %v1673 = vadd.f32 %v1535, %v1659
      %v1674 = vadd.f32 %v1536, %v1664
      %v1675 = vld [vmem:[#allocation2 + $0x4] sm:$0xff]
      %v1676 = vld [vmem:[#allocation2 + $0x14] sm:$0xff]
      %v1677 = vld [vmem:[#allocation2 + $0x24] sm:$0xff]
      %v1678 = vld [vmem:[#allocation2 + $0x34] sm:$0xff]
      %v1679 = vld [vmem:[#allocation2 + $0x44] sm:$0xff]
      %v1680 = vld [vmem:[#allocation2 + $0x54] sm:$0xff]
      %v1681 = vld [vmem:[#allocation2 + $0x64] sm:$0xff]
      %v1682 = vld [vmem:[#allocation2 + $0x74] sm:$0xff]
      %s1683 = scalar_lea.vmem %s3, 512
      %v1684 = vld [vmem:[%s1683] sm:$0xff]
      %v1685 = vld [vmem:[%s1683 + $0x8] sm:$0xff]
      %v1686 = vld [vmem:[%s1683 + $0x10] sm:$0xff]
      %v1687 = vld [vmem:[%s1683 + $0x18] sm:$0xff]
      %v1688 = vld [vmem:[%s1683 + $0x20] sm:$0xff]
      %v1689 = vld [vmem:[%s1683 + $0x28] sm:$0xff]
      %v1690 = vld [vmem:[%s1683 + $0x30] sm:$0xff]
      %v1691 = vld [vmem:[%s1683 + $0x38] sm:$0xff]
      %v1692 = vld [vmem:[%s1683 + $0x40] sm:$0xff]
      %v1693 = vld [vmem:[%s1683 + $0x48] sm:$0xff]
      %v1694 = vld [vmem:[%s1683 + $0x50] sm:$0xff]
      %v1695 = vld [vmem:[%s1683 + $0x58] sm:$0xff]
      %v1696 = vld [vmem:[%s1683 + $0x60] sm:$0xff]
      %v1697 = vld [vmem:[%s1683 + $0x68] sm:$0xff]
      %v1698 = vld [vmem:[%s1683 + $0x70] sm:$0xff]
      %v1699 = vld [vmem:[%s1683 + $0x78] sm:$0xff]
      %1700 = vmatprep.subr.mxu0 0.0
      %1701 = vmatpush1.msra.mxu0 %v1684
      %1702 = vmatprep.subr.mxu0 0.0
      %1703 = vmatpush1.msra.mxu0 %v1685
      %1704 = vmatprep.subr.mxu0 0.0
      %1705 = vmatpush1.msra.mxu0 %v1686
      %1706 = vmatprep.subr.mxu0 0.0
      %1707 = vmatpush1.msra.mxu0 %v1687
      %1708 = vmatprep.subr.mxu0 0.0
      %1709 = vmatpush1.msra.mxu0 %v1688
      %1710 = vmatprep.subr.mxu0 0.0
      %1711 = vmatpush1.msra.mxu0 %v1689
      %1712 = vmatprep.subr.mxu0 0.0
      %1713 = vmatpush1.msra.mxu0 %v1690
      %1714 = vmatprep.subr.mxu0 0.0
      %1715 = vmatpush1.msra.mxu0 %v1691
      %1716 = vmatprep.subr.mxu0 0.0
      %1717 = vmatpush1.msra.mxu0 %v1692
      %1718 = vmatprep.subr.mxu0 0.0
      %1719 = vmatpush1.msra.mxu0 %v1693
      %1720 = vmatprep.subr.mxu0 0.0
      %1721 = vmatpush1.msra.mxu0 %v1694
      %1722 = vmatprep.subr.mxu0 0.0
      %1723 = vmatpush1.msra.mxu0 %v1695
      %1724 = vmatprep.subr.mxu0 0.0
      %1725 = vmatpush1.msra.mxu0 %v1696
      %1726 = vmatprep.subr.mxu0 0.0
      %1727 = vmatpush1.msra.mxu0 %v1697
      %1728 = vmatprep.subr.mxu0 0.0
      %1729 = vmatpush1.msra.mxu0 %v1698
      %1730 = vmatprep.subr.mxu0 0.0
      %1731 = vmatpush1.msra.mxu0 %v1699
      %1732 = vmatprep.subr.mxu0 0.0
      %1733 = vmatpush1.msra.mxu0 0.0
      %1734 = vmatprep.subr.mxu0 0.0
      %1735 = vmatpush1.msra.mxu0 0.0
      %1736 = vmatprep.subr.mxu0 0.0
      %1737 = vmatpush1.msra.mxu0 0.0
      %1738 = vmatprep.subr.mxu0 0.0
      %1739 = vmatpush1.msra.mxu0 0.0
      %1740 = vmatprep.subr.mxu0 0.0
      %1741 = vmatpush1.msra.mxu0 0.0
      %1742 = vmatprep.subr.mxu0 0.0
      %1743 = vmatpush1.msra.mxu0 0.0
      %1744 = vmatprep.subr.mxu0 0.0
      %1745 = vmatpush1.msra.mxu0 0.0
      %1746 = vmatprep.subr.mxu0 0.0
      %1747 = vmatpush1.msra.mxu0 0.0
      %1748 = vmatprep.subr.mxu0 0.0
      %1749 = vmatpush1.msra.mxu0 0.0
      %1750 = vmatprep.subr.mxu0 0.0
      %1751 = vmatpush1.msra.mxu0 0.0
      %1752 = vmatprep.subr.mxu0 0.0
      %1753 = vmatpush1.msra.mxu0 0.0
      %1754 = vmatprep.subr.mxu0 0.0
      %1755 = vmatpush1.msra.mxu0 0.0
      %1756 = vmatprep.subr.mxu0 0.0
      %1757 = vmatpush1.msra.mxu0 0.0
      %1758 = vmatprep.subr.mxu0 0.0
      %1759 = vmatpush1.msra.mxu0 0.0
      %1760 = vmatprep.subr.mxu0 0.0
      %1761 = vmatpush1.msra.mxu0 0.0
      %1762 = vmatprep.subr.mxu0 0.0
      %1763 = vmatpush1.msra.mxu0 0.0
      %1764 = vmatprep.mubr.f32.mxu0 0.0
      %1765 = vmatmul.mubr.f32.gmra.mrb[0].mxu0 %v1675
      %v1766 = vpop.f32.mrb[0].mxu0
      %v1767 = vadd.f32 0.0, %v1766
      %v1768 = vpop.f32.mrb[0].mxu0
      %1769 = vmatprep.mubr.f32.mxu0 0.0
      %1770 = vmatmul.mubr.f32.gmra.mrb[0].mxu0 %v1676
      %v1771 = vpop.f32.mrb[0].mxu0
      %v1772 = vadd.f32 0.0, %v1771
      %v1773 = vpop.f32.mrb[0].mxu0
      %1774 = vmatprep.mubr.f32.mxu0 0.0
      %1775 = vmatmul.mubr.f32.gmra.mrb[0].mxu0 %v1677
      %v1776 = vpop.f32.mrb[0].mxu0
      %v1777 = vadd.f32 0.0, %v1776
      %v1778 = vpop.f32.mrb[0].mxu0
      %1779 = vmatprep.mubr.f32.mxu0 0.0
      %1780 = vmatmul.mubr.f32.gmra.mrb[0].mxu0 %v1678
      %v1781 = vpop.f32.mrb[0].mxu0
      %v1782 = vadd.f32 0.0, %v1781
      %v1783 = vpop.f32.mrb[0].mxu0
      %1784 = vmatprep.mubr.f32.mxu0 0.0
      %1785 = vmatmul.mubr.f32.gmra.mrb[0].mxu0 %v1679
      %v1786 = vpop.f32.mrb[0].mxu0
      %v1787 = vadd.f32 0.0, %v1786
      %v1788 = vpop.f32.mrb[0].mxu0
      %1789 = vmatprep.mubr.f32.mxu0 0.0
      %1790 = vmatmul.mubr.f32.gmra.mrb[0].mxu0 %v1680
      %v1791 = vpop.f32.mrb[0].mxu0
      %v1792 = vadd.f32 0.0, %v1791
      %v1793 = vpop.f32.mrb[0].mxu0
      %1794 = vmatprep.mubr.f32.mxu0 0.0
      %1795 = vmatmul.mubr.f32.gmra.mrb[0].mxu0 %v1681
      %v1796 = vpop.f32.mrb[0].mxu0
      %v1797 = vadd.f32 0.0, %v1796
      %v1798 = vpop.f32.mrb[0].mxu0
      %1799 = vmatprep.mubr.f32.mxu0 0.0
      %1800 = vmatmul.mubr.f32.gmra.mrb[0].mxu0 %v1682
      %v1801 = vpop.f32.mrb[0].mxu0
      %v1802 = vadd.f32 0.0, %v1801
      %v1803 = vpop.f32.mrb[0].mxu0
      %1804 = vdwg.mxu0
      %v1805 = vadd.f32 %v1667, %v1767
      %v1806 = vadd.f32 %v1668, %v1772
      %v1807 = vadd.f32 %v1669, %v1777
      %v1808 = vadd.f32 %v1670, %v1782
      %v1809 = vadd.f32 %v1671, %v1787
      %v1810 = vadd.f32 %v1672, %v1792
      %v1811 = vadd.f32 %v1673, %v1797
      %v1812 = vadd.f32 %v1674, %v1802
      %v1813 = vld [vmem:[%s1084] sm:$0xff]
      %v1814 = vld [vmem:[%s1084 + $0x10] sm:$0xff]
      %v1815 = vld [vmem:[%s1084 + $0x20] sm:$0xff]
      %v1816 = vld [vmem:[%s1084 + $0x30] sm:$0xff]
      %v1817 = vld [vmem:[%s1084 + $0x40] sm:$0xff]
      %v1818 = vld [vmem:[%s1084 + $0x50] sm:$0xff]
      %v1819 = vld [vmem:[%s1084 + $0x60] sm:$0xff]
      %v1820 = vld [vmem:[%s1084 + $0x70] sm:$0xff]
      %s1821 = scalar_lea.vmem %s3, 640
      %v1822 = vld [vmem:[%s1821] sm:$0xff]
      %v1823 = vld [vmem:[%s1821 + $0x8] sm:$0xff]
      %v1824 = vld [vmem:[%s1821 + $0x10] sm:$0xff]
      %v1825 = vld [vmem:[%s1821 + $0x18] sm:$0xff]
      %v1826 = vld [vmem:[%s1821 + $0x20] sm:$0xff]
      %v1827 = vld [vmem:[%s1821 + $0x28] sm:$0xff]
      %v1828 = vld [vmem:[%s1821 + $0x30] sm:$0xff]
      %v1829 = vld [vmem:[%s1821 + $0x38] sm:$0xff]
      %v1830 = vld [vmem:[%s1821 + $0x40] sm:$0xff]
      %v1831 = vld [vmem:[%s1821 + $0x48] sm:$0xff]
      %v1832 = vld [vmem:[%s1821 + $0x50] sm:$0xff]
      %v1833 = vld [vmem:[%s1821 + $0x58] sm:$0xff]
      %v1834 = vld [vmem:[%s1821 + $0x60] sm:$0xff]
      %v1835 = vld [vmem:[%s1821 + $0x68] sm:$0xff]
      %v1836 = vld [vmem:[%s1821 + $0x70] sm:$0xff]
      %v1837 = vld [vmem:[%s1821 + $0x78] sm:$0xff]
      %1838 = vmatprep.subr.mxu0 0.0
      %1839 = vmatpush1.msra.mxu0 %v1822
      %1840 = vmatprep.subr.mxu0 0.0
      %1841 = vmatpush1.msra.mxu0 %v1823
      %1842 = vmatprep.subr.mxu0 0.0
      %1843 = vmatpush1.msra.mxu0 %v1824
      %1844 = vmatprep.subr.mxu0 0.0
      %1845 = vmatpush1.msra.mxu0 %v1825
      %1846 = vmatprep.subr.mxu0 0.0
      %1847 = vmatpush1.msra.mxu0 %v1826
      %1848 = vmatprep.subr.mxu0 0.0
      %1849 = vmatpush1.msra.mxu0 %v1827
      %1850 = vmatprep.subr.mxu0 0.0
      %1851 = vmatpush1.msra.mxu0 %v1828
      %1852 = vmatprep.subr.mxu0 0.0
      %1853 = vmatpush1.msra.mxu0 %v1829
      %1854 = vmatprep.subr.mxu0 0.0
      %1855 = vmatpush1.msra.mxu0 %v1830
      %1856 = vmatprep.subr.mxu0 0.0
      %1857 = vmatpush1.msra.mxu0 %v1831
      %1858 = vmatprep.subr.mxu0 0.0
      %1859 = vmatpush1.msra.mxu0 %v1832
      %1860 = vmatprep.subr.mxu0 0.0
      %1861 = vmatpush1.msra.mxu0 %v1833
      %1862 = vmatprep.subr.mxu0 0.0
      %1863 = vmatpush1.msra.mxu0 %v1834
      %1864 = vmatprep.subr.mxu0 0.0
      %1865 = vmatpush1.msra.mxu0 %v1835
      %1866 = vmatprep.subr.mxu0 0.0
      %1867 = vmatpush1.msra.mxu0 %v1836
      %1868 = vmatprep.subr.mxu0 0.0
      %1869 = vmatpush1.msra.mxu0 %v1837
      %1870 = vmatprep.subr.mxu0 0.0
      %1871 = vmatpush1.msra.mxu0 0.0
      %1872 = vmatprep.subr.mxu0 0.0
      %1873 = vmatpush1.msra.mxu0 0.0
      %1874 = vmatprep.subr.mxu0 0.0
      %1875 = vmatpush1.msra.mxu0 0.0
      %1876 = vmatprep.subr.mxu0 0.0
      %1877 = vmatpush1.msra.mxu0 0.0
      %1878 = vmatprep.subr.mxu0 0.0
      %1879 = vmatpush1.msra.mxu0 0.0
      %1880 = vmatprep.subr.mxu0 0.0
      %1881 = vmatpush1.msra.mxu0 0.0
      %1882 = vmatprep.subr.mxu0 0.0
      %1883 = vmatpush1.msra.mxu0 0.0
      %1884 = vmatprep.subr.mxu0 0.0
      %1885 = vmatpush1.msra.mxu0 0.0
      %1886 = vmatprep.subr.mxu0 0.0
      %1887 = vmatpush1.msra.mxu0 0.0
      %1888 = vmatprep.subr.mxu0 0.0
      %1889 = vmatpush1.msra.mxu0 0.0
      %1890 = vmatprep.subr.mxu0 0.0
      %1891 = vmatpush1.msra.mxu0 0.0
      %1892 = vmatprep.subr.mxu0 0.0
      %1893 = vmatpush1.msra.mxu0 0.0
      %1894 = vmatprep.subr.mxu0 0.0
      %1895 = vmatpush1.msra.mxu0 0.0
      %1896 = vmatprep.subr.mxu0 0.0
      %1897 = vmatpush1.msra.mxu0 0.0
      %1898 = vmatprep.subr.mxu0 0.0
      %1899 = vmatpush1.msra.mxu0 0.0
      %1900 = vmatprep.subr.mxu0 0.0
      %1901 = vmatpush1.msra.mxu0 0.0
      %1902 = vmatprep.mubr.f32.mxu0 0.0
      %1903 = vmatmul.mubr.f32.gmra.mrb[0].mxu0 %v1813
      %v1904 = vpop.f32.mrb[0].mxu0
      %v1905 = vadd.f32 0.0, %v1904
      %v1906 = vpop.f32.mrb[0].mxu0
      %1907 = vmatprep.mubr.f32.mxu0 0.0
      %1908 = vmatmul.mubr.f32.gmra.mrb[0].mxu0 %v1814
      %v1909 = vpop.f32.mrb[0].mxu0
      %v1910 = vadd.f32 0.0, %v1909
      %v1911 = vpop.f32.mrb[0].mxu0
      %1912 = vmatprep.mubr.f32.mxu0 0.0
      %1913 = vmatmul.mubr.f32.gmra.mrb[0].mxu0 %v1815
      %v1914 = vpop.f32.mrb[0].mxu0
      %v1915 = vadd.f32 0.0, %v1914
      %v1916 = vpop.f32.mrb[0].mxu0
      %1917 = vmatprep.mubr.f32.mxu0 0.0
      %1918 = vmatmul.mubr.f32.gmra.mrb[0].mxu0 %v1816
      %v1919 = vpop.f32.mrb[0].mxu0
      %v1920 = vadd.f32 0.0, %v1919
      %v1921 = vpop.f32.mrb[0].mxu0
      %1922 = vmatprep.mubr.f32.mxu0 0.0
      %1923 = vmatmul.mubr.f32.gmra.mrb[0].mxu0 %v1817
      %v1924 = vpop.f32.mrb[0].mxu0
      %v1925 = vadd.f32 0.0, %v1924
      %v1926 = vpop.f32.mrb[0].mxu0
      %1927 = vmatprep.mubr.f32.mxu0 0.0
      %1928 = vmatmul.mubr.f32.gmra.mrb[0].mxu0 %v1818
      %v1929 = vpop.f32.mrb[0].mxu0
      %v1930 = vadd.f32 0.0, %v1929
      %v1931 = vpop.f32.mrb[0].mxu0
      %1932 = vmatprep.mubr.f32.mxu0 0.0
      %1933 = vmatmul.mubr.f32.gmra.mrb[0].mxu0 %v1819
      %v1934 = vpop.f32.mrb[0].mxu0
      %v1935 = vadd.f32 0.0, %v1934
      %v1936 = vpop.f32.mrb[0].mxu0
      %1937 = vmatprep.mubr.f32.mxu0 0.0
      %1938 = vmatmul.mubr.f32.gmra.mrb[0].mxu0 %v1820
      %v1939 = vpop.f32.mrb[0].mxu0
      %v1940 = vadd.f32 0.0, %v1939
      %v1941 = vpop.f32.mrb[0].mxu0
      %1942 = vdwg.mxu0
      %v1943 = vadd.f32 %v1805, %v1905
      %v1944 = vadd.f32 %v1806, %v1910
      %v1945 = vadd.f32 %v1807, %v1915
      %v1946 = vadd.f32 %v1808, %v1920
      %v1947 = vadd.f32 %v1809, %v1925
      %v1948 = vadd.f32 %v1810, %v1930
      %v1949 = vadd.f32 %v1811, %v1935
      %v1950 = vadd.f32 %v1812, %v1940
      %v1951 = vld [vmem:[%s1084 + $0x1] sm:$0xff]
      %v1952 = vld [vmem:[%s1084 + $0x11] sm:$0xff]
      %v1953 = vld [vmem:[%s1084 + $0x21] sm:$0xff]
      %v1954 = vld [vmem:[%s1084 + $0x31] sm:$0xff]
      %v1955 = vld [vmem:[%s1084 + $0x41] sm:$0xff]
      %v1956 = vld [vmem:[%s1084 + $0x51] sm:$0xff]
      %v1957 = vld [vmem:[%s1084 + $0x61] sm:$0xff]
      %v1958 = vld [vmem:[%s1084 + $0x71] sm:$0xff]
      %s1959 = scalar_lea.vmem %s3, 768
      %v1960 = vld [vmem:[%s1959] sm:$0xff]
      %v1961 = vld [vmem:[%s1959 + $0x8] sm:$0xff]
      %v1962 = vld [vmem:[%s1959 + $0x10] sm:$0xff]
      %v1963 = vld [vmem:[%s1959 + $0x18] sm:$0xff]
      %v1964 = vld [vmem:[%s1959 + $0x20] sm:$0xff]
      %v1965 = vld [vmem:[%s1959 + $0x28] sm:$0xff]
      %v1966 = vld [vmem:[%s1959 + $0x30] sm:$0xff]
      %v1967 = vld [vmem:[%s1959 + $0x38] sm:$0xff]
      %v1968 = vld [vmem:[%s1959 + $0x40] sm:$0xff]
      %v1969 = vld [vmem:[%s1959 + $0x48] sm:$0xff]
      %v1970 = vld [vmem:[%s1959 + $0x50] sm:$0xff]
      %v1971 = vld [vmem:[%s1959 + $0x58] sm:$0xff]
      %v1972 = vld [vmem:[%s1959 + $0x60] sm:$0xff]
      %v1973 = vld [vmem:[%s1959 + $0x68] sm:$0xff]
      %v1974 = vld [vmem:[%s1959 + $0x70] sm:$0xff]
      %v1975 = vld [vmem:[%s1959 + $0x78] sm:$0xff]
      %1976 = vmatprep.subr.mxu0 0.0
      %1977 = vmatpush1.msra.mxu0 %v1960
      %1978 = vmatprep.subr.mxu0 0.0
      %1979 = vmatpush1.msra.mxu0 %v1961
      %1980 = vmatprep.subr.mxu0 0.0
      %1981 = vmatpush1.msra.mxu0 %v1962
      %1982 = vmatprep.subr.mxu0 0.0
      %1983 = vmatpush1.msra.mxu0 %v1963
      %1984 = vmatprep.subr.mxu0 0.0
      %1985 = vmatpush1.msra.mxu0 %v1964
      %1986 = vmatprep.subr.mxu0 0.0
      %1987 = vmatpush1.msra.mxu0 %v1965
      %1988 = vmatprep.subr.mxu0 0.0
      %1989 = vmatpush1.msra.mxu0 %v1966
      %1990 = vmatprep.subr.mxu0 0.0
      %1991 = vmatpush1.msra.mxu0 %v1967
      %1992 = vmatprep.subr.mxu0 0.0
      %1993 = vmatpush1.msra.mxu0 %v1968
      %1994 = vmatprep.subr.mxu0 0.0
      %1995 = vmatpush1.msra.mxu0 %v1969
      %1996 = vmatprep.subr.mxu0 0.0
      %1997 = vmatpush1.msra.mxu0 %v1970
      %1998 = vmatprep.subr.mxu0 0.0
      %1999 = vmatpush1.msra.mxu0 %v1971
      %2000 = vmatprep.subr.mxu0 0.0
      %2001 = vmatpush1.msra.mxu0 %v1972
      %2002 = vmatprep.subr.mxu0 0.0
      %2003 = vmatpush1.msra.mxu0 %v1973
      %2004 = vmatprep.subr.mxu0 0.0
      %2005 = vmatpush1.msra.mxu0 %v1974
      %2006 = vmatprep.subr.mxu0 0.0
      %2007 = vmatpush1.msra.mxu0 %v1975
      %2008 = vmatprep.subr.mxu0 0.0
      %2009 = vmatpush1.msra.mxu0 0.0
      %2010 = vmatprep.subr.mxu0 0.0
      %2011 = vmatpush1.msra.mxu0 0.0
      %2012 = vmatprep.subr.mxu0 0.0
      %2013 = vmatpush1.msra.mxu0 0.0
      %2014 = vmatprep.subr.mxu0 0.0
      %2015 = vmatpush1.msra.mxu0 0.0
      %2016 = vmatprep.subr.mxu0 0.0
      %2017 = vmatpush1.msra.mxu0 0.0
      %2018 = vmatprep.subr.mxu0 0.0
      %2019 = vmatpush1.msra.mxu0 0.0
      %2020 = vmatprep.subr.mxu0 0.0
      %2021 = vmatpush1.msra.mxu0 0.0
      %2022 = vmatprep.subr.mxu0 0.0
      %2023 = vmatpush1.msra.mxu0 0.0
      %2024 = vmatprep.subr.mxu0 0.0
      %2025 = vmatpush1.msra.mxu0 0.0
      %2026 = vmatprep.subr.mxu0 0.0
      %2027 = vmatpush1.msra.mxu0 0.0
      %2028 = vmatprep.subr.mxu0 0.0
      %2029 = vmatpush1.msra.mxu0 0.0
      %2030 = vmatprep.subr.mxu0 0.0
      %2031 = vmatpush1.msra.mxu0 0.0
      %2032 = vmatprep.subr.mxu0 0.0
      %2033 = vmatpush1.msra.mxu0 0.0
      %2034 = vmatprep.subr.mxu0 0.0
      %2035 = vmatpush1.msra.mxu0 0.0
      %2036 = vmatprep.subr.mxu0 0.0
      %2037 = vmatpush1.msra.mxu0 0.0
      %2038 = vmatprep.subr.mxu0 0.0
      %2039 = vmatpush1.msra.mxu0 0.0
      %2040 = vmatprep.mubr.f32.mxu0 0.0
      %2041 = vmatmul.mubr.f32.gmra.mrb[0].mxu0 %v1951
      %v2042 = vpop.f32.mrb[0].mxu0
      %v2043 = vadd.f32 0.0, %v2042
      %v2044 = vpop.f32.mrb[0].mxu0
      %2045 = vmatprep.mubr.f32.mxu0 0.0
      %2046 = vmatmul.mubr.f32.gmra.mrb[0].mxu0 %v1952
      %v2047 = vpop.f32.mrb[0].mxu0
      %v2048 = vadd.f32 0.0, %v2047
      %v2049 = vpop.f32.mrb[0].mxu0
      %2050 = vmatprep.mubr.f32.mxu0 0.0
      %2051 = vmatmul.mubr.f32.gmra.mrb[0].mxu0 %v1953
      %v2052 = vpop.f32.mrb[0].mxu0
      %v2053 = vadd.f32 0.0, %v2052
      %v2054 = vpop.f32.mrb[0].mxu0
      %2055 = vmatprep.mubr.f32.mxu0 0.0
      %2056 = vmatmul.mubr.f32.gmra.mrb[0].mxu0 %v1954
      %v2057 = vpop.f32.mrb[0].mxu0
      %v2058 = vadd.f32 0.0, %v2057
      %v2059 = vpop.f32.mrb[0].mxu0
      %2060 = vmatprep.mubr.f32.mxu0 0.0
      %2061 = vmatmul.mubr.f32.gmra.mrb[0].mxu0 %v1955
      %v2062 = vpop.f32.mrb[0].mxu0
      %v2063 = vadd.f32 0.0, %v2062
      %v2064 = vpop.f32.mrb[0].mxu0
      %2065 = vmatprep.mubr.f32.mxu0 0.0
      %2066 = vmatmul.mubr.f32.gmra.mrb[0].mxu0 %v1956
      %v2067 = vpop.f32.mrb[0].mxu0
      %v2068 = vadd.f32 0.0, %v2067
      %v2069 = vpop.f32.mrb[0].mxu0
      %2070 = vmatprep.mubr.f32.mxu0 0.0
      %2071 = vmatmul.mubr.f32.gmra.mrb[0].mxu0 %v1957
      %v2072 = vpop.f32.mrb[0].mxu0
      %v2073 = vadd.f32 0.0, %v2072
      %v2074 = vpop.f32.mrb[0].mxu0
      %2075 = vmatprep.mubr.f32.mxu0 0.0
      %2076 = vmatmul.mubr.f32.gmra.mrb[0].mxu0 %v1958
      %v2077 = vpop.f32.mrb[0].mxu0
      %v2078 = vadd.f32 0.0, %v2077
      %v2079 = vpop.f32.mrb[0].mxu0
      %2080 = vdwg.mxu0
      %v2081 = vadd.f32 %v1943, %v2043
      %v2082 = vadd.f32 %v1944, %v2048
      %v2083 = vadd.f32 %v1945, %v2053
      %v2084 = vadd.f32 %v1946, %v2058
      %v2085 = vadd.f32 %v1947, %v2063
      %v2086 = vadd.f32 %v1948, %v2068
      %v2087 = vadd.f32 %v1949, %v2073
      %v2088 = vadd.f32 %v1950, %v2078
      %v2089 = vld [vmem:[%s1084 + $0x2] sm:$0xff]
      %v2090 = vld [vmem:[%s1084 + $0x12] sm:$0xff]
      %v2091 = vld [vmem:[%s1084 + $0x22] sm:$0xff]
      %v2092 = vld [vmem:[%s1084 + $0x32] sm:$0xff]
      %v2093 = vld [vmem:[%s1084 + $0x42] sm:$0xff]
      %v2094 = vld [vmem:[%s1084 + $0x52] sm:$0xff]
      %v2095 = vld [vmem:[%s1084 + $0x62] sm:$0xff]
      %v2096 = vld [vmem:[%s1084 + $0x72] sm:$0xff]
      %s2097 = scalar_lea.vmem %s3, 896
      %v2098 = vld [vmem:[%s2097] sm:$0xff]
      %v2099 = vld [vmem:[%s2097 + $0x8] sm:$0xff]
      %v2100 = vld [vmem:[%s2097 + $0x10] sm:$0xff]
      %v2101 = vld [vmem:[%s2097 + $0x18] sm:$0xff]
      %v2102 = vld [vmem:[%s2097 + $0x20] sm:$0xff]
      %v2103 = vld [vmem:[%s2097 + $0x28] sm:$0xff]
      %v2104 = vld [vmem:[%s2097 + $0x30] sm:$0xff]
      %v2105 = vld [vmem:[%s2097 + $0x38] sm:$0xff]
      %v2106 = vld [vmem:[%s2097 + $0x40] sm:$0xff]
      %v2107 = vld [vmem:[%s2097 + $0x48] sm:$0xff]
      %v2108 = vld [vmem:[%s2097 + $0x50] sm:$0xff]
      %v2109 = vld [vmem:[%s2097 + $0x58] sm:$0xff]
      %v2110 = vld [vmem:[%s2097 + $0x60] sm:$0xff]
      %v2111 = vld [vmem:[%s2097 + $0x68] sm:$0xff]
      %v2112 = vld [vmem:[%s2097 + $0x70] sm:$0xff]
      %v2113 = vld [vmem:[%s2097 + $0x78] sm:$0xff]
      %2114 = vmatprep.subr.mxu0 0.0
      %2115 = vmatpush1.msra.mxu0 %v2098
      %2116 = vmatprep.subr.mxu0 0.0
      %2117 = vmatpush1.msra.mxu0 %v2099
      %2118 = vmatprep.subr.mxu0 0.0
      %2119 = vmatpush1.msra.mxu0 %v2100
      %2120 = vmatprep.subr.mxu0 0.0
      %2121 = vmatpush1.msra.mxu0 %v2101
      %2122 = vmatprep.subr.mxu0 0.0
      %2123 = vmatpush1.msra.mxu0 %v2102
      %2124 = vmatprep.subr.mxu0 0.0
      %2125 = vmatpush1.msra.mxu0 %v2103
      %2126 = vmatprep.subr.mxu0 0.0
      %2127 = vmatpush1.msra.mxu0 %v2104
      %2128 = vmatprep.subr.mxu0 0.0
      %2129 = vmatpush1.msra.mxu0 %v2105
      %2130 = vmatprep.subr.mxu0 0.0
      %2131 = vmatpush1.msra.mxu0 %v2106
      %2132 = vmatprep.subr.mxu0 0.0
      %2133 = vmatpush1.msra.mxu0 %v2107
      %2134 = vmatprep.subr.mxu0 0.0
      %2135 = vmatpush1.msra.mxu0 %v2108
      %2136 = vmatprep.subr.mxu0 0.0
      %2137 = vmatpush1.msra.mxu0 %v2109
      %2138 = vmatprep.subr.mxu0 0.0
      %2139 = vmatpush1.msra.mxu0 %v2110
      %2140 = vmatprep.subr.mxu0 0.0
      %2141 = vmatpush1.msra.mxu0 %v2111
      %2142 = vmatprep.subr.mxu0 0.0
      %2143 = vmatpush1.msra.mxu0 %v2112
      %2144 = vmatprep.subr.mxu0 0.0
      %2145 = vmatpush1.msra.mxu0 %v2113
      %2146 = vmatprep.subr.mxu0 0.0
      %2147 = vmatpush1.msra.mxu0 0.0
      %2148 = vmatprep.subr.mxu0 0.0
      %2149 = vmatpush1.msra.mxu0 0.0
      %2150 = vmatprep.subr.mxu0 0.0
      %2151 = vmatpush1.msra.mxu0 0.0
      %2152 = vmatprep.subr.mxu0 0.0
      %2153 = vmatpush1.msra.mxu0 0.0
      %2154 = vmatprep.subr.mxu0 0.0
      %2155 = vmatpush1.msra.mxu0 0.0
      %2156 = vmatprep.subr.mxu0 0.0
      %2157 = vmatpush1.msra.mxu0 0.0
      %2158 = vmatprep.subr.mxu0 0.0
      %2159 = vmatpush1.msra.mxu0 0.0
      %2160 = vmatprep.subr.mxu0 0.0
      %2161 = vmatpush1.msra.mxu0 0.0
      %2162 = vmatprep.subr.mxu0 0.0
      %2163 = vmatpush1.msra.mxu0 0.0
      %2164 = vmatprep.subr.mxu0 0.0
      %2165 = vmatpush1.msra.mxu0 0.0
      %2166 = vmatprep.subr.mxu0 0.0
      %2167 = vmatpush1.msra.mxu0 0.0
      %2168 = vmatprep.subr.mxu0 0.0
      %2169 = vmatpush1.msra.mxu0 0.0
      %2170 = vmatprep.subr.mxu0 0.0
      %2171 = vmatpush1.msra.mxu0 0.0
      %2172 = vmatprep.subr.mxu0 0.0
      %2173 = vmatpush1.msra.mxu0 0.0
      %2174 = vmatprep.subr.mxu0 0.0
      %2175 = vmatpush1.msra.mxu0 0.0
      %2176 = vmatprep.subr.mxu0 0.0
      %2177 = vmatpush1.msra.mxu0 0.0
      %2178 = vmatprep.mubr.f32.mxu0 0.0
      %2179 = vmatmul.mubr.f32.gmra.mrb[0].mxu0 %v2089
      %v2180 = vpop.f32.mrb[0].mxu0
      %v2181 = vadd.f32 0.0, %v2180
      %v2182 = vpop.f32.mrb[0].mxu0
      %2183 = vmatprep.mubr.f32.mxu0 0.0
      %2184 = vmatmul.mubr.f32.gmra.mrb[0].mxu0 %v2090
      %v2185 = vpop.f32.mrb[0].mxu0
      %v2186 = vadd.f32 0.0, %v2185
      %v2187 = vpop.f32.mrb[0].mxu0
      %2188 = vmatprep.mubr.f32.mxu0 0.0
      %2189 = vmatmul.mubr.f32.gmra.mrb[0].mxu0 %v2091
      %v2190 = vpop.f32.mrb[0].mxu0
      %v2191 = vadd.f32 0.0, %v2190
      %v2192 = vpop.f32.mrb[0].mxu0
      %2193 = vmatprep.mubr.f32.mxu0 0.0
      %2194 = vmatmul.mubr.f32.gmra.mrb[0].mxu0 %v2092
      %v2195 = vpop.f32.mrb[0].mxu0
      %v2196 = vadd.f32 0.0, %v2195
      %v2197 = vpop.f32.mrb[0].mxu0
      %2198 = vmatprep.mubr.f32.mxu0 0.0
      %2199 = vmatmul.mubr.f32.gmra.mrb[0].mxu0 %v2093
      %v2200 = vpop.f32.mrb[0].mxu0
      %v2201 = vadd.f32 0.0, %v2200
      %v2202 = vpop.f32.mrb[0].mxu0
      %2203 = vmatprep.mubr.f32.mxu0 0.0
      %2204 = vmatmul.mubr.f32.gmra.mrb[0].mxu0 %v2094
      %v2205 = vpop.f32.mrb[0].mxu0
      %v2206 = vadd.f32 0.0, %v2205
      %v2207 = vpop.f32.mrb[0].mxu0
      %2208 = vmatprep.mubr.f32.mxu0 0.0
      %2209 = vmatmul.mubr.f32.gmra.mrb[0].mxu0 %v2095
      %v2210 = vpop.f32.mrb[0].mxu0
      %v2211 = vadd.f32 0.0, %v2210
      %v2212 = vpop.f32.mrb[0].mxu0
      %2213 = vmatprep.mubr.f32.mxu0 0.0
      %2214 = vmatmul.mubr.f32.gmra.mrb[0].mxu0 %v2096
      %v2215 = vpop.f32.mrb[0].mxu0
      %v2216 = vadd.f32 0.0, %v2215
      %v2217 = vpop.f32.mrb[0].mxu0
      %2218 = vdwg.mxu0
      %v2219 = vadd.f32 %v2081, %v2181
      %v2220 = vadd.f32 %v2082, %v2186
      %v2221 = vadd.f32 %v2083, %v2191
      %v2222 = vadd.f32 %v2084, %v2196
      %v2223 = vadd.f32 %v2085, %v2201
      %v2224 = vadd.f32 %v2086, %v2206
      %v2225 = vadd.f32 %v2087, %v2211
      %v2226 = vadd.f32 %v2088, %v2216
      %v2227 = vld [vmem:[%s1084 + $0x3] sm:$0xff]
      %v2228 = vld [vmem:[%s1084 + $0x13] sm:$0xff]
      %v2229 = vld [vmem:[%s1084 + $0x23] sm:$0xff]
      %v2230 = vld [vmem:[%s1084 + $0x33] sm:$0xff]
      %v2231 = vld [vmem:[%s1084 + $0x43] sm:$0xff]
      %v2232 = vld [vmem:[%s1084 + $0x53] sm:$0xff]
      %v2233 = vld [vmem:[%s1084 + $0x63] sm:$0xff]
      %v2234 = vld [vmem:[%s1084 + $0x73] sm:$0xff]
      %s2235 = scalar_lea.vmem %s3, 1024
      %v2236 = vld [vmem:[%s2235] sm:$0xff]
      %v2237 = vld [vmem:[%s2235 + $0x8] sm:$0xff]
      %v2238 = vld [vmem:[%s2235 + $0x10] sm:$0xff]
      %v2239 = vld [vmem:[%s2235 + $0x18] sm:$0xff]
      %v2240 = vld [vmem:[%s2235 + $0x20] sm:$0xff]
      %v2241 = vld [vmem:[%s2235 + $0x28] sm:$0xff]
      %v2242 = vld [vmem:[%s2235 + $0x30] sm:$0xff]
      %v2243 = vld [vmem:[%s2235 + $0x38] sm:$0xff]
      %v2244 = vld [vmem:[%s2235 + $0x40] sm:$0xff]
      %v2245 = vld [vmem:[%s2235 + $0x48] sm:$0xff]
      %v2246 = vld [vmem:[%s2235 + $0x50] sm:$0xff]
      %v2247 = vld [vmem:[%s2235 + $0x58] sm:$0xff]
      %v2248 = vld [vmem:[%s2235 + $0x60] sm:$0xff]
      %v2249 = vld [vmem:[%s2235 + $0x68] sm:$0xff]
      %v2250 = vld [vmem:[%s2235 + $0x70] sm:$0xff]
      %v2251 = vld [vmem:[%s2235 + $0x78] sm:$0xff]
      %2252 = vmatprep.subr.mxu0 0.0
      %2253 = vmatpush1.msra.mxu0 %v2236
      %2254 = vmatprep.subr.mxu0 0.0
      %2255 = vmatpush1.msra.mxu0 %v2237
      %2256 = vmatprep.subr.mxu0 0.0
      %2257 = vmatpush1.msra.mxu0 %v2238
      %2258 = vmatprep.subr.mxu0 0.0
      %2259 = vmatpush1.msra.mxu0 %v2239
      %2260 = vmatprep.subr.mxu0 0.0
      %2261 = vmatpush1.msra.mxu0 %v2240
      %2262 = vmatprep.subr.mxu0 0.0
      %2263 = vmatpush1.msra.mxu0 %v2241
      %2264 = vmatprep.subr.mxu0 0.0
      %2265 = vmatpush1.msra.mxu0 %v2242
      %2266 = vmatprep.subr.mxu0 0.0
      %2267 = vmatpush1.msra.mxu0 %v2243
      %2268 = vmatprep.subr.mxu0 0.0
      %2269 = vmatpush1.msra.mxu0 %v2244
      %2270 = vmatprep.subr.mxu0 0.0
      %2271 = vmatpush1.msra.mxu0 %v2245
      %2272 = vmatprep.subr.mxu0 0.0
      %2273 = vmatpush1.msra.mxu0 %v2246
      %2274 = vmatprep.subr.mxu0 0.0
      %2275 = vmatpush1.msra.mxu0 %v2247
      %2276 = vmatprep.subr.mxu0 0.0
      %2277 = vmatpush1.msra.mxu0 %v2248
      %2278 = vmatprep.subr.mxu0 0.0
      %2279 = vmatpush1.msra.mxu0 %v2249
      %2280 = vmatprep.subr.mxu0 0.0
      %2281 = vmatpush1.msra.mxu0 %v2250
      %2282 = vmatprep.subr.mxu0 0.0
      %2283 = vmatpush1.msra.mxu0 %v2251
      %2284 = vmatprep.subr.mxu0 0.0
      %2285 = vmatpush1.msra.mxu0 0.0
      %2286 = vmatprep.subr.mxu0 0.0
      %2287 = vmatpush1.msra.mxu0 0.0
      %2288 = vmatprep.subr.mxu0 0.0
      %2289 = vmatpush1.msra.mxu0 0.0
      %2290 = vmatprep.subr.mxu0 0.0
      %2291 = vmatpush1.msra.mxu0 0.0
      %2292 = vmatprep.subr.mxu0 0.0
      %2293 = vmatpush1.msra.mxu0 0.0
      %2294 = vmatprep.subr.mxu0 0.0
      %2295 = vmatpush1.msra.mxu0 0.0
      %2296 = vmatprep.subr.mxu0 0.0
      %2297 = vmatpush1.msra.mxu0 0.0
      %2298 = vmatprep.subr.mxu0 0.0
      %2299 = vmatpush1.msra.mxu0 0.0
      %2300 = vmatprep.subr.mxu0 0.0
      %2301 = vmatpush1.msra.mxu0 0.0
      %2302 = vmatprep.subr.mxu0 0.0
      %2303 = vmatpush1.msra.mxu0 0.0
      %2304 = vmatprep.subr.mxu0 0.0
      %2305 = vmatpush1.msra.mxu0 0.0
      %2306 = vmatprep.subr.mxu0 0.0
      %2307 = vmatpush1.msra.mxu0 0.0
      %2308 = vmatprep.subr.mxu0 0.0
      %2309 = vmatpush1.msra.mxu0 0.0
      %2310 = vmatprep.subr.mxu0 0.0
      %2311 = vmatpush1.msra.mxu0 0.0
      %2312 = vmatprep.subr.mxu0 0.0
      %2313 = vmatpush1.msra.mxu0 0.0
      %2314 = vmatprep.subr.mxu0 0.0
      %2315 = vmatpush1.msra.mxu0 0.0
      %2316 = vmatprep.mubr.f32.mxu0 0.0
      %2317 = vmatmul.mubr.f32.gmra.mrb[0].mxu0 %v2227
      %v2318 = vpop.f32.mrb[0].mxu0
      %v2319 = vadd.f32 0.0, %v2318
      %v2320 = vpop.f32.mrb[0].mxu0
      %2321 = vmatprep.mubr.f32.mxu0 0.0
      %2322 = vmatmul.mubr.f32.gmra.mrb[0].mxu0 %v2228
      %v2323 = vpop.f32.mrb[0].mxu0
      %v2324 = vadd.f32 0.0, %v2323
      %v2325 = vpop.f32.mrb[0].mxu0
      %2326 = vmatprep.mubr.f32.mxu0 0.0
      %2327 = vmatmul.mubr.f32.gmra.mrb[0].mxu0 %v2229
      %v2328 = vpop.f32.mrb[0].mxu0
      %v2329 = vadd.f32 0.0, %v2328
      %v2330 = vpop.f32.mrb[0].mxu0
      %2331 = vmatprep.mubr.f32.mxu0 0.0
      %2332 = vmatmul.mubr.f32.gmra.mrb[0].mxu0 %v2230
      %v2333 = vpop.f32.mrb[0].mxu0
      %v2334 = vadd.f32 0.0, %v2333
      %v2335 = vpop.f32.mrb[0].mxu0
      %2336 = vmatprep.mubr.f32.mxu0 0.0
      %2337 = vmatmul.mubr.f32.gmra.mrb[0].mxu0 %v2231
      %v2338 = vpop.f32.mrb[0].mxu0
      %v2339 = vadd.f32 0.0, %v2338
      %v2340 = vpop.f32.mrb[0].mxu0
      %2341 = vmatprep.mubr.f32.mxu0 0.0
      %2342 = vmatmul.mubr.f32.gmra.mrb[0].mxu0 %v2232
      %v2343 = vpop.f32.mrb[0].mxu0
      %v2344 = vadd.f32 0.0, %v2343
      %v2345 = vpop.f32.mrb[0].mxu0
      %2346 = vmatprep.mubr.f32.mxu0 0.0
      %2347 = vmatmul.mubr.f32.gmra.mrb[0].mxu0 %v2233
      %v2348 = vpop.f32.mrb[0].mxu0
      %v2349 = vadd.f32 0.0, %v2348
      %v2350 = vpop.f32.mrb[0].mxu0
      %2351 = vmatprep.mubr.f32.mxu0 0.0
      %2352 = vmatmul.mubr.f32.gmra.mrb[0].mxu0 %v2234
      %v2353 = vpop.f32.mrb[0].mxu0
      %v2354 = vadd.f32 0.0, %v2353
      %v2355 = vpop.f32.mrb[0].mxu0
      %2356 = vdwg.mxu0
      %v2357 = vadd.f32 %v2219, %v2319
      %v2358 = vadd.f32 %v2220, %v2324
      %v2359 = vadd.f32 %v2221, %v2329
      %v2360 = vadd.f32 %v2222, %v2334
      %v2361 = vadd.f32 %v2223, %v2339
      %v2362 = vadd.f32 %v2224, %v2344
      %v2363 = vadd.f32 %v2225, %v2349
      %v2364 = vadd.f32 %v2226, %v2354
      %v2365 = vld [vmem:[%s1084 + $0x4] sm:$0xff]
      %v2366 = vld [vmem:[%s1084 + $0x14] sm:$0xff]
      %v2367 = vld [vmem:[%s1084 + $0x24] sm:$0xff]
      %v2368 = vld [vmem:[%s1084 + $0x34] sm:$0xff]
      %v2369 = vld [vmem:[%s1084 + $0x44] sm:$0xff]
      %v2370 = vld [vmem:[%s1084 + $0x54] sm:$0xff]
      %v2371 = vld [vmem:[%s1084 + $0x64] sm:$0xff]
      %v2372 = vld [vmem:[%s1084 + $0x74] sm:$0xff]
      %s2373 = scalar_lea.vmem %s3, 1152
      %v2374 = vld [vmem:[%s2373] sm:$0xff]
      %v2375 = vld [vmem:[%s2373 + $0x8] sm:$0xff]
      %v2376 = vld [vmem:[%s2373 + $0x10] sm:$0xff]
      %v2377 = vld [vmem:[%s2373 + $0x18] sm:$0xff]
      %v2378 = vld [vmem:[%s2373 + $0x20] sm:$0xff]
      %v2379 = vld [vmem:[%s2373 + $0x28] sm:$0xff]
      %v2380 = vld [vmem:[%s2373 + $0x30] sm:$0xff]
      %v2381 = vld [vmem:[%s2373 + $0x38] sm:$0xff]
      %v2382 = vld [vmem:[%s2373 + $0x40] sm:$0xff]
      %v2383 = vld [vmem:[%s2373 + $0x48] sm:$0xff]
      %v2384 = vld [vmem:[%s2373 + $0x50] sm:$0xff]
      %v2385 = vld [vmem:[%s2373 + $0x58] sm:$0xff]
      %v2386 = vld [vmem:[%s2373 + $0x60] sm:$0xff]
      %v2387 = vld [vmem:[%s2373 + $0x68] sm:$0xff]
      %v2388 = vld [vmem:[%s2373 + $0x70] sm:$0xff]
      %v2389 = vld [vmem:[%s2373 + $0x78] sm:$0xff]
      %2390 = vmatprep.subr.mxu0 0.0
      %2391 = vmatpush1.msra.mxu0 %v2374
      %2392 = vmatprep.subr.mxu0 0.0
      %2393 = vmatpush1.msra.mxu0 %v2375
      %2394 = vmatprep.subr.mxu0 0.0
      %2395 = vmatpush1.msra.mxu0 %v2376
      %2396 = vmatprep.subr.mxu0 0.0
      %2397 = vmatpush1.msra.mxu0 %v2377
      %2398 = vmatprep.subr.mxu0 0.0
      %2399 = vmatpush1.msra.mxu0 %v2378
      %2400 = vmatprep.subr.mxu0 0.0
      %2401 = vmatpush1.msra.mxu0 %v2379
      %2402 = vmatprep.subr.mxu0 0.0
      %2403 = vmatpush1.msra.mxu0 %v2380
      %2404 = vmatprep.subr.mxu0 0.0
      %2405 = vmatpush1.msra.mxu0 %v2381
      %2406 = vmatprep.subr.mxu0 0.0
      %2407 = vmatpush1.msra.mxu0 %v2382
      %2408 = vmatprep.subr.mxu0 0.0
      %2409 = vmatpush1.msra.mxu0 %v2383
      %2410 = vmatprep.subr.mxu0 0.0
      %2411 = vmatpush1.msra.mxu0 %v2384
      %2412 = vmatprep.subr.mxu0 0.0
      %2413 = vmatpush1.msra.mxu0 %v2385
      %2414 = vmatprep.subr.mxu0 0.0
      %2415 = vmatpush1.msra.mxu0 %v2386
      %2416 = vmatprep.subr.mxu0 0.0
      %2417 = vmatpush1.msra.mxu0 %v2387
      %2418 = vmatprep.subr.mxu0 0.0
      %2419 = vmatpush1.msra.mxu0 %v2388
      %2420 = vmatprep.subr.mxu0 0.0
      %2421 = vmatpush1.msra.mxu0 %v2389
      %2422 = vmatprep.subr.mxu0 0.0
      %2423 = vmatpush1.msra.mxu0 0.0
      %2424 = vmatprep.subr.mxu0 0.0
      %2425 = vmatpush1.msra.mxu0 0.0
      %2426 = vmatprep.subr.mxu0 0.0
      %2427 = vmatpush1.msra.mxu0 0.0
      %2428 = vmatprep.subr.mxu0 0.0
      %2429 = vmatpush1.msra.mxu0 0.0
      %2430 = vmatprep.subr.mxu0 0.0
      %2431 = vmatpush1.msra.mxu0 0.0
      %2432 = vmatprep.subr.mxu0 0.0
      %2433 = vmatpush1.msra.mxu0 0.0
      %2434 = vmatprep.subr.mxu0 0.0
      %2435 = vmatpush1.msra.mxu0 0.0
      %2436 = vmatprep.subr.mxu0 0.0
      %2437 = vmatpush1.msra.mxu0 0.0
      %2438 = vmatprep.subr.mxu0 0.0
      %2439 = vmatpush1.msra.mxu0 0.0
      %2440 = vmatprep.subr.mxu0 0.0
      %2441 = vmatpush1.msra.mxu0 0.0
      %2442 = vmatprep.subr.mxu0 0.0
      %2443 = vmatpush1.msra.mxu0 0.0
      %2444 = vmatprep.subr.mxu0 0.0
      %2445 = vmatpush1.msra.mxu0 0.0
      %2446 = vmatprep.subr.mxu0 0.0
      %2447 = vmatpush1.msra.mxu0 0.0
      %2448 = vmatprep.subr.mxu0 0.0
      %2449 = vmatpush1.msra.mxu0 0.0
      %2450 = vmatprep.subr.mxu0 0.0
      %2451 = vmatpush1.msra.mxu0 0.0
      %2452 = vmatprep.subr.mxu0 0.0
      %2453 = vmatpush1.msra.mxu0 0.0
      %2454 = vmatprep.mubr.f32.mxu0 0.0
      %2455 = vmatmul.mubr.f32.gmra.mrb[0].mxu0 %v2365
      %v2456 = vpop.f32.mrb[0].mxu0
      %v2457 = vadd.f32 0.0, %v2456
      %v2458 = vpop.f32.mrb[0].mxu0
      %2459 = vmatprep.mubr.f32.mxu0 0.0
      %2460 = vmatmul.mubr.f32.gmra.mrb[0].mxu0 %v2366
      %v2461 = vpop.f32.mrb[0].mxu0
      %v2462 = vadd.f32 0.0, %v2461
      %v2463 = vpop.f32.mrb[0].mxu0
      %2464 = vmatprep.mubr.f32.mxu0 0.0
      %2465 = vmatmul.mubr.f32.gmra.mrb[0].mxu0 %v2367
      %v2466 = vpop.f32.mrb[0].mxu0
      %v2467 = vadd.f32 0.0, %v2466
      %v2468 = vpop.f32.mrb[0].mxu0
      %2469 = vmatprep.mubr.f32.mxu0 0.0
      %2470 = vmatmul.mubr.f32.gmra.mrb[0].mxu0 %v2368
      %v2471 = vpop.f32.mrb[0].mxu0
      %v2472 = vadd.f32 0.0, %v2471
      %v2473 = vpop.f32.mrb[0].mxu0
      %2474 = vmatprep.mubr.f32.mxu0 0.0
      %2475 = vmatmul.mubr.f32.gmra.mrb[0].mxu0 %v2369
      %v2476 = vpop.f32.mrb[0].mxu0
      %v2477 = vadd.f32 0.0, %v2476
      %v2478 = vpop.f32.mrb[0].mxu0
      %2479 = vmatprep.mubr.f32.mxu0 0.0
      %2480 = vmatmul.mubr.f32.gmra.mrb[0].mxu0 %v2370
      %v2481 = vpop.f32.mrb[0].mxu0
      %v2482 = vadd.f32 0.0, %v2481
      %v2483 = vpop.f32.mrb[0].mxu0
      %2484 = vmatprep.mubr.f32.mxu0 0.0
      %2485 = vmatmul.mubr.f32.gmra.mrb[0].mxu0 %v2371
      %v2486 = vpop.f32.mrb[0].mxu0
      %v2487 = vadd.f32 0.0, %v2486
      %v2488 = vpop.f32.mrb[0].mxu0
      %2489 = vmatprep.mubr.f32.mxu0 0.0
      %2490 = vmatmul.mubr.f32.gmra.mrb[0].mxu0 %v2372
      %v2491 = vpop.f32.mrb[0].mxu0
      %v2492 = vadd.f32 0.0, %v2491
      %v2493 = vpop.f32.mrb[0].mxu0
      %2494 = vdwg.mxu0
      %v2495 = vadd.f32 %v2357, %v2457
      %v2496 = vadd.f32 %v2358, %v2462
      %v2497 = vadd.f32 %v2359, %v2467
      %v2498 = vadd.f32 %v2360, %v2472
      %v2499 = vadd.f32 %v2361, %v2477
      %v2500 = vadd.f32 %v2362, %v2482
      %v2501 = vadd.f32 %v2363, %v2487
      %v2502 = vadd.f32 %v2364, %v2492
      %v2503 = vld [vmem:[%s1087] sm:$0xff]
      %v2504 = vld [vmem:[%s1087 + $0x10] sm:$0xff]
      %v2505 = vld [vmem:[%s1087 + $0x20] sm:$0xff]
      %v2506 = vld [vmem:[%s1087 + $0x30] sm:$0xff]
      %v2507 = vld [vmem:[%s1087 + $0x40] sm:$0xff]
      %v2508 = vld [vmem:[%s1087 + $0x50] sm:$0xff]
      %v2509 = vld [vmem:[%s1087 + $0x60] sm:$0xff]
      %v2510 = vld [vmem:[%s1087 + $0x70] sm:$0xff]
      %s2511 = scalar_lea.vmem %s3, 1280
      %v2512 = vld [vmem:[%s2511] sm:$0xff]
      %v2513 = vld [vmem:[%s2511 + $0x8] sm:$0xff]
      %v2514 = vld [vmem:[%s2511 + $0x10] sm:$0xff]
      %v2515 = vld [vmem:[%s2511 + $0x18] sm:$0xff]
      %v2516 = vld [vmem:[%s2511 + $0x20] sm:$0xff]
      %v2517 = vld [vmem:[%s2511 + $0x28] sm:$0xff]
      %v2518 = vld [vmem:[%s2511 + $0x30] sm:$0xff]
      %v2519 = vld [vmem:[%s2511 + $0x38] sm:$0xff]
      %v2520 = vld [vmem:[%s2511 + $0x40] sm:$0xff]
      %v2521 = vld [vmem:[%s2511 + $0x48] sm:$0xff]
      %v2522 = vld [vmem:[%s2511 + $0x50] sm:$0xff]
      %v2523 = vld [vmem:[%s2511 + $0x58] sm:$0xff]
      %v2524 = vld [vmem:[%s2511 + $0x60] sm:$0xff]
      %v2525 = vld [vmem:[%s2511 + $0x68] sm:$0xff]
      %v2526 = vld [vmem:[%s2511 + $0x70] sm:$0xff]
      %v2527 = vld [vmem:[%s2511 + $0x78] sm:$0xff]
      %2528 = vmatprep.subr.mxu0 0.0
      %2529 = vmatpush1.msra.mxu0 %v2512
      %2530 = vmatprep.subr.mxu0 0.0
      %2531 = vmatpush1.msra.mxu0 %v2513
      %2532 = vmatprep.subr.mxu0 0.0
      %2533 = vmatpush1.msra.mxu0 %v2514
      %2534 = vmatprep.subr.mxu0 0.0
      %2535 = vmatpush1.msra.mxu0 %v2515
      %2536 = vmatprep.subr.mxu0 0.0
      %2537 = vmatpush1.msra.mxu0 %v2516
      %2538 = vmatprep.subr.mxu0 0.0
      %2539 = vmatpush1.msra.mxu0 %v2517
      %2540 = vmatprep.subr.mxu0 0.0
      %2541 = vmatpush1.msra.mxu0 %v2518
      %2542 = vmatprep.subr.mxu0 0.0
      %2543 = vmatpush1.msra.mxu0 %v2519
      %2544 = vmatprep.subr.mxu0 0.0
      %2545 = vmatpush1.msra.mxu0 %v2520
      %2546 = vmatprep.subr.mxu0 0.0
      %2547 = vmatpush1.msra.mxu0 %v2521
      %2548 = vmatprep.subr.mxu0 0.0
      %2549 = vmatpush1.msra.mxu0 %v2522
      %2550 = vmatprep.subr.mxu0 0.0
      %2551 = vmatpush1.msra.mxu0 %v2523
      %2552 = vmatprep.subr.mxu0 0.0
      %2553 = vmatpush1.msra.mxu0 %v2524
      %2554 = vmatprep.subr.mxu0 0.0
      %2555 = vmatpush1.msra.mxu0 %v2525
      %2556 = vmatprep.subr.mxu0 0.0
      %2557 = vmatpush1.msra.mxu0 %v2526
      %2558 = vmatprep.subr.mxu0 0.0
      %2559 = vmatpush1.msra.mxu0 %v2527
      %2560 = vmatprep.subr.mxu0 0.0
      %2561 = vmatpush1.msra.mxu0 0.0
      %2562 = vmatprep.subr.mxu0 0.0
      %2563 = vmatpush1.msra.mxu0 0.0
      %2564 = vmatprep.subr.mxu0 0.0
      %2565 = vmatpush1.msra.mxu0 0.0
      %2566 = vmatprep.subr.mxu0 0.0
      %2567 = vmatpush1.msra.mxu0 0.0
      %2568 = vmatprep.subr.mxu0 0.0
      %2569 = vmatpush1.msra.mxu0 0.0
      %2570 = vmatprep.subr.mxu0 0.0
      %2571 = vmatpush1.msra.mxu0 0.0
      %2572 = vmatprep.subr.mxu0 0.0
      %2573 = vmatpush1.msra.mxu0 0.0
      %2574 = vmatprep.subr.mxu0 0.0
      %2575 = vmatpush1.msra.mxu0 0.0
      %2576 = vmatprep.subr.mxu0 0.0
      %2577 = vmatpush1.msra.mxu0 0.0
      %2578 = vmatprep.subr.mxu0 0.0
      %2579 = vmatpush1.msra.mxu0 0.0
      %2580 = vmatprep.subr.mxu0 0.0
      %2581 = vmatpush1.msra.mxu0 0.0
      %2582 = vmatprep.subr.mxu0 0.0
      %2583 = vmatpush1.msra.mxu0 0.0
      %2584 = vmatprep.subr.mxu0 0.0
      %2585 = vmatpush1.msra.mxu0 0.0
      %2586 = vmatprep.subr.mxu0 0.0
      %2587 = vmatpush1.msra.mxu0 0.0
      %2588 = vmatprep.subr.mxu0 0.0
      %2589 = vmatpush1.msra.mxu0 0.0
      %2590 = vmatprep.subr.mxu0 0.0
      %2591 = vmatpush1.msra.mxu0 0.0
      %2592 = vmatprep.mubr.f32.mxu0 0.0
      %2593 = vmatmul.mubr.f32.gmra.mrb[0].mxu0 %v2503
      %v2594 = vpop.f32.mrb[0].mxu0
      %v2595 = vadd.f32 0.0, %v2594
      %v2596 = vpop.f32.mrb[0].mxu0
      %2597 = vmatprep.mubr.f32.mxu0 0.0
      %2598 = vmatmul.mubr.f32.gmra.mrb[0].mxu0 %v2504
      %v2599 = vpop.f32.mrb[0].mxu0
      %v2600 = vadd.f32 0.0, %v2599
      %v2601 = vpop.f32.mrb[0].mxu0
      %2602 = vmatprep.mubr.f32.mxu0 0.0
      %2603 = vmatmul.mubr.f32.gmra.mrb[0].mxu0 %v2505
      %v2604 = vpop.f32.mrb[0].mxu0
      %v2605 = vadd.f32 0.0, %v2604
      %v2606 = vpop.f32.mrb[0].mxu0
      %2607 = vmatprep.mubr.f32.mxu0 0.0
      %2608 = vmatmul.mubr.f32.gmra.mrb[0].mxu0 %v2506
      %v2609 = vpop.f32.mrb[0].mxu0
      %v2610 = vadd.f32 0.0, %v2609
      %v2611 = vpop.f32.mrb[0].mxu0
      %2612 = vmatprep.mubr.f32.mxu0 0.0
      %2613 = vmatmul.mubr.f32.gmra.mrb[0].mxu0 %v2507
      %v2614 = vpop.f32.mrb[0].mxu0
      %v2615 = vadd.f32 0.0, %v2614
      %v2616 = vpop.f32.mrb[0].mxu0
      %2617 = vmatprep.mubr.f32.mxu0 0.0
      %2618 = vmatmul.mubr.f32.gmra.mrb[0].mxu0 %v2508
      %v2619 = vpop.f32.mrb[0].mxu0
      %v2620 = vadd.f32 0.0, %v2619
      %v2621 = vpop.f32.mrb[0].mxu0
      %2622 = vmatprep.mubr.f32.mxu0 0.0
      %2623 = vmatmul.mubr.f32.gmra.mrb[0].mxu0 %v2509
      %v2624 = vpop.f32.mrb[0].mxu0
      %v2625 = vadd.f32 0.0, %v2624
      %v2626 = vpop.f32.mrb[0].mxu0
      %2627 = vmatprep.mubr.f32.mxu0 0.0
      %2628 = vmatmul.mubr.f32.gmra.mrb[0].mxu0 %v2510
      %v2629 = vpop.f32.mrb[0].mxu0
      %v2630 = vadd.f32 0.0, %v2629
      %v2631 = vpop.f32.mrb[0].mxu0
      %2632 = vdwg.mxu0
      %v2633 = vadd.f32 %v2495, %v2595
      %v2634 = vadd.f32 %v2496, %v2600
      %v2635 = vadd.f32 %v2497, %v2605
      %v2636 = vadd.f32 %v2498, %v2610
      %v2637 = vadd.f32 %v2499, %v2615
      %v2638 = vadd.f32 %v2500, %v2620
      %v2639 = vadd.f32 %v2501, %v2625
      %v2640 = vadd.f32 %v2502, %v2630
      %v2641 = vld [vmem:[%s1087 + $0x1] sm:$0xff]
      %v2642 = vld [vmem:[%s1087 + $0x11] sm:$0xff]
      %v2643 = vld [vmem:[%s1087 + $0x21] sm:$0xff]
      %v2644 = vld [vmem:[%s1087 + $0x31] sm:$0xff]
      %v2645 = vld [vmem:[%s1087 + $0x41] sm:$0xff]
      %v2646 = vld [vmem:[%s1087 + $0x51] sm:$0xff]
      %v2647 = vld [vmem:[%s1087 + $0x61] sm:$0xff]
      %v2648 = vld [vmem:[%s1087 + $0x71] sm:$0xff]
      %s2649 = scalar_lea.vmem %s3, 1408
      %v2650 = vld [vmem:[%s2649] sm:$0xff]
      %v2651 = vld [vmem:[%s2649 + $0x8] sm:$0xff]
      %v2652 = vld [vmem:[%s2649 + $0x10] sm:$0xff]
      %v2653 = vld [vmem:[%s2649 + $0x18] sm:$0xff]
      %v2654 = vld [vmem:[%s2649 + $0x20] sm:$0xff]
      %v2655 = vld [vmem:[%s2649 + $0x28] sm:$0xff]
      %v2656 = vld [vmem:[%s2649 + $0x30] sm:$0xff]
      %v2657 = vld [vmem:[%s2649 + $0x38] sm:$0xff]
      %v2658 = vld [vmem:[%s2649 + $0x40] sm:$0xff]
      %v2659 = vld [vmem:[%s2649 + $0x48] sm:$0xff]
      %v2660 = vld [vmem:[%s2649 + $0x50] sm:$0xff]
      %v2661 = vld [vmem:[%s2649 + $0x58] sm:$0xff]
      %v2662 = vld [vmem:[%s2649 + $0x60] sm:$0xff]
      %v2663 = vld [vmem:[%s2649 + $0x68] sm:$0xff]
      %v2664 = vld [vmem:[%s2649 + $0x70] sm:$0xff]
      %v2665 = vld [vmem:[%s2649 + $0x78] sm:$0xff]
      %2666 = vmatprep.subr.mxu0 0.0
      %2667 = vmatpush1.msra.mxu0 %v2650
      %2668 = vmatprep.subr.mxu0 0.0
      %2669 = vmatpush1.msra.mxu0 %v2651
      %2670 = vmatprep.subr.mxu0 0.0
      %2671 = vmatpush1.msra.mxu0 %v2652
      %2672 = vmatprep.subr.mxu0 0.0
      %2673 = vmatpush1.msra.mxu0 %v2653
      %2674 = vmatprep.subr.mxu0 0.0
      %2675 = vmatpush1.msra.mxu0 %v2654
      %2676 = vmatprep.subr.mxu0 0.0
      %2677 = vmatpush1.msra.mxu0 %v2655
      %2678 = vmatprep.subr.mxu0 0.0
      %2679 = vmatpush1.msra.mxu0 %v2656
      %2680 = vmatprep.subr.mxu0 0.0
      %2681 = vmatpush1.msra.mxu0 %v2657
      %2682 = vmatprep.subr.mxu0 0.0
      %2683 = vmatpush1.msra.mxu0 %v2658
      %2684 = vmatprep.subr.mxu0 0.0
      %2685 = vmatpush1.msra.mxu0 %v2659
      %2686 = vmatprep.subr.mxu0 0.0
      %2687 = vmatpush1.msra.mxu0 %v2660
      %2688 = vmatprep.subr.mxu0 0.0
      %2689 = vmatpush1.msra.mxu0 %v2661
      %2690 = vmatprep.subr.mxu0 0.0
      %2691 = vmatpush1.msra.mxu0 %v2662
      %2692 = vmatprep.subr.mxu0 0.0
      %2693 = vmatpush1.msra.mxu0 %v2663
      %2694 = vmatprep.subr.mxu0 0.0
      %2695 = vmatpush1.msra.mxu0 %v2664
      %2696 = vmatprep.subr.mxu0 0.0
      %2697 = vmatpush1.msra.mxu0 %v2665
      %2698 = vmatprep.subr.mxu0 0.0
      %2699 = vmatpush1.msra.mxu0 0.0
      %2700 = vmatprep.subr.mxu0 0.0
      %2701 = vmatpush1.msra.mxu0 0.0
      %2702 = vmatprep.subr.mxu0 0.0
      %2703 = vmatpush1.msra.mxu0 0.0
      %2704 = vmatprep.subr.mxu0 0.0
      %2705 = vmatpush1.msra.mxu0 0.0
      %2706 = vmatprep.subr.mxu0 0.0
      %2707 = vmatpush1.msra.mxu0 0.0
      %2708 = vmatprep.subr.mxu0 0.0
      %2709 = vmatpush1.msra.mxu0 0.0
      %2710 = vmatprep.subr.mxu0 0.0
      %2711 = vmatpush1.msra.mxu0 0.0
      %2712 = vmatprep.subr.mxu0 0.0
      %2713 = vmatpush1.msra.mxu0 0.0
      %2714 = vmatprep.subr.mxu0 0.0
      %2715 = vmatpush1.msra.mxu0 0.0
      %2716 = vmatprep.subr.mxu0 0.0
      %2717 = vmatpush1.msra.mxu0 0.0
      %2718 = vmatprep.subr.mxu0 0.0
      %2719 = vmatpush1.msra.mxu0 0.0
      %2720 = vmatprep.subr.mxu0 0.0
      %2721 = vmatpush1.msra.mxu0 0.0
      %2722 = vmatprep.subr.mxu0 0.0
      %2723 = vmatpush1.msra.mxu0 0.0
      %2724 = vmatprep.subr.mxu0 0.0
      %2725 = vmatpush1.msra.mxu0 0.0
      %2726 = vmatprep.subr.mxu0 0.0
      %2727 = vmatpush1.msra.mxu0 0.0
      %2728 = vmatprep.subr.mxu0 0.0
      %2729 = vmatpush1.msra.mxu0 0.0
      %2730 = vmatprep.mubr.f32.mxu0 0.0
      %2731 = vmatmul.mubr.f32.gmra.mrb[0].mxu0 %v2641
      %v2732 = vpop.f32.mrb[0].mxu0
      %v2733 = vadd.f32 0.0, %v2732
      %v2734 = vpop.f32.mrb[0].mxu0
      %2735 = vmatprep.mubr.f32.mxu0 0.0
      %2736 = vmatmul.mubr.f32.gmra.mrb[0].mxu0 %v2642
      %v2737 = vpop.f32.mrb[0].mxu0
      %v2738 = vadd.f32 0.0, %v2737
      %v2739 = vpop.f32.mrb[0].mxu0
      %2740 = vmatprep.mubr.f32.mxu0 0.0
      %2741 = vmatmul.mubr.f32.gmra.mrb[0].mxu0 %v2643
      %v2742 = vpop.f32.mrb[0].mxu0
      %v2743 = vadd.f32 0.0, %v2742
      %v2744 = vpop.f32.mrb[0].mxu0
      %2745 = vmatprep.mubr.f32.mxu0 0.0
      %2746 = vmatmul.mubr.f32.gmra.mrb[0].mxu0 %v2644
      %v2747 = vpop.f32.mrb[0].mxu0
      %v2748 = vadd.f32 0.0, %v2747
      %v2749 = vpop.f32.mrb[0].mxu0
      %2750 = vmatprep.mubr.f32.mxu0 0.0
      %2751 = vmatmul.mubr.f32.gmra.mrb[0].mxu0 %v2645
      %v2752 = vpop.f32.mrb[0].mxu0
      %v2753 = vadd.f32 0.0, %v2752
      %v2754 = vpop.f32.mrb[0].mxu0
      %2755 = vmatprep.mubr.f32.mxu0 0.0
      %2756 = vmatmul.mubr.f32.gmra.mrb[0].mxu0 %v2646
      %v2757 = vpop.f32.mrb[0].mxu0
      %v2758 = vadd.f32 0.0, %v2757
      %v2759 = vpop.f32.mrb[0].mxu0
      %2760 = vmatprep.mubr.f32.mxu0 0.0
      %2761 = vmatmul.mubr.f32.gmra.mrb[0].mxu0 %v2647
      %v2762 = vpop.f32.mrb[0].mxu0
      %v2763 = vadd.f32 0.0, %v2762
      %v2764 = vpop.f32.mrb[0].mxu0
      %2765 = vmatprep.mubr.f32.mxu0 0.0
      %2766 = vmatmul.mubr.f32.gmra.mrb[0].mxu0 %v2648
      %v2767 = vpop.f32.mrb[0].mxu0
      %v2768 = vadd.f32 0.0, %v2767
      %v2769 = vpop.f32.mrb[0].mxu0
      %2770 = vdwg.mxu0
      %v2771 = vadd.f32 %v2633, %v2733
      %v2772 = vadd.f32 %v2634, %v2738
      %v2773 = vadd.f32 %v2635, %v2743
      %v2774 = vadd.f32 %v2636, %v2748
      %v2775 = vadd.f32 %v2637, %v2753
      %v2776 = vadd.f32 %v2638, %v2758
      %v2777 = vadd.f32 %v2639, %v2763
      %v2778 = vadd.f32 %v2640, %v2768
      %v2779 = vld [vmem:[%s1087 + $0x2] sm:$0xff]
      %v2780 = vld [vmem:[%s1087 + $0x12] sm:$0xff]
      %v2781 = vld [vmem:[%s1087 + $0x22] sm:$0xff]
      %v2782 = vld [vmem:[%s1087 + $0x32] sm:$0xff]
      %v2783 = vld [vmem:[%s1087 + $0x42] sm:$0xff]
      %v2784 = vld [vmem:[%s1087 + $0x52] sm:$0xff]
      %v2785 = vld [vmem:[%s1087 + $0x62] sm:$0xff]
      %v2786 = vld [vmem:[%s1087 + $0x72] sm:$0xff]
      %s2787 = scalar_lea.vmem %s3, 1536
      %v2788 = vld [vmem:[%s2787] sm:$0xff]
      %v2789 = vld [vmem:[%s2787 + $0x8] sm:$0xff]
      %v2790 = vld [vmem:[%s2787 + $0x10] sm:$0xff]
      %v2791 = vld [vmem:[%s2787 + $0x18] sm:$0xff]
      %v2792 = vld [vmem:[%s2787 + $0x20] sm:$0xff]
      %v2793 = vld [vmem:[%s2787 + $0x28] sm:$0xff]
      %v2794 = vld [vmem:[%s2787 + $0x30] sm:$0xff]
      %v2795 = vld [vmem:[%s2787 + $0x38] sm:$0xff]
      %v2796 = vld [vmem:[%s2787 + $0x40] sm:$0xff]
      %v2797 = vld [vmem:[%s2787 + $0x48] sm:$0xff]
      %v2798 = vld [vmem:[%s2787 + $0x50] sm:$0xff]
      %v2799 = vld [vmem:[%s2787 + $0x58] sm:$0xff]
      %v2800 = vld [vmem:[%s2787 + $0x60] sm:$0xff]
      %v2801 = vld [vmem:[%s2787 + $0x68] sm:$0xff]
      %v2802 = vld [vmem:[%s2787 + $0x70] sm:$0xff]
      %v2803 = vld [vmem:[%s2787 + $0x78] sm:$0xff]
      %2804 = vmatprep.subr.mxu0 0.0
      %2805 = vmatpush1.msra.mxu0 %v2788
      %2806 = vmatprep.subr.mxu0 0.0
      %2807 = vmatpush1.msra.mxu0 %v2789
      %2808 = vmatprep.subr.mxu0 0.0
      %2809 = vmatpush1.msra.mxu0 %v2790
      %2810 = vmatprep.subr.mxu0 0.0
      %2811 = vmatpush1.msra.mxu0 %v2791
      %2812 = vmatprep.subr.mxu0 0.0
      %2813 = vmatpush1.msra.mxu0 %v2792
      %2814 = vmatprep.subr.mxu0 0.0
      %2815 = vmatpush1.msra.mxu0 %v2793
      %2816 = vmatprep.subr.mxu0 0.0
      %2817 = vmatpush1.msra.mxu0 %v2794
      %2818 = vmatprep.subr.mxu0 0.0
      %2819 = vmatpush1.msra.mxu0 %v2795
      %2820 = vmatprep.subr.mxu0 0.0
      %2821 = vmatpush1.msra.mxu0 %v2796
      %2822 = vmatprep.subr.mxu0 0.0
      %2823 = vmatpush1.msra.mxu0 %v2797
      %2824 = vmatprep.subr.mxu0 0.0
      %2825 = vmatpush1.msra.mxu0 %v2798
      %2826 = vmatprep.subr.mxu0 0.0
      %2827 = vmatpush1.msra.mxu0 %v2799
      %2828 = vmatprep.subr.mxu0 0.0
      %2829 = vmatpush1.msra.mxu0 %v2800
      %2830 = vmatprep.subr.mxu0 0.0
      %2831 = vmatpush1.msra.mxu0 %v2801
      %2832 = vmatprep.subr.mxu0 0.0
      %2833 = vmatpush1.msra.mxu0 %v2802
      %2834 = vmatprep.subr.mxu0 0.0
      %2835 = vmatpush1.msra.mxu0 %v2803
      %2836 = vmatprep.subr.mxu0 0.0
      %2837 = vmatpush1.msra.mxu0 0.0
      %2838 = vmatprep.subr.mxu0 0.0
      %2839 = vmatpush1.msra.mxu0 0.0
      %2840 = vmatprep.subr.mxu0 0.0
      %2841 = vmatpush1.msra.mxu0 0.0
      %2842 = vmatprep.subr.mxu0 0.0
      %2843 = vmatpush1.msra.mxu0 0.0
      %2844 = vmatprep.subr.mxu0 0.0
      %2845 = vmatpush1.msra.mxu0 0.0
      %2846 = vmatprep.subr.mxu0 0.0
      %2847 = vmatpush1.msra.mxu0 0.0
      %2848 = vmatprep.subr.mxu0 0.0
      %2849 = vmatpush1.msra.mxu0 0.0
      %2850 = vmatprep.subr.mxu0 0.0
      %2851 = vmatpush1.msra.mxu0 0.0
      %2852 = vmatprep.subr.mxu0 0.0
      %2853 = vmatpush1.msra.mxu0 0.0
      %2854 = vmatprep.subr.mxu0 0.0
      %2855 = vmatpush1.msra.mxu0 0.0
      %2856 = vmatprep.subr.mxu0 0.0
      %2857 = vmatpush1.msra.mxu0 0.0
      %2858 = vmatprep.subr.mxu0 0.0
      %2859 = vmatpush1.msra.mxu0 0.0
      %2860 = vmatprep.subr.mxu0 0.0
      %2861 = vmatpush1.msra.mxu0 0.0
      %2862 = vmatprep.subr.mxu0 0.0
      %2863 = vmatpush1.msra.mxu0 0.0
      %2864 = vmatprep.subr.mxu0 0.0
      %2865 = vmatpush1.msra.mxu0 0.0
      %2866 = vmatprep.subr.mxu0 0.0
      %2867 = vmatpush1.msra.mxu0 0.0
      %2868 = vmatprep.mubr.f32.mxu0 0.0
      %2869 = vmatmul.mubr.f32.gmra.mrb[0].mxu0 %v2779
      %v2870 = vpop.f32.mrb[0].mxu0
      %v2871 = vadd.f32 0.0, %v2870
      %v2872 = vpop.f32.mrb[0].mxu0
      %2873 = vmatprep.mubr.f32.mxu0 0.0
      %2874 = vmatmul.mubr.f32.gmra.mrb[0].mxu0 %v2780
      %v2875 = vpop.f32.mrb[0].mxu0
      %v2876 = vadd.f32 0.0, %v2875
      %v2877 = vpop.f32.mrb[0].mxu0
      %2878 = vmatprep.mubr.f32.mxu0 0.0
      %2879 = vmatmul.mubr.f32.gmra.mrb[0].mxu0 %v2781
      %v2880 = vpop.f32.mrb[0].mxu0
      %v2881 = vadd.f32 0.0, %v2880
      %v2882 = vpop.f32.mrb[0].mxu0
      %2883 = vmatprep.mubr.f32.mxu0 0.0
      %2884 = vmatmul.mubr.f32.gmra.mrb[0].mxu0 %v2782
      %v2885 = vpop.f32.mrb[0].mxu0
      %v2886 = vadd.f32 0.0, %v2885
      %v2887 = vpop.f32.mrb[0].mxu0
      %2888 = vmatprep.mubr.f32.mxu0 0.0
      %2889 = vmatmul.mubr.f32.gmra.mrb[0].mxu0 %v2783
      %v2890 = vpop.f32.mrb[0].mxu0
      %v2891 = vadd.f32 0.0, %v2890
      %v2892 = vpop.f32.mrb[0].mxu0
      %2893 = vmatprep.mubr.f32.mxu0 0.0
      %2894 = vmatmul.mubr.f32.gmra.mrb[0].mxu0 %v2784
      %v2895 = vpop.f32.mrb[0].mxu0
      %v2896 = vadd.f32 0.0, %v2895
      %v2897 = vpop.f32.mrb[0].mxu0
      %2898 = vmatprep.mubr.f32.mxu0 0.0
      %2899 = vmatmul.mubr.f32.gmra.mrb[0].mxu0 %v2785
      %v2900 = vpop.f32.mrb[0].mxu0
      %v2901 = vadd.f32 0.0, %v2900
      %v2902 = vpop.f32.mrb[0].mxu0
      %2903 = vmatprep.mubr.f32.mxu0 0.0
      %2904 = vmatmul.mubr.f32.gmra.mrb[0].mxu0 %v2786
      %v2905 = vpop.f32.mrb[0].mxu0
      %v2906 = vadd.f32 0.0, %v2905
      %v2907 = vpop.f32.mrb[0].mxu0
      %2908 = vdwg.mxu0
      %v2909 = vadd.f32 %v2771, %v2871
      %v2910 = vadd.f32 %v2772, %v2876
      %v2911 = vadd.f32 %v2773, %v2881
      %v2912 = vadd.f32 %v2774, %v2886
      %v2913 = vadd.f32 %v2775, %v2891
      %v2914 = vadd.f32 %v2776, %v2896
      %v2915 = vadd.f32 %v2777, %v2901
      %v2916 = vadd.f32 %v2778, %v2906
      %v2917 = vld [vmem:[%s1087 + $0x3] sm:$0xff]
      %v2918 = vld [vmem:[%s1087 + $0x13] sm:$0xff]
      %v2919 = vld [vmem:[%s1087 + $0x23] sm:$0xff]
      %v2920 = vld [vmem:[%s1087 + $0x33] sm:$0xff]
      %v2921 = vld [vmem:[%s1087 + $0x43] sm:$0xff]
      %v2922 = vld [vmem:[%s1087 + $0x53] sm:$0xff]
      %v2923 = vld [vmem:[%s1087 + $0x63] sm:$0xff]
      %v2924 = vld [vmem:[%s1087 + $0x73] sm:$0xff]
      %s2925 = scalar_lea.vmem %s3, 1664
      %v2926 = vld [vmem:[%s2925] sm:$0xff]
      %v2927 = vld [vmem:[%s2925 + $0x8] sm:$0xff]
      %v2928 = vld [vmem:[%s2925 + $0x10] sm:$0xff]
      %v2929 = vld [vmem:[%s2925 + $0x18] sm:$0xff]
      %v2930 = vld [vmem:[%s2925 + $0x20] sm:$0xff]
      %v2931 = vld [vmem:[%s2925 + $0x28] sm:$0xff]
      %v2932 = vld [vmem:[%s2925 + $0x30] sm:$0xff]
      %v2933 = vld [vmem:[%s2925 + $0x38] sm:$0xff]
      %v2934 = vld [vmem:[%s2925 + $0x40] sm:$0xff]
      %v2935 = vld [vmem:[%s2925 + $0x48] sm:$0xff]
      %v2936 = vld [vmem:[%s2925 + $0x50] sm:$0xff]
      %v2937 = vld [vmem:[%s2925 + $0x58] sm:$0xff]
      %v2938 = vld [vmem:[%s2925 + $0x60] sm:$0xff]
      %v2939 = vld [vmem:[%s2925 + $0x68] sm:$0xff]
      %v2940 = vld [vmem:[%s2925 + $0x70] sm:$0xff]
      %v2941 = vld [vmem:[%s2925 + $0x78] sm:$0xff]
      %2942 = vmatprep.subr.mxu0 0.0
      %2943 = vmatpush1.msra.mxu0 %v2926
      %2944 = vmatprep.subr.mxu0 0.0
      %2945 = vmatpush1.msra.mxu0 %v2927
      %2946 = vmatprep.subr.mxu0 0.0
      %2947 = vmatpush1.msra.mxu0 %v2928
      %2948 = vmatprep.subr.mxu0 0.0
      %2949 = vmatpush1.msra.mxu0 %v2929
      %2950 = vmatprep.subr.mxu0 0.0
      %2951 = vmatpush1.msra.mxu0 %v2930
      %2952 = vmatprep.subr.mxu0 0.0
      %2953 = vmatpush1.msra.mxu0 %v2931
      %2954 = vmatprep.subr.mxu0 0.0
      %2955 = vmatpush1.msra.mxu0 %v2932
      %2956 = vmatprep.subr.mxu0 0.0
      %2957 = vmatpush1.msra.mxu0 %v2933
      %2958 = vmatprep.subr.mxu0 0.0
      %2959 = vmatpush1.msra.mxu0 %v2934
      %2960 = vmatprep.subr.mxu0 0.0
      %2961 = vmatpush1.msra.mxu0 %v2935
      %2962 = vmatprep.subr.mxu0 0.0
      %2963 = vmatpush1.msra.mxu0 %v2936
      %2964 = vmatprep.subr.mxu0 0.0
      %2965 = vmatpush1.msra.mxu0 %v2937
      %2966 = vmatprep.subr.mxu0 0.0
      %2967 = vmatpush1.msra.mxu0 %v2938
      %2968 = vmatprep.subr.mxu0 0.0
      %2969 = vmatpush1.msra.mxu0 %v2939
      %2970 = vmatprep.subr.mxu0 0.0
      %2971 = vmatpush1.msra.mxu0 %v2940
      %2972 = vmatprep.subr.mxu0 0.0
      %2973 = vmatpush1.msra.mxu0 %v2941
      %2974 = vmatprep.subr.mxu0 0.0
      %2975 = vmatpush1.msra.mxu0 0.0
      %2976 = vmatprep.subr.mxu0 0.0
      %2977 = vmatpush1.msra.mxu0 0.0
      %2978 = vmatprep.subr.mxu0 0.0
      %2979 = vmatpush1.msra.mxu0 0.0
      %2980 = vmatprep.subr.mxu0 0.0
      %2981 = vmatpush1.msra.mxu0 0.0
      %2982 = vmatprep.subr.mxu0 0.0
      %2983 = vmatpush1.msra.mxu0 0.0
      %2984 = vmatprep.subr.mxu0 0.0
      %2985 = vmatpush1.msra.mxu0 0.0
      %2986 = vmatprep.subr.mxu0 0.0
      %2987 = vmatpush1.msra.mxu0 0.0
      %2988 = vmatprep.subr.mxu0 0.0
      %2989 = vmatpush1.msra.mxu0 0.0
      %2990 = vmatprep.subr.mxu0 0.0
      %2991 = vmatpush1.msra.mxu0 0.0
      %2992 = vmatprep.subr.mxu0 0.0
      %2993 = vmatpush1.msra.mxu0 0.0
      %2994 = vmatprep.subr.mxu0 0.0
      %2995 = vmatpush1.msra.mxu0 0.0
      %2996 = vmatprep.subr.mxu0 0.0
      %2997 = vmatpush1.msra.mxu0 0.0
      %2998 = vmatprep.subr.mxu0 0.0
      %2999 = vmatpush1.msra.mxu0 0.0
      %3000 = vmatprep.subr.mxu0 0.0
      %3001 = vmatpush1.msra.mxu0 0.0
      %3002 = vmatprep.subr.mxu0 0.0
      %3003 = vmatpush1.msra.mxu0 0.0
      %3004 = vmatprep.subr.mxu0 0.0
      %3005 = vmatpush1.msra.mxu0 0.0
      %3006 = vmatprep.mubr.f32.mxu0 0.0
      %3007 = vmatmul.mubr.f32.gmra.mrb[0].mxu0 %v2917
      %v3008 = vpop.f32.mrb[0].mxu0
      %v3009 = vadd.f32 0.0, %v3008
      %v3010 = vpop.f32.mrb[0].mxu0
      %3011 = vmatprep.mubr.f32.mxu0 0.0
      %3012 = vmatmul.mubr.f32.gmra.mrb[0].mxu0 %v2918
      %v3013 = vpop.f32.mrb[0].mxu0
      %v3014 = vadd.f32 0.0, %v3013
      %v3015 = vpop.f32.mrb[0].mxu0
      %3016 = vmatprep.mubr.f32.mxu0 0.0
      %3017 = vmatmul.mubr.f32.gmra.mrb[0].mxu0 %v2919
      %v3018 = vpop.f32.mrb[0].mxu0
      %v3019 = vadd.f32 0.0, %v3018
      %v3020 = vpop.f32.mrb[0].mxu0
      %3021 = vmatprep.mubr.f32.mxu0 0.0
      %3022 = vmatmul.mubr.f32.gmra.mrb[0].mxu0 %v2920
      %v3023 = vpop.f32.mrb[0].mxu0
      %v3024 = vadd.f32 0.0, %v3023
      %v3025 = vpop.f32.mrb[0].mxu0
      %3026 = vmatprep.mubr.f32.mxu0 0.0
      %3027 = vmatmul.mubr.f32.gmra.mrb[0].mxu0 %v2921
      %v3028 = vpop.f32.mrb[0].mxu0
      %v3029 = vadd.f32 0.0, %v3028
      %v3030 = vpop.f32.mrb[0].mxu0
      %3031 = vmatprep.mubr.f32.mxu0 0.0
      %3032 = vmatmul.mubr.f32.gmra.mrb[0].mxu0 %v2922
      %v3033 = vpop.f32.mrb[0].mxu0
      %v3034 = vadd.f32 0.0, %v3033
      %v3035 = vpop.f32.mrb[0].mxu0
      %3036 = vmatprep.mubr.f32.mxu0 0.0
      %3037 = vmatmul.mubr.f32.gmra.mrb[0].mxu0 %v2923
      %v3038 = vpop.f32.mrb[0].mxu0
      %v3039 = vadd.f32 0.0, %v3038
      %v3040 = vpop.f32.mrb[0].mxu0
      %3041 = vmatprep.mubr.f32.mxu0 0.0
      %3042 = vmatmul.mubr.f32.gmra.mrb[0].mxu0 %v2924
      %v3043 = vpop.f32.mrb[0].mxu0
      %v3044 = vadd.f32 0.0, %v3043
      %v3045 = vpop.f32.mrb[0].mxu0
      %3046 = vdwg.mxu0
      %v3047 = vadd.f32 %v2909, %v3009
      %v3048 = vadd.f32 %v2910, %v3014
      %v3049 = vadd.f32 %v2911, %v3019
      %v3050 = vadd.f32 %v2912, %v3024
      %v3051 = vadd.f32 %v2913, %v3029
      %v3052 = vadd.f32 %v2914, %v3034
      %v3053 = vadd.f32 %v2915, %v3039
      %v3054 = vadd.f32 %v2916, %v3044
      %v3055 = vld [vmem:[%s1087 + $0x4] sm:$0xff]
      %v3056 = vld [vmem:[%s1087 + $0x14] sm:$0xff]
      %v3057 = vld [vmem:[%s1087 + $0x24] sm:$0xff]
      %v3058 = vld [vmem:[%s1087 + $0x34] sm:$0xff]
      %v3059 = vld [vmem:[%s1087 + $0x44] sm:$0xff]
      %v3060 = vld [vmem:[%s1087 + $0x54] sm:$0xff]
      %v3061 = vld [vmem:[%s1087 + $0x64] sm:$0xff]
      %v3062 = vld [vmem:[%s1087 + $0x74] sm:$0xff]
      %s3063 = scalar_lea.vmem %s3, 1792
      %v3064 = vld [vmem:[%s3063] sm:$0xff]
      %v3065 = vld [vmem:[%s3063 + $0x8] sm:$0xff]
      %v3066 = vld [vmem:[%s3063 + $0x10] sm:$0xff]
      %v3067 = vld [vmem:[%s3063 + $0x18] sm:$0xff]
      %v3068 = vld [vmem:[%s3063 + $0x20] sm:$0xff]
      %v3069 = vld [vmem:[%s3063 + $0x28] sm:$0xff]
      %v3070 = vld [vmem:[%s3063 + $0x30] sm:$0xff]
      %v3071 = vld [vmem:[%s3063 + $0x38] sm:$0xff]
      %v3072 = vld [vmem:[%s3063 + $0x40] sm:$0xff]
      %v3073 = vld [vmem:[%s3063 + $0x48] sm:$0xff]
      %v3074 = vld [vmem:[%s3063 + $0x50] sm:$0xff]
      %v3075 = vld [vmem:[%s3063 + $0x58] sm:$0xff]
      %v3076 = vld [vmem:[%s3063 + $0x60] sm:$0xff]
      %v3077 = vld [vmem:[%s3063 + $0x68] sm:$0xff]
      %v3078 = vld [vmem:[%s3063 + $0x70] sm:$0xff]
      %v3079 = vld [vmem:[%s3063 + $0x78] sm:$0xff]
      %3080 = vmatprep.subr.mxu0 0.0
      %3081 = vmatpush1.msra.mxu0 %v3064
      %3082 = vmatprep.subr.mxu0 0.0
      %3083 = vmatpush1.msra.mxu0 %v3065
      %3084 = vmatprep.subr.mxu0 0.0
      %3085 = vmatpush1.msra.mxu0 %v3066
      %3086 = vmatprep.subr.mxu0 0.0
      %3087 = vmatpush1.msra.mxu0 %v3067
      %3088 = vmatprep.subr.mxu0 0.0
      %3089 = vmatpush1.msra.mxu0 %v3068
      %3090 = vmatprep.subr.mxu0 0.0
      %3091 = vmatpush1.msra.mxu0 %v3069
      %3092 = vmatprep.subr.mxu0 0.0
      %3093 = vmatpush1.msra.mxu0 %v3070
      %3094 = vmatprep.subr.mxu0 0.0
      %3095 = vmatpush1.msra.mxu0 %v3071
      %3096 = vmatprep.subr.mxu0 0.0
      %3097 = vmatpush1.msra.mxu0 %v3072
      %3098 = vmatprep.subr.mxu0 0.0
      %3099 = vmatpush1.msra.mxu0 %v3073
      %3100 = vmatprep.subr.mxu0 0.0
      %3101 = vmatpush1.msra.mxu0 %v3074
      %3102 = vmatprep.subr.mxu0 0.0
      %3103 = vmatpush1.msra.mxu0 %v3075
      %3104 = vmatprep.subr.mxu0 0.0
      %3105 = vmatpush1.msra.mxu0 %v3076
      %3106 = vmatprep.subr.mxu0 0.0
      %3107 = vmatpush1.msra.mxu0 %v3077
      %3108 = vmatprep.subr.mxu0 0.0
      %3109 = vmatpush1.msra.mxu0 %v3078
      %3110 = vmatprep.subr.mxu0 0.0
      %3111 = vmatpush1.msra.mxu0 %v3079
      %3112 = vmatprep.subr.mxu0 0.0
      %3113 = vmatpush1.msra.mxu0 0.0
      %3114 = vmatprep.subr.mxu0 0.0
      %3115 = vmatpush1.msra.mxu0 0.0
      %3116 = vmatprep.subr.mxu0 0.0
      %3117 = vmatpush1.msra.mxu0 0.0
      %3118 = vmatprep.subr.mxu0 0.0
      %3119 = vmatpush1.msra.mxu0 0.0
      %3120 = vmatprep.subr.mxu0 0.0
      %3121 = vmatpush1.msra.mxu0 0.0
      %3122 = vmatprep.subr.mxu0 0.0
      %3123 = vmatpush1.msra.mxu0 0.0
      %3124 = vmatprep.subr.mxu0 0.0
      %3125 = vmatpush1.msra.mxu0 0.0
      %3126 = vmatprep.subr.mxu0 0.0
      %3127 = vmatpush1.msra.mxu0 0.0
      %3128 = vmatprep.subr.mxu0 0.0
      %3129 = vmatpush1.msra.mxu0 0.0
      %3130 = vmatprep.subr.mxu0 0.0
      %3131 = vmatpush1.msra.mxu0 0.0
      %3132 = vmatprep.subr.mxu0 0.0
      %3133 = vmatpush1.msra.mxu0 0.0
      %3134 = vmatprep.subr.mxu0 0.0
      %3135 = vmatpush1.msra.mxu0 0.0
      %3136 = vmatprep.subr.mxu0 0.0
      %3137 = vmatpush1.msra.mxu0 0.0
      %3138 = vmatprep.subr.mxu0 0.0
      %3139 = vmatpush1.msra.mxu0 0.0
      %3140 = vmatprep.subr.mxu0 0.0
      %3141 = vmatpush1.msra.mxu0 0.0
      %3142 = vmatprep.subr.mxu0 0.0
      %3143 = vmatpush1.msra.mxu0 0.0
      %3144 = vmatprep.mubr.f32.mxu0 0.0
      %3145 = vmatmul.mubr.f32.gmra.mrb[0].mxu0 %v3055
      %v3146 = vpop.f32.mrb[0].mxu0
      %v3147 = vadd.f32 0.0, %v3146
      %v3148 = vpop.f32.mrb[0].mxu0
      %3149 = vmatprep.mubr.f32.mxu0 0.0
      %3150 = vmatmul.mubr.f32.gmra.mrb[0].mxu0 %v3056
      %v3151 = vpop.f32.mrb[0].mxu0
      %v3152 = vadd.f32 0.0, %v3151
      %v3153 = vpop.f32.mrb[0].mxu0
      %3154 = vmatprep.mubr.f32.mxu0 0.0
      %3155 = vmatmul.mubr.f32.gmra.mrb[0].mxu0 %v3057
      %v3156 = vpop.f32.mrb[0].mxu0
      %v3157 = vadd.f32 0.0, %v3156
      %v3158 = vpop.f32.mrb[0].mxu0
      %3159 = vmatprep.mubr.f32.mxu0 0.0
      %3160 = vmatmul.mubr.f32.gmra.mrb[0].mxu0 %v3058
      %v3161 = vpop.f32.mrb[0].mxu0
      %v3162 = vadd.f32 0.0, %v3161
      %v3163 = vpop.f32.mrb[0].mxu0
      %3164 = vmatprep.mubr.f32.mxu0 0.0
      %3165 = vmatmul.mubr.f32.gmra.mrb[0].mxu0 %v3059
      %v3166 = vpop.f32.mrb[0].mxu0
      %v3167 = vadd.f32 0.0, %v3166
      %v3168 = vpop.f32.mrb[0].mxu0
      %3169 = vmatprep.mubr.f32.mxu0 0.0
      %3170 = vmatmul.mubr.f32.gmra.mrb[0].mxu0 %v3060
      %v3171 = vpop.f32.mrb[0].mxu0
      %v3172 = vadd.f32 0.0, %v3171
      %v3173 = vpop.f32.mrb[0].mxu0
      %3174 = vmatprep.mubr.f32.mxu0 0.0
      %3175 = vmatmul.mubr.f32.gmra.mrb[0].mxu0 %v3061
      %v3176 = vpop.f32.mrb[0].mxu0
      %v3177 = vadd.f32 0.0, %v3176
      %v3178 = vpop.f32.mrb[0].mxu0
      %3179 = vmatprep.mubr.f32.mxu0 0.0
      %3180 = vmatmul.mubr.f32.gmra.mrb[0].mxu0 %v3062
      %v3181 = vpop.f32.mrb[0].mxu0
      %v3182 = vadd.f32 0.0, %v3181
      %v3183 = vpop.f32.mrb[0].mxu0
      %3184 = vdwg.mxu0
      %v3185 = vadd.f32 %v3047, %v3147
      %v3186 = vadd.f32 %v3048, %v3152
      %v3187 = vadd.f32 %v3049, %v3157
      %v3188 = vadd.f32 %v3050, %v3162
      %v3189 = vadd.f32 %v3051, %v3167
      %v3190 = vadd.f32 %v3052, %v3172
      %v3191 = vadd.f32 %v3053, %v3177
      %v3192 = vadd.f32 %v3054, %v3182
      %v3193 = vld [vmem:[%s1090] sm:$0xff]
      %v3194 = vld [vmem:[%s1090 + $0x10] sm:$0xff]
      %v3195 = vld [vmem:[%s1090 + $0x20] sm:$0xff]
      %v3196 = vld [vmem:[%s1090 + $0x30] sm:$0xff]
      %v3197 = vld [vmem:[%s1090 + $0x40] sm:$0xff]
      %v3198 = vld [vmem:[%s1090 + $0x50] sm:$0xff]
      %v3199 = vld [vmem:[%s1090 + $0x60] sm:$0xff]
      %v3200 = vld [vmem:[%s1090 + $0x70] sm:$0xff]
      %s3201 = scalar_lea.vmem %s3, 1920
      %v3202 = vld [vmem:[%s3201] sm:$0xff]
      %v3203 = vld [vmem:[%s3201 + $0x8] sm:$0xff]
      %v3204 = vld [vmem:[%s3201 + $0x10] sm:$0xff]
      %v3205 = vld [vmem:[%s3201 + $0x18] sm:$0xff]
      %v3206 = vld [vmem:[%s3201 + $0x20] sm:$0xff]
      %v3207 = vld [vmem:[%s3201 + $0x28] sm:$0xff]
      %v3208 = vld [vmem:[%s3201 + $0x30] sm:$0xff]
      %v3209 = vld [vmem:[%s3201 + $0x38] sm:$0xff]
      %v3210 = vld [vmem:[%s3201 + $0x40] sm:$0xff]
      %v3211 = vld [vmem:[%s3201 + $0x48] sm:$0xff]
      %v3212 = vld [vmem:[%s3201 + $0x50] sm:$0xff]
      %v3213 = vld [vmem:[%s3201 + $0x58] sm:$0xff]
      %v3214 = vld [vmem:[%s3201 + $0x60] sm:$0xff]
      %v3215 = vld [vmem:[%s3201 + $0x68] sm:$0xff]
      %v3216 = vld [vmem:[%s3201 + $0x70] sm:$0xff]
      %v3217 = vld [vmem:[%s3201 + $0x78] sm:$0xff]
      %3218 = vmatprep.subr.mxu0 0.0
      %3219 = vmatpush1.msra.mxu0 %v3202
      %3220 = vmatprep.subr.mxu0 0.0
      %3221 = vmatpush1.msra.mxu0 %v3203
      %3222 = vmatprep.subr.mxu0 0.0
      %3223 = vmatpush1.msra.mxu0 %v3204
      %3224 = vmatprep.subr.mxu0 0.0
      %3225 = vmatpush1.msra.mxu0 %v3205
      %3226 = vmatprep.subr.mxu0 0.0
      %3227 = vmatpush1.msra.mxu0 %v3206
      %3228 = vmatprep.subr.mxu0 0.0
      %3229 = vmatpush1.msra.mxu0 %v3207
      %3230 = vmatprep.subr.mxu0 0.0
      %3231 = vmatpush1.msra.mxu0 %v3208
      %3232 = vmatprep.subr.mxu0 0.0
      %3233 = vmatpush1.msra.mxu0 %v3209
      %3234 = vmatprep.subr.mxu0 0.0
      %3235 = vmatpush1.msra.mxu0 %v3210
      %3236 = vmatprep.subr.mxu0 0.0
      %3237 = vmatpush1.msra.mxu0 %v3211
      %3238 = vmatprep.subr.mxu0 0.0
      %3239 = vmatpush1.msra.mxu0 %v3212
      %3240 = vmatprep.subr.mxu0 0.0
      %3241 = vmatpush1.msra.mxu0 %v3213
      %3242 = vmatprep.subr.mxu0 0.0
      %3243 = vmatpush1.msra.mxu0 %v3214
      %3244 = vmatprep.subr.mxu0 0.0
      %3245 = vmatpush1.msra.mxu0 %v3215
      %3246 = vmatprep.subr.mxu0 0.0
      %3247 = vmatpush1.msra.mxu0 %v3216
      %3248 = vmatprep.subr.mxu0 0.0
      %3249 = vmatpush1.msra.mxu0 %v3217
      %3250 = vmatprep.subr.mxu0 0.0
      %3251 = vmatpush1.msra.mxu0 0.0
      %3252 = vmatprep.subr.mxu0 0.0
      %3253 = vmatpush1.msra.mxu0 0.0
      %3254 = vmatprep.subr.mxu0 0.0
      %3255 = vmatpush1.msra.mxu0 0.0
      %3256 = vmatprep.subr.mxu0 0.0
      %3257 = vmatpush1.msra.mxu0 0.0
      %3258 = vmatprep.subr.mxu0 0.0
      %3259 = vmatpush1.msra.mxu0 0.0
      %3260 = vmatprep.subr.mxu0 0.0
      %3261 = vmatpush1.msra.mxu0 0.0
      %3262 = vmatprep.subr.mxu0 0.0
      %3263 = vmatpush1.msra.mxu0 0.0
      %3264 = vmatprep.subr.mxu0 0.0
      %3265 = vmatpush1.msra.mxu0 0.0
      %3266 = vmatprep.subr.mxu0 0.0
      %3267 = vmatpush1.msra.mxu0 0.0
      %3268 = vmatprep.subr.mxu0 0.0
      %3269 = vmatpush1.msra.mxu0 0.0
      %3270 = vmatprep.subr.mxu0 0.0
      %3271 = vmatpush1.msra.mxu0 0.0
      %3272 = vmatprep.subr.mxu0 0.0
      %3273 = vmatpush1.msra.mxu0 0.0
      %3274 = vmatprep.subr.mxu0 0.0
      %3275 = vmatpush1.msra.mxu0 0.0
      %3276 = vmatprep.subr.mxu0 0.0
      %3277 = vmatpush1.msra.mxu0 0.0
      %3278 = vmatprep.subr.mxu0 0.0
      %3279 = vmatpush1.msra.mxu0 0.0
      %3280 = vmatprep.subr.mxu0 0.0
      %3281 = vmatpush1.msra.mxu0 0.0
      %3282 = vmatprep.mubr.f32.mxu0 0.0
      %3283 = vmatmul.mubr.f32.gmra.mrb[0].mxu0 %v3193
      %v3284 = vpop.f32.mrb[0].mxu0
      %v3285 = vadd.f32 0.0, %v3284
      %v3286 = vpop.f32.mrb[0].mxu0
      %3287 = vmatprep.mubr.f32.mxu0 0.0
      %3288 = vmatmul.mubr.f32.gmra.mrb[0].mxu0 %v3194
      %v3289 = vpop.f32.mrb[0].mxu0
      %v3290 = vadd.f32 0.0, %v3289
      %v3291 = vpop.f32.mrb[0].mxu0
      %3292 = vmatprep.mubr.f32.mxu0 0.0
      %3293 = vmatmul.mubr.f32.gmra.mrb[0].mxu0 %v3195
      %v3294 = vpop.f32.mrb[0].mxu0
      %v3295 = vadd.f32 0.0, %v3294
      %v3296 = vpop.f32.mrb[0].mxu0
      %3297 = vmatprep.mubr.f32.mxu0 0.0
      %3298 = vmatmul.mubr.f32.gmra.mrb[0].mxu0 %v3196
      %v3299 = vpop.f32.mrb[0].mxu0
      %v3300 = vadd.f32 0.0, %v3299
      %v3301 = vpop.f32.mrb[0].mxu0
      %3302 = vmatprep.mubr.f32.mxu0 0.0
      %3303 = vmatmul.mubr.f32.gmra.mrb[0].mxu0 %v3197
      %v3304 = vpop.f32.mrb[0].mxu0
      %v3305 = vadd.f32 0.0, %v3304
      %v3306 = vpop.f32.mrb[0].mxu0
      %3307 = vmatprep.mubr.f32.mxu0 0.0
      %3308 = vmatmul.mubr.f32.gmra.mrb[0].mxu0 %v3198
      %v3309 = vpop.f32.mrb[0].mxu0
      %v3310 = vadd.f32 0.0, %v3309
      %v3311 = vpop.f32.mrb[0].mxu0
      %3312 = vmatprep.mubr.f32.mxu0 0.0
      %3313 = vmatmul.mubr.f32.gmra.mrb[0].mxu0 %v3199
      %v3314 = vpop.f32.mrb[0].mxu0
      %v3315 = vadd.f32 0.0, %v3314
      %v3316 = vpop.f32.mrb[0].mxu0
      %3317 = vmatprep.mubr.f32.mxu0 0.0
      %3318 = vmatmul.mubr.f32.gmra.mrb[0].mxu0 %v3200
      %v3319 = vpop.f32.mrb[0].mxu0
      %v3320 = vadd.f32 0.0, %v3319
      %v3321 = vpop.f32.mrb[0].mxu0
      %3322 = vdwg.mxu0
      %v3323 = vadd.f32 %v3185, %v3285
      %v3324 = vadd.f32 %v3186, %v3290
      %v3325 = vadd.f32 %v3187, %v3295
      %v3326 = vadd.f32 %v3188, %v3300
      %v3327 = vadd.f32 %v3189, %v3305
      %v3328 = vadd.f32 %v3190, %v3310
      %v3329 = vadd.f32 %v3191, %v3315
      %v3330 = vadd.f32 %v3192, %v3320
      %v3331 = vld [vmem:[%s1090 + $0x1] sm:$0xff]
      %v3332 = vld [vmem:[%s1090 + $0x11] sm:$0xff]
      %v3333 = vld [vmem:[%s1090 + $0x21] sm:$0xff]
      %v3334 = vld [vmem:[%s1090 + $0x31] sm:$0xff]
      %v3335 = vld [vmem:[%s1090 + $0x41] sm:$0xff]
      %v3336 = vld [vmem:[%s1090 + $0x51] sm:$0xff]
      %v3337 = vld [vmem:[%s1090 + $0x61] sm:$0xff]
      %v3338 = vld [vmem:[%s1090 + $0x71] sm:$0xff]
      %s3339 = scalar_lea.vmem %s3, 2048
      %v3340 = vld [vmem:[%s3339] sm:$0xff]
      %v3341 = vld [vmem:[%s3339 + $0x8] sm:$0xff]
      %v3342 = vld [vmem:[%s3339 + $0x10] sm:$0xff]
      %v3343 = vld [vmem:[%s3339 + $0x18] sm:$0xff]
      %v3344 = vld [vmem:[%s3339 + $0x20] sm:$0xff]
      %v3345 = vld [vmem:[%s3339 + $0x28] sm:$0xff]
      %v3346 = vld [vmem:[%s3339 + $0x30] sm:$0xff]
      %v3347 = vld [vmem:[%s3339 + $0x38] sm:$0xff]
      %v3348 = vld [vmem:[%s3339 + $0x40] sm:$0xff]
      %v3349 = vld [vmem:[%s3339 + $0x48] sm:$0xff]
      %v3350 = vld [vmem:[%s3339 + $0x50] sm:$0xff]
      %v3351 = vld [vmem:[%s3339 + $0x58] sm:$0xff]
      %v3352 = vld [vmem:[%s3339 + $0x60] sm:$0xff]
      %v3353 = vld [vmem:[%s3339 + $0x68] sm:$0xff]
      %v3354 = vld [vmem:[%s3339 + $0x70] sm:$0xff]
      %v3355 = vld [vmem:[%s3339 + $0x78] sm:$0xff]
      %3356 = vmatprep.subr.mxu0 0.0
      %3357 = vmatpush1.msra.mxu0 %v3340
      %3358 = vmatprep.subr.mxu0 0.0
      %3359 = vmatpush1.msra.mxu0 %v3341
      %3360 = vmatprep.subr.mxu0 0.0
      %3361 = vmatpush1.msra.mxu0 %v3342
      %3362 = vmatprep.subr.mxu0 0.0
      %3363 = vmatpush1.msra.mxu0 %v3343
      %3364 = vmatprep.subr.mxu0 0.0
      %3365 = vmatpush1.msra.mxu0 %v3344
      %3366 = vmatprep.subr.mxu0 0.0
      %3367 = vmatpush1.msra.mxu0 %v3345
      %3368 = vmatprep.subr.mxu0 0.0
      %3369 = vmatpush1.msra.mxu0 %v3346
      %3370 = vmatprep.subr.mxu0 0.0
      %3371 = vmatpush1.msra.mxu0 %v3347
      %3372 = vmatprep.subr.mxu0 0.0
      %3373 = vmatpush1.msra.mxu0 %v3348
      %3374 = vmatprep.subr.mxu0 0.0
      %3375 = vmatpush1.msra.mxu0 %v3349
      %3376 = vmatprep.subr.mxu0 0.0
      %3377 = vmatpush1.msra.mxu0 %v3350
      %3378 = vmatprep.subr.mxu0 0.0
      %3379 = vmatpush1.msra.mxu0 %v3351
      %3380 = vmatprep.subr.mxu0 0.0
      %3381 = vmatpush1.msra.mxu0 %v3352
      %3382 = vmatprep.subr.mxu0 0.0
      %3383 = vmatpush1.msra.mxu0 %v3353
      %3384 = vmatprep.subr.mxu0 0.0
      %3385 = vmatpush1.msra.mxu0 %v3354
      %3386 = vmatprep.subr.mxu0 0.0
      %3387 = vmatpush1.msra.mxu0 %v3355
      %3388 = vmatprep.subr.mxu0 0.0
      %3389 = vmatpush1.msra.mxu0 0.0
      %3390 = vmatprep.subr.mxu0 0.0
      %3391 = vmatpush1.msra.mxu0 0.0
      %3392 = vmatprep.subr.mxu0 0.0
      %3393 = vmatpush1.msra.mxu0 0.0
      %3394 = vmatprep.subr.mxu0 0.0
      %3395 = vmatpush1.msra.mxu0 0.0
      %3396 = vmatprep.subr.mxu0 0.0
      %3397 = vmatpush1.msra.mxu0 0.0
      %3398 = vmatprep.subr.mxu0 0.0
      %3399 = vmatpush1.msra.mxu0 0.0
      %3400 = vmatprep.subr.mxu0 0.0
      %3401 = vmatpush1.msra.mxu0 0.0
      %3402 = vmatprep.subr.mxu0 0.0
      %3403 = vmatpush1.msra.mxu0 0.0
      %3404 = vmatprep.subr.mxu0 0.0
      %3405 = vmatpush1.msra.mxu0 0.0
      %3406 = vmatprep.subr.mxu0 0.0
      %3407 = vmatpush1.msra.mxu0 0.0
      %3408 = vmatprep.subr.mxu0 0.0
      %3409 = vmatpush1.msra.mxu0 0.0
      %3410 = vmatprep.subr.mxu0 0.0
      %3411 = vmatpush1.msra.mxu0 0.0
      %3412 = vmatprep.subr.mxu0 0.0
      %3413 = vmatpush1.msra.mxu0 0.0
      %3414 = vmatprep.subr.mxu0 0.0
      %3415 = vmatpush1.msra.mxu0 0.0
      %3416 = vmatprep.subr.mxu0 0.0
      %3417 = vmatpush1.msra.mxu0 0.0
      %3418 = vmatprep.subr.mxu0 0.0
      %3419 = vmatpush1.msra.mxu0 0.0
      %3420 = vmatprep.mubr.f32.mxu0 0.0
      %3421 = vmatmul.mubr.f32.gmra.mrb[0].mxu0 %v3331
      %v3422 = vpop.f32.mrb[0].mxu0
      %v3423 = vadd.f32 0.0, %v3422
      %v3424 = vpop.f32.mrb[0].mxu0
      %3425 = vmatprep.mubr.f32.mxu0 0.0
      %3426 = vmatmul.mubr.f32.gmra.mrb[0].mxu0 %v3332
      %v3427 = vpop.f32.mrb[0].mxu0
      %v3428 = vadd.f32 0.0, %v3427
      %v3429 = vpop.f32.mrb[0].mxu0
      %3430 = vmatprep.mubr.f32.mxu0 0.0
      %3431 = vmatmul.mubr.f32.gmra.mrb[0].mxu0 %v3333
      %v3432 = vpop.f32.mrb[0].mxu0
      %v3433 = vadd.f32 0.0, %v3432
      %v3434 = vpop.f32.mrb[0].mxu0
      %3435 = vmatprep.mubr.f32.mxu0 0.0
      %3436 = vmatmul.mubr.f32.gmra.mrb[0].mxu0 %v3334
      %v3437 = vpop.f32.mrb[0].mxu0
      %v3438 = vadd.f32 0.0, %v3437
      %v3439 = vpop.f32.mrb[0].mxu0
      %3440 = vmatprep.mubr.f32.mxu0 0.0
      %3441 = vmatmul.mubr.f32.gmra.mrb[0].mxu0 %v3335
      %v3442 = vpop.f32.mrb[0].mxu0
      %v3443 = vadd.f32 0.0, %v3442
      %v3444 = vpop.f32.mrb[0].mxu0
      %3445 = vmatprep.mubr.f32.mxu0 0.0
      %3446 = vmatmul.mubr.f32.gmra.mrb[0].mxu0 %v3336
      %v3447 = vpop.f32.mrb[0].mxu0
      %v3448 = vadd.f32 0.0, %v3447
      %v3449 = vpop.f32.mrb[0].mxu0
      %3450 = vmatprep.mubr.f32.mxu0 0.0
      %3451 = vmatmul.mubr.f32.gmra.mrb[0].mxu0 %v3337
      %v3452 = vpop.f32.mrb[0].mxu0
      %v3453 = vadd.f32 0.0, %v3452
      %v3454 = vpop.f32.mrb[0].mxu0
      %3455 = vmatprep.mubr.f32.mxu0 0.0
      %3456 = vmatmul.mubr.f32.gmra.mrb[0].mxu0 %v3338
      %v3457 = vpop.f32.mrb[0].mxu0
      %v3458 = vadd.f32 0.0, %v3457
      %v3459 = vpop.f32.mrb[0].mxu0
      %3460 = vdwg.mxu0
      %v3461 = vadd.f32 %v3323, %v3423
      %v3462 = vadd.f32 %v3324, %v3428
      %v3463 = vadd.f32 %v3325, %v3433
      %v3464 = vadd.f32 %v3326, %v3438
      %v3465 = vadd.f32 %v3327, %v3443
      %v3466 = vadd.f32 %v3328, %v3448
      %v3467 = vadd.f32 %v3329, %v3453
      %v3468 = vadd.f32 %v3330, %v3458
      %v3469 = vld [vmem:[%s1090 + $0x2] sm:$0xff]
      %v3470 = vld [vmem:[%s1090 + $0x12] sm:$0xff]
      %v3471 = vld [vmem:[%s1090 + $0x22] sm:$0xff]
      %v3472 = vld [vmem:[%s1090 + $0x32] sm:$0xff]
      %v3473 = vld [vmem:[%s1090 + $0x42] sm:$0xff]
      %v3474 = vld [vmem:[%s1090 + $0x52] sm:$0xff]
      %v3475 = vld [vmem:[%s1090 + $0x62] sm:$0xff]
      %v3476 = vld [vmem:[%s1090 + $0x72] sm:$0xff]
      %s3477 = scalar_lea.vmem %s3, 2176
      %v3478 = vld [vmem:[%s3477] sm:$0xff]
      %v3479 = vld [vmem:[%s3477 + $0x8] sm:$0xff]
      %v3480 = vld [vmem:[%s3477 + $0x10] sm:$0xff]
      %v3481 = vld [vmem:[%s3477 + $0x18] sm:$0xff]
      %v3482 = vld [vmem:[%s3477 + $0x20] sm:$0xff]
      %v3483 = vld [vmem:[%s3477 + $0x28] sm:$0xff]
      %v3484 = vld [vmem:[%s3477 + $0x30] sm:$0xff]
      %v3485 = vld [vmem:[%s3477 + $0x38] sm:$0xff]
      %v3486 = vld [vmem:[%s3477 + $0x40] sm:$0xff]
      %v3487 = vld [vmem:[%s3477 + $0x48] sm:$0xff]
      %v3488 = vld [vmem:[%s3477 + $0x50] sm:$0xff]
      %v3489 = vld [vmem:[%s3477 + $0x58] sm:$0xff]
      %v3490 = vld [vmem:[%s3477 + $0x60] sm:$0xff]
      %v3491 = vld [vmem:[%s3477 + $0x68] sm:$0xff]
      %v3492 = vld [vmem:[%s3477 + $0x70] sm:$0xff]
      %v3493 = vld [vmem:[%s3477 + $0x78] sm:$0xff]
      %3494 = vmatprep.subr.mxu0 0.0
      %3495 = vmatpush1.msra.mxu0 %v3478
      %3496 = vmatprep.subr.mxu0 0.0
      %3497 = vmatpush1.msra.mxu0 %v3479
      %3498 = vmatprep.subr.mxu0 0.0
      %3499 = vmatpush1.msra.mxu0 %v3480
      %3500 = vmatprep.subr.mxu0 0.0
      %3501 = vmatpush1.msra.mxu0 %v3481
      %3502 = vmatprep.subr.mxu0 0.0
      %3503 = vmatpush1.msra.mxu0 %v3482
      %3504 = vmatprep.subr.mxu0 0.0
      %3505 = vmatpush1.msra.mxu0 %v3483
      %3506 = vmatprep.subr.mxu0 0.0
      %3507 = vmatpush1.msra.mxu0 %v3484
      %3508 = vmatprep.subr.mxu0 0.0
      %3509 = vmatpush1.msra.mxu0 %v3485
      %3510 = vmatprep.subr.mxu0 0.0
      %3511 = vmatpush1.msra.mxu0 %v3486
      %3512 = vmatprep.subr.mxu0 0.0
      %3513 = vmatpush1.msra.mxu0 %v3487
      %3514 = vmatprep.subr.mxu0 0.0
      %3515 = vmatpush1.msra.mxu0 %v3488
      %3516 = vmatprep.subr.mxu0 0.0
      %3517 = vmatpush1.msra.mxu0 %v3489
      %3518 = vmatprep.subr.mxu0 0.0
      %3519 = vmatpush1.msra.mxu0 %v3490
      %3520 = vmatprep.subr.mxu0 0.0
      %3521 = vmatpush1.msra.mxu0 %v3491
      %3522 = vmatprep.subr.mxu0 0.0
      %3523 = vmatpush1.msra.mxu0 %v3492
      %3524 = vmatprep.subr.mxu0 0.0
      %3525 = vmatpush1.msra.mxu0 %v3493
      %3526 = vmatprep.subr.mxu0 0.0
      %3527 = vmatpush1.msra.mxu0 0.0
      %3528 = vmatprep.subr.mxu0 0.0
      %3529 = vmatpush1.msra.mxu0 0.0
      %3530 = vmatprep.subr.mxu0 0.0
      %3531 = vmatpush1.msra.mxu0 0.0
      %3532 = vmatprep.subr.mxu0 0.0
      %3533 = vmatpush1.msra.mxu0 0.0
      %3534 = vmatprep.subr.mxu0 0.0
      %3535 = vmatpush1.msra.mxu0 0.0
      %3536 = vmatprep.subr.mxu0 0.0
      %3537 = vmatpush1.msra.mxu0 0.0
      %3538 = vmatprep.subr.mxu0 0.0
      %3539 = vmatpush1.msra.mxu0 0.0
      %3540 = vmatprep.subr.mxu0 0.0
      %3541 = vmatpush1.msra.mxu0 0.0
      %3542 = vmatprep.subr.mxu0 0.0
      %3543 = vmatpush1.msra.mxu0 0.0
      %3544 = vmatprep.subr.mxu0 0.0
      %3545 = vmatpush1.msra.mxu0 0.0
      %3546 = vmatprep.subr.mxu0 0.0
      %3547 = vmatpush1.msra.mxu0 0.0
      %3548 = vmatprep.subr.mxu0 0.0
      %3549 = vmatpush1.msra.mxu0 0.0
      %3550 = vmatprep.subr.mxu0 0.0
      %3551 = vmatpush1.msra.mxu0 0.0
      %3552 = vmatprep.subr.mxu0 0.0
      %3553 = vmatpush1.msra.mxu0 0.0
      %3554 = vmatprep.subr.mxu0 0.0
      %3555 = vmatpush1.msra.mxu0 0.0
      %3556 = vmatprep.subr.mxu0 0.0
      %3557 = vmatpush1.msra.mxu0 0.0
      %3558 = vmatprep.mubr.f32.mxu0 0.0
      %3559 = vmatmul.mubr.f32.gmra.mrb[0].mxu0 %v3469
      %v3560 = vpop.f32.mrb[0].mxu0
      %v3561 = vadd.f32 0.0, %v3560
      %v3562 = vpop.f32.mrb[0].mxu0
      %3563 = vmatprep.mubr.f32.mxu0 0.0
      %3564 = vmatmul.mubr.f32.gmra.mrb[0].mxu0 %v3470
      %v3565 = vpop.f32.mrb[0].mxu0
      %v3566 = vadd.f32 0.0, %v3565
      %v3567 = vpop.f32.mrb[0].mxu0
      %3568 = vmatprep.mubr.f32.mxu0 0.0
      %3569 = vmatmul.mubr.f32.gmra.mrb[0].mxu0 %v3471
      %v3570 = vpop.f32.mrb[0].mxu0
      %v3571 = vadd.f32 0.0, %v3570
      %v3572 = vpop.f32.mrb[0].mxu0
      %3573 = vmatprep.mubr.f32.mxu0 0.0
      %3574 = vmatmul.mubr.f32.gmra.mrb[0].mxu0 %v3472
      %v3575 = vpop.f32.mrb[0].mxu0
      %v3576 = vadd.f32 0.0, %v3575
      %v3577 = vpop.f32.mrb[0].mxu0
      %3578 = vmatprep.mubr.f32.mxu0 0.0
      %3579 = vmatmul.mubr.f32.gmra.mrb[0].mxu0 %v3473
      %v3580 = vpop.f32.mrb[0].mxu0
      %v3581 = vadd.f32 0.0, %v3580
      %v3582 = vpop.f32.mrb[0].mxu0
      %3583 = vmatprep.mubr.f32.mxu0 0.0
      %3584 = vmatmul.mubr.f32.gmra.mrb[0].mxu0 %v3474
      %v3585 = vpop.f32.mrb[0].mxu0
      %v3586 = vadd.f32 0.0, %v3585
      %v3587 = vpop.f32.mrb[0].mxu0
      %3588 = vmatprep.mubr.f32.mxu0 0.0
      %3589 = vmatmul.mubr.f32.gmra.mrb[0].mxu0 %v3475
      %v3590 = vpop.f32.mrb[0].mxu0
      %v3591 = vadd.f32 0.0, %v3590
      %v3592 = vpop.f32.mrb[0].mxu0
      %3593 = vmatprep.mubr.f32.mxu0 0.0
      %3594 = vmatmul.mubr.f32.gmra.mrb[0].mxu0 %v3476
      %v3595 = vpop.f32.mrb[0].mxu0
      %v3596 = vadd.f32 0.0, %v3595
      %v3597 = vpop.f32.mrb[0].mxu0
      %3598 = vdwg.mxu0
      %v3599 = vadd.f32 %v3461, %v3561
      %v3600 = vadd.f32 %v3462, %v3566
      %v3601 = vadd.f32 %v3463, %v3571
      %v3602 = vadd.f32 %v3464, %v3576
      %v3603 = vadd.f32 %v3465, %v3581
      %v3604 = vadd.f32 %v3466, %v3586
      %v3605 = vadd.f32 %v3467, %v3591
      %v3606 = vadd.f32 %v3468, %v3596
      %v3607 = vld [vmem:[%s1090 + $0x3] sm:$0xff]
      %v3608 = vld [vmem:[%s1090 + $0x13] sm:$0xff]
      %v3609 = vld [vmem:[%s1090 + $0x23] sm:$0xff]
      %v3610 = vld [vmem:[%s1090 + $0x33] sm:$0xff]
      %v3611 = vld [vmem:[%s1090 + $0x43] sm:$0xff]
      %v3612 = vld [vmem:[%s1090 + $0x53] sm:$0xff]
      %v3613 = vld [vmem:[%s1090 + $0x63] sm:$0xff]
      %v3614 = vld [vmem:[%s1090 + $0x73] sm:$0xff]
      %s3615 = scalar_lea.vmem %s3, 2304
      %v3616 = vld [vmem:[%s3615] sm:$0xff]
      %v3617 = vld [vmem:[%s3615 + $0x8] sm:$0xff]
      %v3618 = vld [vmem:[%s3615 + $0x10] sm:$0xff]
      %v3619 = vld [vmem:[%s3615 + $0x18] sm:$0xff]
      %v3620 = vld [vmem:[%s3615 + $0x20] sm:$0xff]
      %v3621 = vld [vmem:[%s3615 + $0x28] sm:$0xff]
      %v3622 = vld [vmem:[%s3615 + $0x30] sm:$0xff]
      %v3623 = vld [vmem:[%s3615 + $0x38] sm:$0xff]
      %v3624 = vld [vmem:[%s3615 + $0x40] sm:$0xff]
      %v3625 = vld [vmem:[%s3615 + $0x48] sm:$0xff]
      %v3626 = vld [vmem:[%s3615 + $0x50] sm:$0xff]
      %v3627 = vld [vmem:[%s3615 + $0x58] sm:$0xff]
      %v3628 = vld [vmem:[%s3615 + $0x60] sm:$0xff]
      %v3629 = vld [vmem:[%s3615 + $0x68] sm:$0xff]
      %v3630 = vld [vmem:[%s3615 + $0x70] sm:$0xff]
      %v3631 = vld [vmem:[%s3615 + $0x78] sm:$0xff]
      %3632 = vmatprep.subr.mxu0 0.0
      %3633 = vmatpush1.msra.mxu0 %v3616
      %3634 = vmatprep.subr.mxu0 0.0
      %3635 = vmatpush1.msra.mxu0 %v3617
      %3636 = vmatprep.subr.mxu0 0.0
      %3637 = vmatpush1.msra.mxu0 %v3618
      %3638 = vmatprep.subr.mxu0 0.0
      %3639 = vmatpush1.msra.mxu0 %v3619
      %3640 = vmatprep.subr.mxu0 0.0
      %3641 = vmatpush1.msra.mxu0 %v3620
      %3642 = vmatprep.subr.mxu0 0.0
      %3643 = vmatpush1.msra.mxu0 %v3621
      %3644 = vmatprep.subr.mxu0 0.0
      %3645 = vmatpush1.msra.mxu0 %v3622
      %3646 = vmatprep.subr.mxu0 0.0
      %3647 = vmatpush1.msra.mxu0 %v3623
      %3648 = vmatprep.subr.mxu0 0.0
      %3649 = vmatpush1.msra.mxu0 %v3624
      %3650 = vmatprep.subr.mxu0 0.0
      %3651 = vmatpush1.msra.mxu0 %v3625
      %3652 = vmatprep.subr.mxu0 0.0
      %3653 = vmatpush1.msra.mxu0 %v3626
      %3654 = vmatprep.subr.mxu0 0.0
      %3655 = vmatpush1.msra.mxu0 %v3627
      %3656 = vmatprep.subr.mxu0 0.0
      %3657 = vmatpush1.msra.mxu0 %v3628
      %3658 = vmatprep.subr.mxu0 0.0
      %3659 = vmatpush1.msra.mxu0 %v3629
      %3660 = vmatprep.subr.mxu0 0.0
      %3661 = vmatpush1.msra.mxu0 %v3630
      %3662 = vmatprep.subr.mxu0 0.0
      %3663 = vmatpush1.msra.mxu0 %v3631
      %3664 = vmatprep.subr.mxu0 0.0
      %3665 = vmatpush1.msra.mxu0 0.0
      %3666 = vmatprep.subr.mxu0 0.0
      %3667 = vmatpush1.msra.mxu0 0.0
      %3668 = vmatprep.subr.mxu0 0.0
      %3669 = vmatpush1.msra.mxu0 0.0
      %3670 = vmatprep.subr.mxu0 0.0
      %3671 = vmatpush1.msra.mxu0 0.0
      %3672 = vmatprep.subr.mxu0 0.0
      %3673 = vmatpush1.msra.mxu0 0.0
      %3674 = vmatprep.subr.mxu0 0.0
      %3675 = vmatpush1.msra.mxu0 0.0
      %3676 = vmatprep.subr.mxu0 0.0
      %3677 = vmatpush1.msra.mxu0 0.0
      %3678 = vmatprep.subr.mxu0 0.0
      %3679 = vmatpush1.msra.mxu0 0.0
      %3680 = vmatprep.subr.mxu0 0.0
      %3681 = vmatpush1.msra.mxu0 0.0
      %3682 = vmatprep.subr.mxu0 0.0
      %3683 = vmatpush1.msra.mxu0 0.0
      %3684 = vmatprep.subr.mxu0 0.0
      %3685 = vmatpush1.msra.mxu0 0.0
      %3686 = vmatprep.subr.mxu0 0.0
      %3687 = vmatpush1.msra.mxu0 0.0
      %3688 = vmatprep.subr.mxu0 0.0
      %3689 = vmatpush1.msra.mxu0 0.0
      %3690 = vmatprep.subr.mxu0 0.0
      %3691 = vmatpush1.msra.mxu0 0.0
      %3692 = vmatprep.subr.mxu0 0.0
      %3693 = vmatpush1.msra.mxu0 0.0
      %3694 = vmatprep.subr.mxu0 0.0
      %3695 = vmatpush1.msra.mxu0 0.0
      %3696 = vmatprep.mubr.f32.mxu0 0.0
      %3697 = vmatmul.mubr.f32.gmra.mrb[0].mxu0 %v3607
      %v3698 = vpop.f32.mrb[0].mxu0
      %v3699 = vadd.f32 0.0, %v3698
      %v3700 = vpop.f32.mrb[0].mxu0
      %3701 = vmatprep.mubr.f32.mxu0 0.0
      %3702 = vmatmul.mubr.f32.gmra.mrb[0].mxu0 %v3608
      %v3703 = vpop.f32.mrb[0].mxu0
      %v3704 = vadd.f32 0.0, %v3703
      %v3705 = vpop.f32.mrb[0].mxu0
      %3706 = vmatprep.mubr.f32.mxu0 0.0
      %3707 = vmatmul.mubr.f32.gmra.mrb[0].mxu0 %v3609
      %v3708 = vpop.f32.mrb[0].mxu0
      %v3709 = vadd.f32 0.0, %v3708
      %v3710 = vpop.f32.mrb[0].mxu0
      %3711 = vmatprep.mubr.f32.mxu0 0.0
      %3712 = vmatmul.mubr.f32.gmra.mrb[0].mxu0 %v3610
      %v3713 = vpop.f32.mrb[0].mxu0
      %v3714 = vadd.f32 0.0, %v3713
      %v3715 = vpop.f32.mrb[0].mxu0
      %3716 = vmatprep.mubr.f32.mxu0 0.0
      %3717 = vmatmul.mubr.f32.gmra.mrb[0].mxu0 %v3611
      %v3718 = vpop.f32.mrb[0].mxu0
      %v3719 = vadd.f32 0.0, %v3718
      %v3720 = vpop.f32.mrb[0].mxu0
      %3721 = vmatprep.mubr.f32.mxu0 0.0
      %3722 = vmatmul.mubr.f32.gmra.mrb[0].mxu0 %v3612
      %v3723 = vpop.f32.mrb[0].mxu0
      %v3724 = vadd.f32 0.0, %v3723
      %v3725 = vpop.f32.mrb[0].mxu0
      %3726 = vmatprep.mubr.f32.mxu0 0.0
      %3727 = vmatmul.mubr.f32.gmra.mrb[0].mxu0 %v3613
      %v3728 = vpop.f32.mrb[0].mxu0
      %v3729 = vadd.f32 0.0, %v3728
      %v3730 = vpop.f32.mrb[0].mxu0
      %3731 = vmatprep.mubr.f32.mxu0 0.0
      %3732 = vmatmul.mubr.f32.gmra.mrb[0].mxu0 %v3614
      %v3733 = vpop.f32.mrb[0].mxu0
      %v3734 = vadd.f32 0.0, %v3733
      %v3735 = vpop.f32.mrb[0].mxu0
      %3736 = vdwg.mxu0
      %v3737 = vadd.f32 %v3599, %v3699
      %v3738 = vadd.f32 %v3600, %v3704
      %v3739 = vadd.f32 %v3601, %v3709
      %v3740 = vadd.f32 %v3602, %v3714
      %v3741 = vadd.f32 %v3603, %v3719
      %v3742 = vadd.f32 %v3604, %v3724
      %v3743 = vadd.f32 %v3605, %v3729
      %v3744 = vadd.f32 %v3606, %v3734
      %v3745 = vld [vmem:[%s1090 + $0x4] sm:$0xff]
      %v3746 = vld [vmem:[%s1090 + $0x14] sm:$0xff]
      %v3747 = vld [vmem:[%s1090 + $0x24] sm:$0xff]
      %v3748 = vld [vmem:[%s1090 + $0x34] sm:$0xff]
      %v3749 = vld [vmem:[%s1090 + $0x44] sm:$0xff]
      %v3750 = vld [vmem:[%s1090 + $0x54] sm:$0xff]
      %v3751 = vld [vmem:[%s1090 + $0x64] sm:$0xff]
      %v3752 = vld [vmem:[%s1090 + $0x74] sm:$0xff]
      %s3753 = scalar_lea.vmem %s3, 2432
      %v3754 = vld [vmem:[%s3753] sm:$0xff]
      %v3755 = vld [vmem:[%s3753 + $0x8] sm:$0xff]
      %v3756 = vld [vmem:[%s3753 + $0x10] sm:$0xff]
      %v3757 = vld [vmem:[%s3753 + $0x18] sm:$0xff]
      %v3758 = vld [vmem:[%s3753 + $0x20] sm:$0xff]
      %v3759 = vld [vmem:[%s3753 + $0x28] sm:$0xff]
      %v3760 = vld [vmem:[%s3753 + $0x30] sm:$0xff]
      %v3761 = vld [vmem:[%s3753 + $0x38] sm:$0xff]
      %v3762 = vld [vmem:[%s3753 + $0x40] sm:$0xff]
      %v3763 = vld [vmem:[%s3753 + $0x48] sm:$0xff]
      %v3764 = vld [vmem:[%s3753 + $0x50] sm:$0xff]
      %v3765 = vld [vmem:[%s3753 + $0x58] sm:$0xff]
      %v3766 = vld [vmem:[%s3753 + $0x60] sm:$0xff]
      %v3767 = vld [vmem:[%s3753 + $0x68] sm:$0xff]
      %v3768 = vld [vmem:[%s3753 + $0x70] sm:$0xff]
      %v3769 = vld [vmem:[%s3753 + $0x78] sm:$0xff]
      %3770 = vmatprep.subr.mxu0 0.0
      %3771 = vmatpush1.msra.mxu0 %v3754
      %3772 = vmatprep.subr.mxu0 0.0
      %3773 = vmatpush1.msra.mxu0 %v3755
      %3774 = vmatprep.subr.mxu0 0.0
      %3775 = vmatpush1.msra.mxu0 %v3756
      %3776 = vmatprep.subr.mxu0 0.0
      %3777 = vmatpush1.msra.mxu0 %v3757
      %3778 = vmatprep.subr.mxu0 0.0
      %3779 = vmatpush1.msra.mxu0 %v3758
      %3780 = vmatprep.subr.mxu0 0.0
      %3781 = vmatpush1.msra.mxu0 %v3759
      %3782 = vmatprep.subr.mxu0 0.0
      %3783 = vmatpush1.msra.mxu0 %v3760
      %3784 = vmatprep.subr.mxu0 0.0
      %3785 = vmatpush1.msra.mxu0 %v3761
      %3786 = vmatprep.subr.mxu0 0.0
      %3787 = vmatpush1.msra.mxu0 %v3762
      %3788 = vmatprep.subr.mxu0 0.0
      %3789 = vmatpush1.msra.mxu0 %v3763
      %3790 = vmatprep.subr.mxu0 0.0
      %3791 = vmatpush1.msra.mxu0 %v3764
      %3792 = vmatprep.subr.mxu0 0.0
      %3793 = vmatpush1.msra.mxu0 %v3765
      %3794 = vmatprep.subr.mxu0 0.0
      %3795 = vmatpush1.msra.mxu0 %v3766
      %3796 = vmatprep.subr.mxu0 0.0
      %3797 = vmatpush1.msra.mxu0 %v3767
      %3798 = vmatprep.subr.mxu0 0.0
      %3799 = vmatpush1.msra.mxu0 %v3768
      %3800 = vmatprep.subr.mxu0 0.0
      %3801 = vmatpush1.msra.mxu0 %v3769
      %3802 = vmatprep.subr.mxu0 0.0
      %3803 = vmatpush1.msra.mxu0 0.0
      %3804 = vmatprep.subr.mxu0 0.0
      %3805 = vmatpush1.msra.mxu0 0.0
      %3806 = vmatprep.subr.mxu0 0.0
      %3807 = vmatpush1.msra.mxu0 0.0
      %3808 = vmatprep.subr.mxu0 0.0
      %3809 = vmatpush1.msra.mxu0 0.0
      %3810 = vmatprep.subr.mxu0 0.0
      %3811 = vmatpush1.msra.mxu0 0.0
      %3812 = vmatprep.subr.mxu0 0.0
      %3813 = vmatpush1.msra.mxu0 0.0
      %3814 = vmatprep.subr.mxu0 0.0
      %3815 = vmatpush1.msra.mxu0 0.0
      %3816 = vmatprep.subr.mxu0 0.0
      %3817 = vmatpush1.msra.mxu0 0.0
      %3818 = vmatprep.subr.mxu0 0.0
      %3819 = vmatpush1.msra.mxu0 0.0
      %3820 = vmatprep.subr.mxu0 0.0
      %3821 = vmatpush1.msra.mxu0 0.0
      %3822 = vmatprep.subr.mxu0 0.0
      %3823 = vmatpush1.msra.mxu0 0.0
      %3824 = vmatprep.subr.mxu0 0.0
      %3825 = vmatpush1.msra.mxu0 0.0
      %3826 = vmatprep.subr.mxu0 0.0
      %3827 = vmatpush1.msra.mxu0 0.0
      %3828 = vmatprep.subr.mxu0 0.0
      %3829 = vmatpush1.msra.mxu0 0.0
      %3830 = vmatprep.subr.mxu0 0.0
      %3831 = vmatpush1.msra.mxu0 0.0
      %3832 = vmatprep.subr.mxu0 0.0
      %3833 = vmatpush1.msra.mxu0 0.0
      %3834 = vmatprep.mubr.f32.mxu0 0.0
      %3835 = vmatmul.mubr.f32.gmra.mrb[0].mxu0 %v3745
      %v3836 = vpop.f32.mrb[0].mxu0
      %v3837 = vadd.f32 0.0, %v3836
      %v3838 = vpop.f32.mrb[0].mxu0
      %3839 = vmatprep.mubr.f32.mxu0 0.0
      %3840 = vmatmul.mubr.f32.gmra.mrb[0].mxu0 %v3746
      %v3841 = vpop.f32.mrb[0].mxu0
      %v3842 = vadd.f32 0.0, %v3841
      %v3843 = vpop.f32.mrb[0].mxu0
      %3844 = vmatprep.mubr.f32.mxu0 0.0
      %3845 = vmatmul.mubr.f32.gmra.mrb[0].mxu0 %v3747
      %v3846 = vpop.f32.mrb[0].mxu0
      %v3847 = vadd.f32 0.0, %v3846
      %v3848 = vpop.f32.mrb[0].mxu0
      %3849 = vmatprep.mubr.f32.mxu0 0.0
      %3850 = vmatmul.mubr.f32.gmra.mrb[0].mxu0 %v3748
      %v3851 = vpop.f32.mrb[0].mxu0
      %v3852 = vadd.f32 0.0, %v3851
      %v3853 = vpop.f32.mrb[0].mxu0
      %3854 = vmatprep.mubr.f32.mxu0 0.0
      %3855 = vmatmul.mubr.f32.gmra.mrb[0].mxu0 %v3749
      %v3856 = vpop.f32.mrb[0].mxu0
      %v3857 = vadd.f32 0.0, %v3856
      %v3858 = vpop.f32.mrb[0].mxu0
      %3859 = vmatprep.mubr.f32.mxu0 0.0
      %3860 = vmatmul.mubr.f32.gmra.mrb[0].mxu0 %v3750
      %v3861 = vpop.f32.mrb[0].mxu0
      %v3862 = vadd.f32 0.0, %v3861
      %v3863 = vpop.f32.mrb[0].mxu0
      %3864 = vmatprep.mubr.f32.mxu0 0.0
      %3865 = vmatmul.mubr.f32.gmra.mrb[0].mxu0 %v3751
      %v3866 = vpop.f32.mrb[0].mxu0
      %v3867 = vadd.f32 0.0, %v3866
      %v3868 = vpop.f32.mrb[0].mxu0
      %3869 = vmatprep.mubr.f32.mxu0 0.0
      %3870 = vmatmul.mubr.f32.gmra.mrb[0].mxu0 %v3752
      %v3871 = vpop.f32.mrb[0].mxu0
      %v3872 = vadd.f32 0.0, %v3871
      %v3873 = vpop.f32.mrb[0].mxu0
      %3874 = vdwg.mxu0
      %v3875 = vadd.f32 %v3737, %v3837
      %v3876 = vadd.f32 %v3738, %v3842
      %v3877 = vadd.f32 %v3739, %v3847
      %v3878 = vadd.f32 %v3740, %v3852
      %v3879 = vadd.f32 %v3741, %v3857
      %v3880 = vadd.f32 %v3742, %v3862
      %v3881 = vadd.f32 %v3743, %v3867
      %v3882 = vadd.f32 %v3744, %v3872
      %v3883 = vld [vmem:[%s1093] sm:$0xff]
      %v3884 = vld [vmem:[%s1093 + $0x10] sm:$0xff]
      %v3885 = vld [vmem:[%s1093 + $0x20] sm:$0xff]
      %v3886 = vld [vmem:[%s1093 + $0x30] sm:$0xff]
      %v3887 = vld [vmem:[%s1093 + $0x40] sm:$0xff]
      %v3888 = vld [vmem:[%s1093 + $0x50] sm:$0xff]
      %v3889 = vld [vmem:[%s1093 + $0x60] sm:$0xff]
      %v3890 = vld [vmem:[%s1093 + $0x70] sm:$0xff]
      %s3891 = scalar_lea.vmem %s3, 2560
      %v3892 = vld [vmem:[%s3891] sm:$0xff]
      %v3893 = vld [vmem:[%s3891 + $0x8] sm:$0xff]
      %v3894 = vld [vmem:[%s3891 + $0x10] sm:$0xff]
      %v3895 = vld [vmem:[%s3891 + $0x18] sm:$0xff]
      %v3896 = vld [vmem:[%s3891 + $0x20] sm:$0xff]
      %v3897 = vld [vmem:[%s3891 + $0x28] sm:$0xff]
      %v3898 = vld [vmem:[%s3891 + $0x30] sm:$0xff]
      %v3899 = vld [vmem:[%s3891 + $0x38] sm:$0xff]
      %v3900 = vld [vmem:[%s3891 + $0x40] sm:$0xff]
      %v3901 = vld [vmem:[%s3891 + $0x48] sm:$0xff]
      %v3902 = vld [vmem:[%s3891 + $0x50] sm:$0xff]
      %v3903 = vld [vmem:[%s3891 + $0x58] sm:$0xff]
      %v3904 = vld [vmem:[%s3891 + $0x60] sm:$0xff]
      %v3905 = vld [vmem:[%s3891 + $0x68] sm:$0xff]
      %v3906 = vld [vmem:[%s3891 + $0x70] sm:$0xff]
      %v3907 = vld [vmem:[%s3891 + $0x78] sm:$0xff]
      %3908 = vmatprep.subr.mxu0 0.0
      %3909 = vmatpush1.msra.mxu0 %v3892
      %3910 = vmatprep.subr.mxu0 0.0
      %3911 = vmatpush1.msra.mxu0 %v3893
      %3912 = vmatprep.subr.mxu0 0.0
      %3913 = vmatpush1.msra.mxu0 %v3894
      %3914 = vmatprep.subr.mxu0 0.0
      %3915 = vmatpush1.msra.mxu0 %v3895
      %3916 = vmatprep.subr.mxu0 0.0
      %3917 = vmatpush1.msra.mxu0 %v3896
      %3918 = vmatprep.subr.mxu0 0.0
      %3919 = vmatpush1.msra.mxu0 %v3897
      %3920 = vmatprep.subr.mxu0 0.0
      %3921 = vmatpush1.msra.mxu0 %v3898
      %3922 = vmatprep.subr.mxu0 0.0
      %3923 = vmatpush1.msra.mxu0 %v3899
      %3924 = vmatprep.subr.mxu0 0.0
      %3925 = vmatpush1.msra.mxu0 %v3900
      %3926 = vmatprep.subr.mxu0 0.0
      %3927 = vmatpush1.msra.mxu0 %v3901
      %3928 = vmatprep.subr.mxu0 0.0
      %3929 = vmatpush1.msra.mxu0 %v3902
      %3930 = vmatprep.subr.mxu0 0.0
      %3931 = vmatpush1.msra.mxu0 %v3903
      %3932 = vmatprep.subr.mxu0 0.0
      %3933 = vmatpush1.msra.mxu0 %v3904
      %3934 = vmatprep.subr.mxu0 0.0
      %3935 = vmatpush1.msra.mxu0 %v3905
      %3936 = vmatprep.subr.mxu0 0.0
      %3937 = vmatpush1.msra.mxu0 %v3906
      %3938 = vmatprep.subr.mxu0 0.0
      %3939 = vmatpush1.msra.mxu0 %v3907
      %3940 = vmatprep.subr.mxu0 0.0
      %3941 = vmatpush1.msra.mxu0 0.0
      %3942 = vmatprep.subr.mxu0 0.0
      %3943 = vmatpush1.msra.mxu0 0.0
      %3944 = vmatprep.subr.mxu0 0.0
      %3945 = vmatpush1.msra.mxu0 0.0
      %3946 = vmatprep.subr.mxu0 0.0
      %3947 = vmatpush1.msra.mxu0 0.0
      %3948 = vmatprep.subr.mxu0 0.0
      %3949 = vmatpush1.msra.mxu0 0.0
      %3950 = vmatprep.subr.mxu0 0.0
      %3951 = vmatpush1.msra.mxu0 0.0
      %3952 = vmatprep.subr.mxu0 0.0
      %3953 = vmatpush1.msra.mxu0 0.0
      %3954 = vmatprep.subr.mxu0 0.0
      %3955 = vmatpush1.msra.mxu0 0.0
      %3956 = vmatprep.subr.mxu0 0.0
      %3957 = vmatpush1.msra.mxu0 0.0
      %3958 = vmatprep.subr.mxu0 0.0
      %3959 = vmatpush1.msra.mxu0 0.0
      %3960 = vmatprep.subr.mxu0 0.0
      %3961 = vmatpush1.msra.mxu0 0.0
      %3962 = vmatprep.subr.mxu0 0.0
      %3963 = vmatpush1.msra.mxu0 0.0
      %3964 = vmatprep.subr.mxu0 0.0
      %3965 = vmatpush1.msra.mxu0 0.0
      %3966 = vmatprep.subr.mxu0 0.0
      %3967 = vmatpush1.msra.mxu0 0.0
      %3968 = vmatprep.subr.mxu0 0.0
      %3969 = vmatpush1.msra.mxu0 0.0
      %3970 = vmatprep.subr.mxu0 0.0
      %3971 = vmatpush1.msra.mxu0 0.0
      %3972 = vmatprep.mubr.f32.mxu0 0.0
      %3973 = vmatmul.mubr.f32.gmra.mrb[0].mxu0 %v3883
      %v3974 = vpop.f32.mrb[0].mxu0
      %v3975 = vadd.f32 0.0, %v3974
      %v3976 = vpop.f32.mrb[0].mxu0
      %3977 = vmatprep.mubr.f32.mxu0 0.0
      %3978 = vmatmul.mubr.f32.gmra.mrb[0].mxu0 %v3884
      %v3979 = vpop.f32.mrb[0].mxu0
      %v3980 = vadd.f32 0.0, %v3979
      %v3981 = vpop.f32.mrb[0].mxu0
      %3982 = vmatprep.mubr.f32.mxu0 0.0
      %3983 = vmatmul.mubr.f32.gmra.mrb[0].mxu0 %v3885
      %v3984 = vpop.f32.mrb[0].mxu0
      %v3985 = vadd.f32 0.0, %v3984
      %v3986 = vpop.f32.mrb[0].mxu0
      %3987 = vmatprep.mubr.f32.mxu0 0.0
      %3988 = vmatmul.mubr.f32.gmra.mrb[0].mxu0 %v3886
      %v3989 = vpop.f32.mrb[0].mxu0
      %v3990 = vadd.f32 0.0, %v3989
      %v3991 = vpop.f32.mrb[0].mxu0
      %3992 = vmatprep.mubr.f32.mxu0 0.0
      %3993 = vmatmul.mubr.f32.gmra.mrb[0].mxu0 %v3887
      %v3994 = vpop.f32.mrb[0].mxu0
      %v3995 = vadd.f32 0.0, %v3994
      %v3996 = vpop.f32.mrb[0].mxu0
      %3997 = vmatprep.mubr.f32.mxu0 0.0
      %3998 = vmatmul.mubr.f32.gmra.mrb[0].mxu0 %v3888
      %v3999 = vpop.f32.mrb[0].mxu0
      %v4000 = vadd.f32 0.0, %v3999
      %v4001 = vpop.f32.mrb[0].mxu0
      %4002 = vmatprep.mubr.f32.mxu0 0.0
      %4003 = vmatmul.mubr.f32.gmra.mrb[0].mxu0 %v3889
      %v4004 = vpop.f32.mrb[0].mxu0
      %v4005 = vadd.f32 0.0, %v4004
      %v4006 = vpop.f32.mrb[0].mxu0
      %4007 = vmatprep.mubr.f32.mxu0 0.0
      %4008 = vmatmul.mubr.f32.gmra.mrb[0].mxu0 %v3890
      %v4009 = vpop.f32.mrb[0].mxu0
      %v4010 = vadd.f32 0.0, %v4009
      %v4011 = vpop.f32.mrb[0].mxu0
      %4012 = vdwg.mxu0
      %v4013 = vadd.f32 %v3875, %v3975
      %v4014 = vadd.f32 %v3876, %v3980
      %v4015 = vadd.f32 %v3877, %v3985
      %v4016 = vadd.f32 %v3878, %v3990
      %v4017 = vadd.f32 %v3879, %v3995
      %v4018 = vadd.f32 %v3880, %v4000
      %v4019 = vadd.f32 %v3881, %v4005
      %v4020 = vadd.f32 %v3882, %v4010
      %v4021 = vld [vmem:[%s1093 + $0x1] sm:$0xff]
      %v4022 = vld [vmem:[%s1093 + $0x11] sm:$0xff]
      %v4023 = vld [vmem:[%s1093 + $0x21] sm:$0xff]
      %v4024 = vld [vmem:[%s1093 + $0x31] sm:$0xff]
      %v4025 = vld [vmem:[%s1093 + $0x41] sm:$0xff]
      %v4026 = vld [vmem:[%s1093 + $0x51] sm:$0xff]
      %v4027 = vld [vmem:[%s1093 + $0x61] sm:$0xff]
      %v4028 = vld [vmem:[%s1093 + $0x71] sm:$0xff]
      %s4029 = scalar_lea.vmem %s3, 2688
      %v4030 = vld [vmem:[%s4029] sm:$0xff]
      %v4031 = vld [vmem:[%s4029 + $0x8] sm:$0xff]
      %v4032 = vld [vmem:[%s4029 + $0x10] sm:$0xff]
      %v4033 = vld [vmem:[%s4029 + $0x18] sm:$0xff]
      %v4034 = vld [vmem:[%s4029 + $0x20] sm:$0xff]
      %v4035 = vld [vmem:[%s4029 + $0x28] sm:$0xff]
      %v4036 = vld [vmem:[%s4029 + $0x30] sm:$0xff]
      %v4037 = vld [vmem:[%s4029 + $0x38] sm:$0xff]
      %v4038 = vld [vmem:[%s4029 + $0x40] sm:$0xff]
      %v4039 = vld [vmem:[%s4029 + $0x48] sm:$0xff]
      %v4040 = vld [vmem:[%s4029 + $0x50] sm:$0xff]
      %v4041 = vld [vmem:[%s4029 + $0x58] sm:$0xff]
      %v4042 = vld [vmem:[%s4029 + $0x60] sm:$0xff]
      %v4043 = vld [vmem:[%s4029 + $0x68] sm:$0xff]
      %v4044 = vld [vmem:[%s4029 + $0x70] sm:$0xff]
      %v4045 = vld [vmem:[%s4029 + $0x78] sm:$0xff]
      %4046 = vmatprep.subr.mxu0 0.0
      %4047 = vmatpush1.msra.mxu0 %v4030
      %4048 = vmatprep.subr.mxu0 0.0
      %4049 = vmatpush1.msra.mxu0 %v4031
      %4050 = vmatprep.subr.mxu0 0.0
      %4051 = vmatpush1.msra.mxu0 %v4032
      %4052 = vmatprep.subr.mxu0 0.0
      %4053 = vmatpush1.msra.mxu0 %v4033
      %4054 = vmatprep.subr.mxu0 0.0
      %4055 = vmatpush1.msra.mxu0 %v4034
      %4056 = vmatprep.subr.mxu0 0.0
      %4057 = vmatpush1.msra.mxu0 %v4035
      %4058 = vmatprep.subr.mxu0 0.0
      %4059 = vmatpush1.msra.mxu0 %v4036
      %4060 = vmatprep.subr.mxu0 0.0
      %4061 = vmatpush1.msra.mxu0 %v4037
      %4062 = vmatprep.subr.mxu0 0.0
      %4063 = vmatpush1.msra.mxu0 %v4038
      %4064 = vmatprep.subr.mxu0 0.0
      %4065 = vmatpush1.msra.mxu0 %v4039
      %4066 = vmatprep.subr.mxu0 0.0
      %4067 = vmatpush1.msra.mxu0 %v4040
      %4068 = vmatprep.subr.mxu0 0.0
      %4069 = vmatpush1.msra.mxu0 %v4041
      %4070 = vmatprep.subr.mxu0 0.0
      %4071 = vmatpush1.msra.mxu0 %v4042
      %4072 = vmatprep.subr.mxu0 0.0
      %4073 = vmatpush1.msra.mxu0 %v4043
      %4074 = vmatprep.subr.mxu0 0.0
      %4075 = vmatpush1.msra.mxu0 %v4044
      %4076 = vmatprep.subr.mxu0 0.0
      %4077 = vmatpush1.msra.mxu0 %v4045
      %4078 = vmatprep.subr.mxu0 0.0
      %4079 = vmatpush1.msra.mxu0 0.0
      %4080 = vmatprep.subr.mxu0 0.0
      %4081 = vmatpush1.msra.mxu0 0.0
      %4082 = vmatprep.subr.mxu0 0.0
      %4083 = vmatpush1.msra.mxu0 0.0
      %4084 = vmatprep.subr.mxu0 0.0
      %4085 = vmatpush1.msra.mxu0 0.0
      %4086 = vmatprep.subr.mxu0 0.0
      %4087 = vmatpush1.msra.mxu0 0.0
      %4088 = vmatprep.subr.mxu0 0.0
      %4089 = vmatpush1.msra.mxu0 0.0
      %4090 = vmatprep.subr.mxu0 0.0
      %4091 = vmatpush1.msra.mxu0 0.0
      %4092 = vmatprep.subr.mxu0 0.0
      %4093 = vmatpush1.msra.mxu0 0.0
      %4094 = vmatprep.subr.mxu0 0.0
      %4095 = vmatpush1.msra.mxu0 0.0
      %4096 = vmatprep.subr.mxu0 0.0
      %4097 = vmatpush1.msra.mxu0 0.0
      %4098 = vmatprep.subr.mxu0 0.0
      %4099 = vmatpush1.msra.mxu0 0.0
      %4100 = vmatprep.subr.mxu0 0.0
      %4101 = vmatpush1.msra.mxu0 0.0
      %4102 = vmatprep.subr.mxu0 0.0
      %4103 = vmatpush1.msra.mxu0 0.0
      %4104 = vmatprep.subr.mxu0 0.0
      %4105 = vmatpush1.msra.mxu0 0.0
      %4106 = vmatprep.subr.mxu0 0.0
      %4107 = vmatpush1.msra.mxu0 0.0
      %4108 = vmatprep.subr.mxu0 0.0
      %4109 = vmatpush1.msra.mxu0 0.0
      %4110 = vmatprep.mubr.f32.mxu0 0.0
      %4111 = vmatmul.mubr.f32.gmra.mrb[0].mxu0 %v4021
      %v4112 = vpop.f32.mrb[0].mxu0
      %v4113 = vadd.f32 0.0, %v4112
      %v4114 = vpop.f32.mrb[0].mxu0
      %4115 = vmatprep.mubr.f32.mxu0 0.0
      %4116 = vmatmul.mubr.f32.gmra.mrb[0].mxu0 %v4022
      %v4117 = vpop.f32.mrb[0].mxu0
      %v4118 = vadd.f32 0.0, %v4117
      %v4119 = vpop.f32.mrb[0].mxu0
      %4120 = vmatprep.mubr.f32.mxu0 0.0
      %4121 = vmatmul.mubr.f32.gmra.mrb[0].mxu0 %v4023
      %v4122 = vpop.f32.mrb[0].mxu0
      %v4123 = vadd.f32 0.0, %v4122
      %v4124 = vpop.f32.mrb[0].mxu0
      %4125 = vmatprep.mubr.f32.mxu0 0.0
      %4126 = vmatmul.mubr.f32.gmra.mrb[0].mxu0 %v4024
      %v4127 = vpop.f32.mrb[0].mxu0
      %v4128 = vadd.f32 0.0, %v4127
      %v4129 = vpop.f32.mrb[0].mxu0
      %4130 = vmatprep.mubr.f32.mxu0 0.0
      %4131 = vmatmul.mubr.f32.gmra.mrb[0].mxu0 %v4025
      %v4132 = vpop.f32.mrb[0].mxu0
      %v4133 = vadd.f32 0.0, %v4132
      %v4134 = vpop.f32.mrb[0].mxu0
      %4135 = vmatprep.mubr.f32.mxu0 0.0
      %4136 = vmatmul.mubr.f32.gmra.mrb[0].mxu0 %v4026
      %v4137 = vpop.f32.mrb[0].mxu0
      %v4138 = vadd.f32 0.0, %v4137
      %v4139 = vpop.f32.mrb[0].mxu0
      %4140 = vmatprep.mubr.f32.mxu0 0.0
      %4141 = vmatmul.mubr.f32.gmra.mrb[0].mxu0 %v4027
      %v4142 = vpop.f32.mrb[0].mxu0
      %v4143 = vadd.f32 0.0, %v4142
      %v4144 = vpop.f32.mrb[0].mxu0
      %4145 = vmatprep.mubr.f32.mxu0 0.0
      %4146 = vmatmul.mubr.f32.gmra.mrb[0].mxu0 %v4028
      %v4147 = vpop.f32.mrb[0].mxu0
      %v4148 = vadd.f32 0.0, %v4147
      %v4149 = vpop.f32.mrb[0].mxu0
      %4150 = vdwg.mxu0
      %v4151 = vadd.f32 %v4013, %v4113
      %v4152 = vadd.f32 %v4014, %v4118
      %v4153 = vadd.f32 %v4015, %v4123
      %v4154 = vadd.f32 %v4016, %v4128
      %v4155 = vadd.f32 %v4017, %v4133
      %v4156 = vadd.f32 %v4018, %v4138
      %v4157 = vadd.f32 %v4019, %v4143
      %v4158 = vadd.f32 %v4020, %v4148
      %v4159 = vld [vmem:[%s1093 + $0x2] sm:$0xff]
      %v4160 = vld [vmem:[%s1093 + $0x12] sm:$0xff]
      %v4161 = vld [vmem:[%s1093 + $0x22] sm:$0xff]
      %v4162 = vld [vmem:[%s1093 + $0x32] sm:$0xff]
      %v4163 = vld [vmem:[%s1093 + $0x42] sm:$0xff]
      %v4164 = vld [vmem:[%s1093 + $0x52] sm:$0xff]
      %v4165 = vld [vmem:[%s1093 + $0x62] sm:$0xff]
      %v4166 = vld [vmem:[%s1093 + $0x72] sm:$0xff]
      %s4167 = scalar_lea.vmem %s3, 2816
      %v4168 = vld [vmem:[%s4167] sm:$0xff]
      %v4169 = vld [vmem:[%s4167 + $0x8] sm:$0xff]
      %v4170 = vld [vmem:[%s4167 + $0x10] sm:$0xff]
      %v4171 = vld [vmem:[%s4167 + $0x18] sm:$0xff]
      %v4172 = vld [vmem:[%s4167 + $0x20] sm:$0xff]
      %v4173 = vld [vmem:[%s4167 + $0x28] sm:$0xff]
      %v4174 = vld [vmem:[%s4167 + $0x30] sm:$0xff]
      %v4175 = vld [vmem:[%s4167 + $0x38] sm:$0xff]
      %v4176 = vld [vmem:[%s4167 + $0x40] sm:$0xff]
      %v4177 = vld [vmem:[%s4167 + $0x48] sm:$0xff]
      %v4178 = vld [vmem:[%s4167 + $0x50] sm:$0xff]
      %v4179 = vld [vmem:[%s4167 + $0x58] sm:$0xff]
      %v4180 = vld [vmem:[%s4167 + $0x60] sm:$0xff]
      %v4181 = vld [vmem:[%s4167 + $0x68] sm:$0xff]
      %v4182 = vld [vmem:[%s4167 + $0x70] sm:$0xff]
      %v4183 = vld [vmem:[%s4167 + $0x78] sm:$0xff]
      %4184 = vmatprep.subr.mxu0 0.0
      %4185 = vmatpush1.msra.mxu0 %v4168
      %4186 = vmatprep.subr.mxu0 0.0
      %4187 = vmatpush1.msra.mxu0 %v4169
      %4188 = vmatprep.subr.mxu0 0.0
      %4189 = vmatpush1.msra.mxu0 %v4170
      %4190 = vmatprep.subr.mxu0 0.0
      %4191 = vmatpush1.msra.mxu0 %v4171
      %4192 = vmatprep.subr.mxu0 0.0
      %4193 = vmatpush1.msra.mxu0 %v4172
      %4194 = vmatprep.subr.mxu0 0.0
      %4195 = vmatpush1.msra.mxu0 %v4173
      %4196 = vmatprep.subr.mxu0 0.0
      %4197 = vmatpush1.msra.mxu0 %v4174
      %4198 = vmatprep.subr.mxu0 0.0
      %4199 = vmatpush1.msra.mxu0 %v4175
      %4200 = vmatprep.subr.mxu0 0.0
      %4201 = vmatpush1.msra.mxu0 %v4176
      %4202 = vmatprep.subr.mxu0 0.0
      %4203 = vmatpush1.msra.mxu0 %v4177
      %4204 = vmatprep.subr.mxu0 0.0
      %4205 = vmatpush1.msra.mxu0 %v4178
      %4206 = vmatprep.subr.mxu0 0.0
      %4207 = vmatpush1.msra.mxu0 %v4179
      %4208 = vmatprep.subr.mxu0 0.0
      %4209 = vmatpush1.msra.mxu0 %v4180
      %4210 = vmatprep.subr.mxu0 0.0
      %4211 = vmatpush1.msra.mxu0 %v4181
      %4212 = vmatprep.subr.mxu0 0.0
      %4213 = vmatpush1.msra.mxu0 %v4182
      %4214 = vmatprep.subr.mxu0 0.0
      %4215 = vmatpush1.msra.mxu0 %v4183
      %4216 = vmatprep.subr.mxu0 0.0
      %4217 = vmatpush1.msra.mxu0 0.0
      %4218 = vmatprep.subr.mxu0 0.0
      %4219 = vmatpush1.msra.mxu0 0.0
      %4220 = vmatprep.subr.mxu0 0.0
      %4221 = vmatpush1.msra.mxu0 0.0
      %4222 = vmatprep.subr.mxu0 0.0
      %4223 = vmatpush1.msra.mxu0 0.0
      %4224 = vmatprep.subr.mxu0 0.0
      %4225 = vmatpush1.msra.mxu0 0.0
      %4226 = vmatprep.subr.mxu0 0.0
      %4227 = vmatpush1.msra.mxu0 0.0
      %4228 = vmatprep.subr.mxu0 0.0
      %4229 = vmatpush1.msra.mxu0 0.0
      %4230 = vmatprep.subr.mxu0 0.0
      %4231 = vmatpush1.msra.mxu0 0.0
      %4232 = vmatprep.subr.mxu0 0.0
      %4233 = vmatpush1.msra.mxu0 0.0
      %4234 = vmatprep.subr.mxu0 0.0
      %4235 = vmatpush1.msra.mxu0 0.0
      %4236 = vmatprep.subr.mxu0 0.0
      %4237 = vmatpush1.msra.mxu0 0.0
      %4238 = vmatprep.subr.mxu0 0.0
      %4239 = vmatpush1.msra.mxu0 0.0
      %4240 = vmatprep.subr.mxu0 0.0
      %4241 = vmatpush1.msra.mxu0 0.0
      %4242 = vmatprep.subr.mxu0 0.0
      %4243 = vmatpush1.msra.mxu0 0.0
      %4244 = vmatprep.subr.mxu0 0.0
      %4245 = vmatpush1.msra.mxu0 0.0
      %4246 = vmatprep.subr.mxu0 0.0
      %4247 = vmatpush1.msra.mxu0 0.0
      %4248 = vmatprep.mubr.f32.mxu0 0.0
      %4249 = vmatmul.mubr.f32.gmra.mrb[0].mxu0 %v4159
      %v4250 = vpop.f32.mrb[0].mxu0
      %v4251 = vadd.f32 0.0, %v4250
      %v4252 = vpop.f32.mrb[0].mxu0
      %4253 = vmatprep.mubr.f32.mxu0 0.0
      %4254 = vmatmul.mubr.f32.gmra.mrb[0].mxu0 %v4160
      %v4255 = vpop.f32.mrb[0].mxu0
      %v4256 = vadd.f32 0.0, %v4255
      %v4257 = vpop.f32.mrb[0].mxu0
      %4258 = vmatprep.mubr.f32.mxu0 0.0
      %4259 = vmatmul.mubr.f32.gmra.mrb[0].mxu0 %v4161
      %v4260 = vpop.f32.mrb[0].mxu0
      %v4261 = vadd.f32 0.0, %v4260
      %v4262 = vpop.f32.mrb[0].mxu0
      %4263 = vmatprep.mubr.f32.mxu0 0.0
      %4264 = vmatmul.mubr.f32.gmra.mrb[0].mxu0 %v4162
      %v4265 = vpop.f32.mrb[0].mxu0
      %v4266 = vadd.f32 0.0, %v4265
      %v4267 = vpop.f32.mrb[0].mxu0
      %4268 = vmatprep.mubr.f32.mxu0 0.0
      %4269 = vmatmul.mubr.f32.gmra.mrb[0].mxu0 %v4163
      %v4270 = vpop.f32.mrb[0].mxu0
      %v4271 = vadd.f32 0.0, %v4270
      %v4272 = vpop.f32.mrb[0].mxu0
      %4273 = vmatprep.mubr.f32.mxu0 0.0
      %4274 = vmatmul.mubr.f32.gmra.mrb[0].mxu0 %v4164
      %v4275 = vpop.f32.mrb[0].mxu0
      %v4276 = vadd.f32 0.0, %v4275
      %v4277 = vpop.f32.mrb[0].mxu0
      %4278 = vmatprep.mubr.f32.mxu0 0.0
      %4279 = vmatmul.mubr.f32.gmra.mrb[0].mxu0 %v4165
      %v4280 = vpop.f32.mrb[0].mxu0
      %v4281 = vadd.f32 0.0, %v4280
      %v4282 = vpop.f32.mrb[0].mxu0
      %4283 = vmatprep.mubr.f32.mxu0 0.0
      %4284 = vmatmul.mubr.f32.gmra.mrb[0].mxu0 %v4166
      %v4285 = vpop.f32.mrb[0].mxu0
      %v4286 = vadd.f32 0.0, %v4285
      %v4287 = vpop.f32.mrb[0].mxu0
      %4288 = vdwg.mxu0
      %v4289 = vadd.f32 %v4151, %v4251
      %v4290 = vadd.f32 %v4152, %v4256
      %v4291 = vadd.f32 %v4153, %v4261
      %v4292 = vadd.f32 %v4154, %v4266
      %v4293 = vadd.f32 %v4155, %v4271
      %v4294 = vadd.f32 %v4156, %v4276
      %v4295 = vadd.f32 %v4157, %v4281
      %v4296 = vadd.f32 %v4158, %v4286
      %v4297 = vld [vmem:[%s1093 + $0x3] sm:$0xff]
      %v4298 = vld [vmem:[%s1093 + $0x13] sm:$0xff]
      %v4299 = vld [vmem:[%s1093 + $0x23] sm:$0xff]
      %v4300 = vld [vmem:[%s1093 + $0x33] sm:$0xff]
      %v4301 = vld [vmem:[%s1093 + $0x43] sm:$0xff]
      %v4302 = vld [vmem:[%s1093 + $0x53] sm:$0xff]
      %v4303 = vld [vmem:[%s1093 + $0x63] sm:$0xff]
      %v4304 = vld [vmem:[%s1093 + $0x73] sm:$0xff]
      %s4305 = scalar_lea.vmem %s3, 2944
      %v4306 = vld [vmem:[%s4305] sm:$0xff]
      %v4307 = vld [vmem:[%s4305 + $0x8] sm:$0xff]
      %v4308 = vld [vmem:[%s4305 + $0x10] sm:$0xff]
      %v4309 = vld [vmem:[%s4305 + $0x18] sm:$0xff]
      %v4310 = vld [vmem:[%s4305 + $0x20] sm:$0xff]
      %v4311 = vld [vmem:[%s4305 + $0x28] sm:$0xff]
      %v4312 = vld [vmem:[%s4305 + $0x30] sm:$0xff]
      %v4313 = vld [vmem:[%s4305 + $0x38] sm:$0xff]
      %v4314 = vld [vmem:[%s4305 + $0x40] sm:$0xff]
      %v4315 = vld [vmem:[%s4305 + $0x48] sm:$0xff]
      %v4316 = vld [vmem:[%s4305 + $0x50] sm:$0xff]
      %v4317 = vld [vmem:[%s4305 + $0x58] sm:$0xff]
      %v4318 = vld [vmem:[%s4305 + $0x60] sm:$0xff]
      %v4319 = vld [vmem:[%s4305 + $0x68] sm:$0xff]
      %v4320 = vld [vmem:[%s4305 + $0x70] sm:$0xff]
      %v4321 = vld [vmem:[%s4305 + $0x78] sm:$0xff]
      %4322 = vmatprep.subr.mxu0 0.0
      %4323 = vmatpush1.msra.mxu0 %v4306
      %4324 = vmatprep.subr.mxu0 0.0
      %4325 = vmatpush1.msra.mxu0 %v4307
      %4326 = vmatprep.subr.mxu0 0.0
      %4327 = vmatpush1.msra.mxu0 %v4308
      %4328 = vmatprep.subr.mxu0 0.0
      %4329 = vmatpush1.msra.mxu0 %v4309
      %4330 = vmatprep.subr.mxu0 0.0
      %4331 = vmatpush1.msra.mxu0 %v4310
      %4332 = vmatprep.subr.mxu0 0.0
      %4333 = vmatpush1.msra.mxu0 %v4311
      %4334 = vmatprep.subr.mxu0 0.0
      %4335 = vmatpush1.msra.mxu0 %v4312
      %4336 = vmatprep.subr.mxu0 0.0
      %4337 = vmatpush1.msra.mxu0 %v4313
      %4338 = vmatprep.subr.mxu0 0.0
      %4339 = vmatpush1.msra.mxu0 %v4314
      %4340 = vmatprep.subr.mxu0 0.0
      %4341 = vmatpush1.msra.mxu0 %v4315
      %4342 = vmatprep.subr.mxu0 0.0
      %4343 = vmatpush1.msra.mxu0 %v4316
      %4344 = vmatprep.subr.mxu0 0.0
      %4345 = vmatpush1.msra.mxu0 %v4317
      %4346 = vmatprep.subr.mxu0 0.0
      %4347 = vmatpush1.msra.mxu0 %v4318
      %4348 = vmatprep.subr.mxu0 0.0
      %4349 = vmatpush1.msra.mxu0 %v4319
      %4350 = vmatprep.subr.mxu0 0.0
      %4351 = vmatpush1.msra.mxu0 %v4320
      %4352 = vmatprep.subr.mxu0 0.0
      %4353 = vmatpush1.msra.mxu0 %v4321
      %4354 = vmatprep.subr.mxu0 0.0
      %4355 = vmatpush1.msra.mxu0 0.0
      %4356 = vmatprep.subr.mxu0 0.0
      %4357 = vmatpush1.msra.mxu0 0.0
      %4358 = vmatprep.subr.mxu0 0.0
      %4359 = vmatpush1.msra.mxu0 0.0
      %4360 = vmatprep.subr.mxu0 0.0
      %4361 = vmatpush1.msra.mxu0 0.0
      %4362 = vmatprep.subr.mxu0 0.0
      %4363 = vmatpush1.msra.mxu0 0.0
      %4364 = vmatprep.subr.mxu0 0.0
      %4365 = vmatpush1.msra.mxu0 0.0
      %4366 = vmatprep.subr.mxu0 0.0
      %4367 = vmatpush1.msra.mxu0 0.0
      %4368 = vmatprep.subr.mxu0 0.0
      %4369 = vmatpush1.msra.mxu0 0.0
      %4370 = vmatprep.subr.mxu0 0.0
      %4371 = vmatpush1.msra.mxu0 0.0
      %4372 = vmatprep.subr.mxu0 0.0
      %4373 = vmatpush1.msra.mxu0 0.0
      %4374 = vmatprep.subr.mxu0 0.0
      %4375 = vmatpush1.msra.mxu0 0.0
      %4376 = vmatprep.subr.mxu0 0.0
      %4377 = vmatpush1.msra.mxu0 0.0
      %4378 = vmatprep.subr.mxu0 0.0
      %4379 = vmatpush1.msra.mxu0 0.0
      %4380 = vmatprep.subr.mxu0 0.0
      %4381 = vmatpush1.msra.mxu0 0.0
      %4382 = vmatprep.subr.mxu0 0.0
      %4383 = vmatpush1.msra.mxu0 0.0
      %4384 = vmatprep.subr.mxu0 0.0
      %4385 = vmatpush1.msra.mxu0 0.0
      %4386 = vmatprep.mubr.f32.mxu0 0.0
      %4387 = vmatmul.mubr.f32.gmra.mrb[0].mxu0 %v4297
      %v4388 = vpop.f32.mrb[0].mxu0
      %v4389 = vadd.f32 0.0, %v4388
      %v4390 = vpop.f32.mrb[0].mxu0
      %4391 = vmatprep.mubr.f32.mxu0 0.0
      %4392 = vmatmul.mubr.f32.gmra.mrb[0].mxu0 %v4298
      %v4393 = vpop.f32.mrb[0].mxu0
      %v4394 = vadd.f32 0.0, %v4393
      %v4395 = vpop.f32.mrb[0].mxu0
      %4396 = vmatprep.mubr.f32.mxu0 0.0
      %4397 = vmatmul.mubr.f32.gmra.mrb[0].mxu0 %v4299
      %v4398 = vpop.f32.mrb[0].mxu0
      %v4399 = vadd.f32 0.0, %v4398
      %v4400 = vpop.f32.mrb[0].mxu0
      %4401 = vmatprep.mubr.f32.mxu0 0.0
      %4402 = vmatmul.mubr.f32.gmra.mrb[0].mxu0 %v4300
      %v4403 = vpop.f32.mrb[0].mxu0
      %v4404 = vadd.f32 0.0, %v4403
      %v4405 = vpop.f32.mrb[0].mxu0
      %4406 = vmatprep.mubr.f32.mxu0 0.0
      %4407 = vmatmul.mubr.f32.gmra.mrb[0].mxu0 %v4301
      %v4408 = vpop.f32.mrb[0].mxu0
      %v4409 = vadd.f32 0.0, %v4408
      %v4410 = vpop.f32.mrb[0].mxu0
      %4411 = vmatprep.mubr.f32.mxu0 0.0
      %4412 = vmatmul.mubr.f32.gmra.mrb[0].mxu0 %v4302
      %v4413 = vpop.f32.mrb[0].mxu0
      %v4414 = vadd.f32 0.0, %v4413
      %v4415 = vpop.f32.mrb[0].mxu0
      %4416 = vmatprep.mubr.f32.mxu0 0.0
      %4417 = vmatmul.mubr.f32.gmra.mrb[0].mxu0 %v4303
      %v4418 = vpop.f32.mrb[0].mxu0
      %v4419 = vadd.f32 0.0, %v4418
      %v4420 = vpop.f32.mrb[0].mxu0
      %4421 = vmatprep.mubr.f32.mxu0 0.0
      %4422 = vmatmul.mubr.f32.gmra.mrb[0].mxu0 %v4304
      %v4423 = vpop.f32.mrb[0].mxu0
      %v4424 = vadd.f32 0.0, %v4423
      %v4425 = vpop.f32.mrb[0].mxu0
      %4426 = vdwg.mxu0
      %v4427 = vadd.f32 %v4289, %v4389
      %v4428 = vadd.f32 %v4290, %v4394
      %v4429 = vadd.f32 %v4291, %v4399
      %v4430 = vadd.f32 %v4292, %v4404
      %v4431 = vadd.f32 %v4293, %v4409
      %v4432 = vadd.f32 %v4294, %v4414
      %v4433 = vadd.f32 %v4295, %v4419
      %v4434 = vadd.f32 %v4296, %v4424
      %v4435 = vld [vmem:[%s1093 + $0x4] sm:$0xff]
      %v4436 = vld [vmem:[%s1093 + $0x14] sm:$0xff]
      %v4437 = vld [vmem:[%s1093 + $0x24] sm:$0xff]
      %v4438 = vld [vmem:[%s1093 + $0x34] sm:$0xff]
      %v4439 = vld [vmem:[%s1093 + $0x44] sm:$0xff]
      %v4440 = vld [vmem:[%s1093 + $0x54] sm:$0xff]
      %v4441 = vld [vmem:[%s1093 + $0x64] sm:$0xff]
      %v4442 = vld [vmem:[%s1093 + $0x74] sm:$0xff]
      %s4443 = scalar_lea.vmem %s3, 3072
      %v4444 = vld [vmem:[%s4443] sm:$0xff]
      %v4445 = vld [vmem:[%s4443 + $0x8] sm:$0xff]
      %v4446 = vld [vmem:[%s4443 + $0x10] sm:$0xff]
      %v4447 = vld [vmem:[%s4443 + $0x18] sm:$0xff]
      %v4448 = vld [vmem:[%s4443 + $0x20] sm:$0xff]
      %v4449 = vld [vmem:[%s4443 + $0x28] sm:$0xff]
      %v4450 = vld [vmem:[%s4443 + $0x30] sm:$0xff]
      %v4451 = vld [vmem:[%s4443 + $0x38] sm:$0xff]
      %v4452 = vld [vmem:[%s4443 + $0x40] sm:$0xff]
      %v4453 = vld [vmem:[%s4443 + $0x48] sm:$0xff]
      %v4454 = vld [vmem:[%s4443 + $0x50] sm:$0xff]
      %v4455 = vld [vmem:[%s4443 + $0x58] sm:$0xff]
      %v4456 = vld [vmem:[%s4443 + $0x60] sm:$0xff]
      %v4457 = vld [vmem:[%s4443 + $0x68] sm:$0xff]
      %v4458 = vld [vmem:[%s4443 + $0x70] sm:$0xff]
      %v4459 = vld [vmem:[%s4443 + $0x78] sm:$0xff]
      %4460 = vmatprep.subr.mxu0 0.0
      %4461 = vmatpush1.msra.mxu0 %v4444
      %4462 = vmatprep.subr.mxu0 0.0
      %4463 = vmatpush1.msra.mxu0 %v4445
      %4464 = vmatprep.subr.mxu0 0.0
      %4465 = vmatpush1.msra.mxu0 %v4446
      %4466 = vmatprep.subr.mxu0 0.0
      %4467 = vmatpush1.msra.mxu0 %v4447
      %4468 = vmatprep.subr.mxu0 0.0
      %4469 = vmatpush1.msra.mxu0 %v4448
      %4470 = vmatprep.subr.mxu0 0.0
      %4471 = vmatpush1.msra.mxu0 %v4449
      %4472 = vmatprep.subr.mxu0 0.0
      %4473 = vmatpush1.msra.mxu0 %v4450
      %4474 = vmatprep.subr.mxu0 0.0
      %4475 = vmatpush1.msra.mxu0 %v4451
      %4476 = vmatprep.subr.mxu0 0.0
      %4477 = vmatpush1.msra.mxu0 %v4452
      %4478 = vmatprep.subr.mxu0 0.0
      %4479 = vmatpush1.msra.mxu0 %v4453
      %4480 = vmatprep.subr.mxu0 0.0
      %4481 = vmatpush1.msra.mxu0 %v4454
      %4482 = vmatprep.subr.mxu0 0.0
      %4483 = vmatpush1.msra.mxu0 %v4455
      %4484 = vmatprep.subr.mxu0 0.0
      %4485 = vmatpush1.msra.mxu0 %v4456
      %4486 = vmatprep.subr.mxu0 0.0
      %4487 = vmatpush1.msra.mxu0 %v4457
      %4488 = vmatprep.subr.mxu0 0.0
      %4489 = vmatpush1.msra.mxu0 %v4458
      %4490 = vmatprep.subr.mxu0 0.0
      %4491 = vmatpush1.msra.mxu0 %v4459
      %4492 = vmatprep.subr.mxu0 0.0
      %4493 = vmatpush1.msra.mxu0 0.0
      %4494 = vmatprep.subr.mxu0 0.0
      %4495 = vmatpush1.msra.mxu0 0.0
      %4496 = vmatprep.subr.mxu0 0.0
      %4497 = vmatpush1.msra.mxu0 0.0
      %4498 = vmatprep.subr.mxu0 0.0
      %4499 = vmatpush1.msra.mxu0 0.0
      %4500 = vmatprep.subr.mxu0 0.0
      %4501 = vmatpush1.msra.mxu0 0.0
      %4502 = vmatprep.subr.mxu0 0.0
      %4503 = vmatpush1.msra.mxu0 0.0
      %4504 = vmatprep.subr.mxu0 0.0
      %4505 = vmatpush1.msra.mxu0 0.0
      %4506 = vmatprep.subr.mxu0 0.0
      %4507 = vmatpush1.msra.mxu0 0.0
      %4508 = vmatprep.subr.mxu0 0.0
      %4509 = vmatpush1.msra.mxu0 0.0
      %4510 = vmatprep.subr.mxu0 0.0
      %4511 = vmatpush1.msra.mxu0 0.0
      %4512 = vmatprep.subr.mxu0 0.0
      %4513 = vmatpush1.msra.mxu0 0.0
      %4514 = vmatprep.subr.mxu0 0.0
      %4515 = vmatpush1.msra.mxu0 0.0
      %4516 = vmatprep.subr.mxu0 0.0
      %4517 = vmatpush1.msra.mxu0 0.0
      %4518 = vmatprep.subr.mxu0 0.0
      %4519 = vmatpush1.msra.mxu0 0.0
      %4520 = vmatprep.subr.mxu0 0.0
      %4521 = vmatpush1.msra.mxu0 0.0
      %4522 = vmatprep.subr.mxu0 0.0
      %4523 = vmatpush1.msra.mxu0 0.0
      %4524 = vmatprep.mubr.f32.mxu0 0.0
      %4525 = vmatmul.mubr.f32.gmra.mrb[0].mxu0 %v4435
      %v4526 = vpop.f32.mrb[0].mxu0
      %v4527 = vadd.f32 0.0, %v4526
      %v4528 = vpop.f32.mrb[0].mxu0
      %4529 = vmatprep.mubr.f32.mxu0 0.0
      %4530 = vmatmul.mubr.f32.gmra.mrb[0].mxu0 %v4436
      %v4531 = vpop.f32.mrb[0].mxu0
      %v4532 = vadd.f32 0.0, %v4531
      %v4533 = vpop.f32.mrb[0].mxu0
      %4534 = vmatprep.mubr.f32.mxu0 0.0
      %4535 = vmatmul.mubr.f32.gmra.mrb[0].mxu0 %v4437
      %v4536 = vpop.f32.mrb[0].mxu0
      %v4537 = vadd.f32 0.0, %v4536
      %v4538 = vpop.f32.mrb[0].mxu0
      %4539 = vmatprep.mubr.f32.mxu0 0.0
      %4540 = vmatmul.mubr.f32.gmra.mrb[0].mxu0 %v4438
      %v4541 = vpop.f32.mrb[0].mxu0
      %v4542 = vadd.f32 0.0, %v4541
      %v4543 = vpop.f32.mrb[0].mxu0
      %4544 = vmatprep.mubr.f32.mxu0 0.0
      %4545 = vmatmul.mubr.f32.gmra.mrb[0].mxu0 %v4439
      %v4546 = vpop.f32.mrb[0].mxu0
      %v4547 = vadd.f32 0.0, %v4546
      %v4548 = vpop.f32.mrb[0].mxu0
      %4549 = vmatprep.mubr.f32.mxu0 0.0
      %4550 = vmatmul.mubr.f32.gmra.mrb[0].mxu0 %v4440
      %v4551 = vpop.f32.mrb[0].mxu0
      %v4552 = vadd.f32 0.0, %v4551
      %v4553 = vpop.f32.mrb[0].mxu0
      %4554 = vmatprep.mubr.f32.mxu0 0.0
      %4555 = vmatmul.mubr.f32.gmra.mrb[0].mxu0 %v4441
      %v4556 = vpop.f32.mrb[0].mxu0
      %v4557 = vadd.f32 0.0, %v4556
      %v4558 = vpop.f32.mrb[0].mxu0
      %4559 = vmatprep.mubr.f32.mxu0 0.0
      %4560 = vmatmul.mubr.f32.gmra.mrb[0].mxu0 %v4442
      %v4561 = vpop.f32.mrb[0].mxu0
      %v4562 = vadd.f32 0.0, %v4561
      %v4563 = vpop.f32.mrb[0].mxu0
      %4564 = vdwg.mxu0
      %v4565 = vadd.f32 %v4427, %v4527
      %v4566 = vadd.f32 %v4428, %v4532
      %v4567 = vadd.f32 %v4429, %v4537
      %v4568 = vadd.f32 %v4430, %v4542
      %v4569 = vadd.f32 %v4431, %v4547
      %v4570 = vadd.f32 %v4432, %v4552
      %v4571 = vadd.f32 %v4433, %v4557
      %v4572 = vadd.f32 %v4434, %v4562
      %v4573 = vmax.f32 %v4565, %v4566
      %v4574 = vmax.f32 %v4567, %v4568
      %v4575 = vmax.f32 %v4569, %v4570
      %v4576 = vmax.f32 %v4571, %v4572
      %v4581 = vrot.slane %v4573, 1
      %v4582 = vrot.slane %v4574, 1
      %v4583 = vrot.slane %v4575, 1
      %v4584 = vrot.slane %v4576, 1
      %v4589 = vmax.f32 %v4573, %v4581
      %v4590 = vmax.f32 %v4574, %v4582
      %v4591 = vmax.f32 %v4575, %v4583
      %v4592 = vmax.f32 %v4576, %v4584
      %v4597 = vrot.slane %v4589, 2
      %v4598 = vrot.slane %v4590, 2
      %v4599 = vrot.slane %v4591, 2
      %v4600 = vrot.slane %v4592, 2
      %v4605 = vrot.slane %v4589, 4
      %v4606 = vrot.slane %v4590, 4
      %v4607 = vrot.slane %v4591, 4
      %v4608 = vrot.slane %v4592, 4
      %v4613 = vrot.slane %v4589, 6
      %v4614 = vrot.slane %v4590, 6
      %v4615 = vrot.slane %v4591, 6
      %v4616 = vrot.slane %v4592, 6
      %v4621 = vmax.f32 %v4589, 0.0
      %v4622 = vmax.f32 %v4590, 0.0
      %v4623 = vmax.f32 %v4591, 0.0
      %v4624 = vmax.f32 %v4592, 0.0
      %v4625 = vmax.f32 %v4597, 0.0
      %v4626 = vmax.f32 %v4598, 0.0
      %v4627 = vmax.f32 %v4599, 0.0
      %v4628 = vmax.f32 %v4600, 0.0
      %v4629 = vmax.f32 %v4605, 0.0
      %v4630 = vmax.f32 %v4606, 0.0
      %v4631 = vmax.f32 %v4607, 0.0
      %v4632 = vmax.f32 %v4608, 0.0
      %v4633 = vmax.f32 %v4613, 0.0
      %v4634 = vmax.f32 %v4614, 0.0
      %v4635 = vmax.f32 %v4615, 0.0
      %v4636 = vmax.f32 %v4616, 0.0
      %v4637 = vlaneseq
      %v4638 = vshrl.u32 %v4637, 7
      %v4639 = vsub.s32 0, %v4638
      %v4640 = vrot.slane %v4621, %v4639
      %v4641 = vlaneseq
      %v4642 = vshrl.u32 %v4641, 7
      %v4643 = vsub.s32 0, %v4642
      %v4644 = vrot.slane %v4622, %v4643
      %v4645 = vlaneseq
      %v4646 = vshrl.u32 %v4645, 7
      %v4647 = vsub.s32 0, %v4646
      %v4648 = vrot.slane %v4623, %v4647
      %v4649 = vlaneseq
      %v4650 = vshrl.u32 %v4649, 7
      %v4651 = vsub.s32 0, %v4650
      %v4652 = vrot.slane %v4624, %v4651
      %v4653 = vlaneseq
      %v4654 = vshrl.u32 %v4653, 7
      %v4655 = vsub.s32 0, %v4654
      %v4656 = vrot.slane %v4625, %v4655
      %v4657 = vlaneseq
      %v4658 = vshrl.u32 %v4657, 7
      %v4659 = vsub.s32 0, %v4658
      %v4660 = vrot.slane %v4626, %v4659
      %v4661 = vlaneseq
      %v4662 = vshrl.u32 %v4661, 7
      %v4663 = vsub.s32 0, %v4662
      %v4664 = vrot.slane %v4627, %v4663
      %v4665 = vlaneseq
      %v4666 = vshrl.u32 %v4665, 7
      %v4667 = vsub.s32 0, %v4666
      %v4668 = vrot.slane %v4628, %v4667
      %v4669 = vlaneseq
      %v4670 = vshrl.u32 %v4669, 7
      %v4671 = vsub.s32 0, %v4670
      %v4672 = vrot.slane %v4629, %v4671
      %v4673 = vlaneseq
      %v4674 = vshrl.u32 %v4673, 7
      %v4675 = vsub.s32 0, %v4674
      %v4676 = vrot.slane %v4630, %v4675
      %v4677 = vlaneseq
      %v4678 = vshrl.u32 %v4677, 7
      %v4679 = vsub.s32 0, %v4678
      %v4680 = vrot.slane %v4631, %v4679
      %v4681 = vlaneseq
      %v4682 = vshrl.u32 %v4681, 7
      %v4683 = vsub.s32 0, %v4682
      %v4684 = vrot.slane %v4632, %v4683
      %v4685 = vlaneseq
      %v4686 = vshrl.u32 %v4685, 7
      %v4687 = vsub.s32 0, %v4686
      %v4688 = vrot.slane %v4633, %v4687
      %v4689 = vlaneseq
      %v4690 = vshrl.u32 %v4689, 7
      %v4691 = vsub.s32 0, %v4690
      %v4692 = vrot.slane %v4634, %v4691
      %v4693 = vlaneseq
      %v4694 = vshrl.u32 %v4693, 7
      %v4695 = vsub.s32 0, %v4694
      %v4696 = vrot.slane %v4635, %v4695
      %v4697 = vlaneseq
      %v4698 = vshrl.u32 %v4697, 7
      %v4699 = vsub.s32 0, %v4698
      %v4700 = vrot.slane %v4636, %v4699
      %v4701 = vld [vmem:[%s5] sm:$0xff]
      %v4702 = vld [vmem:[%s5 + $0x8] sm:$0xff]
      %v4703 = vld [vmem:[%s5 + $0x10] sm:$0xff]
      %v4704 = vld [vmem:[%s5 + $0x18] sm:$0xff]
      %v4705 = vld [vmem:[%s5 + $0x20] sm:$0xff]
      %v4706 = vld [vmem:[%s5 + $0x28] sm:$0xff]
      %v4707 = vld [vmem:[%s5 + $0x30] sm:$0xff]
      %v4708 = vld [vmem:[%s5 + $0x38] sm:$0xff]
      %v4709 = vld [vmem:[%s5 + $0x40] sm:$0xff]
      %v4710 = vld [vmem:[%s5 + $0x48] sm:$0xff]
      %v4711 = vld [vmem:[%s5 + $0x50] sm:$0xff]
      %v4712 = vld [vmem:[%s5 + $0x58] sm:$0xff]
      %v4713 = vld [vmem:[%s5 + $0x60] sm:$0xff]
      %v4714 = vld [vmem:[%s5 + $0x68] sm:$0xff]
      %v4715 = vld [vmem:[%s5 + $0x70] sm:$0xff]
      %v4716 = vld [vmem:[%s5 + $0x78] sm:$0xff]
      %v4717 = vld [vmem:[%s5 + $0x80] sm:$0xff]
      %v4718 = vld [vmem:[%s5 + $0x88] sm:$0xff]
      %v4719 = vld [vmem:[%s5 + $0x90] sm:$0xff]
      %v4720 = vld [vmem:[%s5 + $0x98] sm:$0xff]
      %v4721 = vld [vmem:[%s5 + $0xa0] sm:$0xff]
      %v4722 = vld [vmem:[%s5 + $0xa8] sm:$0xff]
      %v4723 = vld [vmem:[%s5 + $0xb0] sm:$0xff]
      %v4724 = vld [vmem:[%s5 + $0xb8] sm:$0xff]
      %v4725 = vld [vmem:[%s5 + $0xc0] sm:$0xff]
      %v4726 = vld [vmem:[%s5 + $0xc8] sm:$0xff]
      %v4727 = vld [vmem:[%s5 + $0xd0] sm:$0xff]
      %v4728 = vld [vmem:[%s5 + $0xd8] sm:$0xff]
      %v4729 = vld [vmem:[%s5 + $0xe0] sm:$0xff]
      %v4730 = vld [vmem:[%s5 + $0xe8] sm:$0xff]
      %v4731 = vld [vmem:[%s5 + $0xf0] sm:$0xff]
      %v4732 = vld [vmem:[%s5 + $0xf8] sm:$0xff]
      %v4733 = vld [vmem:[%s5 + $0x100] sm:$0xff]
      %v4734 = vld [vmem:[%s5 + $0x108] sm:$0xff]
      %v4735 = vld [vmem:[%s5 + $0x110] sm:$0xff]
      %v4736 = vld [vmem:[%s5 + $0x118] sm:$0xff]
      %v4737 = vld [vmem:[%s5 + $0x120] sm:$0xff]
      %v4738 = vld [vmem:[%s5 + $0x128] sm:$0xff]
      %v4739 = vld [vmem:[%s5 + $0x130] sm:$0xff]
      %v4740 = vld [vmem:[%s5 + $0x138] sm:$0xff]
      %v4741 = vld [vmem:[%s5 + $0x140] sm:$0xff]
      %v4742 = vld [vmem:[%s5 + $0x148] sm:$0xff]
      %v4743 = vld [vmem:[%s5 + $0x150] sm:$0xff]
      %v4744 = vld [vmem:[%s5 + $0x158] sm:$0xff]
      %v4745 = vld [vmem:[%s5 + $0x160] sm:$0xff]
      %v4746 = vld [vmem:[%s5 + $0x168] sm:$0xff]
      %v4747 = vld [vmem:[%s5 + $0x170] sm:$0xff]
      %v4748 = vld [vmem:[%s5 + $0x178] sm:$0xff]
      %v4749 = vld [vmem:[%s5 + $0x180] sm:$0xff]
      %v4750 = vld [vmem:[%s5 + $0x188] sm:$0xff]
      %v4751 = vld [vmem:[%s5 + $0x190] sm:$0xff]
      %v4752 = vld [vmem:[%s5 + $0x198] sm:$0xff]
      %v4753 = vld [vmem:[%s5 + $0x1a0] sm:$0xff]
      %v4754 = vld [vmem:[%s5 + $0x1a8] sm:$0xff]
      %v4755 = vld [vmem:[%s5 + $0x1b0] sm:$0xff]
      %v4756 = vld [vmem:[%s5 + $0x1b8] sm:$0xff]
      %v4757 = vld [vmem:[%s5 + $0x1c0] sm:$0xff]
      %v4758 = vld [vmem:[%s5 + $0x1c8] sm:$0xff]
      %v4759 = vld [vmem:[%s5 + $0x1d0] sm:$0xff]
      %v4760 = vld [vmem:[%s5 + $0x1d8] sm:$0xff]
      %v4761 = vld [vmem:[%s5 + $0x1e0] sm:$0xff]
      %v4762 = vld [vmem:[%s5 + $0x1e8] sm:$0xff]
      %v4763 = vld [vmem:[%s5 + $0x1f0] sm:$0xff]
      %v4764 = vld [vmem:[%s5 + $0x1f8] sm:$0xff]
      %v4765 = vld [vmem:[%s5 + $0x200] sm:$0xff]
      %v4766 = vld [vmem:[%s5 + $0x208] sm:$0xff]
      %v4767 = vld [vmem:[%s5 + $0x210] sm:$0xff]
      %v4768 = vld [vmem:[%s5 + $0x218] sm:$0xff]
      %v4769 = vld [vmem:[%s5 + $0x220] sm:$0xff]
      %v4770 = vld [vmem:[%s5 + $0x228] sm:$0xff]
      %v4771 = vld [vmem:[%s5 + $0x230] sm:$0xff]
      %v4772 = vld [vmem:[%s5 + $0x238] sm:$0xff]
      %v4773 = vld [vmem:[%s5 + $0x240] sm:$0xff]
      %v4774 = vld [vmem:[%s5 + $0x248] sm:$0xff]
      %v4775 = vld [vmem:[%s5 + $0x250] sm:$0xff]
      %v4776 = vld [vmem:[%s5 + $0x258] sm:$0xff]
      %v4777 = vld [vmem:[%s5 + $0x260] sm:$0xff]
      %v4778 = vld [vmem:[%s5 + $0x268] sm:$0xff]
      %v4779 = vld [vmem:[%s5 + $0x270] sm:$0xff]
      %v4780 = vld [vmem:[%s5 + $0x278] sm:$0xff]
      %v4781 = vld [vmem:[%s5 + $0x280] sm:$0xff]
      %v4782 = vld [vmem:[%s5 + $0x288] sm:$0xff]
      %v4783 = vld [vmem:[%s5 + $0x290] sm:$0xff]
      %v4784 = vld [vmem:[%s5 + $0x298] sm:$0xff]
      %v4785 = vld [vmem:[%s5 + $0x2a0] sm:$0xff]
      %v4786 = vld [vmem:[%s5 + $0x2a8] sm:$0xff]
      %v4787 = vld [vmem:[%s5 + $0x2b0] sm:$0xff]
      %v4788 = vld [vmem:[%s5 + $0x2b8] sm:$0xff]
      %v4789 = vld [vmem:[%s5 + $0x2c0] sm:$0xff]
      %v4790 = vld [vmem:[%s5 + $0x2c8] sm:$0xff]
      %v4791 = vld [vmem:[%s5 + $0x2d0] sm:$0xff]
      %v4792 = vld [vmem:[%s5 + $0x2d8] sm:$0xff]
      %v4793 = vld [vmem:[%s5 + $0x2e0] sm:$0xff]
      %v4794 = vld [vmem:[%s5 + $0x2e8] sm:$0xff]
      %v4795 = vld [vmem:[%s5 + $0x2f0] sm:$0xff]
      %v4796 = vld [vmem:[%s5 + $0x2f8] sm:$0xff]
      %v4797 = vld [vmem:[%s5 + $0x300] sm:$0xff]
      %v4798 = vld [vmem:[%s5 + $0x308] sm:$0xff]
      %v4799 = vld [vmem:[%s5 + $0x310] sm:$0xff]
      %v4800 = vld [vmem:[%s5 + $0x318] sm:$0xff]
      %v4801 = vld [vmem:[%s5 + $0x320] sm:$0xff]
      %v4802 = vld [vmem:[%s5 + $0x328] sm:$0xff]
      %v4803 = vld [vmem:[%s5 + $0x330] sm:$0xff]
      %v4804 = vld [vmem:[%s5 + $0x338] sm:$0xff]
      %v4805 = vld [vmem:[%s5 + $0x340] sm:$0xff]
      %v4806 = vld [vmem:[%s5 + $0x348] sm:$0xff]
      %v4807 = vld [vmem:[%s5 + $0x350] sm:$0xff]
      %v4808 = vld [vmem:[%s5 + $0x358] sm:$0xff]
      %v4809 = vld [vmem:[%s5 + $0x360] sm:$0xff]
      %v4810 = vld [vmem:[%s5 + $0x368] sm:$0xff]
      %v4811 = vld [vmem:[%s5 + $0x370] sm:$0xff]
      %v4812 = vld [vmem:[%s5 + $0x378] sm:$0xff]
      %v4813 = vld [vmem:[%s5 + $0x380] sm:$0xff]
      %v4814 = vld [vmem:[%s5 + $0x388] sm:$0xff]
      %v4815 = vld [vmem:[%s5 + $0x390] sm:$0xff]
      %v4816 = vld [vmem:[%s5 + $0x398] sm:$0xff]
      %v4817 = vld [vmem:[%s5 + $0x3a0] sm:$0xff]
      %v4818 = vld [vmem:[%s5 + $0x3a8] sm:$0xff]
      %v4819 = vld [vmem:[%s5 + $0x3b0] sm:$0xff]
      %v4820 = vld [vmem:[%s5 + $0x3b8] sm:$0xff]
      %v4821 = vld [vmem:[%s5 + $0x3c0] sm:$0xff]
      %v4822 = vld [vmem:[%s5 + $0x3c8] sm:$0xff]
      %v4823 = vld [vmem:[%s5 + $0x3d0] sm:$0xff]
      %v4824 = vld [vmem:[%s5 + $0x3d8] sm:$0xff]
      %v4825 = vld [vmem:[%s5 + $0x3e0] sm:$0xff]
      %v4826 = vld [vmem:[%s5 + $0x3e8] sm:$0xff]
      %v4827 = vld [vmem:[%s5 + $0x3f0] sm:$0xff]
      %v4828 = vld [vmem:[%s5 + $0x3f8] sm:$0xff]
      %v4829 = vld [vmem:[%s5 + $0x400] sm:$0xff]
      %v4830 = vld [vmem:[%s5 + $0x408] sm:$0xff]
      %v4831 = vld [vmem:[%s5 + $0x410] sm:$0xff]
      %v4832 = vld [vmem:[%s5 + $0x418] sm:$0xff]
      %v4833 = vld [vmem:[%s5 + $0x420] sm:$0xff]
      %v4834 = vld [vmem:[%s5 + $0x428] sm:$0xff]
      %v4835 = vld [vmem:[%s5 + $0x430] sm:$0xff]
      %v4836 = vld [vmem:[%s5 + $0x438] sm:$0xff]
      %v4837 = vld [vmem:[%s5 + $0x440] sm:$0xff]
      %v4838 = vld [vmem:[%s5 + $0x448] sm:$0xff]
      %v4839 = vld [vmem:[%s5 + $0x450] sm:$0xff]
      %v4840 = vld [vmem:[%s5 + $0x458] sm:$0xff]
      %v4841 = vld [vmem:[%s5 + $0x460] sm:$0xff]
      %v4842 = vld [vmem:[%s5 + $0x468] sm:$0xff]
      %v4843 = vld [vmem:[%s5 + $0x470] sm:$0xff]
      %v4844 = vld [vmem:[%s5 + $0x478] sm:$0xff]
      %v4845 = vld [vmem:[%s5 + $0x480] sm:$0xff]
      %v4846 = vld [vmem:[%s5 + $0x488] sm:$0xff]
      %v4847 = vld [vmem:[%s5 + $0x490] sm:$0xff]
      %v4848 = vld [vmem:[%s5 + $0x498] sm:$0xff]
      %v4849 = vld [vmem:[%s5 + $0x4a0] sm:$0xff]
      %v4850 = vld [vmem:[%s5 + $0x4a8] sm:$0xff]
      %v4851 = vld [vmem:[%s5 + $0x4b0] sm:$0xff]
      %v4852 = vld [vmem:[%s5 + $0x4b8] sm:$0xff]
      %v4853 = vld [vmem:[%s5 + $0x4c0] sm:$0xff]
      %v4854 = vld [vmem:[%s5 + $0x4c8] sm:$0xff]
      %v4855 = vld [vmem:[%s5 + $0x4d0] sm:$0xff]
      %v4856 = vld [vmem:[%s5 + $0x4d8] sm:$0xff]
      %v4857 = vld [vmem:[%s5 + $0x4e0] sm:$0xff]
      %v4858 = vld [vmem:[%s5 + $0x4e8] sm:$0xff]
      %v4859 = vld [vmem:[%s5 + $0x4f0] sm:$0xff]
      %v4860 = vld [vmem:[%s5 + $0x4f8] sm:$0xff]
      %v4861 = vld [vmem:[%s5 + $0x500] sm:$0xff]
      %v4862 = vld [vmem:[%s5 + $0x508] sm:$0xff]
      %v4863 = vld [vmem:[%s5 + $0x510] sm:$0xff]
      %v4864 = vld [vmem:[%s5 + $0x518] sm:$0xff]
      %v4865 = vld [vmem:[%s5 + $0x520] sm:$0xff]
      %v4866 = vld [vmem:[%s5 + $0x528] sm:$0xff]
      %v4867 = vld [vmem:[%s5 + $0x530] sm:$0xff]
      %v4868 = vld [vmem:[%s5 + $0x538] sm:$0xff]
      %v4869 = vld [vmem:[%s5 + $0x540] sm:$0xff]
      %v4870 = vld [vmem:[%s5 + $0x548] sm:$0xff]
      %v4871 = vld [vmem:[%s5 + $0x550] sm:$0xff]
      %v4872 = vld [vmem:[%s5 + $0x558] sm:$0xff]
      %v4873 = vld [vmem:[%s5 + $0x560] sm:$0xff]
      %v4874 = vld [vmem:[%s5 + $0x568] sm:$0xff]
      %v4875 = vld [vmem:[%s5 + $0x570] sm:$0xff]
      %v4876 = vld [vmem:[%s5 + $0x578] sm:$0xff]
      %v4877 = vld [vmem:[%s5 + $0x580] sm:$0xff]
      %v4878 = vld [vmem:[%s5 + $0x588] sm:$0xff]
      %v4879 = vld [vmem:[%s5 + $0x590] sm:$0xff]
      %v4880 = vld [vmem:[%s5 + $0x598] sm:$0xff]
      %v4881 = vld [vmem:[%s5 + $0x5a0] sm:$0xff]
      %v4882 = vld [vmem:[%s5 + $0x5a8] sm:$0xff]
      %v4883 = vld [vmem:[%s5 + $0x5b0] sm:$0xff]
      %v4884 = vld [vmem:[%s5 + $0x5b8] sm:$0xff]
      %v4885 = vld [vmem:[%s5 + $0x5c0] sm:$0xff]
      %v4886 = vld [vmem:[%s5 + $0x5c8] sm:$0xff]
      %v4887 = vld [vmem:[%s5 + $0x5d0] sm:$0xff]
      %v4888 = vld [vmem:[%s5 + $0x5d8] sm:$0xff]
      %v4889 = vld [vmem:[%s5 + $0x5e0] sm:$0xff]
      %v4890 = vld [vmem:[%s5 + $0x5e8] sm:$0xff]
      %v4891 = vld [vmem:[%s5 + $0x5f0] sm:$0xff]
      %v4892 = vld [vmem:[%s5 + $0x5f8] sm:$0xff]
      %v4893 = vld [vmem:[%s5 + $0x600] sm:$0xff]
      %v4894 = vld [vmem:[%s5 + $0x608] sm:$0xff]
      %v4895 = vld [vmem:[%s5 + $0x610] sm:$0xff]
      %v4896 = vld [vmem:[%s5 + $0x618] sm:$0xff]
      %v4897 = vld [vmem:[%s5 + $0x620] sm:$0xff]
      %v4898 = vld [vmem:[%s5 + $0x628] sm:$0xff]
      %v4899 = vld [vmem:[%s5 + $0x630] sm:$0xff]
      %v4900 = vld [vmem:[%s5 + $0x638] sm:$0xff]
      %v4901 = vld [vmem:[%s5 + $0x640] sm:$0xff]
      %v4902 = vld [vmem:[%s5 + $0x648] sm:$0xff]
      %v4903 = vld [vmem:[%s5 + $0x650] sm:$0xff]
      %v4904 = vld [vmem:[%s5 + $0x658] sm:$0xff]
      %v4905 = vld [vmem:[%s5 + $0x660] sm:$0xff]
      %v4906 = vld [vmem:[%s5 + $0x668] sm:$0xff]
      %v4907 = vld [vmem:[%s5 + $0x670] sm:$0xff]
      %v4908 = vld [vmem:[%s5 + $0x678] sm:$0xff]
      %v4909 = vld [vmem:[%s5 + $0x680] sm:$0xff]
      %v4910 = vld [vmem:[%s5 + $0x688] sm:$0xff]
      %v4911 = vld [vmem:[%s5 + $0x690] sm:$0xff]
      %v4912 = vld [vmem:[%s5 + $0x698] sm:$0xff]
      %v4913 = vld [vmem:[%s5 + $0x6a0] sm:$0xff]
      %v4914 = vld [vmem:[%s5 + $0x6a8] sm:$0xff]
      %v4915 = vld [vmem:[%s5 + $0x6b0] sm:$0xff]
      %v4916 = vld [vmem:[%s5 + $0x6b8] sm:$0xff]
      %v4917 = vld [vmem:[%s5 + $0x6c0] sm:$0xff]
      %v4918 = vld [vmem:[%s5 + $0x6c8] sm:$0xff]
      %v4919 = vld [vmem:[%s5 + $0x6d0] sm:$0xff]
      %v4920 = vld [vmem:[%s5 + $0x6d8] sm:$0xff]
      %v4921 = vld [vmem:[%s5 + $0x6e0] sm:$0xff]
      %v4922 = vld [vmem:[%s5 + $0x6e8] sm:$0xff]
      %v4923 = vld [vmem:[%s5 + $0x6f0] sm:$0xff]
      %v4924 = vld [vmem:[%s5 + $0x6f8] sm:$0xff]
      %v4925 = vld [vmem:[%s5 + $0x700] sm:$0xff]
      %v4926 = vld [vmem:[%s5 + $0x708] sm:$0xff]
      %v4927 = vld [vmem:[%s5 + $0x710] sm:$0xff]
      %v4928 = vld [vmem:[%s5 + $0x718] sm:$0xff]
      %v4929 = vld [vmem:[%s5 + $0x720] sm:$0xff]
      %v4930 = vld [vmem:[%s5 + $0x728] sm:$0xff]
      %v4931 = vld [vmem:[%s5 + $0x730] sm:$0xff]
      %v4932 = vld [vmem:[%s5 + $0x738] sm:$0xff]
      %v4933 = vld [vmem:[%s5 + $0x740] sm:$0xff]
      %v4934 = vld [vmem:[%s5 + $0x748] sm:$0xff]
      %v4935 = vld [vmem:[%s5 + $0x750] sm:$0xff]
      %v4936 = vld [vmem:[%s5 + $0x758] sm:$0xff]
      %v4937 = vld [vmem:[%s5 + $0x760] sm:$0xff]
      %v4938 = vld [vmem:[%s5 + $0x768] sm:$0xff]
      %v4939 = vld [vmem:[%s5 + $0x770] sm:$0xff]
      %v4940 = vld [vmem:[%s5 + $0x778] sm:$0xff]
      %v4941 = vld [vmem:[%s5 + $0x780] sm:$0xff]
      %v4942 = vld [vmem:[%s5 + $0x788] sm:$0xff]
      %v4943 = vld [vmem:[%s5 + $0x790] sm:$0xff]
      %v4944 = vld [vmem:[%s5 + $0x798] sm:$0xff]
      %v4945 = vld [vmem:[%s5 + $0x7a0] sm:$0xff]
      %v4946 = vld [vmem:[%s5 + $0x7a8] sm:$0xff]
      %v4947 = vld [vmem:[%s5 + $0x7b0] sm:$0xff]
      %v4948 = vld [vmem:[%s5 + $0x7b8] sm:$0xff]
      %v4949 = vld [vmem:[%s5 + $0x7c0] sm:$0xff]
      %v4950 = vld [vmem:[%s5 + $0x7c8] sm:$0xff]
      %v4951 = vld [vmem:[%s5 + $0x7d0] sm:$0xff]
      %v4952 = vld [vmem:[%s5 + $0x7d8] sm:$0xff]
      %v4953 = vld [vmem:[%s5 + $0x7e0] sm:$0xff]
      %v4954 = vld [vmem:[%s5 + $0x7e8] sm:$0xff]
      %v4955 = vld [vmem:[%s5 + $0x7f0] sm:$0xff]
      %v4956 = vld [vmem:[%s5 + $0x7f8] sm:$0xff]
      %v4957 = vld [vmem:[%s6] sm:$0x1]
      %v4959 = vlaneseq
      %v4960 = vshrl.u32 %v4959, 7
      %v4961 = vsub.s32 0, %v4960
      %v4962 = vrot.slane %v4957, %v4961
      %4964 = vmatprep.subr.mxu0 0.0
      %4965 = vmatpush1.msra.mxu0 %v4701
      %4966 = vmatprep.subr.mxu0 0.0
      %4967 = vmatpush1.msra.mxu0 %v4702
      %4968 = vmatprep.subr.mxu0 0.0
      %4969 = vmatpush1.msra.mxu0 %v4703
      %4970 = vmatprep.subr.mxu0 0.0
      %4971 = vmatpush1.msra.mxu0 %v4704
      %4972 = vmatprep.subr.mxu0 0.0
      %4973 = vmatpush1.msra.mxu0 %v4705
      %4974 = vmatprep.subr.mxu0 0.0
      %4975 = vmatpush1.msra.mxu0 %v4706
      %4976 = vmatprep.subr.mxu0 0.0
      %4977 = vmatpush1.msra.mxu0 %v4707
      %4978 = vmatprep.subr.mxu0 0.0
      %4979 = vmatpush1.msra.mxu0 %v4708
      %4980 = vmatprep.subr.mxu0 0.0
      %4981 = vmatpush1.msra.mxu0 %v4709
      %4982 = vmatprep.subr.mxu0 0.0
      %4983 = vmatpush1.msra.mxu0 %v4710
      %4984 = vmatprep.subr.mxu0 0.0
      %4985 = vmatpush1.msra.mxu0 %v4711
      %4986 = vmatprep.subr.mxu0 0.0
      %4987 = vmatpush1.msra.mxu0 %v4712
      %4988 = vmatprep.subr.mxu0 0.0
      %4989 = vmatpush1.msra.mxu0 %v4713
      %4990 = vmatprep.subr.mxu0 0.0
      %4991 = vmatpush1.msra.mxu0 %v4714
      %4992 = vmatprep.subr.mxu0 0.0
      %4993 = vmatpush1.msra.mxu0 %v4715
      %4994 = vmatprep.subr.mxu0 0.0
      %4995 = vmatpush1.msra.mxu0 %v4716
      %4996 = vmatprep.subr.mxu0 0.0
      %4997 = vmatpush1.msra.mxu0 %v4717
      %4998 = vmatprep.subr.mxu0 0.0
      %4999 = vmatpush1.msra.mxu0 %v4718
      %5000 = vmatprep.subr.mxu0 0.0
      %5001 = vmatpush1.msra.mxu0 %v4719
      %5002 = vmatprep.subr.mxu0 0.0
      %5003 = vmatpush1.msra.mxu0 %v4720
      %5004 = vmatprep.subr.mxu0 0.0
      %5005 = vmatpush1.msra.mxu0 %v4721
      %5006 = vmatprep.subr.mxu0 0.0
      %5007 = vmatpush1.msra.mxu0 %v4722
      %5008 = vmatprep.subr.mxu0 0.0
      %5009 = vmatpush1.msra.mxu0 %v4723
      %5010 = vmatprep.subr.mxu0 0.0
      %5011 = vmatpush1.msra.mxu0 %v4724
      %5012 = vmatprep.subr.mxu0 0.0
      %5013 = vmatpush1.msra.mxu0 %v4725
      %5014 = vmatprep.subr.mxu0 0.0
      %5015 = vmatpush1.msra.mxu0 %v4726
      %5016 = vmatprep.subr.mxu0 0.0
      %5017 = vmatpush1.msra.mxu0 %v4727
      %5018 = vmatprep.subr.mxu0 0.0
      %5019 = vmatpush1.msra.mxu0 %v4728
      %5020 = vmatprep.subr.mxu0 0.0
      %5021 = vmatpush1.msra.mxu0 %v4729
      %5022 = vmatprep.subr.mxu0 0.0
      %5023 = vmatpush1.msra.mxu0 %v4730
      %5024 = vmatprep.subr.mxu0 0.0
      %5025 = vmatpush1.msra.mxu0 %v4731
      %5026 = vmatprep.subr.mxu0 0.0
      %5027 = vmatpush1.msra.mxu0 %v4732
      %5028 = vmatprep.mubr.f32.mxu0 %v4644
      %5029 = vmatmul.mubr.f32.gmra.mrb[0].mxu0 %v4640
      %v5030 = vpop.f32.mrb[0].mxu0
      %v5031 = vadd.f32 %v4962, %v5030
      %v5032 = vpop.f32.mrb[0].mxu0
      %5033 = vdwg.mxu0
      %5034 = vmatprep.subr.mxu0 0.0
      %5035 = vmatpush1.msra.mxu0 %v4733
      %5036 = vmatprep.subr.mxu0 0.0
      %5037 = vmatpush1.msra.mxu0 %v4734
      %5038 = vmatprep.subr.mxu0 0.0
      %5039 = vmatpush1.msra.mxu0 %v4735
      %5040 = vmatprep.subr.mxu0 0.0
      %5041 = vmatpush1.msra.mxu0 %v4736
      %5042 = vmatprep.subr.mxu0 0.0
      %5043 = vmatpush1.msra.mxu0 %v4737
      %5044 = vmatprep.subr.mxu0 0.0
      %5045 = vmatpush1.msra.mxu0 %v4738
      %5046 = vmatprep.subr.mxu0 0.0
      %5047 = vmatpush1.msra.mxu0 %v4739
      %5048 = vmatprep.subr.mxu0 0.0
      %5049 = vmatpush1.msra.mxu0 %v4740
      %5050 = vmatprep.subr.mxu0 0.0
      %5051 = vmatpush1.msra.mxu0 %v4741
      %5052 = vmatprep.subr.mxu0 0.0
      %5053 = vmatpush1.msra.mxu0 %v4742
      %5054 = vmatprep.subr.mxu0 0.0
      %5055 = vmatpush1.msra.mxu0 %v4743
      %5056 = vmatprep.subr.mxu0 0.0
      %5057 = vmatpush1.msra.mxu0 %v4744
      %5058 = vmatprep.subr.mxu0 0.0
      %5059 = vmatpush1.msra.mxu0 %v4745
      %5060 = vmatprep.subr.mxu0 0.0
      %5061 = vmatpush1.msra.mxu0 %v4746
      %5062 = vmatprep.subr.mxu0 0.0
      %5063 = vmatpush1.msra.mxu0 %v4747
      %5064 = vmatprep.subr.mxu0 0.0
      %5065 = vmatpush1.msra.mxu0 %v4748
      %5066 = vmatprep.subr.mxu0 0.0
      %5067 = vmatpush1.msra.mxu0 %v4749
      %5068 = vmatprep.subr.mxu0 0.0
      %5069 = vmatpush1.msra.mxu0 %v4750
      %5070 = vmatprep.subr.mxu0 0.0
      %5071 = vmatpush1.msra.mxu0 %v4751
      %5072 = vmatprep.subr.mxu0 0.0
      %5073 = vmatpush1.msra.mxu0 %v4752
      %5074 = vmatprep.subr.mxu0 0.0
      %5075 = vmatpush1.msra.mxu0 %v4753
      %5076 = vmatprep.subr.mxu0 0.0
      %5077 = vmatpush1.msra.mxu0 %v4754
      %5078 = vmatprep.subr.mxu0 0.0
      %5079 = vmatpush1.msra.mxu0 %v4755
      %5080 = vmatprep.subr.mxu0 0.0
      %5081 = vmatpush1.msra.mxu0 %v4756
      %5082 = vmatprep.subr.mxu0 0.0
      %5083 = vmatpush1.msra.mxu0 %v4757
      %5084 = vmatprep.subr.mxu0 0.0
      %5085 = vmatpush1.msra.mxu0 %v4758
      %5086 = vmatprep.subr.mxu0 0.0
      %5087 = vmatpush1.msra.mxu0 %v4759
      %5088 = vmatprep.subr.mxu0 0.0
      %5089 = vmatpush1.msra.mxu0 %v4760
      %5090 = vmatprep.subr.mxu0 0.0
      %5091 = vmatpush1.msra.mxu0 %v4761
      %5092 = vmatprep.subr.mxu0 0.0
      %5093 = vmatpush1.msra.mxu0 %v4762
      %5094 = vmatprep.subr.mxu0 0.0
      %5095 = vmatpush1.msra.mxu0 %v4763
      %5096 = vmatprep.subr.mxu0 0.0
      %5097 = vmatpush1.msra.mxu0 %v4764
      %5098 = vmatprep.mubr.f32.mxu0 %v4652
      %5099 = vmatmul.mubr.f32.gmra.mrb[0].mxu0 %v4648
      %v5100 = vpop.f32.mrb[0].mxu0
      %v5101 = vadd.f32 %v5031, %v5100
      %v5102 = vpop.f32.mrb[0].mxu0
      %5103 = vdwg.mxu0
      %5104 = vmatprep.subr.mxu0 0.0
      %5105 = vmatpush1.msra.mxu0 %v4765
      %5106 = vmatprep.subr.mxu0 0.0
      %5107 = vmatpush1.msra.mxu0 %v4766
      %5108 = vmatprep.subr.mxu0 0.0
      %5109 = vmatpush1.msra.mxu0 %v4767
      %5110 = vmatprep.subr.mxu0 0.0
      %5111 = vmatpush1.msra.mxu0 %v4768
      %5112 = vmatprep.subr.mxu0 0.0
      %5113 = vmatpush1.msra.mxu0 %v4769
      %5114 = vmatprep.subr.mxu0 0.0
      %5115 = vmatpush1.msra.mxu0 %v4770
      %5116 = vmatprep.subr.mxu0 0.0
      %5117 = vmatpush1.msra.mxu0 %v4771
      %5118 = vmatprep.subr.mxu0 0.0
      %5119 = vmatpush1.msra.mxu0 %v4772
      %5120 = vmatprep.subr.mxu0 0.0
      %5121 = vmatpush1.msra.mxu0 %v4773
      %5122 = vmatprep.subr.mxu0 0.0
      %5123 = vmatpush1.msra.mxu0 %v4774
      %5124 = vmatprep.subr.mxu0 0.0
      %5125 = vmatpush1.msra.mxu0 %v4775
      %5126 = vmatprep.subr.mxu0 0.0
      %5127 = vmatpush1.msra.mxu0 %v4776
      %5128 = vmatprep.subr.mxu0 0.0
      %5129 = vmatpush1.msra.mxu0 %v4777
      %5130 = vmatprep.subr.mxu0 0.0
      %5131 = vmatpush1.msra.mxu0 %v4778
      %5132 = vmatprep.subr.mxu0 0.0
      %5133 = vmatpush1.msra.mxu0 %v4779
      %5134 = vmatprep.subr.mxu0 0.0
      %5135 = vmatpush1.msra.mxu0 %v4780
      %5136 = vmatprep.subr.mxu0 0.0
      %5137 = vmatpush1.msra.mxu0 %v4781
      %5138 = vmatprep.subr.mxu0 0.0
      %5139 = vmatpush1.msra.mxu0 %v4782
      %5140 = vmatprep.subr.mxu0 0.0
      %5141 = vmatpush1.msra.mxu0 %v4783
      %5142 = vmatprep.subr.mxu0 0.0
      %5143 = vmatpush1.msra.mxu0 %v4784
      %5144 = vmatprep.subr.mxu0 0.0
      %5145 = vmatpush1.msra.mxu0 %v4785
      %5146 = vmatprep.subr.mxu0 0.0
      %5147 = vmatpush1.msra.mxu0 %v4786
      %5148 = vmatprep.subr.mxu0 0.0
      %5149 = vmatpush1.msra.mxu0 %v4787
      %5150 = vmatprep.subr.mxu0 0.0
      %5151 = vmatpush1.msra.mxu0 %v4788
      %5152 = vmatprep.subr.mxu0 0.0
      %5153 = vmatpush1.msra.mxu0 %v4789
      %5154 = vmatprep.subr.mxu0 0.0
      %5155 = vmatpush1.msra.mxu0 %v4790
      %5156 = vmatprep.subr.mxu0 0.0
      %5157 = vmatpush1.msra.mxu0 %v4791
      %5158 = vmatprep.subr.mxu0 0.0
      %5159 = vmatpush1.msra.mxu0 %v4792
      %5160 = vmatprep.subr.mxu0 0.0
      %5161 = vmatpush1.msra.mxu0 %v4793
      %5162 = vmatprep.subr.mxu0 0.0
      %5163 = vmatpush1.msra.mxu0 %v4794
      %5164 = vmatprep.subr.mxu0 0.0
      %5165 = vmatpush1.msra.mxu0 %v4795
      %5166 = vmatprep.subr.mxu0 0.0
      %5167 = vmatpush1.msra.mxu0 %v4796
      %5168 = vmatprep.mubr.f32.mxu0 %v4660
      %5169 = vmatmul.mubr.f32.gmra.mrb[0].mxu0 %v4656
      %v5170 = vpop.f32.mrb[0].mxu0
      %v5171 = vadd.f32 %v5101, %v5170
      %v5172 = vpop.f32.mrb[0].mxu0
      %5173 = vdwg.mxu0
      %5174 = vmatprep.subr.mxu0 0.0
      %5175 = vmatpush1.msra.mxu0 %v4797
      %5176 = vmatprep.subr.mxu0 0.0
      %5177 = vmatpush1.msra.mxu0 %v4798
      %5178 = vmatprep.subr.mxu0 0.0
      %5179 = vmatpush1.msra.mxu0 %v4799
      %5180 = vmatprep.subr.mxu0 0.0
      %5181 = vmatpush1.msra.mxu0 %v4800
      %5182 = vmatprep.subr.mxu0 0.0
      %5183 = vmatpush1.msra.mxu0 %v4801
      %5184 = vmatprep.subr.mxu0 0.0
      %5185 = vmatpush1.msra.mxu0 %v4802
      %5186 = vmatprep.subr.mxu0 0.0
      %5187 = vmatpush1.msra.mxu0 %v4803
      %5188 = vmatprep.subr.mxu0 0.0
      %5189 = vmatpush1.msra.mxu0 %v4804
      %5190 = vmatprep.subr.mxu0 0.0
      %5191 = vmatpush1.msra.mxu0 %v4805
      %5192 = vmatprep.subr.mxu0 0.0
      %5193 = vmatpush1.msra.mxu0 %v4806
      %5194 = vmatprep.subr.mxu0 0.0
      %5195 = vmatpush1.msra.mxu0 %v4807
      %5196 = vmatprep.subr.mxu0 0.0
      %5197 = vmatpush1.msra.mxu0 %v4808
      %5198 = vmatprep.subr.mxu0 0.0
      %5199 = vmatpush1.msra.mxu0 %v4809
      %5200 = vmatprep.subr.mxu0 0.0
      %5201 = vmatpush1.msra.mxu0 %v4810
      %5202 = vmatprep.subr.mxu0 0.0
      %5203 = vmatpush1.msra.mxu0 %v4811
      %5204 = vmatprep.subr.mxu0 0.0
      %5205 = vmatpush1.msra.mxu0 %v4812
      %5206 = vmatprep.subr.mxu0 0.0
      %5207 = vmatpush1.msra.mxu0 %v4813
      %5208 = vmatprep.subr.mxu0 0.0
      %5209 = vmatpush1.msra.mxu0 %v4814
      %5210 = vmatprep.subr.mxu0 0.0
      %5211 = vmatpush1.msra.mxu0 %v4815
      %5212 = vmatprep.subr.mxu0 0.0
      %5213 = vmatpush1.msra.mxu0 %v4816
      %5214 = vmatprep.subr.mxu0 0.0
      %5215 = vmatpush1.msra.mxu0 %v4817
      %5216 = vmatprep.subr.mxu0 0.0
      %5217 = vmatpush1.msra.mxu0 %v4818
      %5218 = vmatprep.subr.mxu0 0.0
      %5219 = vmatpush1.msra.mxu0 %v4819
      %5220 = vmatprep.subr.mxu0 0.0
      %5221 = vmatpush1.msra.mxu0 %v4820
      %5222 = vmatprep.subr.mxu0 0.0
      %5223 = vmatpush1.msra.mxu0 %v4821
      %5224 = vmatprep.subr.mxu0 0.0
      %5225 = vmatpush1.msra.mxu0 %v4822
      %5226 = vmatprep.subr.mxu0 0.0
      %5227 = vmatpush1.msra.mxu0 %v4823
      %5228 = vmatprep.subr.mxu0 0.0
      %5229 = vmatpush1.msra.mxu0 %v4824
      %5230 = vmatprep.subr.mxu0 0.0
      %5231 = vmatpush1.msra.mxu0 %v4825
      %5232 = vmatprep.subr.mxu0 0.0
      %5233 = vmatpush1.msra.mxu0 %v4826
      %5234 = vmatprep.subr.mxu0 0.0
      %5235 = vmatpush1.msra.mxu0 %v4827
      %5236 = vmatprep.subr.mxu0 0.0
      %5237 = vmatpush1.msra.mxu0 %v4828
      %5238 = vmatprep.mubr.f32.mxu0 %v4668
      %5239 = vmatmul.mubr.f32.gmra.mrb[0].mxu0 %v4664
      %v5240 = vpop.f32.mrb[0].mxu0
      %v5241 = vadd.f32 %v5171, %v5240
      %v5242 = vpop.f32.mrb[0].mxu0
      %5243 = vdwg.mxu0
      %5244 = vmatprep.subr.mxu0 0.0
      %5245 = vmatpush1.msra.mxu0 %v4829
      %5246 = vmatprep.subr.mxu0 0.0
      %5247 = vmatpush1.msra.mxu0 %v4830
      %5248 = vmatprep.subr.mxu0 0.0
      %5249 = vmatpush1.msra.mxu0 %v4831
      %5250 = vmatprep.subr.mxu0 0.0
      %5251 = vmatpush1.msra.mxu0 %v4832
      %5252 = vmatprep.subr.mxu0 0.0
      %5253 = vmatpush1.msra.mxu0 %v4833
      %5254 = vmatprep.subr.mxu0 0.0
      %5255 = vmatpush1.msra.mxu0 %v4834
      %5256 = vmatprep.subr.mxu0 0.0
      %5257 = vmatpush1.msra.mxu0 %v4835
      %5258 = vmatprep.subr.mxu0 0.0
      %5259 = vmatpush1.msra.mxu0 %v4836
      %5260 = vmatprep.subr.mxu0 0.0
      %5261 = vmatpush1.msra.mxu0 %v4837
      %5262 = vmatprep.subr.mxu0 0.0
      %5263 = vmatpush1.msra.mxu0 %v4838
      %5264 = vmatprep.subr.mxu0 0.0
      %5265 = vmatpush1.msra.mxu0 %v4839
      %5266 = vmatprep.subr.mxu0 0.0
      %5267 = vmatpush1.msra.mxu0 %v4840
      %5268 = vmatprep.subr.mxu0 0.0
      %5269 = vmatpush1.msra.mxu0 %v4841
      %5270 = vmatprep.subr.mxu0 0.0
      %5271 = vmatpush1.msra.mxu0 %v4842
      %5272 = vmatprep.subr.mxu0 0.0
      %5273 = vmatpush1.msra.mxu0 %v4843
      %5274 = vmatprep.subr.mxu0 0.0
      %5275 = vmatpush1.msra.mxu0 %v4844
      %5276 = vmatprep.subr.mxu0 0.0
      %5277 = vmatpush1.msra.mxu0 %v4845
      %5278 = vmatprep.subr.mxu0 0.0
      %5279 = vmatpush1.msra.mxu0 %v4846
      %5280 = vmatprep.subr.mxu0 0.0
      %5281 = vmatpush1.msra.mxu0 %v4847
      %5282 = vmatprep.subr.mxu0 0.0
      %5283 = vmatpush1.msra.mxu0 %v4848
      %5284 = vmatprep.subr.mxu0 0.0
      %5285 = vmatpush1.msra.mxu0 %v4849
      %5286 = vmatprep.subr.mxu0 0.0
      %5287 = vmatpush1.msra.mxu0 %v4850
      %5288 = vmatprep.subr.mxu0 0.0
      %5289 = vmatpush1.msra.mxu0 %v4851
      %5290 = vmatprep.subr.mxu0 0.0
      %5291 = vmatpush1.msra.mxu0 %v4852
      %5292 = vmatprep.subr.mxu0 0.0
      %5293 = vmatpush1.msra.mxu0 %v4853
      %5294 = vmatprep.subr.mxu0 0.0
      %5295 = vmatpush1.msra.mxu0 %v4854
      %5296 = vmatprep.subr.mxu0 0.0
      %5297 = vmatpush1.msra.mxu0 %v4855
      %5298 = vmatprep.subr.mxu0 0.0
      %5299 = vmatpush1.msra.mxu0 %v4856
      %5300 = vmatprep.subr.mxu0 0.0
      %5301 = vmatpush1.msra.mxu0 %v4857
      %5302 = vmatprep.subr.mxu0 0.0
      %5303 = vmatpush1.msra.mxu0 %v4858
      %5304 = vmatprep.subr.mxu0 0.0
      %5305 = vmatpush1.msra.mxu0 %v4859
      %5306 = vmatprep.subr.mxu0 0.0
      %5307 = vmatpush1.msra.mxu0 %v4860
      %5308 = vmatprep.mubr.f32.mxu0 %v4676
      %5309 = vmatmul.mubr.f32.gmra.mrb[0].mxu0 %v4672
      %v5310 = vpop.f32.mrb[0].mxu0
      %v5311 = vadd.f32 %v5241, %v5310
      %v5312 = vpop.f32.mrb[0].mxu0
      %5313 = vdwg.mxu0
      %5314 = vmatprep.subr.mxu0 0.0
      %5315 = vmatpush1.msra.mxu0 %v4861
      %5316 = vmatprep.subr.mxu0 0.0
      %5317 = vmatpush1.msra.mxu0 %v4862
      %5318 = vmatprep.subr.mxu0 0.0
      %5319 = vmatpush1.msra.mxu0 %v4863
      %5320 = vmatprep.subr.mxu0 0.0
      %5321 = vmatpush1.msra.mxu0 %v4864
      %5322 = vmatprep.subr.mxu0 0.0
      %5323 = vmatpush1.msra.mxu0 %v4865
      %5324 = vmatprep.subr.mxu0 0.0
      %5325 = vmatpush1.msra.mxu0 %v4866
      %5326 = vmatprep.subr.mxu0 0.0
      %5327 = vmatpush1.msra.mxu0 %v4867
      %5328 = vmatprep.subr.mxu0 0.0
      %5329 = vmatpush1.msra.mxu0 %v4868
      %5330 = vmatprep.subr.mxu0 0.0
      %5331 = vmatpush1.msra.mxu0 %v4869
      %5332 = vmatprep.subr.mxu0 0.0
      %5333 = vmatpush1.msra.mxu0 %v4870
      %5334 = vmatprep.subr.mxu0 0.0
      %5335 = vmatpush1.msra.mxu0 %v4871
      %5336 = vmatprep.subr.mxu0 0.0
      %5337 = vmatpush1.msra.mxu0 %v4872
      %5338 = vmatprep.subr.mxu0 0.0
      %5339 = vmatpush1.msra.mxu0 %v4873
      %5340 = vmatprep.subr.mxu0 0.0
      %5341 = vmatpush1.msra.mxu0 %v4874
      %5342 = vmatprep.subr.mxu0 0.0
      %5343 = vmatpush1.msra.mxu0 %v4875
      %5344 = vmatprep.subr.mxu0 0.0
      %5345 = vmatpush1.msra.mxu0 %v4876
      %5346 = vmatprep.subr.mxu0 0.0
      %5347 = vmatpush1.msra.mxu0 %v4877
      %5348 = vmatprep.subr.mxu0 0.0
      %5349 = vmatpush1.msra.mxu0 %v4878
      %5350 = vmatprep.subr.mxu0 0.0
      %5351 = vmatpush1.msra.mxu0 %v4879
      %5352 = vmatprep.subr.mxu0 0.0
      %5353 = vmatpush1.msra.mxu0 %v4880
      %5354 = vmatprep.subr.mxu0 0.0
      %5355 = vmatpush1.msra.mxu0 %v4881
      %5356 = vmatprep.subr.mxu0 0.0
      %5357 = vmatpush1.msra.mxu0 %v4882
      %5358 = vmatprep.subr.mxu0 0.0
      %5359 = vmatpush1.msra.mxu0 %v4883
      %5360 = vmatprep.subr.mxu0 0.0
      %5361 = vmatpush1.msra.mxu0 %v4884
      %5362 = vmatprep.subr.mxu0 0.0
      %5363 = vmatpush1.msra.mxu0 %v4885
      %5364 = vmatprep.subr.mxu0 0.0
      %5365 = vmatpush1.msra.mxu0 %v4886
      %5366 = vmatprep.subr.mxu0 0.0
      %5367 = vmatpush1.msra.mxu0 %v4887
      %5368 = vmatprep.subr.mxu0 0.0
      %5369 = vmatpush1.msra.mxu0 %v4888
      %5370 = vmatprep.subr.mxu0 0.0
      %5371 = vmatpush1.msra.mxu0 %v4889
      %5372 = vmatprep.subr.mxu0 0.0
      %5373 = vmatpush1.msra.mxu0 %v4890
      %5374 = vmatprep.subr.mxu0 0.0
      %5375 = vmatpush1.msra.mxu0 %v4891
      %5376 = vmatprep.subr.mxu0 0.0
      %5377 = vmatpush1.msra.mxu0 %v4892
      %5378 = vmatprep.mubr.f32.mxu0 %v4684
      %5379 = vmatmul.mubr.f32.gmra.mrb[0].mxu0 %v4680
      %v5380 = vpop.f32.mrb[0].mxu0
      %v5381 = vadd.f32 %v5311, %v5380
      %v5382 = vpop.f32.mrb[0].mxu0
      %5383 = vdwg.mxu0
      %5384 = vmatprep.subr.mxu0 0.0
      %5385 = vmatpush1.msra.mxu0 %v4893
      %5386 = vmatprep.subr.mxu0 0.0
      %5387 = vmatpush1.msra.mxu0 %v4894
      %5388 = vmatprep.subr.mxu0 0.0
      %5389 = vmatpush1.msra.mxu0 %v4895
      %5390 = vmatprep.subr.mxu0 0.0
      %5391 = vmatpush1.msra.mxu0 %v4896
      %5392 = vmatprep.subr.mxu0 0.0
      %5393 = vmatpush1.msra.mxu0 %v4897
      %5394 = vmatprep.subr.mxu0 0.0
      %5395 = vmatpush1.msra.mxu0 %v4898
      %5396 = vmatprep.subr.mxu0 0.0
      %5397 = vmatpush1.msra.mxu0 %v4899
      %5398 = vmatprep.subr.mxu0 0.0
      %5399 = vmatpush1.msra.mxu0 %v4900
      %5400 = vmatprep.subr.mxu0 0.0
      %5401 = vmatpush1.msra.mxu0 %v4901
      %5402 = vmatprep.subr.mxu0 0.0
      %5403 = vmatpush1.msra.mxu0 %v4902
      %5404 = vmatprep.subr.mxu0 0.0
      %5405 = vmatpush1.msra.mxu0 %v4903
      %5406 = vmatprep.subr.mxu0 0.0
      %5407 = vmatpush1.msra.mxu0 %v4904
      %5408 = vmatprep.subr.mxu0 0.0
      %5409 = vmatpush1.msra.mxu0 %v4905
      %5410 = vmatprep.subr.mxu0 0.0
      %5411 = vmatpush1.msra.mxu0 %v4906
      %5412 = vmatprep.subr.mxu0 0.0
      %5413 = vmatpush1.msra.mxu0 %v4907
      %5414 = vmatprep.subr.mxu0 0.0
      %5415 = vmatpush1.msra.mxu0 %v4908
      %5416 = vmatprep.subr.mxu0 0.0
      %5417 = vmatpush1.msra.mxu0 %v4909
      %5418 = vmatprep.subr.mxu0 0.0
      %5419 = vmatpush1.msra.mxu0 %v4910
      %5420 = vmatprep.subr.mxu0 0.0
      %5421 = vmatpush1.msra.mxu0 %v4911
      %5422 = vmatprep.subr.mxu0 0.0
      %5423 = vmatpush1.msra.mxu0 %v4912
      %5424 = vmatprep.subr.mxu0 0.0
      %5425 = vmatpush1.msra.mxu0 %v4913
      %5426 = vmatprep.subr.mxu0 0.0
      %5427 = vmatpush1.msra.mxu0 %v4914
      %5428 = vmatprep.subr.mxu0 0.0
      %5429 = vmatpush1.msra.mxu0 %v4915
      %5430 = vmatprep.subr.mxu0 0.0
      %5431 = vmatpush1.msra.mxu0 %v4916
      %5432 = vmatprep.subr.mxu0 0.0
      %5433 = vmatpush1.msra.mxu0 %v4917
      %5434 = vmatprep.subr.mxu0 0.0
      %5435 = vmatpush1.msra.mxu0 %v4918
      %5436 = vmatprep.subr.mxu0 0.0
      %5437 = vmatpush1.msra.mxu0 %v4919
      %5438 = vmatprep.subr.mxu0 0.0
      %5439 = vmatpush1.msra.mxu0 %v4920
      %5440 = vmatprep.subr.mxu0 0.0
      %5441 = vmatpush1.msra.mxu0 %v4921
      %5442 = vmatprep.subr.mxu0 0.0
      %5443 = vmatpush1.msra.mxu0 %v4922
      %5444 = vmatprep.subr.mxu0 0.0
      %5445 = vmatpush1.msra.mxu0 %v4923
      %5446 = vmatprep.subr.mxu0 0.0
      %5447 = vmatpush1.msra.mxu0 %v4924
      %5448 = vmatprep.mubr.f32.mxu0 %v4692
      %5449 = vmatmul.mubr.f32.gmra.mrb[0].mxu0 %v4688
      %v5450 = vpop.f32.mrb[0].mxu0
      %v5451 = vadd.f32 %v5381, %v5450
      %v5452 = vpop.f32.mrb[0].mxu0
      %5453 = vdwg.mxu0
      %5454 = vmatprep.subr.mxu0 0.0
      %5455 = vmatpush1.msra.mxu0 %v4925
      %5456 = vmatprep.subr.mxu0 0.0
      %5457 = vmatpush1.msra.mxu0 %v4926
      %5458 = vmatprep.subr.mxu0 0.0
      %5459 = vmatpush1.msra.mxu0 %v4927
      %5460 = vmatprep.subr.mxu0 0.0
      %5461 = vmatpush1.msra.mxu0 %v4928
      %5462 = vmatprep.subr.mxu0 0.0
      %5463 = vmatpush1.msra.mxu0 %v4929
      %5464 = vmatprep.subr.mxu0 0.0
      %5465 = vmatpush1.msra.mxu0 %v4930
      %5466 = vmatprep.subr.mxu0 0.0
      %5467 = vmatpush1.msra.mxu0 %v4931
      %5468 = vmatprep.subr.mxu0 0.0
      %5469 = vmatpush1.msra.mxu0 %v4932
      %5470 = vmatprep.subr.mxu0 0.0
      %5471 = vmatpush1.msra.mxu0 %v4933
      %5472 = vmatprep.subr.mxu0 0.0
      %5473 = vmatpush1.msra.mxu0 %v4934
      %5474 = vmatprep.subr.mxu0 0.0
      %5475 = vmatpush1.msra.mxu0 %v4935
      %5476 = vmatprep.subr.mxu0 0.0
      %5477 = vmatpush1.msra.mxu0 %v4936
      %5478 = vmatprep.subr.mxu0 0.0
      %5479 = vmatpush1.msra.mxu0 %v4937
      %5480 = vmatprep.subr.mxu0 0.0
      %5481 = vmatpush1.msra.mxu0 %v4938
      %5482 = vmatprep.subr.mxu0 0.0
      %5483 = vmatpush1.msra.mxu0 %v4939
      %5484 = vmatprep.subr.mxu0 0.0
      %5485 = vmatpush1.msra.mxu0 %v4940
      %5486 = vmatprep.subr.mxu0 0.0
      %5487 = vmatpush1.msra.mxu0 %v4941
      %5488 = vmatprep.subr.mxu0 0.0
      %5489 = vmatpush1.msra.mxu0 %v4942
      %5490 = vmatprep.subr.mxu0 0.0
      %5491 = vmatpush1.msra.mxu0 %v4943
      %5492 = vmatprep.subr.mxu0 0.0
      %5493 = vmatpush1.msra.mxu0 %v4944
      %5494 = vmatprep.subr.mxu0 0.0
      %5495 = vmatpush1.msra.mxu0 %v4945
      %5496 = vmatprep.subr.mxu0 0.0
      %5497 = vmatpush1.msra.mxu0 %v4946
      %5498 = vmatprep.subr.mxu0 0.0
      %5499 = vmatpush1.msra.mxu0 %v4947
      %5500 = vmatprep.subr.mxu0 0.0
      %5501 = vmatpush1.msra.mxu0 %v4948
      %5502 = vmatprep.subr.mxu0 0.0
      %5503 = vmatpush1.msra.mxu0 %v4949
      %5504 = vmatprep.subr.mxu0 0.0
      %5505 = vmatpush1.msra.mxu0 %v4950
      %5506 = vmatprep.subr.mxu0 0.0
      %5507 = vmatpush1.msra.mxu0 %v4951
      %5508 = vmatprep.subr.mxu0 0.0
      %5509 = vmatpush1.msra.mxu0 %v4952
      %5510 = vmatprep.subr.mxu0 0.0
      %5511 = vmatpush1.msra.mxu0 %v4953
      %5512 = vmatprep.subr.mxu0 0.0
      %5513 = vmatpush1.msra.mxu0 %v4954
      %5514 = vmatprep.subr.mxu0 0.0
      %5515 = vmatpush1.msra.mxu0 %v4955
      %5516 = vmatprep.subr.mxu0 0.0
      %5517 = vmatpush1.msra.mxu0 %v4956
      %5518 = vmatprep.mubr.f32.mxu0 %v4700
      %5519 = vmatmul.mubr.f32.gmra.mrb[0].mxu0 %v4696
      %v5520 = vpop.f32.mrb[0].mxu0
      %v5521 = vadd.f32 %v5451, %v5520
      %v5522 = vpop.f32.mrb[0].mxu0
      %5523 = vdwg.mxu0
      %5524 = vst [vmem:[%s276] sm:$0xff] %v5521
      %p5525 = scmp.lt.s32.totalorder %s18, 1
      %s5526 = scalar_select %p5525, %s18, 1
      %s5527 = smul.addr %s5526, 8
      %s5528 = scalar_lea.vmem %s7, %s5527
      // Predicated region
      $region49: #{net_forward.1} parent=47 // pred_check
        %p5529 = pneg %p188
      $region50: #{net_forward.1} parent=47 // pred_check_branch
        %5531 = sbr.rel (%p5529) target = $region52
      $region51: #{net_forward.1} parent=47 // pred_region
        _
      $region52: #{net_forward.1} parent=47 // pred_fallthru
        _
    $region48: #{net_forward.1} parent=5 // pred_fallthru
      _
    %p5532 = scmp.le.s32.totalorder 2, %s13
    // Predicated region
    $region53: #{net_forward.1} parent=5 // pred_check
      %p5533 = pneg %p5532
    $region54: #{net_forward.1} parent=5 // pred_check_branch
      %5535 = sbr.rel (%p5533) target = $region56
    $region55: #{net_forward.1} parent=5 // pred_region
      %s5536 = ssub.s32 %s13, 2
      // Predicated region
      $region57: #{net_forward.1} parent=55 // pred_check
        %p5537 = pneg %p194
      $region58: #{net_forward.1} parent=55 // pred_check_branch
        %5539 = sbr.rel (%p5537) target = $region60
      $region59: #{net_forward.1} parent=55 // pred_region
        %p5540 = scmp.lt.s32.totalorder %s19, 1
        %s5541 = scalar_select %p5540, %s19, 1
        %s5542 = smul.addr %s5541, 8
        %s5543 = scalar_lea.vmem %s7, %s5542
      $region60: #{net_forward.1} parent=55 // pred_fallthru
        _
    $region56: #{net_forward.1} parent=5 // pred_fallthru
      _
  $region6: #{net_forward.1} parent=0 // loop_footer
    %s17 = sadd.s32 1, %s13
  $region7: #{net_forward.1} parent=0 // loop_footer_branch
    %12 = sbr.rel target = $region3
  $region8: #{net_forward.1} parent=0 // loop_exit
    _

</llo_original>
